<compile_context>
chip_gen: v7x
topology: tpu7x:2x2x1
jax: 0.10.0
libtpu: 0.0.40
codegen_flags: <defaults>
</compile_context>

<pallas_src>
import functools
import math

import jax
import jax.numpy as jnp
from jax.experimental import pallas as pl
from jax.experimental.pallas import tpu as pltpu


def _round_up(x, m):
    return (x + m - 1) // m * m


def _sigmoid(x):
    # Exact sigmoid via tanh: goes to the (otherwise idle) EUP slot and is
    # numerically safe for large |x|.
    return 0.5 * jnp.tanh(0.5 * x) + 0.5


def _gru_model_kernel(*refs, n_layers, seq, bp, Hp):
    """Fused GRU (n_layers, seq steps) + fc + ReLU.

    refs layout:
      x_ref                                      (seq*bp, in_p)        bf16
      per layer l: w_ih, w_hh, b_ih, b_hh        ((in_p|Hp,3Hp) bf16, (Hp,3Hp) bf16,
                                                  (1,3Hp) f32, (1,3Hp) f32)
      w_fc, b_fc                                 ((Hp,out_p) bf16, (1,out_p) f32)
      o_ref                                      (bp, out_p) f32
      xg_buf                                     (seq*bp, 3*Hp) f32   scratch
      h_buf                                      (seq*bp, Hp)   f32   scratch
    """
    idx = 0
    x_ref = refs[idx]; idx += 1
    layer_refs = []
    for _ in range(n_layers):
        layer_refs.append(refs[idx:idx + 4])
        idx += 4
    w_fc_ref = refs[idx]; idx += 1
    b_fc_ref = refs[idx]; idx += 1
    o_ref = refs[idx]; idx += 1
    xg_buf = refs[idx]; idx += 1
    h_buf = refs[idx]; idx += 1

    h = None
    for l, (w_ih_ref, w_hh_ref, b_ih_ref, b_hh_ref) in enumerate(layer_refs):
        # One wide MXU matmul: input projection for ALL timesteps of layer l.
        if l == 0:
            lhs = x_ref[...]                               # already bf16
        else:
            lhs = h_buf[...].astype(jnp.bfloat16)          # staged layer l-1 out
        xg_buf[...] = (jnp.dot(lhs, w_ih_ref[...],
                               preferred_element_type=jnp.float32)
                       + b_ih_ref[...])

        h = jnp.zeros((bp, Hp), jnp.float32)
        for t in range(seq):                               # static unroll (seq small)
            xg = xg_buf[t * bp:(t + 1) * bp, :]            # tile-aligned static slice
            hg = (jnp.dot(h.astype(jnp.bfloat16), w_hh_ref[...],
                          preferred_element_type=jnp.float32)
                  + b_hh_ref[...])
            # PyTorch GRU gate order r, z, n; each gate on its own 128-lane slab.
            r = _sigmoid(xg[:, 0:Hp] + hg[:, 0:Hp])
            z = _sigmoid(xg[:, Hp:2 * Hp] + hg[:, Hp:2 * Hp])
            n = jnp.tanh(xg[:, 2 * Hp:3 * Hp] + r * hg[:, 2 * Hp:3 * Hp])
            h = (1.0 - z) * n + z * h
            if l < n_layers - 1:
                # Stage layer output for the next layer's wide projection.
                h_buf[t * bp:(t + 1) * bp, :] = h
        # nn.GRU inter-layer dropout is identity at inference.

    # out[:, -1, :] -> fc -> ReLU (final nn.Dropout is identity at inference).
    y = (jnp.dot(h.astype(jnp.bfloat16), w_fc_ref[...],
                 preferred_element_type=jnp.float32) + b_fc_ref[...])
    o_ref[...] = jnp.maximum(y, 0.0).astype(o_ref.dtype)


# -----------------------------------------------------------------------------
# Weight padding helpers: gate g of a (in, 3*Hn) GRU weight is placed on the
# 128-lane slab [g*Hp, g*Hp + Hn); remaining rows/lanes are zero.
# -----------------------------------------------------------------------------
def _pad_gate_weight(w, in_dim_p, Hn, Hp):
    in_dim = w.shape[0]
    out = jnp.zeros((in_dim_p, 3 * Hp), jnp.float32)
    for g in range(3):
        out = out.at[:in_dim, g * Hp:g * Hp + Hn].set(w[:, g * Hn:(g + 1) * Hn])
    return out


def _pad_gate_bias(b, Hn, Hp):
    out = jnp.zeros((1, 3 * Hp), jnp.float32)
    for g in range(3):
        out = out.at[0, g * Hp:g * Hp + Hn].set(b[g * Hn:(g + 1) * Hn])
    return out


def gru_model_forward(x, params, *, hidden_dim, n_layers):
    """x: (b, H, W, R, seq) float32 -> (b, H, W, R) float32."""
    b, H, W, R, seq = x.shape
    input_size = H * W * R            # equals 2*H*W (R == 2), as in the module
    Hn = hidden_dim
    Hp = _round_up(max(Hn, 1), 128)   # 128-lane gate slabs
    in_p = _round_up(input_size, 128)
    out_p = in_p
    bp = _round_up(max(b, 1), 8)      # sublane-aligned batch rows

    # Single transpose (torch: permute(0,4,1,2,3).reshape(b,seq,-1), then
    # time-major): (b,H,W,R,seq) -> (seq, b, H*W*R); zero-pad batch rows and
    # feature lanes; flatten to (seq*bp, in_p) bf16 for the MXU.
    xt = jnp.transpose(x, (4, 0, 1, 2, 3)).reshape(seq, b, input_size)
    xt = jnp.pad(xt, ((0, 0), (0, bp - b), (0, in_p - input_size)))
    x_flat = xt.reshape(seq * bp, in_p).astype(jnp.bfloat16)

    flat_args = [x_flat]
    for l in range(n_layers):
        lp = params["gru"][l]
        in_dim_p = in_p if l == 0 else Hp
        flat_args += [
            _pad_gate_weight(lp["w_ih"], in_dim_p, Hn, Hp).astype(jnp.bfloat16),
            _pad_gate_weight(lp["w_hh"], Hp, Hn, Hp).astype(jnp.bfloat16),
            _pad_gate_bias(lp["b_ih"], Hn, Hp),
            _pad_gate_bias(lp["b_hh"], Hn, Hp),
        ]
    w_fc = jnp.zeros((Hp, out_p), jnp.float32)
    w_fc = w_fc.at[:Hn, :input_size].set(params["fc"]["w"]).astype(jnp.bfloat16)
    b_fc = jnp.zeros((1, out_p), jnp.float32)
    b_fc = b_fc.at[0, :input_size].set(params["fc"]["b"])
    flat_args += [w_fc, b_fc]

    # Single fused invocation; everything (<300 KB) is VMEM-resident on all of
    # v5e/v6e/v7x, so no BlockSpec tiling / grid is needed.
    # TODO(synk): shard a batch-block grid axis across v7x's 2 TensorCores
    # (dimension_semantics=("parallel",)) once batch exceeds one sublane tile.
    out = pl.pallas_call(
        functools.partial(_gru_model_kernel, n_layers=n_layers, seq=seq,
                          bp=bp, Hp=Hp),
        out_shape=jax.ShapeDtypeStruct((bp, out_p), jnp.float32),
        in_specs=[pl.BlockSpec(memory_space=pltpu.MemorySpace.VMEM)] * len(flat_args),
        out_specs=pl.BlockSpec(memory_space=pltpu.MemorySpace.VMEM),
        scratch_shapes=[pltpu.VMEM((seq * bp, 3 * Hp), jnp.float32),   # xg_buf
                        pltpu.VMEM((seq * bp, Hp), jnp.float32)],      # h_buf
    )(*flat_args)
    # Drop padded batch rows / feature lanes, reshape like torch .view.
    return out[:b, :input_size].reshape(b, H, W, R)


# -----------------------------------------------------------------------------
# Pure-JAX reference (same bf16-MXU / f32-accumulate numerics as the kernel).
# -----------------------------------------------------------------------------
def gru_model_reference(x, params, *, hidden_dim, n_layers):
    b, H, W, R, seq = x.shape
    Hn = hidden_dim
    layer_in = jnp.transpose(x, (0, 4, 1, 2, 3)).reshape(b, seq, H * W * R)
    h = None
    for l in range(n_layers):
        lp = params["gru"][l]
        w_ih = lp["w_ih"].astype(jnp.bfloat16)
        w_hh = lp["w_hh"].astype(jnp.bfloat16)
        b_ih, b_hh = lp["b_ih"], lp["b_hh"]
        h = jnp.zeros((b, Hn), jnp.float32)
        outs = []
        for t in range(seq):
            xg = jnp.dot(layer_in[:, t, :].astype(jnp.bfloat16), w_ih,
                         preferred_element_type=jnp.float32) + b_ih
            hg = jnp.dot(h.astype(jnp.bfloat16), w_hh,
                         preferred_element_type=jnp.float32) + b_hh
            r = jax.nn.sigmoid(xg[:, :Hn] + hg[:, :Hn])
            z = jax.nn.sigmoid(xg[:, Hn:2 * Hn] + hg[:, Hn:2 * Hn])
            n = jnp.tanh(xg[:, 2 * Hn:] + r * hg[:, 2 * Hn:])
            h = (1.0 - z) * n + z * h
            outs.append(h)
        layer_in = jnp.stack(outs, axis=1)
    y = jnp.dot(h.astype(jnp.bfloat16), params["fc"]["w"].astype(jnp.bfloat16),
                preferred_element_type=jnp.float32) + params["fc"]["b"]
    return jnp.maximum(y, 0.0).reshape(b, H, W, R)


# -----------------------------------------------------------------------------
# Deterministic parameter init (matches nn.GRU / nn.Linear shapes & init range;
# weights stored transposed: (in_features, 3*hidden) / (hidden, input_size)).
# -----------------------------------------------------------------------------
def init_params(key, *, input_size, hidden_dim, n_layers):
    k = 1.0 / math.sqrt(hidden_dim)
    keys = jax.random.split(key, 4 * n_layers + 2)
    ki = 0
    gru = []
    for l in range(n_layers):
        in_dim = input_size if l == 0 else hidden_dim
        w_ih = jax.random.uniform(keys[ki], (in_dim, 3 * hidden_dim),
                                  jnp.float32, -k, k); ki += 1
        w_hh = jax.random.uniform(keys[ki], (hidden_dim, 3 * hidden_dim),
                                  jnp.float32, -k, k); ki += 1
        b_ih = jax.random.uniform(keys[ki], (3 * hidden_dim,),
                                  jnp.float32, -k, k); ki += 1
        b_hh = jax.random.uniform(keys[ki], (3 * hidden_dim,),
                                  jnp.float32, -k, k); ki += 1
        gru.append({"w_ih": w_ih, "w_hh": w_hh, "b_ih": b_ih, "b_hh": b_hh})
    w_fc = jax.random.uniform(keys[ki], (hidden_dim, input_size),
                              jnp.float32, -k, k); ki += 1
    b_fc = jax.random.uniform(keys[ki], (input_size,), jnp.float32, -k, k)
    return {"gru": gru, "fc": {"w": w_fc, "b": b_fc}}


# -----------------------------------------------------------------------------
if __name__ == "__main__":
    # Small shapes consistent with the module: R must be 2 so the flattened
    # per-timestep feature size H*W*R equals the GRU input_size = 2*H*W.
    B, Hh, Ww, R, SEQ = 2, 8, 8, 2, 8
    HIDDEN, N_LAYERS = 32, 3
    INPUT_SIZE = 2 * Hh * Ww            # = H*W*R = 128 (lane-dense)

    key = jax.random.PRNGKey(0)
    kx, kp = jax.random.split(key)
    x = jax.random.normal(kx, (B, Hh, Ww, R, SEQ), jnp.float32)
    params = init_params(kp, input_size=INPUT_SIZE, hidden_dim=HIDDEN,
                         n_layers=N_LAYERS)

    fwd = jax.jit(functools.partial(gru_model_forward,
                                    hidden_dim=HIDDEN, n_layers=N_LAYERS))
    out = fwd(x, params)
    jax.block_until_ready(out)
    assert out.shape == (B, Hh, Ww, R) and out.dtype == jnp.float32
    assert bool(jnp.all(jnp.isfinite(out)))

    ref = gru_model_reference(x, params, hidden_dim=HIDDEN, n_layers=N_LAYERS)
    assert bool(jnp.allclose(out, ref, atol=3e-2, rtol=3e-2)), (
        "max abs diff = %f" % float(jnp.max(jnp.abs(out - ref))))
    print("KERNEL_OK")
</pallas_src>

<mosaic_0001>
module attributes {stable_mosaic.version = 11 : i64} {
  func.func @_gru_model_kernel(%arg0: memref<64x128xbf16, #tpu.memory_space<vmem>>, %arg1: memref<128x384xbf16, #tpu.memory_space<vmem>>, %arg2: memref<128x384xbf16, #tpu.memory_space<vmem>>, %arg3: memref<1x384xf32, #tpu.memory_space<vmem>>, %arg4: memref<1x384xf32, #tpu.memory_space<vmem>>, %arg5: memref<128x384xbf16, #tpu.memory_space<vmem>>, %arg6: memref<128x384xbf16, #tpu.memory_space<vmem>>, %arg7: memref<1x384xf32, #tpu.memory_space<vmem>>, %arg8: memref<1x384xf32, #tpu.memory_space<vmem>>, %arg9: memref<128x384xbf16, #tpu.memory_space<vmem>>, %arg10: memref<128x384xbf16, #tpu.memory_space<vmem>>, %arg11: memref<1x384xf32, #tpu.memory_space<vmem>>, %arg12: memref<1x384xf32, #tpu.memory_space<vmem>>, %arg13: memref<128x128xbf16, #tpu.memory_space<vmem>>, %arg14: memref<1x128xf32, #tpu.memory_space<vmem>>, %arg15: memref<8x128xf32, #tpu.memory_space<vmem>>, %arg16: memref<64x384xf32, #tpu.memory_space<vmem>>, %arg17: memref<64x128xf32, #tpu.memory_space<vmem>>) attributes {dimension_semantics = [], scalar_prefetch = 0 : i64, scratch_operands = 2 : i64, tpu.core_type = #tpu.core_type<tc>} {
    %c0 = arith.constant 0 : index
    %c0_0 = arith.constant 0 : index
    %0 = vector.load %arg0[%c0, %c0_0] : memref<64x128xbf16, #tpu.memory_space<vmem>>, vector<64x128xbf16>
    %c0_1 = arith.constant 0 : index
    %c0_2 = arith.constant 0 : index
    %1 = vector.load %arg1[%c0_1, %c0_2] : memref<128x384xbf16, #tpu.memory_space<vmem>>, vector<128x384xbf16>
    %cst = arith.constant dense<0.000000e+00> : vector<64x384xf32>
    %2 = tpu.matmul %0, %1, %cst {dimension_numbers = #tpu.dot_dimension_numbers<[1], [0], [0], [1], [0, 0, 1, 1], [], []>} : vector<64x128xbf16>, vector<128x384xbf16>, vector<64x384xf32> -> vector<64x384xf32>
    %c0_3 = arith.constant 0 : index
    %c0_4 = arith.constant 0 : index
    %3 = vector.load %arg3[%c0_3, %c0_4] : memref<1x384xf32, #tpu.memory_space<vmem>>, vector<1x384xf32>
    %4 = vector.broadcast %3 : vector<1x384xf32> to vector<64x384xf32>
    %5 = arith.addf %2, %4 : vector<64x384xf32>
    %c0_5 = arith.constant 0 : index
    %c0_6 = arith.constant 0 : index
    %6 = vector.load %arg16[%c0_5, %c0_6] : memref<64x384xf32, #tpu.memory_space<vmem>>, vector<64x384xf32>
    tpu.vector_store %arg16[%c0_5, %c0_6], %5 {strides = array<i32>} : memref<64x384xf32, #tpu.memory_space<vmem>>, vector<64x384xf32>,
    %cst_7 = arith.constant 0.000000e+00 : f32
    %7 = vector.broadcast %cst_7 : f32 to vector<8x128xf32>
    %c0_8 = arith.constant 0 : index
    %c0_9 = arith.constant 0 : index
    %8 = vector.load %arg16[%c0_8, %c0_9] : memref<64x384xf32, #tpu.memory_space<vmem>>, vector<8x384xf32>
    %9 = arith.truncf %7 : vector<8x128xf32> to vector<8x128xbf16>
    %c0_10 = arith.constant 0 : index
    %c0_11 = arith.constant 0 : index
    %10 = vector.load %arg2[%c0_10, %c0_11] : memref<128x384xbf16, #tpu.memory_space<vmem>>, vector<128x384xbf16>
    %cst_12 = arith.constant dense<0.000000e+00> : vector<8x384xf32>
    %11 = tpu.matmul %9, %10, %cst_12 {dimension_numbers = #tpu.dot_dimension_numbers<[1], [0], [0], [1], [0, 0, 1, 1], [], []>} : vector<8x128xbf16>, vector<128x384xbf16>, vector<8x384xf32> -> vector<8x384xf32>
    %c0_13 = arith.constant 0 : index
    %c0_14 = arith.constant 0 : index
    %12 = vector.load %arg4[%c0_13, %c0_14] : memref<1x384xf32, #tpu.memory_space<vmem>>, vector<1x384xf32>
    %13 = vector.broadcast %12 : vector<1x384xf32> to vector<8x384xf32>
    %14 = arith.addf %11, %13 : vector<8x384xf32>
    %15 = vector.extract_strided_slice %8 {offsets = [0, 0], sizes = [8, 128], strides = [1, 1]} : vector<8x384xf32> to vector<8x128xf32>
    %16 = vector.extract_strided_slice %14 {offsets = [0, 0], sizes = [8, 128], strides = [1, 1]} : vector<8x384xf32> to vector<8x128xf32>
    %17 = arith.addf %15, %16 : vector<8x128xf32>
    %cst_15 = arith.constant 5.000000e-01 : f32
    %18 = vector.broadcast %cst_15 : f32 to vector<8x128xf32>
    %19 = arith.mulf %18, %17 : vector<8x128xf32>
    %20 = math.tanh %19 : vector<8x128xf32>
    %cst_16 = arith.constant 5.000000e-01 : f32
    %21 = vector.broadcast %cst_16 : f32 to vector<8x128xf32>
    %22 = arith.mulf %21, %20 : vector<8x128xf32>
    %cst_17 = arith.constant 5.000000e-01 : f32
    %23 = vector.broadcast %cst_17 : f32 to vector<8x128xf32>
    %24 = arith.addf %22, %23 : vector<8x128xf32>
    %25 = vector.extract_strided_slice %8 {offsets = [0, 128], sizes = [8, 128], strides = [1, 1]} : vector<8x384xf32> to vector<8x128xf32>
    %26 = vector.extract_strided_slice %14 {offsets = [0, 128], sizes = [8, 128], strides = [1, 1]} : vector<8x384xf32> to vector<8x128xf32>
    %27 = arith.addf %25, %26 : vector<8x128xf32>
    %cst_18 = arith.constant 5.000000e-01 : f32
    %28 = vector.broadcast %cst_18 : f32 to vector<8x128xf32>
    %29 = arith.mulf %28, %27 : vector<8x128xf32>
    %30 = math.tanh %29 : vector<8x128xf32>
    %cst_19 = arith.constant 5.000000e-01 : f32
    %31 = vector.broadcast %cst_19 : f32 to vector<8x128xf32>
    %32 = arith.mulf %31, %30 : vector<8x128xf32>
    %cst_20 = arith.constant 5.000000e-01 : f32
    %33 = vector.broadcast %cst_20 : f32 to vector<8x128xf32>
    %34 = arith.addf %32, %33 : vector<8x128xf32>
    %35 = vector.extract_strided_slice %8 {offsets = [0, 256], sizes = [8, 128], strides = [1, 1]} : vector<8x384xf32> to vector<8x128xf32>
    %36 = vector.extract_strided_slice %14 {offsets = [0, 256], sizes = [8, 128], strides = [1, 1]} : vector<8x384xf32> to vector<8x128xf32>
    %37 = arith.mulf %24, %36 : vector<8x128xf32>
    %38 = arith.addf %35, %37 : vector<8x128xf32>
    %39 = math.tanh %38 : vector<8x128xf32>
    %cst_21 = arith.constant 1.000000e+00 : f32
    %40 = vector.broadcast %cst_21 : f32 to vector<8x128xf32>
    %41 = arith.subf %40, %34 : vector<8x128xf32>
    %42 = arith.mulf %41, %39 : vector<8x128xf32>
    %43 = arith.mulf %34, %7 : vector<8x128xf32>
    %44 = arith.addf %42, %43 : vector<8x128xf32>
    %c0_22 = arith.constant 0 : index
    %c0_23 = arith.constant 0 : index
    %45 = vector.load %arg17[%c0_22, %c0_23] : memref<64x128xf32, #tpu.memory_space<vmem>>, vector<8x128xf32>
    tpu.vector_store %arg17[%c0_22, %c0_23], %44 {strides = array<i32>} : memref<64x128xf32, #tpu.memory_space<vmem>>, vector<8x128xf32>,
    %c8 = arith.constant 8 : index
    %c0_24 = arith.constant 0 : index
    %46 = vector.load %arg16[%c8, %c0_24] : memref<64x384xf32, #tpu.memory_space<vmem>>, vector<8x384xf32>
    %47 = arith.truncf %44 : vector<8x128xf32> to vector<8x128xbf16>
    %c0_25 = arith.constant 0 : index
    %c0_26 = arith.constant 0 : index
    %48 = vector.load %arg2[%c0_25, %c0_26] : memref<128x384xbf16, #tpu.memory_space<vmem>>, vector<128x384xbf16>
    %cst_27 = arith.constant dense<0.000000e+00> : vector<8x384xf32>
    %49 = tpu.matmul %47, %48, %cst_27 {dimension_numbers = #tpu.dot_dimension_numbers<[1], [0], [0], [1], [0, 0, 1, 1], [], []>} : vector<8x128xbf16>, vector<128x384xbf16>, vector<8x384xf32> -> vector<8x384xf32>
    %c0_28 = arith.constant 0 : index
    %c0_29 = arith.constant 0 : index
    %50 = vector.load %arg4[%c0_28, %c0_29] : memref<1x384xf32, #tpu.memory_space<vmem>>, vector<1x384xf32>
    %51 = vector.broadcast %50 : vector<1x384xf32> to vector<8x384xf32>
    %52 = arith.addf %49, %51 : vector<8x384xf32>
    %53 = vector.extract_strided_slice %46 {offsets = [0, 0], sizes = [8, 128], strides = [1, 1]} : vector<8x384xf32> to vector<8x128xf32>
    %54 = vector.extract_strided_slice %52 {offsets = [0, 0], sizes = [8, 128], strides = [1, 1]} : vector<8x384xf32> to vector<8x128xf32>
    %55 = arith.addf %53, %54 : vector<8x128xf32>
    %cst_30 = arith.constant 5.000000e-01 : f32
    %56 = vector.broadcast %cst_30 : f32 to vector<8x128xf32>
    %57 = arith.mulf %56, %55 : vector<8x128xf32>
    %58 = math.tanh %57 : vector<8x128xf32>
    %cst_31 = arith.constant 5.000000e-01 : f32
    %59 = vector.broadcast %cst_31 : f32 to vector<8x128xf32>
    %60 = arith.mulf %59, %58 : vector<8x128xf32>
    %cst_32 = arith.constant 5.000000e-01 : f32
    %61 = vector.broadcast %cst_32 : f32 to vector<8x128xf32>
    %62 = arith.addf %60, %61 : vector<8x128xf32>
    %63 = vector.extract_strided_slice %46 {offsets = [0, 128], sizes = [8, 128], strides = [1, 1]} : vector<8x384xf32> to vector<8x128xf32>
    %64 = vector.extract_strided_slice %52 {offsets = [0, 128], sizes = [8, 128], strides = [1, 1]} : vector<8x384xf32> to vector<8x128xf32>
    %65 = arith.addf %63, %64 : vector<8x128xf32>
    %cst_33 = arith.constant 5.000000e-01 : f32
    %66 = vector.broadcast %cst_33 : f32 to vector<8x128xf32>
    %67 = arith.mulf %66, %65 : vector<8x128xf32>
    %68 = math.tanh %67 : vector<8x128xf32>
    %cst_34 = arith.constant 5.000000e-01 : f32
    %69 = vector.broadcast %cst_34 : f32 to vector<8x128xf32>
    %70 = arith.mulf %69, %68 : vector<8x128xf32>
    %cst_35 = arith.constant 5.000000e-01 : f32
    %71 = vector.broadcast %cst_35 : f32 to vector<8x128xf32>
    %72 = arith.addf %70, %71 : vector<8x128xf32>
    %73 = vector.extract_strided_slice %46 {offsets = [0, 256], sizes = [8, 128], strides = [1, 1]} : vector<8x384xf32> to vector<8x128xf32>
    %74 = vector.extract_strided_slice %52 {offsets = [0, 256], sizes = [8, 128], strides = [1, 1]} : vector<8x384xf32> to vector<8x128xf32>
    %75 = arith.mulf %62, %74 : vector<8x128xf32>
    %76 = arith.addf %73, %75 : vector<8x128xf32>
    %77 = math.tanh %76 : vector<8x128xf32>
    %cst_36 = arith.constant 1.000000e+00 : f32
    %78 = vector.broadcast %cst_36 : f32 to vector<8x128xf32>
    %79 = arith.subf %78, %72 : vector<8x128xf32>
    %80 = arith.mulf %79, %77 : vector<8x128xf32>
    %81 = arith.mulf %72, %44 : vector<8x128xf32>
    %82 = arith.addf %80, %81 : vector<8x128xf32>
    %c8_37 = arith.constant 8 : index
    %c0_38 = arith.constant 0 : index
    %83 = vector.load %arg17[%c8_37, %c0_38] : memref<64x128xf32, #tpu.memory_space<vmem>>, vector<8x128xf32>
    tpu.vector_store %arg17[%c8_37, %c0_38], %82 {strides = array<i32>} : memref<64x128xf32, #tpu.memory_space<vmem>>, vector<8x128xf32>,
    %c16 = arith.constant 16 : index
    %c0_39 = arith.constant 0 : index
    %84 = vector.load %arg16[%c16, %c0_39] : memref<64x384xf32, #tpu.memory_space<vmem>>, vector<8x384xf32>
    %85 = arith.truncf %82 : vector<8x128xf32> to vector<8x128xbf16>
    %c0_40 = arith.constant 0 : index
    %c0_41 = arith.constant 0 : index
    %86 = vector.load %arg2[%c0_40, %c0_41] : memref<128x384xbf16, #tpu.memory_space<vmem>>, vector<128x384xbf16>
    %cst_42 = arith.constant dense<0.000000e+00> : vector<8x384xf32>
    %87 = tpu.matmul %85, %86, %cst_42 {dimension_numbers = #tpu.dot_dimension_numbers<[1], [0], [0], [1], [0, 0, 1, 1], [], []>} : vector<8x128xbf16>, vector<128x384xbf16>, vector<8x384xf32> -> vector<8x384xf32>
    %c0_43 = arith.constant 0 : index
    %c0_44 = arith.constant 0 : index
    %88 = vector.load %arg4[%c0_43, %c0_44] : memref<1x384xf32, #tpu.memory_space<vmem>>, vector<1x384xf32>
    %89 = vector.broadcast %88 : vector<1x384xf32> to vector<8x384xf32>
    %90 = arith.addf %87, %89 : vector<8x384xf32>
    %91 = vector.extract_strided_slice %84 {offsets = [0, 0], sizes = [8, 128], strides = [1, 1]} : vector<8x384xf32> to vector<8x128xf32>
    %92 = vector.extract_strided_slice %90 {offsets = [0, 0], sizes = [8, 128], strides = [1, 1]} : vector<8x384xf32> to vector<8x128xf32>
    %93 = arith.addf %91, %92 : vector<8x128xf32>
    %cst_45 = arith.constant 5.000000e-01 : f32
    %94 = vector.broadcast %cst_45 : f32 to vector<8x128xf32>
    %95 = arith.mulf %94, %93 : vector<8x128xf32>
    %96 = math.tanh %95 : vector<8x128xf32>
    %cst_46 = arith.constant 5.000000e-01 : f32
    %97 = vector.broadcast %cst_46 : f32 to vector<8x128xf32>
    %98 = arith.mulf %97, %96 : vector<8x128xf32>
    %cst_47 = arith.constant 5.000000e-01 : f32
    %99 = vector.broadcast %cst_47 : f32 to vector<8x128xf32>
    %100 = arith.addf %98, %99 : vector<8x128xf32>
    %101 = vector.extract_strided_slice %84 {offsets = [0, 128], sizes = [8, 128], strides = [1, 1]} : vector<8x384xf32> to vector<8x128xf32>
    %102 = vector.extract_strided_slice %90 {offsets = [0, 128], sizes = [8, 128], strides = [1, 1]} : vector<8x384xf32> to vector<8x128xf32>
    %103 = arith.addf %101, %102 : vector<8x128xf32>
    %cst_48 = arith.constant 5.000000e-01 : f32
    %104 = vector.broadcast %cst_48 : f32 to vector<8x128xf32>
    %105 = arith.mulf %104, %103 : vector<8x128xf32>
    %106 = math.tanh %105 : vector<8x128xf32>
    %cst_49 = arith.constant 5.000000e-01 : f32
    %107 = vector.broadcast %cst_49 : f32 to vector<8x128xf32>
    %108 = arith.mulf %107, %106 : vector<8x128xf32>
    %cst_50 = arith.constant 5.000000e-01 : f32
    %109 = vector.broadcast %cst_50 : f32 to vector<8x128xf32>
    %110 = arith.addf %108, %109 : vector<8x128xf32>
    %111 = vector.extract_strided_slice %84 {offsets = [0, 256], sizes = [8, 128], strides = [1, 1]} : vector<8x384xf32> to vector<8x128xf32>
    %112 = vector.extract_strided_slice %90 {offsets = [0, 256], sizes = [8, 128], strides = [1, 1]} : vector<8x384xf32> to vector<8x128xf32>
    %113 = arith.mulf %100, %112 : vector<8x128xf32>
    %114 = arith.addf %111, %113 : vector<8x128xf32>
    %115 = math.tanh %114 : vector<8x128xf32>
    %cst_51 = arith.constant 1.000000e+00 : f32
    %116 = vector.broadcast %cst_51 : f32 to vector<8x128xf32>
    %117 = arith.subf %116, %110 : vector<8x128xf32>
    %118 = arith.mulf %117, %115 : vector<8x128xf32>
    %119 = arith.mulf %110, %82 : vector<8x128xf32>
    %120 = arith.addf %118, %119 : vector<8x128xf32>
    %c16_52 = arith.constant 16 : index
    %c0_53 = arith.constant 0 : index
    %121 = vector.load %arg17[%c16_52, %c0_53] : memref<64x128xf32, #tpu.memory_space<vmem>>, vector<8x128xf32>
    tpu.vector_store %arg17[%c16_52, %c0_53], %120 {strides = array<i32>} : memref<64x128xf32, #tpu.memory_space<vmem>>, vector<8x128xf32>,
    %c24 = arith.constant 24 : index
    %c0_54 = arith.constant 0 : index
    %122 = vector.load %arg16[%c24, %c0_54] : memref<64x384xf32, #tpu.memory_space<vmem>>, vector<8x384xf32>
    %123 = arith.truncf %120 : vector<8x128xf32> to vector<8x128xbf16>
    %c0_55 = arith.constant 0 : index
    %c0_56 = arith.constant 0 : index
    %124 = vector.load %arg2[%c0_55, %c0_56] : memref<128x384xbf16, #tpu.memory_space<vmem>>, vector<128x384xbf16>
    %cst_57 = arith.constant dense<0.000000e+00> : vector<8x384xf32>
    %125 = tpu.matmul %123, %124, %cst_57 {dimension_numbers = #tpu.dot_dimension_numbers<[1], [0], [0], [1], [0, 0, 1, 1], [], []>} : vector<8x128xbf16>, vector<128x384xbf16>, vector<8x384xf32> -> vector<8x384xf32>
    %c0_58 = arith.constant 0 : index
    %c0_59 = arith.constant 0 : index
    %126 = vector.load %arg4[%c0_58, %c0_59] : memref<1x384xf32, #tpu.memory_space<vmem>>, vector<1x384xf32>
    %127 = vector.broadcast %126 : vector<1x384xf32> to vector<8x384xf32>
    %128 = arith.addf %125, %127 : vector<8x384xf32>
    %129 = vector.extract_strided_slice %122 {offsets = [0, 0], sizes = [8, 128], strides = [1, 1]} : vector<8x384xf32> to vector<8x128xf32>
    %130 = vector.extract_strided_slice %128 {offsets = [0, 0], sizes = [8, 128], strides = [1, 1]} : vector<8x384xf32> to vector<8x128xf32>
    %131 = arith.addf %129, %130 : vector<8x128xf32>
    %cst_60 = arith.constant 5.000000e-01 : f32
    %132 = vector.broadcast %cst_60 : f32 to vector<8x128xf32>
    %133 = arith.mulf %132, %131 : vector<8x128xf32>
    %134 = math.tanh %133 : vector<8x128xf32>
    %cst_61 = arith.constant 5.000000e-01 : f32
    %135 = vector.broadcast %cst_61 : f32 to vector<8x128xf32>
    %136 = arith.mulf %135, %134 : vector<8x128xf32>
    %cst_62 = arith.constant 5.000000e-01 : f32
    %137 = vector.broadcast %cst_62 : f32 to vector<8x128xf32>
    %138 = arith.addf %136, %137 : vector<8x128xf32>
    %139 = vector.extract_strided_slice %122 {offsets = [0, 128], sizes = [8, 128], strides = [1, 1]} : vector<8x384xf32> to vector<8x128xf32>
    %140 = vector.extract_strided_slice %128 {offsets = [0, 128], sizes = [8, 128], strides = [1, 1]} : vector<8x384xf32> to vector<8x128xf32>
    %141 = arith.addf %139, %140 : vector<8x128xf32>
    %cst_63 = arith.constant 5.000000e-01 : f32
    %142 = vector.broadcast %cst_63 : f32 to vector<8x128xf32>
    %143 = arith.mulf %142, %141 : vector<8x128xf32>
    %144 = math.tanh %143 : vector<8x128xf32>
    %cst_64 = arith.constant 5.000000e-01 : f32
    %145 = vector.broadcast %cst_64 : f32 to vector<8x128xf32>
    %146 = arith.mulf %145, %144 : vector<8x128xf32>
    %cst_65 = arith.constant 5.000000e-01 : f32
    %147 = vector.broadcast %cst_65 : f32 to vector<8x128xf32>
    %148 = arith.addf %146, %147 : vector<8x128xf32>
    %149 = vector.extract_strided_slice %122 {offsets = [0, 256], sizes = [8, 128], strides = [1, 1]} : vector<8x384xf32> to vector<8x128xf32>
    %150 = vector.extract_strided_slice %128 {offsets = [0, 256], sizes = [8, 128], strides = [1, 1]} : vector<8x384xf32> to vector<8x128xf32>
    %151 = arith.mulf %138, %150 : vector<8x128xf32>
    %152 = arith.addf %149, %151 : vector<8x128xf32>
    %153 = math.tanh %152 : vector<8x128xf32>
    %cst_66 = arith.constant 1.000000e+00 : f32
    %154 = vector.broadcast %cst_66 : f32 to vector<8x128xf32>
    %155 = arith.subf %154, %148 : vector<8x128xf32>
    %156 = arith.mulf %155, %153 : vector<8x128xf32>
    %157 = arith.mulf %148, %120 : vector<8x128xf32>
    %158 = arith.addf %156, %157 : vector<8x128xf32>
    %c24_67 = arith.constant 24 : index
    %c0_68 = arith.constant 0 : index
    %159 = vector.load %arg17[%c24_67, %c0_68] : memref<64x128xf32, #tpu.memory_space<vmem>>, vector<8x128xf32>
    tpu.vector_store %arg17[%c24_67, %c0_68], %158 {strides = array<i32>} : memref<64x128xf32, #tpu.memory_space<vmem>>, vector<8x128xf32>,
    %c32 = arith.constant 32 : index
    %c0_69 = arith.constant 0 : index
    %160 = vector.load %arg16[%c32, %c0_69] : memref<64x384xf32, #tpu.memory_space<vmem>>, vector<8x384xf32>
    %161 = arith.truncf %158 : vector<8x128xf32> to vector<8x128xbf16>
    %c0_70 = arith.constant 0 : index
    %c0_71 = arith.constant 0 : index
    %162 = vector.load %arg2[%c0_70, %c0_71] : memref<128x384xbf16, #tpu.memory_space<vmem>>, vector<128x384xbf16>
    %cst_72 = arith.constant dense<0.000000e+00> : vector<8x384xf32>
    %163 = tpu.matmul %161, %162, %cst_72 {dimension_numbers = #tpu.dot_dimension_numbers<[1], [0], [0], [1], [0, 0, 1, 1], [], []>} : vector<8x128xbf16>, vector<128x384xbf16>, vector<8x384xf32> -> vector<8x384xf32>
    %c0_73 = arith.constant 0 : index
    %c0_74 = arith.constant 0 : index
    %164 = vector.load %arg4[%c0_73, %c0_74] : memref<1x384xf32, #tpu.memory_space<vmem>>, vector<1x384xf32>
    %165 = vector.broadcast %164 : vector<1x384xf32> to vector<8x384xf32>
    %166 = arith.addf %163, %165 : vector<8x384xf32>
    %167 = vector.extract_strided_slice %160 {offsets = [0, 0], sizes = [8, 128], strides = [1, 1]} : vector<8x384xf32> to vector<8x128xf32>
    %168 = vector.extract_strided_slice %166 {offsets = [0, 0], sizes = [8, 128], strides = [1, 1]} : vector<8x384xf32> to vector<8x128xf32>
    %169 = arith.addf %167, %168 : vector<8x128xf32>
    %cst_75 = arith.constant 5.000000e-01 : f32
    %170 = vector.broadcast %cst_75 : f32 to vector<8x128xf32>
    %171 = arith.mulf %170, %169 : vector<8x128xf32>
    %172 = math.tanh %171 : vector<8x128xf32>
    %cst_76 = arith.constant 5.000000e-01 : f32
    %173 = vector.broadcast %cst_76 : f32 to vector<8x128xf32>
    %174 = arith.mulf %173, %172 : vector<8x128xf32>
    %cst_77 = arith.constant 5.000000e-01 : f32
    %175 = vector.broadcast %cst_77 : f32 to vector<8x128xf32>
    %176 = arith.addf %174, %175 : vector<8x128xf32>
    %177 = vector.extract_strided_slice %160 {offsets = [0, 128], sizes = [8, 128], strides = [1, 1]} : vector<8x384xf32> to vector<8x128xf32>
    %178 = vector.extract_strided_slice %166 {offsets = [0, 128], sizes = [8, 128], strides = [1, 1]} : vector<8x384xf32> to vector<8x128xf32>
    %179 = arith.addf %177, %178 : vector<8x128xf32>
    %cst_78 = arith.constant 5.000000e-01 : f32
    %180 = vector.broadcast %cst_78 : f32 to vector<8x128xf32>
    %181 = arith.mulf %180, %179 : vector<8x128xf32>
    %182 = math.tanh %181 : vector<8x128xf32>
    %cst_79 = arith.constant 5.000000e-01 : f32
    %183 = vector.broadcast %cst_79 : f32 to vector<8x128xf32>
    %184 = arith.mulf %183, %182 : vector<8x128xf32>
    %cst_80 = arith.constant 5.000000e-01 : f32
    %185 = vector.broadcast %cst_80 : f32 to vector<8x128xf32>
    %186 = arith.addf %184, %185 : vector<8x128xf32>
    %187 = vector.extract_strided_slice %160 {offsets = [0, 256], sizes = [8, 128], strides = [1, 1]} : vector<8x384xf32> to vector<8x128xf32>
    %188 = vector.extract_strided_slice %166 {offsets = [0, 256], sizes = [8, 128], strides = [1, 1]} : vector<8x384xf32> to vector<8x128xf32>
    %189 = arith.mulf %176, %188 : vector<8x128xf32>
    %190 = arith.addf %187, %189 : vector<8x128xf32>
    %191 = math.tanh %190 : vector<8x128xf32>
    %cst_81 = arith.constant 1.000000e+00 : f32
    %192 = vector.broadcast %cst_81 : f32 to vector<8x128xf32>
    %193 = arith.subf %192, %186 : vector<8x128xf32>
    %194 = arith.mulf %193, %191 : vector<8x128xf32>
    %195 = arith.mulf %186, %158 : vector<8x128xf32>
    %196 = arith.addf %194, %195 : vector<8x128xf32>
    %c32_82 = arith.constant 32 : index
    %c0_83 = arith.constant 0 : index
    %197 = vector.load %arg17[%c32_82, %c0_83] : memref<64x128xf32, #tpu.memory_space<vmem>>, vector<8x128xf32>
    tpu.vector_store %arg17[%c32_82, %c0_83], %196 {strides = array<i32>} : memref<64x128xf32, #tpu.memory_space<vmem>>, vector<8x128xf32>,
    %c40 = arith.constant 40 : index
    %c0_84 = arith.constant 0 : index
    %198 = vector.load %arg16[%c40, %c0_84] : memref<64x384xf32, #tpu.memory_space<vmem>>, vector<8x384xf32>
    %199 = arith.truncf %196 : vector<8x128xf32> to vector<8x128xbf16>
    %c0_85 = arith.constant 0 : index
    %c0_86 = arith.constant 0 : index
    %200 = vector.load %arg2[%c0_85, %c0_86] : memref<128x384xbf16, #tpu.memory_space<vmem>>, vector<128x384xbf16>
    %cst_87 = arith.constant dense<0.000000e+00> : vector<8x384xf32>
    %201 = tpu.matmul %199, %200, %cst_87 {dimension_numbers = #tpu.dot_dimension_numbers<[1], [0], [0], [1], [0, 0, 1, 1], [], []>} : vector<8x128xbf16>, vector<128x384xbf16>, vector<8x384xf32> -> vector<8x384xf32>
    %c0_88 = arith.constant 0 : index
    %c0_89 = arith.constant 0 : index
    %202 = vector.load %arg4[%c0_88, %c0_89] : memref<1x384xf32, #tpu.memory_space<vmem>>, vector<1x384xf32>
    %203 = vector.broadcast %202 : vector<1x384xf32> to vector<8x384xf32>
    %204 = arith.addf %201, %203 : vector<8x384xf32>
    %205 = vector.extract_strided_slice %198 {offsets = [0, 0], sizes = [8, 128], strides = [1, 1]} : vector<8x384xf32> to vector<8x128xf32>
    %206 = vector.extract_strided_slice %204 {offsets = [0, 0], sizes = [8, 128], strides = [1, 1]} : vector<8x384xf32> to vector<8x128xf32>
    %207 = arith.addf %205, %206 : vector<8x128xf32>
    %cst_90 = arith.constant 5.000000e-01 : f32
    %208 = vector.broadcast %cst_90 : f32 to vector<8x128xf32>
    %209 = arith.mulf %208, %207 : vector<8x128xf32>
    %210 = math.tanh %209 : vector<8x128xf32>
    %cst_91 = arith.constant 5.000000e-01 : f32
    %211 = vector.broadcast %cst_91 : f32 to vector<8x128xf32>
    %212 = arith.mulf %211, %210 : vector<8x128xf32>
    %cst_92 = arith.constant 5.000000e-01 : f32
    %213 = vector.broadcast %cst_92 : f32 to vector<8x128xf32>
    %214 = arith.addf %212, %213 : vector<8x128xf32>
    %215 = vector.extract_strided_slice %198 {offsets = [0, 128], sizes = [8, 128], strides = [1, 1]} : vector<8x384xf32> to vector<8x128xf32>
    %216 = vector.extract_strided_slice %204 {offsets = [0, 128], sizes = [8, 128], strides = [1, 1]} : vector<8x384xf32> to vector<8x128xf32>
    %217 = arith.addf %215, %216 : vector<8x128xf32>
    %cst_93 = arith.constant 5.000000e-01 : f32
    %218 = vector.broadcast %cst_93 : f32 to vector<8x128xf32>
    %219 = arith.mulf %218, %217 : vector<8x128xf32>
    %220 = math.tanh %219 : vector<8x128xf32>
    %cst_94 = arith.constant 5.000000e-01 : f32
    %221 = vector.broadcast %cst_94 : f32 to vector<8x128xf32>
    %222 = arith.mulf %221, %220 : vector<8x128xf32>
    %cst_95 = arith.constant 5.000000e-01 : f32
    %223 = vector.broadcast %cst_95 : f32 to vector<8x128xf32>
    %224 = arith.addf %222, %223 : vector<8x128xf32>
    %225 = vector.extract_strided_slice %198 {offsets = [0, 256], sizes = [8, 128], strides = [1, 1]} : vector<8x384xf32> to vector<8x128xf32>
    %226 = vector.extract_strided_slice %204 {offsets = [0, 256], sizes = [8, 128], strides = [1, 1]} : vector<8x384xf32> to vector<8x128xf32>
    %227 = arith.mulf %214, %226 : vector<8x128xf32>
    %228 = arith.addf %225, %227 : vector<8x128xf32>
    %229 = math.tanh %228 : vector<8x128xf32>
    %cst_96 = arith.constant 1.000000e+00 : f32
    %230 = vector.broadcast %cst_96 : f32 to vector<8x128xf32>
    %231 = arith.subf %230, %224 : vector<8x128xf32>
    %232 = arith.mulf %231, %229 : vector<8x128xf32>
    %233 = arith.mulf %224, %196 : vector<8x128xf32>
    %234 = arith.addf %232, %233 : vector<8x128xf32>
    %c40_97 = arith.constant 40 : index
    %c0_98 = arith.constant 0 : index
    %235 = vector.load %arg17[%c40_97, %c0_98] : memref<64x128xf32, #tpu.memory_space<vmem>>, vector<8x128xf32>
    tpu.vector_store %arg17[%c40_97, %c0_98], %234 {strides = array<i32>} : memref<64x128xf32, #tpu.memory_space<vmem>>, vector<8x128xf32>,
    %c48 = arith.constant 48 : index
    %c0_99 = arith.constant 0 : index
    %236 = vector.load %arg16[%c48, %c0_99] : memref<64x384xf32, #tpu.memory_space<vmem>>, vector<8x384xf32>
    %237 = arith.truncf %234 : vector<8x128xf32> to vector<8x128xbf16>
    %c0_100 = arith.constant 0 : index
    %c0_101 = arith.constant 0 : index
    %238 = vector.load %arg2[%c0_100, %c0_101] : memref<128x384xbf16, #tpu.memory_space<vmem>>, vector<128x384xbf16>
    %cst_102 = arith.constant dense<0.000000e+00> : vector<8x384xf32>
    %239 = tpu.matmul %237, %238, %cst_102 {dimension_numbers = #tpu.dot_dimension_numbers<[1], [0], [0], [1], [0, 0, 1, 1], [], []>} : vector<8x128xbf16>, vector<128x384xbf16>, vector<8x384xf32> -> vector<8x384xf32>
    %c0_103 = arith.constant 0 : index
    %c0_104 = arith.constant 0 : index
    %240 = vector.load %arg4[%c0_103, %c0_104] : memref<1x384xf32, #tpu.memory_space<vmem>>, vector<1x384xf32>
    %241 = vector.broadcast %240 : vector<1x384xf32> to vector<8x384xf32>
    %242 = arith.addf %239, %241 : vector<8x384xf32>
    %243 = vector.extract_strided_slice %236 {offsets = [0, 0], sizes = [8, 128], strides = [1, 1]} : vector<8x384xf32> to vector<8x128xf32>
    %244 = vector.extract_strided_slice %242 {offsets = [0, 0], sizes = [8, 128], strides = [1, 1]} : vector<8x384xf32> to vector<8x128xf32>
    %245 = arith.addf %243, %244 : vector<8x128xf32>
    %cst_105 = arith.constant 5.000000e-01 : f32
    %246 = vector.broadcast %cst_105 : f32 to vector<8x128xf32>
    %247 = arith.mulf %246, %245 : vector<8x128xf32>
    %248 = math.tanh %247 : vector<8x128xf32>
    %cst_106 = arith.constant 5.000000e-01 : f32
    %249 = vector.broadcast %cst_106 : f32 to vector<8x128xf32>
    %250 = arith.mulf %249, %248 : vector<8x128xf32>
    %cst_107 = arith.constant 5.000000e-01 : f32
    %251 = vector.broadcast %cst_107 : f32 to vector<8x128xf32>
    %252 = arith.addf %250, %251 : vector<8x128xf32>
    %253 = vector.extract_strided_slice %236 {offsets = [0, 128], sizes = [8, 128], strides = [1, 1]} : vector<8x384xf32> to vector<8x128xf32>
    %254 = vector.extract_strided_slice %242 {offsets = [0, 128], sizes = [8, 128], strides = [1, 1]} : vector<8x384xf32> to vector<8x128xf32>
    %255 = arith.addf %253, %254 : vector<8x128xf32>
    %cst_108 = arith.constant 5.000000e-01 : f32
    %256 = vector.broadcast %cst_108 : f32 to vector<8x128xf32>
    %257 = arith.mulf %256, %255 : vector<8x128xf32>
    %258 = math.tanh %257 : vector<8x128xf32>
    %cst_109 = arith.constant 5.000000e-01 : f32
    %259 = vector.broadcast %cst_109 : f32 to vector<8x128xf32>
    %260 = arith.mulf %259, %258 : vector<8x128xf32>
    %cst_110 = arith.constant 5.000000e-01 : f32
    %261 = vector.broadcast %cst_110 : f32 to vector<8x128xf32>
    %262 = arith.addf %260, %261 : vector<8x128xf32>
    %263 = vector.extract_strided_slice %236 {offsets = [0, 256], sizes = [8, 128], strides = [1, 1]} : vector<8x384xf32> to vector<8x128xf32>
    %264 = vector.extract_strided_slice %242 {offsets = [0, 256], sizes = [8, 128], strides = [1, 1]} : vector<8x384xf32> to vector<8x128xf32>
    %265 = arith.mulf %252, %264 : vector<8x128xf32>
    %266 = arith.addf %263, %265 : vector<8x128xf32>
    %267 = math.tanh %266 : vector<8x128xf32>
    %cst_111 = arith.constant 1.000000e+00 : f32
    %268 = vector.broadcast %cst_111 : f32 to vector<8x128xf32>
    %269 = arith.subf %268, %262 : vector<8x128xf32>
    %270 = arith.mulf %269, %267 : vector<8x128xf32>
    %271 = arith.mulf %262, %234 : vector<8x128xf32>
    %272 = arith.addf %270, %271 : vector<8x128xf32>
    %c48_112 = arith.constant 48 : index
    %c0_113 = arith.constant 0 : index
    %273 = vector.load %arg17[%c48_112, %c0_113] : memref<64x128xf32, #tpu.memory_space<vmem>>, vector<8x128xf32>
    tpu.vector_store %arg17[%c48_112, %c0_113], %272 {strides = array<i32>} : memref<64x128xf32, #tpu.memory_space<vmem>>, vector<8x128xf32>,
    %c56 = arith.constant 56 : index
    %c0_114 = arith.constant 0 : index
    %274 = vector.load %arg16[%c56, %c0_114] : memref<64x384xf32, #tpu.memory_space<vmem>>, vector<8x384xf32>
    %275 = arith.truncf %272 : vector<8x128xf32> to vector<8x128xbf16>
    %c0_115 = arith.constant 0 : index
    %c0_116 = arith.constant 0 : index
    %276 = vector.load %arg2[%c0_115, %c0_116] : memref<128x384xbf16, #tpu.memory_space<vmem>>, vector<128x384xbf16>
    %cst_117 = arith.constant dense<0.000000e+00> : vector<8x384xf32>
    %277 = tpu.matmul %275, %276, %cst_117 {dimension_numbers = #tpu.dot_dimension_numbers<[1], [0], [0], [1], [0, 0, 1, 1], [], []>} : vector<8x128xbf16>, vector<128x384xbf16>, vector<8x384xf32> -> vector<8x384xf32>
    %c0_118 = arith.constant 0 : index
    %c0_119 = arith.constant 0 : index
    %278 = vector.load %arg4[%c0_118, %c0_119] : memref<1x384xf32, #tpu.memory_space<vmem>>, vector<1x384xf32>
    %279 = vector.broadcast %278 : vector<1x384xf32> to vector<8x384xf32>
    %280 = arith.addf %277, %279 : vector<8x384xf32>
    %281 = vector.extract_strided_slice %274 {offsets = [0, 0], sizes = [8, 128], strides = [1, 1]} : vector<8x384xf32> to vector<8x128xf32>
    %282 = vector.extract_strided_slice %280 {offsets = [0, 0], sizes = [8, 128], strides = [1, 1]} : vector<8x384xf32> to vector<8x128xf32>
    %283 = arith.addf %281, %282 : vector<8x128xf32>
    %cst_120 = arith.constant 5.000000e-01 : f32
    %284 = vector.broadcast %cst_120 : f32 to vector<8x128xf32>
    %285 = arith.mulf %284, %283 : vector<8x128xf32>
    %286 = math.tanh %285 : vector<8x128xf32>
    %cst_121 = arith.constant 5.000000e-01 : f32
    %287 = vector.broadcast %cst_121 : f32 to vector<8x128xf32>
    %288 = arith.mulf %287, %286 : vector<8x128xf32>
    %cst_122 = arith.constant 5.000000e-01 : f32
    %289 = vector.broadcast %cst_122 : f32 to vector<8x128xf32>
    %290 = arith.addf %288, %289 : vector<8x128xf32>
    %291 = vector.extract_strided_slice %274 {offsets = [0, 128], sizes = [8, 128], strides = [1, 1]} : vector<8x384xf32> to vector<8x128xf32>
    %292 = vector.extract_strided_slice %280 {offsets = [0, 128], sizes = [8, 128], strides = [1, 1]} : vector<8x384xf32> to vector<8x128xf32>
    %293 = arith.addf %291, %292 : vector<8x128xf32>
    %cst_123 = arith.constant 5.000000e-01 : f32
    %294 = vector.broadcast %cst_123 : f32 to vector<8x128xf32>
    %295 = arith.mulf %294, %293 : vector<8x128xf32>
    %296 = math.tanh %295 : vector<8x128xf32>
    %cst_124 = arith.constant 5.000000e-01 : f32
    %297 = vector.broadcast %cst_124 : f32 to vector<8x128xf32>
    %298 = arith.mulf %297, %296 : vector<8x128xf32>
    %cst_125 = arith.constant 5.000000e-01 : f32
    %299 = vector.broadcast %cst_125 : f32 to vector<8x128xf32>
    %300 = arith.addf %298, %299 : vector<8x128xf32>
    %301 = vector.extract_strided_slice %274 {offsets = [0, 256], sizes = [8, 128], strides = [1, 1]} : vector<8x384xf32> to vector<8x128xf32>
    %302 = vector.extract_strided_slice %280 {offsets = [0, 256], sizes = [8, 128], strides = [1, 1]} : vector<8x384xf32> to vector<8x128xf32>
    %303 = arith.mulf %290, %302 : vector<8x128xf32>
    %304 = arith.addf %301, %303 : vector<8x128xf32>
    %305 = math.tanh %304 : vector<8x128xf32>
    %cst_126 = arith.constant 1.000000e+00 : f32
    %306 = vector.broadcast %cst_126 : f32 to vector<8x128xf32>
    %307 = arith.subf %306, %300 : vector<8x128xf32>
    %308 = arith.mulf %307, %305 : vector<8x128xf32>
    %309 = arith.mulf %300, %272 : vector<8x128xf32>
    %310 = arith.addf %308, %309 : vector<8x128xf32>
    %c56_127 = arith.constant 56 : index
    %c0_128 = arith.constant 0 : index
    %311 = vector.load %arg17[%c56_127, %c0_128] : memref<64x128xf32, #tpu.memory_space<vmem>>, vector<8x128xf32>
    tpu.vector_store %arg17[%c56_127, %c0_128], %310 {strides = array<i32>} : memref<64x128xf32, #tpu.memory_space<vmem>>, vector<8x128xf32>,
    %c0_129 = arith.constant 0 : index
    %c0_130 = arith.constant 0 : index
    %312 = vector.load %arg17[%c0_129, %c0_130] : memref<64x128xf32, #tpu.memory_space<vmem>>, vector<64x128xf32>
    %313 = arith.truncf %312 : vector<64x128xf32> to vector<64x128xbf16>
    %c0_131 = arith.constant 0 : index
    %c0_132 = arith.constant 0 : index
    %314 = vector.load %arg5[%c0_131, %c0_132] : memref<128x384xbf16, #tpu.memory_space<vmem>>, vector<128x384xbf16>
    %cst_133 = arith.constant dense<0.000000e+00> : vector<64x384xf32>
    %315 = tpu.matmul %313, %314, %cst_133 {dimension_numbers = #tpu.dot_dimension_numbers<[1], [0], [0], [1], [0, 0, 1, 1], [], []>} : vector<64x128xbf16>, vector<128x384xbf16>, vector<64x384xf32> -> vector<64x384xf32>
    %c0_134 = arith.constant 0 : index
    %c0_135 = arith.constant 0 : index
    %316 = vector.load %arg7[%c0_134, %c0_135] : memref<1x384xf32, #tpu.memory_space<vmem>>, vector<1x384xf32>
    %317 = vector.broadcast %316 : vector<1x384xf32> to vector<64x384xf32>
    %318 = arith.addf %315, %317 : vector<64x384xf32>
    %c0_136 = arith.constant 0 : index
    %c0_137 = arith.constant 0 : index
    %319 = vector.load %arg16[%c0_136, %c0_137] : memref<64x384xf32, #tpu.memory_space<vmem>>, vector<64x384xf32>
    tpu.vector_store %arg16[%c0_136, %c0_137], %318 {strides = array<i32>} : memref<64x384xf32, #tpu.memory_space<vmem>>, vector<64x384xf32>,
    %cst_138 = arith.constant 0.000000e+00 : f32
    %320 = vector.broadcast %cst_138 : f32 to vector<8x128xf32>
    %c0_139 = arith.constant 0 : index
    %c0_140 = arith.constant 0 : index
    %321 = vector.load %arg16[%c0_139, %c0_140] : memref<64x384xf32, #tpu.memory_space<vmem>>, vector<8x384xf32>
    %322 = arith.truncf %320 : vector<8x128xf32> to vector<8x128xbf16>
    %c0_141 = arith.constant 0 : index
    %c0_142 = arith.constant 0 : index
    %323 = vector.load %arg6[%c0_141, %c0_142] : memref<128x384xbf16, #tpu.memory_space<vmem>>, vector<128x384xbf16>
    %cst_143 = arith.constant dense<0.000000e+00> : vector<8x384xf32>
    %324 = tpu.matmul %322, %323, %cst_143 {dimension_numbers = #tpu.dot_dimension_numbers<[1], [0], [0], [1], [0, 0, 1, 1], [], []>} : vector<8x128xbf16>, vector<128x384xbf16>, vector<8x384xf32> -> vector<8x384xf32>
    %c0_144 = arith.constant 0 : index
    %c0_145 = arith.constant 0 : index
    %325 = vector.load %arg8[%c0_144, %c0_145] : memref<1x384xf32, #tpu.memory_space<vmem>>, vector<1x384xf32>
    %326 = vector.broadcast %325 : vector<1x384xf32> to vector<8x384xf32>
    %327 = arith.addf %324, %326 : vector<8x384xf32>
    %328 = vector.extract_strided_slice %321 {offsets = [0, 0], sizes = [8, 128], strides = [1, 1]} : vector<8x384xf32> to vector<8x128xf32>
    %329 = vector.extract_strided_slice %327 {offsets = [0, 0], sizes = [8, 128], strides = [1, 1]} : vector<8x384xf32> to vector<8x128xf32>
    %330 = arith.addf %328, %329 : vector<8x128xf32>
    %cst_146 = arith.constant 5.000000e-01 : f32
    %331 = vector.broadcast %cst_146 : f32 to vector<8x128xf32>
    %332 = arith.mulf %331, %330 : vector<8x128xf32>
    %333 = math.tanh %332 : vector<8x128xf32>
    %cst_147 = arith.constant 5.000000e-01 : f32
    %334 = vector.broadcast %cst_147 : f32 to vector<8x128xf32>
    %335 = arith.mulf %334, %333 : vector<8x128xf32>
    %cst_148 = arith.constant 5.000000e-01 : f32
    %336 = vector.broadcast %cst_148 : f32 to vector<8x128xf32>
    %337 = arith.addf %335, %336 : vector<8x128xf32>
    %338 = vector.extract_strided_slice %321 {offsets = [0, 128], sizes = [8, 128], strides = [1, 1]} : vector<8x384xf32> to vector<8x128xf32>
    %339 = vector.extract_strided_slice %327 {offsets = [0, 128], sizes = [8, 128], strides = [1, 1]} : vector<8x384xf32> to vector<8x128xf32>
    %340 = arith.addf %338, %339 : vector<8x128xf32>
    %cst_149 = arith.constant 5.000000e-01 : f32
    %341 = vector.broadcast %cst_149 : f32 to vector<8x128xf32>
    %342 = arith.mulf %341, %340 : vector<8x128xf32>
    %343 = math.tanh %342 : vector<8x128xf32>
    %cst_150 = arith.constant 5.000000e-01 : f32
    %344 = vector.broadcast %cst_150 : f32 to vector<8x128xf32>
    %345 = arith.mulf %344, %343 : vector<8x128xf32>
    %cst_151 = arith.constant 5.000000e-01 : f32
    %346 = vector.broadcast %cst_151 : f32 to vector<8x128xf32>
    %347 = arith.addf %345, %346 : vector<8x128xf32>
    %348 = vector.extract_strided_slice %321 {offsets = [0, 256], sizes = [8, 128], strides = [1, 1]} : vector<8x384xf32> to vector<8x128xf32>
    %349 = vector.extract_strided_slice %327 {offsets = [0, 256], sizes = [8, 128], strides = [1, 1]} : vector<8x384xf32> to vector<8x128xf32>
    %350 = arith.mulf %337, %349 : vector<8x128xf32>
    %351 = arith.addf %348, %350 : vector<8x128xf32>
    %352 = math.tanh %351 : vector<8x128xf32>
    %cst_152 = arith.constant 1.000000e+00 : f32
    %353 = vector.broadcast %cst_152 : f32 to vector<8x128xf32>
    %354 = arith.subf %353, %347 : vector<8x128xf32>
    %355 = arith.mulf %354, %352 : vector<8x128xf32>
    %356 = arith.mulf %347, %320 : vector<8x128xf32>
    %357 = arith.addf %355, %356 : vector<8x128xf32>
    %c0_153 = arith.constant 0 : index
    %c0_154 = arith.constant 0 : index
    %358 = vector.load %arg17[%c0_153, %c0_154] : memref<64x128xf32, #tpu.memory_space<vmem>>, vector<8x128xf32>
    tpu.vector_store %arg17[%c0_153, %c0_154], %357 {strides = array<i32>} : memref<64x128xf32, #tpu.memory_space<vmem>>, vector<8x128xf32>,
    %c8_155 = arith.constant 8 : index
    %c0_156 = arith.constant 0 : index
    %359 = vector.load %arg16[%c8_155, %c0_156] : memref<64x384xf32, #tpu.memory_space<vmem>>, vector<8x384xf32>
    %360 = arith.truncf %357 : vector<8x128xf32> to vector<8x128xbf16>
    %c0_157 = arith.constant 0 : index
    %c0_158 = arith.constant 0 : index
    %361 = vector.load %arg6[%c0_157, %c0_158] : memref<128x384xbf16, #tpu.memory_space<vmem>>, vector<128x384xbf16>
    %cst_159 = arith.constant dense<0.000000e+00> : vector<8x384xf32>
    %362 = tpu.matmul %360, %361, %cst_159 {dimension_numbers = #tpu.dot_dimension_numbers<[1], [0], [0], [1], [0, 0, 1, 1], [], []>} : vector<8x128xbf16>, vector<128x384xbf16>, vector<8x384xf32> -> vector<8x384xf32>
    %c0_160 = arith.constant 0 : index
    %c0_161 = arith.constant 0 : index
    %363 = vector.load %arg8[%c0_160, %c0_161] : memref<1x384xf32, #tpu.memory_space<vmem>>, vector<1x384xf32>
    %364 = vector.broadcast %363 : vector<1x384xf32> to vector<8x384xf32>
    %365 = arith.addf %362, %364 : vector<8x384xf32>
    %366 = vector.extract_strided_slice %359 {offsets = [0, 0], sizes = [8, 128], strides = [1, 1]} : vector<8x384xf32> to vector<8x128xf32>
    %367 = vector.extract_strided_slice %365 {offsets = [0, 0], sizes = [8, 128], strides = [1, 1]} : vector<8x384xf32> to vector<8x128xf32>
    %368 = arith.addf %366, %367 : vector<8x128xf32>
    %cst_162 = arith.constant 5.000000e-01 : f32
    %369 = vector.broadcast %cst_162 : f32 to vector<8x128xf32>
    %370 = arith.mulf %369, %368 : vector<8x128xf32>
    %371 = math.tanh %370 : vector<8x128xf32>
    %cst_163 = arith.constant 5.000000e-01 : f32
    %372 = vector.broadcast %cst_163 : f32 to vector<8x128xf32>
    %373 = arith.mulf %372, %371 : vector<8x128xf32>
    %cst_164 = arith.constant 5.000000e-01 : f32
    %374 = vector.broadcast %cst_164 : f32 to vector<8x128xf32>
    %375 = arith.addf %373, %374 : vector<8x128xf32>
    %376 = vector.extract_strided_slice %359 {offsets = [0, 128], sizes = [8, 128], strides = [1, 1]} : vector<8x384xf32> to vector<8x128xf32>
    %377 = vector.extract_strided_slice %365 {offsets = [0, 128], sizes = [8, 128], strides = [1, 1]} : vector<8x384xf32> to vector<8x128xf32>
    %378 = arith.addf %376, %377 : vector<8x128xf32>
    %cst_165 = arith.constant 5.000000e-01 : f32
    %379 = vector.broadcast %cst_165 : f32 to vector<8x128xf32>
    %380 = arith.mulf %379, %378 : vector<8x128xf32>
    %381 = math.tanh %380 : vector<8x128xf32>
    %cst_166 = arith.constant 5.000000e-01 : f32
    %382 = vector.broadcast %cst_166 : f32 to vector<8x128xf32>
    %383 = arith.mulf %382, %381 : vector<8x128xf32>
    %cst_167 = arith.constant 5.000000e-01 : f32
    %384 = vector.broadcast %cst_167 : f32 to vector<8x128xf32>
    %385 = arith.addf %383, %384 : vector<8x128xf32>
    %386 = vector.extract_strided_slice %359 {offsets = [0, 256], sizes = [8, 128], strides = [1, 1]} : vector<8x384xf32> to vector<8x128xf32>
    %387 = vector.extract_strided_slice %365 {offsets = [0, 256], sizes = [8, 128], strides = [1, 1]} : vector<8x384xf32> to vector<8x128xf32>
    %388 = arith.mulf %375, %387 : vector<8x128xf32>
    %389 = arith.addf %386, %388 : vector<8x128xf32>
    %390 = math.tanh %389 : vector<8x128xf32>
    %cst_168 = arith.constant 1.000000e+00 : f32
    %391 = vector.broadcast %cst_168 : f32 to vector<8x128xf32>
    %392 = arith.subf %391, %385 : vector<8x128xf32>
    %393 = arith.mulf %392, %390 : vector<8x128xf32>
    %394 = arith.mulf %385, %357 : vector<8x128xf32>
    %395 = arith.addf %393, %394 : vector<8x128xf32>
    %c8_169 = arith.constant 8 : index
    %c0_170 = arith.constant 0 : index
    %396 = vector.load %arg17[%c8_169, %c0_170] : memref<64x128xf32, #tpu.memory_space<vmem>>, vector<8x128xf32>
    tpu.vector_store %arg17[%c8_169, %c0_170], %395 {strides = array<i32>} : memref<64x128xf32, #tpu.memory_space<vmem>>, vector<8x128xf32>,
    %c16_171 = arith.constant 16 : index
    %c0_172 = arith.constant 0 : index
    %397 = vector.load %arg16[%c16_171, %c0_172] : memref<64x384xf32, #tpu.memory_space<vmem>>, vector<8x384xf32>
    %398 = arith.truncf %395 : vector<8x128xf32> to vector<8x128xbf16>
    %c0_173 = arith.constant 0 : index
    %c0_174 = arith.constant 0 : index
    %399 = vector.load %arg6[%c0_173, %c0_174] : memref<128x384xbf16, #tpu.memory_space<vmem>>, vector<128x384xbf16>
    %cst_175 = arith.constant dense<0.000000e+00> : vector<8x384xf32>
    %400 = tpu.matmul %398, %399, %cst_175 {dimension_numbers = #tpu.dot_dimension_numbers<[1], [0], [0], [1], [0, 0, 1, 1], [], []>} : vector<8x128xbf16>, vector<128x384xbf16>, vector<8x384xf32> -> vector<8x384xf32>
    %c0_176 = arith.constant 0 : index
    %c0_177 = arith.constant 0 : index
    %401 = vector.load %arg8[%c0_176, %c0_177] : memref<1x384xf32, #tpu.memory_space<vmem>>, vector<1x384xf32>
    %402 = vector.broadcast %401 : vector<1x384xf32> to vector<8x384xf32>
    %403 = arith.addf %400, %402 : vector<8x384xf32>
    %404 = vector.extract_strided_slice %397 {offsets = [0, 0], sizes = [8, 128], strides = [1, 1]} : vector<8x384xf32> to vector<8x128xf32>
    %405 = vector.extract_strided_slice %403 {offsets = [0, 0], sizes = [8, 128], strides = [1, 1]} : vector<8x384xf32> to vector<8x128xf32>
    %406 = arith.addf %404, %405 : vector<8x128xf32>
    %cst_178 = arith.constant 5.000000e-01 : f32
    %407 = vector.broadcast %cst_178 : f32 to vector<8x128xf32>
    %408 = arith.mulf %407, %406 : vector<8x128xf32>
    %409 = math.tanh %408 : vector<8x128xf32>
    %cst_179 = arith.constant 5.000000e-01 : f32
    %410 = vector.broadcast %cst_179 : f32 to vector<8x128xf32>
    %411 = arith.mulf %410, %409 : vector<8x128xf32>
    %cst_180 = arith.constant 5.000000e-01 : f32
    %412 = vector.broadcast %cst_180 : f32 to vector<8x128xf32>
    %413 = arith.addf %411, %412 : vector<8x128xf32>
    %414 = vector.extract_strided_slice %397 {offsets = [0, 128], sizes = [8, 128], strides = [1, 1]} : vector<8x384xf32> to vector<8x128xf32>
    %415 = vector.extract_strided_slice %403 {offsets = [0, 128], sizes = [8, 128], strides = [1, 1]} : vector<8x384xf32> to vector<8x128xf32>
    %416 = arith.addf %414, %415 : vector<8x128xf32>
    %cst_181 = arith.constant 5.000000e-01 : f32
    %417 = vector.broadcast %cst_181 : f32 to vector<8x128xf32>
    %418 = arith.mulf %417, %416 : vector<8x128xf32>
    %419 = math.tanh %418 : vector<8x128xf32>
    %cst_182 = arith.constant 5.000000e-01 : f32
    %420 = vector.broadcast %cst_182 : f32 to vector<8x128xf32>
    %421 = arith.mulf %420, %419 : vector<8x128xf32>
    %cst_183 = arith.constant 5.000000e-01 : f32
    %422 = vector.broadcast %cst_183 : f32 to vector<8x128xf32>
    %423 = arith.addf %421, %422 : vector<8x128xf32>
    %424 = vector.extract_strided_slice %397 {offsets = [0, 256], sizes = [8, 128], strides = [1, 1]} : vector<8x384xf32> to vector<8x128xf32>
    %425 = vector.extract_strided_slice %403 {offsets = [0, 256], sizes = [8, 128], strides = [1, 1]} : vector<8x384xf32> to vector<8x128xf32>
    %426 = arith.mulf %413, %425 : vector<8x128xf32>
    %427 = arith.addf %424, %426 : vector<8x128xf32>
    %428 = math.tanh %427 : vector<8x128xf32>
    %cst_184 = arith.constant 1.000000e+00 : f32
    %429 = vector.broadcast %cst_184 : f32 to vector<8x128xf32>
    %430 = arith.subf %429, %423 : vector<8x128xf32>
    %431 = arith.mulf %430, %428 : vector<8x128xf32>
    %432 = arith.mulf %423, %395 : vector<8x128xf32>
    %433 = arith.addf %431, %432 : vector<8x128xf32>
    %c16_185 = arith.constant 16 : index
    %c0_186 = arith.constant 0 : index
    %434 = vector.load %arg17[%c16_185, %c0_186] : memref<64x128xf32, #tpu.memory_space<vmem>>, vector<8x128xf32>
    tpu.vector_store %arg17[%c16_185, %c0_186], %433 {strides = array<i32>} : memref<64x128xf32, #tpu.memory_space<vmem>>, vector<8x128xf32>,
    %c24_187 = arith.constant 24 : index
    %c0_188 = arith.constant 0 : index
    %435 = vector.load %arg16[%c24_187, %c0_188] : memref<64x384xf32, #tpu.memory_space<vmem>>, vector<8x384xf32>
    %436 = arith.truncf %433 : vector<8x128xf32> to vector<8x128xbf16>
    %c0_189 = arith.constant 0 : index
    %c0_190 = arith.constant 0 : index
    %437 = vector.load %arg6[%c0_189, %c0_190] : memref<128x384xbf16, #tpu.memory_space<vmem>>, vector<128x384xbf16>
    %cst_191 = arith.constant dense<0.000000e+00> : vector<8x384xf32>
    %438 = tpu.matmul %436, %437, %cst_191 {dimension_numbers = #tpu.dot_dimension_numbers<[1], [0], [0], [1], [0, 0, 1, 1], [], []>} : vector<8x128xbf16>, vector<128x384xbf16>, vector<8x384xf32> -> vector<8x384xf32>
    %c0_192 = arith.constant 0 : index
    %c0_193 = arith.constant 0 : index
    %439 = vector.load %arg8[%c0_192, %c0_193] : memref<1x384xf32, #tpu.memory_space<vmem>>, vector<1x384xf32>
    %440 = vector.broadcast %439 : vector<1x384xf32> to vector<8x384xf32>
    %441 = arith.addf %438, %440 : vector<8x384xf32>
    %442 = vector.extract_strided_slice %435 {offsets = [0, 0], sizes = [8, 128], strides = [1, 1]} : vector<8x384xf32> to vector<8x128xf32>
    %443 = vector.extract_strided_slice %441 {offsets = [0, 0], sizes = [8, 128], strides = [1, 1]} : vector<8x384xf32> to vector<8x128xf32>
    %444 = arith.addf %442, %443 : vector<8x128xf32>
    %cst_194 = arith.constant 5.000000e-01 : f32
    %445 = vector.broadcast %cst_194 : f32 to vector<8x128xf32>
    %446 = arith.mulf %445, %444 : vector<8x128xf32>
    %447 = math.tanh %446 : vector<8x128xf32>
    %cst_195 = arith.constant 5.000000e-01 : f32
    %448 = vector.broadcast %cst_195 : f32 to vector<8x128xf32>
    %449 = arith.mulf %448, %447 : vector<8x128xf32>
    %cst_196 = arith.constant 5.000000e-01 : f32
    %450 = vector.broadcast %cst_196 : f32 to vector<8x128xf32>
    %451 = arith.addf %449, %450 : vector<8x128xf32>
    %452 = vector.extract_strided_slice %435 {offsets = [0, 128], sizes = [8, 128], strides = [1, 1]} : vector<8x384xf32> to vector<8x128xf32>
    %453 = vector.extract_strided_slice %441 {offsets = [0, 128], sizes = [8, 128], strides = [1, 1]} : vector<8x384xf32> to vector<8x128xf32>
    %454 = arith.addf %452, %453 : vector<8x128xf32>
    %cst_197 = arith.constant 5.000000e-01 : f32
    %455 = vector.broadcast %cst_197 : f32 to vector<8x128xf32>
    %456 = arith.mulf %455, %454 : vector<8x128xf32>
    %457 = math.tanh %456 : vector<8x128xf32>
    %cst_198 = arith.constant 5.000000e-01 : f32
    %458 = vector.broadcast %cst_198 : f32 to vector<8x128xf32>
    %459 = arith.mulf %458, %457 : vector<8x128xf32>
    %cst_199 = arith.constant 5.000000e-01 : f32
    %460 = vector.broadcast %cst_199 : f32 to vector<8x128xf32>
    %461 = arith.addf %459, %460 : vector<8x128xf32>
    %462 = vector.extract_strided_slice %435 {offsets = [0, 256], sizes = [8, 128], strides = [1, 1]} : vector<8x384xf32> to vector<8x128xf32>
    %463 = vector.extract_strided_slice %441 {offsets = [0, 256], sizes = [8, 128], strides = [1, 1]} : vector<8x384xf32> to vector<8x128xf32>
    %464 = arith.mulf %451, %463 : vector<8x128xf32>
    %465 = arith.addf %462, %464 : vector<8x128xf32>
    %466 = math.tanh %465 : vector<8x128xf32>
    %cst_200 = arith.constant 1.000000e+00 : f32
    %467 = vector.broadcast %cst_200 : f32 to vector<8x128xf32>
    %468 = arith.subf %467, %461 : vector<8x128xf32>
    %469 = arith.mulf %468, %466 : vector<8x128xf32>
    %470 = arith.mulf %461, %433 : vector<8x128xf32>
    %471 = arith.addf %469, %470 : vector<8x128xf32>
    %c24_201 = arith.constant 24 : index
    %c0_202 = arith.constant 0 : index
    %472 = vector.load %arg17[%c24_201, %c0_202] : memref<64x128xf32, #tpu.memory_space<vmem>>, vector<8x128xf32>
    tpu.vector_store %arg17[%c24_201, %c0_202], %471 {strides = array<i32>} : memref<64x128xf32, #tpu.memory_space<vmem>>, vector<8x128xf32>,
    %c32_203 = arith.constant 32 : index
    %c0_204 = arith.constant 0 : index
    %473 = vector.load %arg16[%c32_203, %c0_204] : memref<64x384xf32, #tpu.memory_space<vmem>>, vector<8x384xf32>
    %474 = arith.truncf %471 : vector<8x128xf32> to vector<8x128xbf16>
    %c0_205 = arith.constant 0 : index
    %c0_206 = arith.constant 0 : index
    %475 = vector.load %arg6[%c0_205, %c0_206] : memref<128x384xbf16, #tpu.memory_space<vmem>>, vector<128x384xbf16>
    %cst_207 = arith.constant dense<0.000000e+00> : vector<8x384xf32>
    %476 = tpu.matmul %474, %475, %cst_207 {dimension_numbers = #tpu.dot_dimension_numbers<[1], [0], [0], [1], [0, 0, 1, 1], [], []>} : vector<8x128xbf16>, vector<128x384xbf16>, vector<8x384xf32> -> vector<8x384xf32>
    %c0_208 = arith.constant 0 : index
    %c0_209 = arith.constant 0 : index
    %477 = vector.load %arg8[%c0_208, %c0_209] : memref<1x384xf32, #tpu.memory_space<vmem>>, vector<1x384xf32>
    %478 = vector.broadcast %477 : vector<1x384xf32> to vector<8x384xf32>
    %479 = arith.addf %476, %478 : vector<8x384xf32>
    %480 = vector.extract_strided_slice %473 {offsets = [0, 0], sizes = [8, 128], strides = [1, 1]} : vector<8x384xf32> to vector<8x128xf32>
    %481 = vector.extract_strided_slice %479 {offsets = [0, 0], sizes = [8, 128], strides = [1, 1]} : vector<8x384xf32> to vector<8x128xf32>
    %482 = arith.addf %480, %481 : vector<8x128xf32>
    %cst_210 = arith.constant 5.000000e-01 : f32
    %483 = vector.broadcast %cst_210 : f32 to vector<8x128xf32>
    %484 = arith.mulf %483, %482 : vector<8x128xf32>
    %485 = math.tanh %484 : vector<8x128xf32>
    %cst_211 = arith.constant 5.000000e-01 : f32
    %486 = vector.broadcast %cst_211 : f32 to vector<8x128xf32>
    %487 = arith.mulf %486, %485 : vector<8x128xf32>
    %cst_212 = arith.constant 5.000000e-01 : f32
    %488 = vector.broadcast %cst_212 : f32 to vector<8x128xf32>
    %489 = arith.addf %487, %488 : vector<8x128xf32>
    %490 = vector.extract_strided_slice %473 {offsets = [0, 128], sizes = [8, 128], strides = [1, 1]} : vector<8x384xf32> to vector<8x128xf32>
    %491 = vector.extract_strided_slice %479 {offsets = [0, 128], sizes = [8, 128], strides = [1, 1]} : vector<8x384xf32> to vector<8x128xf32>
    %492 = arith.addf %490, %491 : vector<8x128xf32>
    %cst_213 = arith.constant 5.000000e-01 : f32
    %493 = vector.broadcast %cst_213 : f32 to vector<8x128xf32>
    %494 = arith.mulf %493, %492 : vector<8x128xf32>
    %495 = math.tanh %494 : vector<8x128xf32>
    %cst_214 = arith.constant 5.000000e-01 : f32
    %496 = vector.broadcast %cst_214 : f32 to vector<8x128xf32>
    %497 = arith.mulf %496, %495 : vector<8x128xf32>
    %cst_215 = arith.constant 5.000000e-01 : f32
    %498 = vector.broadcast %cst_215 : f32 to vector<8x128xf32>
    %499 = arith.addf %497, %498 : vector<8x128xf32>
    %500 = vector.extract_strided_slice %473 {offsets = [0, 256], sizes = [8, 128], strides = [1, 1]} : vector<8x384xf32> to vector<8x128xf32>
    %501 = vector.extract_strided_slice %479 {offsets = [0, 256], sizes = [8, 128], strides = [1, 1]} : vector<8x384xf32> to vector<8x128xf32>
    %502 = arith.mulf %489, %501 : vector<8x128xf32>
    %503 = arith.addf %500, %502 : vector<8x128xf32>
    %504 = math.tanh %503 : vector<8x128xf32>
    %cst_216 = arith.constant 1.000000e+00 : f32
    %505 = vector.broadcast %cst_216 : f32 to vector<8x128xf32>
    %506 = arith.subf %505, %499 : vector<8x128xf32>
    %507 = arith.mulf %506, %504 : vector<8x128xf32>
    %508 = arith.mulf %499, %471 : vector<8x128xf32>
    %509 = arith.addf %507, %508 : vector<8x128xf32>
    %c32_217 = arith.constant 32 : index
    %c0_218 = arith.constant 0 : index
    %510 = vector.load %arg17[%c32_217, %c0_218] : memref<64x128xf32, #tpu.memory_space<vmem>>, vector<8x128xf32>
    tpu.vector_store %arg17[%c32_217, %c0_218], %509 {strides = array<i32>} : memref<64x128xf32, #tpu.memory_space<vmem>>, vector<8x128xf32>,
    %c40_219 = arith.constant 40 : index
    %c0_220 = arith.constant 0 : index
    %511 = vector.load %arg16[%c40_219, %c0_220] : memref<64x384xf32, #tpu.memory_space<vmem>>, vector<8x384xf32>
    %512 = arith.truncf %509 : vector<8x128xf32> to vector<8x128xbf16>
    %c0_221 = arith.constant 0 : index
    %c0_222 = arith.constant 0 : index
    %513 = vector.load %arg6[%c0_221, %c0_222] : memref<128x384xbf16, #tpu.memory_space<vmem>>, vector<128x384xbf16>
    %cst_223 = arith.constant dense<0.000000e+00> : vector<8x384xf32>
    %514 = tpu.matmul %512, %513, %cst_223 {dimension_numbers = #tpu.dot_dimension_numbers<[1], [0], [0], [1], [0, 0, 1, 1], [], []>} : vector<8x128xbf16>, vector<128x384xbf16>, vector<8x384xf32> -> vector<8x384xf32>
    %c0_224 = arith.constant 0 : index
    %c0_225 = arith.constant 0 : index
    %515 = vector.load %arg8[%c0_224, %c0_225] : memref<1x384xf32, #tpu.memory_space<vmem>>, vector<1x384xf32>
    %516 = vector.broadcast %515 : vector<1x384xf32> to vector<8x384xf32>
    %517 = arith.addf %514, %516 : vector<8x384xf32>
    %518 = vector.extract_strided_slice %511 {offsets = [0, 0], sizes = [8, 128], strides = [1, 1]} : vector<8x384xf32> to vector<8x128xf32>
    %519 = vector.extract_strided_slice %517 {offsets = [0, 0], sizes = [8, 128], strides = [1, 1]} : vector<8x384xf32> to vector<8x128xf32>
    %520 = arith.addf %518, %519 : vector<8x128xf32>
    %cst_226 = arith.constant 5.000000e-01 : f32
    %521 = vector.broadcast %cst_226 : f32 to vector<8x128xf32>
    %522 = arith.mulf %521, %520 : vector<8x128xf32>
    %523 = math.tanh %522 : vector<8x128xf32>
    %cst_227 = arith.constant 5.000000e-01 : f32
    %524 = vector.broadcast %cst_227 : f32 to vector<8x128xf32>
    %525 = arith.mulf %524, %523 : vector<8x128xf32>
    %cst_228 = arith.constant 5.000000e-01 : f32
    %526 = vector.broadcast %cst_228 : f32 to vector<8x128xf32>
    %527 = arith.addf %525, %526 : vector<8x128xf32>
    %528 = vector.extract_strided_slice %511 {offsets = [0, 128], sizes = [8, 128], strides = [1, 1]} : vector<8x384xf32> to vector<8x128xf32>
    %529 = vector.extract_strided_slice %517 {offsets = [0, 128], sizes = [8, 128], strides = [1, 1]} : vector<8x384xf32> to vector<8x128xf32>
    %530 = arith.addf %528, %529 : vector<8x128xf32>
    %cst_229 = arith.constant 5.000000e-01 : f32
    %531 = vector.broadcast %cst_229 : f32 to vector<8x128xf32>
    %532 = arith.mulf %531, %530 : vector<8x128xf32>
    %533 = math.tanh %532 : vector<8x128xf32>
    %cst_230 = arith.constant 5.000000e-01 : f32
    %534 = vector.broadcast %cst_230 : f32 to vector<8x128xf32>
    %535 = arith.mulf %534, %533 : vector<8x128xf32>
    %cst_231 = arith.constant 5.000000e-01 : f32
    %536 = vector.broadcast %cst_231 : f32 to vector<8x128xf32>
    %537 = arith.addf %535, %536 : vector<8x128xf32>
    %538 = vector.extract_strided_slice %511 {offsets = [0, 256], sizes = [8, 128], strides = [1, 1]} : vector<8x384xf32> to vector<8x128xf32>
    %539 = vector.extract_strided_slice %517 {offsets = [0, 256], sizes = [8, 128], strides = [1, 1]} : vector<8x384xf32> to vector<8x128xf32>
    %540 = arith.mulf %527, %539 : vector<8x128xf32>
    %541 = arith.addf %538, %540 : vector<8x128xf32>
    %542 = math.tanh %541 : vector<8x128xf32>
    %cst_232 = arith.constant 1.000000e+00 : f32
    %543 = vector.broadcast %cst_232 : f32 to vector<8x128xf32>
    %544 = arith.subf %543, %537 : vector<8x128xf32>
    %545 = arith.mulf %544, %542 : vector<8x128xf32>
    %546 = arith.mulf %537, %509 : vector<8x128xf32>
    %547 = arith.addf %545, %546 : vector<8x128xf32>
    %c40_233 = arith.constant 40 : index
    %c0_234 = arith.constant 0 : index
    %548 = vector.load %arg17[%c40_233, %c0_234] : memref<64x128xf32, #tpu.memory_space<vmem>>, vector<8x128xf32>
    tpu.vector_store %arg17[%c40_233, %c0_234], %547 {strides = array<i32>} : memref<64x128xf32, #tpu.memory_space<vmem>>, vector<8x128xf32>,
    %c48_235 = arith.constant 48 : index
    %c0_236 = arith.constant 0 : index
    %549 = vector.load %arg16[%c48_235, %c0_236] : memref<64x384xf32, #tpu.memory_space<vmem>>, vector<8x384xf32>
    %550 = arith.truncf %547 : vector<8x128xf32> to vector<8x128xbf16>
    %c0_237 = arith.constant 0 : index
    %c0_238 = arith.constant 0 : index
    %551 = vector.load %arg6[%c0_237, %c0_238] : memref<128x384xbf16, #tpu.memory_space<vmem>>, vector<128x384xbf16>
    %cst_239 = arith.constant dense<0.000000e+00> : vector<8x384xf32>
    %552 = tpu.matmul %550, %551, %cst_239 {dimension_numbers = #tpu.dot_dimension_numbers<[1], [0], [0], [1], [0, 0, 1, 1], [], []>} : vector<8x128xbf16>, vector<128x384xbf16>, vector<8x384xf32> -> vector<8x384xf32>
    %c0_240 = arith.constant 0 : index
    %c0_241 = arith.constant 0 : index
    %553 = vector.load %arg8[%c0_240, %c0_241] : memref<1x384xf32, #tpu.memory_space<vmem>>, vector<1x384xf32>
    %554 = vector.broadcast %553 : vector<1x384xf32> to vector<8x384xf32>
    %555 = arith.addf %552, %554 : vector<8x384xf32>
    %556 = vector.extract_strided_slice %549 {offsets = [0, 0], sizes = [8, 128], strides = [1, 1]} : vector<8x384xf32> to vector<8x128xf32>
    %557 = vector.extract_strided_slice %555 {offsets = [0, 0], sizes = [8, 128], strides = [1, 1]} : vector<8x384xf32> to vector<8x128xf32>
    %558 = arith.addf %556, %557 : vector<8x128xf32>
    %cst_242 = arith.constant 5.000000e-01 : f32
    %559 = vector.broadcast %cst_242 : f32 to vector<8x128xf32>
    %560 = arith.mulf %559, %558 : vector<8x128xf32>
    %561 = math.tanh %560 : vector<8x128xf32>
    %cst_243 = arith.constant 5.000000e-01 : f32
    %562 = vector.broadcast %cst_243 : f32 to vector<8x128xf32>
    %563 = arith.mulf %562, %561 : vector<8x128xf32>
    %cst_244 = arith.constant 5.000000e-01 : f32
    %564 = vector.broadcast %cst_244 : f32 to vector<8x128xf32>
    %565 = arith.addf %563, %564 : vector<8x128xf32>
    %566 = vector.extract_strided_slice %549 {offsets = [0, 128], sizes = [8, 128], strides = [1, 1]} : vector<8x384xf32> to vector<8x128xf32>
    %567 = vector.extract_strided_slice %555 {offsets = [0, 128], sizes = [8, 128], strides = [1, 1]} : vector<8x384xf32> to vector<8x128xf32>
    %568 = arith.addf %566, %567 : vector<8x128xf32>
    %cst_245 = arith.constant 5.000000e-01 : f32
    %569 = vector.broadcast %cst_245 : f32 to vector<8x128xf32>
    %570 = arith.mulf %569, %568 : vector<8x128xf32>
    %571 = math.tanh %570 : vector<8x128xf32>
    %cst_246 = arith.constant 5.000000e-01 : f32
    %572 = vector.broadcast %cst_246 : f32 to vector<8x128xf32>
    %573 = arith.mulf %572, %571 : vector<8x128xf32>
    %cst_247 = arith.constant 5.000000e-01 : f32
    %574 = vector.broadcast %cst_247 : f32 to vector<8x128xf32>
    %575 = arith.addf %573, %574 : vector<8x128xf32>
    %576 = vector.extract_strided_slice %549 {offsets = [0, 256], sizes = [8, 128], strides = [1, 1]} : vector<8x384xf32> to vector<8x128xf32>
    %577 = vector.extract_strided_slice %555 {offsets = [0, 256], sizes = [8, 128], strides = [1, 1]} : vector<8x384xf32> to vector<8x128xf32>
    %578 = arith.mulf %565, %577 : vector<8x128xf32>
    %579 = arith.addf %576, %578 : vector<8x128xf32>
    %580 = math.tanh %579 : vector<8x128xf32>
    %cst_248 = arith.constant 1.000000e+00 : f32
    %581 = vector.broadcast %cst_248 : f32 to vector<8x128xf32>
    %582 = arith.subf %581, %575 : vector<8x128xf32>
    %583 = arith.mulf %582, %580 : vector<8x128xf32>
    %584 = arith.mulf %575, %547 : vector<8x128xf32>
    %585 = arith.addf %583, %584 : vector<8x128xf32>
    %c48_249 = arith.constant 48 : index
    %c0_250 = arith.constant 0 : index
    %586 = vector.load %arg17[%c48_249, %c0_250] : memref<64x128xf32, #tpu.memory_space<vmem>>, vector<8x128xf32>
    tpu.vector_store %arg17[%c48_249, %c0_250], %585 {strides = array<i32>} : memref<64x128xf32, #tpu.memory_space<vmem>>, vector<8x128xf32>,
    %c56_251 = arith.constant 56 : index
    %c0_252 = arith.constant 0 : index
    %587 = vector.load %arg16[%c56_251, %c0_252] : memref<64x384xf32, #tpu.memory_space<vmem>>, vector<8x384xf32>
    %588 = arith.truncf %585 : vector<8x128xf32> to vector<8x128xbf16>
    %c0_253 = arith.constant 0 : index
    %c0_254 = arith.constant 0 : index
    %589 = vector.load %arg6[%c0_253, %c0_254] : memref<128x384xbf16, #tpu.memory_space<vmem>>, vector<128x384xbf16>
    %cst_255 = arith.constant dense<0.000000e+00> : vector<8x384xf32>
    %590 = tpu.matmul %588, %589, %cst_255 {dimension_numbers = #tpu.dot_dimension_numbers<[1], [0], [0], [1], [0, 0, 1, 1], [], []>} : vector<8x128xbf16>, vector<128x384xbf16>, vector<8x384xf32> -> vector<8x384xf32>
    %c0_256 = arith.constant 0 : index
    %c0_257 = arith.constant 0 : index
    %591 = vector.load %arg8[%c0_256, %c0_257] : memref<1x384xf32, #tpu.memory_space<vmem>>, vector<1x384xf32>
    %592 = vector.broadcast %591 : vector<1x384xf32> to vector<8x384xf32>
    %593 = arith.addf %590, %592 : vector<8x384xf32>
    %594 = vector.extract_strided_slice %587 {offsets = [0, 0], sizes = [8, 128], strides = [1, 1]} : vector<8x384xf32> to vector<8x128xf32>
    %595 = vector.extract_strided_slice %593 {offsets = [0, 0], sizes = [8, 128], strides = [1, 1]} : vector<8x384xf32> to vector<8x128xf32>
    %596 = arith.addf %594, %595 : vector<8x128xf32>
    %cst_258 = arith.constant 5.000000e-01 : f32
    %597 = vector.broadcast %cst_258 : f32 to vector<8x128xf32>
    %598 = arith.mulf %597, %596 : vector<8x128xf32>
    %599 = math.tanh %598 : vector<8x128xf32>
    %cst_259 = arith.constant 5.000000e-01 : f32
    %600 = vector.broadcast %cst_259 : f32 to vector<8x128xf32>
    %601 = arith.mulf %600, %599 : vector<8x128xf32>
    %cst_260 = arith.constant 5.000000e-01 : f32
    %602 = vector.broadcast %cst_260 : f32 to vector<8x128xf32>
    %603 = arith.addf %601, %602 : vector<8x128xf32>
    %604 = vector.extract_strided_slice %587 {offsets = [0, 128], sizes = [8, 128], strides = [1, 1]} : vector<8x384xf32> to vector<8x128xf32>
    %605 = vector.extract_strided_slice %593 {offsets = [0, 128], sizes = [8, 128], strides = [1, 1]} : vector<8x384xf32> to vector<8x128xf32>
    %606 = arith.addf %604, %605 : vector<8x128xf32>
    %cst_261 = arith.constant 5.000000e-01 : f32
    %607 = vector.broadcast %cst_261 : f32 to vector<8x128xf32>
    %608 = arith.mulf %607, %606 : vector<8x128xf32>
    %609 = math.tanh %608 : vector<8x128xf32>
    %cst_262 = arith.constant 5.000000e-01 : f32
    %610 = vector.broadcast %cst_262 : f32 to vector<8x128xf32>
    %611 = arith.mulf %610, %609 : vector<8x128xf32>
    %cst_263 = arith.constant 5.000000e-01 : f32
    %612 = vector.broadcast %cst_263 : f32 to vector<8x128xf32>
    %613 = arith.addf %611, %612 : vector<8x128xf32>
    %614 = vector.extract_strided_slice %587 {offsets = [0, 256], sizes = [8, 128], strides = [1, 1]} : vector<8x384xf32> to vector<8x128xf32>
    %615 = vector.extract_strided_slice %593 {offsets = [0, 256], sizes = [8, 128], strides = [1, 1]} : vector<8x384xf32> to vector<8x128xf32>
    %616 = arith.mulf %603, %615 : vector<8x128xf32>
    %617 = arith.addf %614, %616 : vector<8x128xf32>
    %618 = math.tanh %617 : vector<8x128xf32>
    %cst_264 = arith.constant 1.000000e+00 : f32
    %619 = vector.broadcast %cst_264 : f32 to vector<8x128xf32>
    %620 = arith.subf %619, %613 : vector<8x128xf32>
    %621 = arith.mulf %620, %618 : vector<8x128xf32>
    %622 = arith.mulf %613, %585 : vector<8x128xf32>
    %623 = arith.addf %621, %622 : vector<8x128xf32>
    %c56_265 = arith.constant 56 : index
    %c0_266 = arith.constant 0 : index
    %624 = vector.load %arg17[%c56_265, %c0_266] : memref<64x128xf32, #tpu.memory_space<vmem>>, vector<8x128xf32>
    tpu.vector_store %arg17[%c56_265, %c0_266], %623 {strides = array<i32>} : memref<64x128xf32, #tpu.memory_space<vmem>>, vector<8x128xf32>,
    %c0_267 = arith.constant 0 : index
    %c0_268 = arith.constant 0 : index
    %625 = vector.load %arg17[%c0_267, %c0_268] : memref<64x128xf32, #tpu.memory_space<vmem>>, vector<64x128xf32>
    %626 = arith.truncf %625 : vector<64x128xf32> to vector<64x128xbf16>
    %c0_269 = arith.constant 0 : index
    %c0_270 = arith.constant 0 : index
    %627 = vector.load %arg9[%c0_269, %c0_270] : memref<128x384xbf16, #tpu.memory_space<vmem>>, vector<128x384xbf16>
    %cst_271 = arith.constant dense<0.000000e+00> : vector<64x384xf32>
    %628 = tpu.matmul %626, %627, %cst_271 {dimension_numbers = #tpu.dot_dimension_numbers<[1], [0], [0], [1], [0, 0, 1, 1], [], []>} : vector<64x128xbf16>, vector<128x384xbf16>, vector<64x384xf32> -> vector<64x384xf32>
    %c0_272 = arith.constant 0 : index
    %c0_273 = arith.constant 0 : index
    %629 = vector.load %arg11[%c0_272, %c0_273] : memref<1x384xf32, #tpu.memory_space<vmem>>, vector<1x384xf32>
    %630 = vector.broadcast %629 : vector<1x384xf32> to vector<64x384xf32>
    %631 = arith.addf %628, %630 : vector<64x384xf32>
    %c0_274 = arith.constant 0 : index
    %c0_275 = arith.constant 0 : index
    %632 = vector.load %arg16[%c0_274, %c0_275] : memref<64x384xf32, #tpu.memory_space<vmem>>, vector<64x384xf32>
    tpu.vector_store %arg16[%c0_274, %c0_275], %631 {strides = array<i32>} : memref<64x384xf32, #tpu.memory_space<vmem>>, vector<64x384xf32>,
    %cst_276 = arith.constant 0.000000e+00 : f32
    %633 = vector.broadcast %cst_276 : f32 to vector<8x128xf32>
    %c0_277 = arith.constant 0 : index
    %c0_278 = arith.constant 0 : index
    %634 = vector.load %arg16[%c0_277, %c0_278] : memref<64x384xf32, #tpu.memory_space<vmem>>, vector<8x384xf32>
    %635 = arith.truncf %633 : vector<8x128xf32> to vector<8x128xbf16>
    %c0_279 = arith.constant 0 : index
    %c0_280 = arith.constant 0 : index
    %636 = vector.load %arg10[%c0_279, %c0_280] : memref<128x384xbf16, #tpu.memory_space<vmem>>, vector<128x384xbf16>
    %cst_281 = arith.constant dense<0.000000e+00> : vector<8x384xf32>
    %637 = tpu.matmul %635, %636, %cst_281 {dimension_numbers = #tpu.dot_dimension_numbers<[1], [0], [0], [1], [0, 0, 1, 1], [], []>} : vector<8x128xbf16>, vector<128x384xbf16>, vector<8x384xf32> -> vector<8x384xf32>
    %c0_282 = arith.constant 0 : index
    %c0_283 = arith.constant 0 : index
    %638 = vector.load %arg12[%c0_282, %c0_283] : memref<1x384xf32, #tpu.memory_space<vmem>>, vector<1x384xf32>
    %639 = vector.broadcast %638 : vector<1x384xf32> to vector<8x384xf32>
    %640 = arith.addf %637, %639 : vector<8x384xf32>
    %641 = vector.extract_strided_slice %634 {offsets = [0, 0], sizes = [8, 128], strides = [1, 1]} : vector<8x384xf32> to vector<8x128xf32>
    %642 = vector.extract_strided_slice %640 {offsets = [0, 0], sizes = [8, 128], strides = [1, 1]} : vector<8x384xf32> to vector<8x128xf32>
    %643 = arith.addf %641, %642 : vector<8x128xf32>
    %cst_284 = arith.constant 5.000000e-01 : f32
    %644 = vector.broadcast %cst_284 : f32 to vector<8x128xf32>
    %645 = arith.mulf %644, %643 : vector<8x128xf32>
    %646 = math.tanh %645 : vector<8x128xf32>
    %cst_285 = arith.constant 5.000000e-01 : f32
    %647 = vector.broadcast %cst_285 : f32 to vector<8x128xf32>
    %648 = arith.mulf %647, %646 : vector<8x128xf32>
    %cst_286 = arith.constant 5.000000e-01 : f32
    %649 = vector.broadcast %cst_286 : f32 to vector<8x128xf32>
    %650 = arith.addf %648, %649 : vector<8x128xf32>
    %651 = vector.extract_strided_slice %634 {offsets = [0, 128], sizes = [8, 128], strides = [1, 1]} : vector<8x384xf32> to vector<8x128xf32>
    %652 = vector.extract_strided_slice %640 {offsets = [0, 128], sizes = [8, 128], strides = [1, 1]} : vector<8x384xf32> to vector<8x128xf32>
    %653 = arith.addf %651, %652 : vector<8x128xf32>
    %cst_287 = arith.constant 5.000000e-01 : f32
    %654 = vector.broadcast %cst_287 : f32 to vector<8x128xf32>
    %655 = arith.mulf %654, %653 : vector<8x128xf32>
    %656 = math.tanh %655 : vector<8x128xf32>
    %cst_288 = arith.constant 5.000000e-01 : f32
    %657 = vector.broadcast %cst_288 : f32 to vector<8x128xf32>
    %658 = arith.mulf %657, %656 : vector<8x128xf32>
    %cst_289 = arith.constant 5.000000e-01 : f32
    %659 = vector.broadcast %cst_289 : f32 to vector<8x128xf32>
    %660 = arith.addf %658, %659 : vector<8x128xf32>
    %661 = vector.extract_strided_slice %634 {offsets = [0, 256], sizes = [8, 128], strides = [1, 1]} : vector<8x384xf32> to vector<8x128xf32>
    %662 = vector.extract_strided_slice %640 {offsets = [0, 256], sizes = [8, 128], strides = [1, 1]} : vector<8x384xf32> to vector<8x128xf32>
    %663 = arith.mulf %650, %662 : vector<8x128xf32>
    %664 = arith.addf %661, %663 : vector<8x128xf32>
    %665 = math.tanh %664 : vector<8x128xf32>
    %cst_290 = arith.constant 1.000000e+00 : f32
    %666 = vector.broadcast %cst_290 : f32 to vector<8x128xf32>
    %667 = arith.subf %666, %660 : vector<8x128xf32>
    %668 = arith.mulf %667, %665 : vector<8x128xf32>
    %669 = arith.mulf %660, %633 : vector<8x128xf32>
    %670 = arith.addf %668, %669 : vector<8x128xf32>
    %c8_291 = arith.constant 8 : index
    %c0_292 = arith.constant 0 : index
    %671 = vector.load %arg16[%c8_291, %c0_292] : memref<64x384xf32, #tpu.memory_space<vmem>>, vector<8x384xf32>
    %672 = arith.truncf %670 : vector<8x128xf32> to vector<8x128xbf16>
    %c0_293 = arith.constant 0 : index
    %c0_294 = arith.constant 0 : index
    %673 = vector.load %arg10[%c0_293, %c0_294] : memref<128x384xbf16, #tpu.memory_space<vmem>>, vector<128x384xbf16>
    %cst_295 = arith.constant dense<0.000000e+00> : vector<8x384xf32>
    %674 = tpu.matmul %672, %673, %cst_295 {dimension_numbers = #tpu.dot_dimension_numbers<[1], [0], [0], [1], [0, 0, 1, 1], [], []>} : vector<8x128xbf16>, vector<128x384xbf16>, vector<8x384xf32> -> vector<8x384xf32>
    %c0_296 = arith.constant 0 : index
    %c0_297 = arith.constant 0 : index
    %675 = vector.load %arg12[%c0_296, %c0_297] : memref<1x384xf32, #tpu.memory_space<vmem>>, vector<1x384xf32>
    %676 = vector.broadcast %675 : vector<1x384xf32> to vector<8x384xf32>
    %677 = arith.addf %674, %676 : vector<8x384xf32>
    %678 = vector.extract_strided_slice %671 {offsets = [0, 0], sizes = [8, 128], strides = [1, 1]} : vector<8x384xf32> to vector<8x128xf32>
    %679 = vector.extract_strided_slice %677 {offsets = [0, 0], sizes = [8, 128], strides = [1, 1]} : vector<8x384xf32> to vector<8x128xf32>
    %680 = arith.addf %678, %679 : vector<8x128xf32>
    %cst_298 = arith.constant 5.000000e-01 : f32
    %681 = vector.broadcast %cst_298 : f32 to vector<8x128xf32>
    %682 = arith.mulf %681, %680 : vector<8x128xf32>
    %683 = math.tanh %682 : vector<8x128xf32>
    %cst_299 = arith.constant 5.000000e-01 : f32
    %684 = vector.broadcast %cst_299 : f32 to vector<8x128xf32>
    %685 = arith.mulf %684, %683 : vector<8x128xf32>
    %cst_300 = arith.constant 5.000000e-01 : f32
    %686 = vector.broadcast %cst_300 : f32 to vector<8x128xf32>
    %687 = arith.addf %685, %686 : vector<8x128xf32>
    %688 = vector.extract_strided_slice %671 {offsets = [0, 128], sizes = [8, 128], strides = [1, 1]} : vector<8x384xf32> to vector<8x128xf32>
    %689 = vector.extract_strided_slice %677 {offsets = [0, 128], sizes = [8, 128], strides = [1, 1]} : vector<8x384xf32> to vector<8x128xf32>
    %690 = arith.addf %688, %689 : vector<8x128xf32>
    %cst_301 = arith.constant 5.000000e-01 : f32
    %691 = vector.broadcast %cst_301 : f32 to vector<8x128xf32>
    %692 = arith.mulf %691, %690 : vector<8x128xf32>
    %693 = math.tanh %692 : vector<8x128xf32>
    %cst_302 = arith.constant 5.000000e-01 : f32
    %694 = vector.broadcast %cst_302 : f32 to vector<8x128xf32>
    %695 = arith.mulf %694, %693 : vector<8x128xf32>
    %cst_303 = arith.constant 5.000000e-01 : f32
    %696 = vector.broadcast %cst_303 : f32 to vector<8x128xf32>
    %697 = arith.addf %695, %696 : vector<8x128xf32>
    %698 = vector.extract_strided_slice %671 {offsets = [0, 256], sizes = [8, 128], strides = [1, 1]} : vector<8x384xf32> to vector<8x128xf32>
    %699 = vector.extract_strided_slice %677 {offsets = [0, 256], sizes = [8, 128], strides = [1, 1]} : vector<8x384xf32> to vector<8x128xf32>
    %700 = arith.mulf %687, %699 : vector<8x128xf32>
    %701 = arith.addf %698, %700 : vector<8x128xf32>
    %702 = math.tanh %701 : vector<8x128xf32>
    %cst_304 = arith.constant 1.000000e+00 : f32
    %703 = vector.broadcast %cst_304 : f32 to vector<8x128xf32>
    %704 = arith.subf %703, %697 : vector<8x128xf32>
    %705 = arith.mulf %704, %702 : vector<8x128xf32>
    %706 = arith.mulf %697, %670 : vector<8x128xf32>
    %707 = arith.addf %705, %706 : vector<8x128xf32>
    %c16_305 = arith.constant 16 : index
    %c0_306 = arith.constant 0 : index
    %708 = vector.load %arg16[%c16_305, %c0_306] : memref<64x384xf32, #tpu.memory_space<vmem>>, vector<8x384xf32>
    %709 = arith.truncf %707 : vector<8x128xf32> to vector<8x128xbf16>
    %c0_307 = arith.constant 0 : index
    %c0_308 = arith.constant 0 : index
    %710 = vector.load %arg10[%c0_307, %c0_308] : memref<128x384xbf16, #tpu.memory_space<vmem>>, vector<128x384xbf16>
    %cst_309 = arith.constant dense<0.000000e+00> : vector<8x384xf32>
    %711 = tpu.matmul %709, %710, %cst_309 {dimension_numbers = #tpu.dot_dimension_numbers<[1], [0], [0], [1], [0, 0, 1, 1], [], []>} : vector<8x128xbf16>, vector<128x384xbf16>, vector<8x384xf32> -> vector<8x384xf32>
    %c0_310 = arith.constant 0 : index
    %c0_311 = arith.constant 0 : index
    %712 = vector.load %arg12[%c0_310, %c0_311] : memref<1x384xf32, #tpu.memory_space<vmem>>, vector<1x384xf32>
    %713 = vector.broadcast %712 : vector<1x384xf32> to vector<8x384xf32>
    %714 = arith.addf %711, %713 : vector<8x384xf32>
    %715 = vector.extract_strided_slice %708 {offsets = [0, 0], sizes = [8, 128], strides = [1, 1]} : vector<8x384xf32> to vector<8x128xf32>
    %716 = vector.extract_strided_slice %714 {offsets = [0, 0], sizes = [8, 128], strides = [1, 1]} : vector<8x384xf32> to vector<8x128xf32>
    %717 = arith.addf %715, %716 : vector<8x128xf32>
    %cst_312 = arith.constant 5.000000e-01 : f32
    %718 = vector.broadcast %cst_312 : f32 to vector<8x128xf32>
    %719 = arith.mulf %718, %717 : vector<8x128xf32>
    %720 = math.tanh %719 : vector<8x128xf32>
    %cst_313 = arith.constant 5.000000e-01 : f32
    %721 = vector.broadcast %cst_313 : f32 to vector<8x128xf32>
    %722 = arith.mulf %721, %720 : vector<8x128xf32>
    %cst_314 = arith.constant 5.000000e-01 : f32
    %723 = vector.broadcast %cst_314 : f32 to vector<8x128xf32>
    %724 = arith.addf %722, %723 : vector<8x128xf32>
    %725 = vector.extract_strided_slice %708 {offsets = [0, 128], sizes = [8, 128], strides = [1, 1]} : vector<8x384xf32> to vector<8x128xf32>
    %726 = vector.extract_strided_slice %714 {offsets = [0, 128], sizes = [8, 128], strides = [1, 1]} : vector<8x384xf32> to vector<8x128xf32>
    %727 = arith.addf %725, %726 : vector<8x128xf32>
    %cst_315 = arith.constant 5.000000e-01 : f32
    %728 = vector.broadcast %cst_315 : f32 to vector<8x128xf32>
    %729 = arith.mulf %728, %727 : vector<8x128xf32>
    %730 = math.tanh %729 : vector<8x128xf32>
    %cst_316 = arith.constant 5.000000e-01 : f32
    %731 = vector.broadcast %cst_316 : f32 to vector<8x128xf32>
    %732 = arith.mulf %731, %730 : vector<8x128xf32>
    %cst_317 = arith.constant 5.000000e-01 : f32
    %733 = vector.broadcast %cst_317 : f32 to vector<8x128xf32>
    %734 = arith.addf %732, %733 : vector<8x128xf32>
    %735 = vector.extract_strided_slice %708 {offsets = [0, 256], sizes = [8, 128], strides = [1, 1]} : vector<8x384xf32> to vector<8x128xf32>
    %736 = vector.extract_strided_slice %714 {offsets = [0, 256], sizes = [8, 128], strides = [1, 1]} : vector<8x384xf32> to vector<8x128xf32>
    %737 = arith.mulf %724, %736 : vector<8x128xf32>
    %738 = arith.addf %735, %737 : vector<8x128xf32>
    %739 = math.tanh %738 : vector<8x128xf32>
    %cst_318 = arith.constant 1.000000e+00 : f32
    %740 = vector.broadcast %cst_318 : f32 to vector<8x128xf32>
    %741 = arith.subf %740, %734 : vector<8x128xf32>
    %742 = arith.mulf %741, %739 : vector<8x128xf32>
    %743 = arith.mulf %734, %707 : vector<8x128xf32>
    %744 = arith.addf %742, %743 : vector<8x128xf32>
    %c24_319 = arith.constant 24 : index
    %c0_320 = arith.constant 0 : index
    %745 = vector.load %arg16[%c24_319, %c0_320] : memref<64x384xf32, #tpu.memory_space<vmem>>, vector<8x384xf32>
    %746 = arith.truncf %744 : vector<8x128xf32> to vector<8x128xbf16>
    %c0_321 = arith.constant 0 : index
    %c0_322 = arith.constant 0 : index
    %747 = vector.load %arg10[%c0_321, %c0_322] : memref<128x384xbf16, #tpu.memory_space<vmem>>, vector<128x384xbf16>
    %cst_323 = arith.constant dense<0.000000e+00> : vector<8x384xf32>
    %748 = tpu.matmul %746, %747, %cst_323 {dimension_numbers = #tpu.dot_dimension_numbers<[1], [0], [0], [1], [0, 0, 1, 1], [], []>} : vector<8x128xbf16>, vector<128x384xbf16>, vector<8x384xf32> -> vector<8x384xf32>
    %c0_324 = arith.constant 0 : index
    %c0_325 = arith.constant 0 : index
    %749 = vector.load %arg12[%c0_324, %c0_325] : memref<1x384xf32, #tpu.memory_space<vmem>>, vector<1x384xf32>
    %750 = vector.broadcast %749 : vector<1x384xf32> to vector<8x384xf32>
    %751 = arith.addf %748, %750 : vector<8x384xf32>
    %752 = vector.extract_strided_slice %745 {offsets = [0, 0], sizes = [8, 128], strides = [1, 1]} : vector<8x384xf32> to vector<8x128xf32>
    %753 = vector.extract_strided_slice %751 {offsets = [0, 0], sizes = [8, 128], strides = [1, 1]} : vector<8x384xf32> to vector<8x128xf32>
    %754 = arith.addf %752, %753 : vector<8x128xf32>
    %cst_326 = arith.constant 5.000000e-01 : f32
    %755 = vector.broadcast %cst_326 : f32 to vector<8x128xf32>
    %756 = arith.mulf %755, %754 : vector<8x128xf32>
    %757 = math.tanh %756 : vector<8x128xf32>
    %cst_327 = arith.constant 5.000000e-01 : f32
    %758 = vector.broadcast %cst_327 : f32 to vector<8x128xf32>
    %759 = arith.mulf %758, %757 : vector<8x128xf32>
    %cst_328 = arith.constant 5.000000e-01 : f32
    %760 = vector.broadcast %cst_328 : f32 to vector<8x128xf32>
    %761 = arith.addf %759, %760 : vector<8x128xf32>
    %762 = vector.extract_strided_slice %745 {offsets = [0, 128], sizes = [8, 128], strides = [1, 1]} : vector<8x384xf32> to vector<8x128xf32>
    %763 = vector.extract_strided_slice %751 {offsets = [0, 128], sizes = [8, 128], strides = [1, 1]} : vector<8x384xf32> to vector<8x128xf32>
    %764 = arith.addf %762, %763 : vector<8x128xf32>
    %cst_329 = arith.constant 5.000000e-01 : f32
    %765 = vector.broadcast %cst_329 : f32 to vector<8x128xf32>
    %766 = arith.mulf %765, %764 : vector<8x128xf32>
    %767 = math.tanh %766 : vector<8x128xf32>
    %cst_330 = arith.constant 5.000000e-01 : f32
    %768 = vector.broadcast %cst_330 : f32 to vector<8x128xf32>
    %769 = arith.mulf %768, %767 : vector<8x128xf32>
    %cst_331 = arith.constant 5.000000e-01 : f32
    %770 = vector.broadcast %cst_331 : f32 to vector<8x128xf32>
    %771 = arith.addf %769, %770 : vector<8x128xf32>
    %772 = vector.extract_strided_slice %745 {offsets = [0, 256], sizes = [8, 128], strides = [1, 1]} : vector<8x384xf32> to vector<8x128xf32>
    %773 = vector.extract_strided_slice %751 {offsets = [0, 256], sizes = [8, 128], strides = [1, 1]} : vector<8x384xf32> to vector<8x128xf32>
    %774 = arith.mulf %761, %773 : vector<8x128xf32>
    %775 = arith.addf %772, %774 : vector<8x128xf32>
    %776 = math.tanh %775 : vector<8x128xf32>
    %cst_332 = arith.constant 1.000000e+00 : f32
    %777 = vector.broadcast %cst_332 : f32 to vector<8x128xf32>
    %778 = arith.subf %777, %771 : vector<8x128xf32>
    %779 = arith.mulf %778, %776 : vector<8x128xf32>
    %780 = arith.mulf %771, %744 : vector<8x128xf32>
    %781 = arith.addf %779, %780 : vector<8x128xf32>
    %c32_333 = arith.constant 32 : index
    %c0_334 = arith.constant 0 : index
    %782 = vector.load %arg16[%c32_333, %c0_334] : memref<64x384xf32, #tpu.memory_space<vmem>>, vector<8x384xf32>
    %783 = arith.truncf %781 : vector<8x128xf32> to vector<8x128xbf16>
    %c0_335 = arith.constant 0 : index
    %c0_336 = arith.constant 0 : index
    %784 = vector.load %arg10[%c0_335, %c0_336] : memref<128x384xbf16, #tpu.memory_space<vmem>>, vector<128x384xbf16>
    %cst_337 = arith.constant dense<0.000000e+00> : vector<8x384xf32>
    %785 = tpu.matmul %783, %784, %cst_337 {dimension_numbers = #tpu.dot_dimension_numbers<[1], [0], [0], [1], [0, 0, 1, 1], [], []>} : vector<8x128xbf16>, vector<128x384xbf16>, vector<8x384xf32> -> vector<8x384xf32>
    %c0_338 = arith.constant 0 : index
    %c0_339 = arith.constant 0 : index
    %786 = vector.load %arg12[%c0_338, %c0_339] : memref<1x384xf32, #tpu.memory_space<vmem>>, vector<1x384xf32>
    %787 = vector.broadcast %786 : vector<1x384xf32> to vector<8x384xf32>
    %788 = arith.addf %785, %787 : vector<8x384xf32>
    %789 = vector.extract_strided_slice %782 {offsets = [0, 0], sizes = [8, 128], strides = [1, 1]} : vector<8x384xf32> to vector<8x128xf32>
    %790 = vector.extract_strided_slice %788 {offsets = [0, 0], sizes = [8, 128], strides = [1, 1]} : vector<8x384xf32> to vector<8x128xf32>
    %791 = arith.addf %789, %790 : vector<8x128xf32>
    %cst_340 = arith.constant 5.000000e-01 : f32
    %792 = vector.broadcast %cst_340 : f32 to vector<8x128xf32>
    %793 = arith.mulf %792, %791 : vector<8x128xf32>
    %794 = math.tanh %793 : vector<8x128xf32>
    %cst_341 = arith.constant 5.000000e-01 : f32
    %795 = vector.broadcast %cst_341 : f32 to vector<8x128xf32>
    %796 = arith.mulf %795, %794 : vector<8x128xf32>
    %cst_342 = arith.constant 5.000000e-01 : f32
    %797 = vector.broadcast %cst_342 : f32 to vector<8x128xf32>
    %798 = arith.addf %796, %797 : vector<8x128xf32>
    %799 = vector.extract_strided_slice %782 {offsets = [0, 128], sizes = [8, 128], strides = [1, 1]} : vector<8x384xf32> to vector<8x128xf32>
    %800 = vector.extract_strided_slice %788 {offsets = [0, 128], sizes = [8, 128], strides = [1, 1]} : vector<8x384xf32> to vector<8x128xf32>
    %801 = arith.addf %799, %800 : vector<8x128xf32>
    %cst_343 = arith.constant 5.000000e-01 : f32
    %802 = vector.broadcast %cst_343 : f32 to vector<8x128xf32>
    %803 = arith.mulf %802, %801 : vector<8x128xf32>
    %804 = math.tanh %803 : vector<8x128xf32>
    %cst_344 = arith.constant 5.000000e-01 : f32
    %805 = vector.broadcast %cst_344 : f32 to vector<8x128xf32>
    %806 = arith.mulf %805, %804 : vector<8x128xf32>
    %cst_345 = arith.constant 5.000000e-01 : f32
    %807 = vector.broadcast %cst_345 : f32 to vector<8x128xf32>
    %808 = arith.addf %806, %807 : vector<8x128xf32>
    %809 = vector.extract_strided_slice %782 {offsets = [0, 256], sizes = [8, 128], strides = [1, 1]} : vector<8x384xf32> to vector<8x128xf32>
    %810 = vector.extract_strided_slice %788 {offsets = [0, 256], sizes = [8, 128], strides = [1, 1]} : vector<8x384xf32> to vector<8x128xf32>
    %811 = arith.mulf %798, %810 : vector<8x128xf32>
    %812 = arith.addf %809, %811 : vector<8x128xf32>
    %813 = math.tanh %812 : vector<8x128xf32>
    %cst_346 = arith.constant 1.000000e+00 : f32
    %814 = vector.broadcast %cst_346 : f32 to vector<8x128xf32>
    %815 = arith.subf %814, %808 : vector<8x128xf32>
    %816 = arith.mulf %815, %813 : vector<8x128xf32>
    %817 = arith.mulf %808, %781 : vector<8x128xf32>
    %818 = arith.addf %816, %817 : vector<8x128xf32>
    %c40_347 = arith.constant 40 : index
    %c0_348 = arith.constant 0 : index
    %819 = vector.load %arg16[%c40_347, %c0_348] : memref<64x384xf32, #tpu.memory_space<vmem>>, vector<8x384xf32>
    %820 = arith.truncf %818 : vector<8x128xf32> to vector<8x128xbf16>
    %c0_349 = arith.constant 0 : index
    %c0_350 = arith.constant 0 : index
    %821 = vector.load %arg10[%c0_349, %c0_350] : memref<128x384xbf16, #tpu.memory_space<vmem>>, vector<128x384xbf16>
    %cst_351 = arith.constant dense<0.000000e+00> : vector<8x384xf32>
    %822 = tpu.matmul %820, %821, %cst_351 {dimension_numbers = #tpu.dot_dimension_numbers<[1], [0], [0], [1], [0, 0, 1, 1], [], []>} : vector<8x128xbf16>, vector<128x384xbf16>, vector<8x384xf32> -> vector<8x384xf32>
    %c0_352 = arith.constant 0 : index
    %c0_353 = arith.constant 0 : index
    %823 = vector.load %arg12[%c0_352, %c0_353] : memref<1x384xf32, #tpu.memory_space<vmem>>, vector<1x384xf32>
    %824 = vector.broadcast %823 : vector<1x384xf32> to vector<8x384xf32>
    %825 = arith.addf %822, %824 : vector<8x384xf32>
    %826 = vector.extract_strided_slice %819 {offsets = [0, 0], sizes = [8, 128], strides = [1, 1]} : vector<8x384xf32> to vector<8x128xf32>
    %827 = vector.extract_strided_slice %825 {offsets = [0, 0], sizes = [8, 128], strides = [1, 1]} : vector<8x384xf32> to vector<8x128xf32>
    %828 = arith.addf %826, %827 : vector<8x128xf32>
    %cst_354 = arith.constant 5.000000e-01 : f32
    %829 = vector.broadcast %cst_354 : f32 to vector<8x128xf32>
    %830 = arith.mulf %829, %828 : vector<8x128xf32>
    %831 = math.tanh %830 : vector<8x128xf32>
    %cst_355 = arith.constant 5.000000e-01 : f32
    %832 = vector.broadcast %cst_355 : f32 to vector<8x128xf32>
    %833 = arith.mulf %832, %831 : vector<8x128xf32>
    %cst_356 = arith.constant 5.000000e-01 : f32
    %834 = vector.broadcast %cst_356 : f32 to vector<8x128xf32>
    %835 = arith.addf %833, %834 : vector<8x128xf32>
    %836 = vector.extract_strided_slice %819 {offsets = [0, 128], sizes = [8, 128], strides = [1, 1]} : vector<8x384xf32> to vector<8x128xf32>
    %837 = vector.extract_strided_slice %825 {offsets = [0, 128], sizes = [8, 128], strides = [1, 1]} : vector<8x384xf32> to vector<8x128xf32>
    %838 = arith.addf %836, %837 : vector<8x128xf32>
    %cst_357 = arith.constant 5.000000e-01 : f32
    %839 = vector.broadcast %cst_357 : f32 to vector<8x128xf32>
    %840 = arith.mulf %839, %838 : vector<8x128xf32>
    %841 = math.tanh %840 : vector<8x128xf32>
    %cst_358 = arith.constant 5.000000e-01 : f32
    %842 = vector.broadcast %cst_358 : f32 to vector<8x128xf32>
    %843 = arith.mulf %842, %841 : vector<8x128xf32>
    %cst_359 = arith.constant 5.000000e-01 : f32
    %844 = vector.broadcast %cst_359 : f32 to vector<8x128xf32>
    %845 = arith.addf %843, %844 : vector<8x128xf32>
    %846 = vector.extract_strided_slice %819 {offsets = [0, 256], sizes = [8, 128], strides = [1, 1]} : vector<8x384xf32> to vector<8x128xf32>
    %847 = vector.extract_strided_slice %825 {offsets = [0, 256], sizes = [8, 128], strides = [1, 1]} : vector<8x384xf32> to vector<8x128xf32>
    %848 = arith.mulf %835, %847 : vector<8x128xf32>
    %849 = arith.addf %846, %848 : vector<8x128xf32>
    %850 = math.tanh %849 : vector<8x128xf32>
    %cst_360 = arith.constant 1.000000e+00 : f32
    %851 = vector.broadcast %cst_360 : f32 to vector<8x128xf32>
    %852 = arith.subf %851, %845 : vector<8x128xf32>
    %853 = arith.mulf %852, %850 : vector<8x128xf32>
    %854 = arith.mulf %845, %818 : vector<8x128xf32>
    %855 = arith.addf %853, %854 : vector<8x128xf32>
    %c48_361 = arith.constant 48 : index
    %c0_362 = arith.constant 0 : index
    %856 = vector.load %arg16[%c48_361, %c0_362] : memref<64x384xf32, #tpu.memory_space<vmem>>, vector<8x384xf32>
    %857 = arith.truncf %855 : vector<8x128xf32> to vector<8x128xbf16>
    %c0_363 = arith.constant 0 : index
    %c0_364 = arith.constant 0 : index
    %858 = vector.load %arg10[%c0_363, %c0_364] : memref<128x384xbf16, #tpu.memory_space<vmem>>, vector<128x384xbf16>
    %cst_365 = arith.constant dense<0.000000e+00> : vector<8x384xf32>
    %859 = tpu.matmul %857, %858, %cst_365 {dimension_numbers = #tpu.dot_dimension_numbers<[1], [0], [0], [1], [0, 0, 1, 1], [], []>} : vector<8x128xbf16>, vector<128x384xbf16>, vector<8x384xf32> -> vector<8x384xf32>
    %c0_366 = arith.constant 0 : index
    %c0_367 = arith.constant 0 : index
    %860 = vector.load %arg12[%c0_366, %c0_367] : memref<1x384xf32, #tpu.memory_space<vmem>>, vector<1x384xf32>
    %861 = vector.broadcast %860 : vector<1x384xf32> to vector<8x384xf32>
    %862 = arith.addf %859, %861 : vector<8x384xf32>
    %863 = vector.extract_strided_slice %856 {offsets = [0, 0], sizes = [8, 128], strides = [1, 1]} : vector<8x384xf32> to vector<8x128xf32>
    %864 = vector.extract_strided_slice %862 {offsets = [0, 0], sizes = [8, 128], strides = [1, 1]} : vector<8x384xf32> to vector<8x128xf32>
    %865 = arith.addf %863, %864 : vector<8x128xf32>
    %cst_368 = arith.constant 5.000000e-01 : f32
    %866 = vector.broadcast %cst_368 : f32 to vector<8x128xf32>
    %867 = arith.mulf %866, %865 : vector<8x128xf32>
    %868 = math.tanh %867 : vector<8x128xf32>
    %cst_369 = arith.constant 5.000000e-01 : f32
    %869 = vector.broadcast %cst_369 : f32 to vector<8x128xf32>
    %870 = arith.mulf %869, %868 : vector<8x128xf32>
    %cst_370 = arith.constant 5.000000e-01 : f32
    %871 = vector.broadcast %cst_370 : f32 to vector<8x128xf32>
    %872 = arith.addf %870, %871 : vector<8x128xf32>
    %873 = vector.extract_strided_slice %856 {offsets = [0, 128], sizes = [8, 128], strides = [1, 1]} : vector<8x384xf32> to vector<8x128xf32>
    %874 = vector.extract_strided_slice %862 {offsets = [0, 128], sizes = [8, 128], strides = [1, 1]} : vector<8x384xf32> to vector<8x128xf32>
    %875 = arith.addf %873, %874 : vector<8x128xf32>
    %cst_371 = arith.constant 5.000000e-01 : f32
    %876 = vector.broadcast %cst_371 : f32 to vector<8x128xf32>
    %877 = arith.mulf %876, %875 : vector<8x128xf32>
    %878 = math.tanh %877 : vector<8x128xf32>
    %cst_372 = arith.constant 5.000000e-01 : f32
    %879 = vector.broadcast %cst_372 : f32 to vector<8x128xf32>
    %880 = arith.mulf %879, %878 : vector<8x128xf32>
    %cst_373 = arith.constant 5.000000e-01 : f32
    %881 = vector.broadcast %cst_373 : f32 to vector<8x128xf32>
    %882 = arith.addf %880, %881 : vector<8x128xf32>
    %883 = vector.extract_strided_slice %856 {offsets = [0, 256], sizes = [8, 128], strides = [1, 1]} : vector<8x384xf32> to vector<8x128xf32>
    %884 = vector.extract_strided_slice %862 {offsets = [0, 256], sizes = [8, 128], strides = [1, 1]} : vector<8x384xf32> to vector<8x128xf32>
    %885 = arith.mulf %872, %884 : vector<8x128xf32>
    %886 = arith.addf %883, %885 : vector<8x128xf32>
    %887 = math.tanh %886 : vector<8x128xf32>
    %cst_374 = arith.constant 1.000000e+00 : f32
    %888 = vector.broadcast %cst_374 : f32 to vector<8x128xf32>
    %889 = arith.subf %888, %882 : vector<8x128xf32>
    %890 = arith.mulf %889, %887 : vector<8x128xf32>
    %891 = arith.mulf %882, %855 : vector<8x128xf32>
    %892 = arith.addf %890, %891 : vector<8x128xf32>
    %c56_375 = arith.constant 56 : index
    %c0_376 = arith.constant 0 : index
    %893 = vector.load %arg16[%c56_375, %c0_376] : memref<64x384xf32, #tpu.memory_space<vmem>>, vector<8x384xf32>
    %894 = arith.truncf %892 : vector<8x128xf32> to vector<8x128xbf16>
    %c0_377 = arith.constant 0 : index
    %c0_378 = arith.constant 0 : index
    %895 = vector.load %arg10[%c0_377, %c0_378] : memref<128x384xbf16, #tpu.memory_space<vmem>>, vector<128x384xbf16>
    %cst_379 = arith.constant dense<0.000000e+00> : vector<8x384xf32>
    %896 = tpu.matmul %894, %895, %cst_379 {dimension_numbers = #tpu.dot_dimension_numbers<[1], [0], [0], [1], [0, 0, 1, 1], [], []>} : vector<8x128xbf16>, vector<128x384xbf16>, vector<8x384xf32> -> vector<8x384xf32>
    %c0_380 = arith.constant 0 : index
    %c0_381 = arith.constant 0 : index
    %897 = vector.load %arg12[%c0_380, %c0_381] : memref<1x384xf32, #tpu.memory_space<vmem>>, vector<1x384xf32>
    %898 = vector.broadcast %897 : vector<1x384xf32> to vector<8x384xf32>
    %899 = arith.addf %896, %898 : vector<8x384xf32>
    %900 = vector.extract_strided_slice %893 {offsets = [0, 0], sizes = [8, 128], strides = [1, 1]} : vector<8x384xf32> to vector<8x128xf32>
    %901 = vector.extract_strided_slice %899 {offsets = [0, 0], sizes = [8, 128], strides = [1, 1]} : vector<8x384xf32> to vector<8x128xf32>
    %902 = arith.addf %900, %901 : vector<8x128xf32>
    %cst_382 = arith.constant 5.000000e-01 : f32
    %903 = vector.broadcast %cst_382 : f32 to vector<8x128xf32>
    %904 = arith.mulf %903, %902 : vector<8x128xf32>
    %905 = math.tanh %904 : vector<8x128xf32>
    %cst_383 = arith.constant 5.000000e-01 : f32
    %906 = vector.broadcast %cst_383 : f32 to vector<8x128xf32>
    %907 = arith.mulf %906, %905 : vector<8x128xf32>
    %cst_384 = arith.constant 5.000000e-01 : f32
    %908 = vector.broadcast %cst_384 : f32 to vector<8x128xf32>
    %909 = arith.addf %907, %908 : vector<8x128xf32>
    %910 = vector.extract_strided_slice %893 {offsets = [0, 128], sizes = [8, 128], strides = [1, 1]} : vector<8x384xf32> to vector<8x128xf32>
    %911 = vector.extract_strided_slice %899 {offsets = [0, 128], sizes = [8, 128], strides = [1, 1]} : vector<8x384xf32> to vector<8x128xf32>
    %912 = arith.addf %910, %911 : vector<8x128xf32>
    %cst_385 = arith.constant 5.000000e-01 : f32
    %913 = vector.broadcast %cst_385 : f32 to vector<8x128xf32>
    %914 = arith.mulf %913, %912 : vector<8x128xf32>
    %915 = math.tanh %914 : vector<8x128xf32>
    %cst_386 = arith.constant 5.000000e-01 : f32
    %916 = vector.broadcast %cst_386 : f32 to vector<8x128xf32>
    %917 = arith.mulf %916, %915 : vector<8x128xf32>
    %cst_387 = arith.constant 5.000000e-01 : f32
    %918 = vector.broadcast %cst_387 : f32 to vector<8x128xf32>
    %919 = arith.addf %917, %918 : vector<8x128xf32>
    %920 = vector.extract_strided_slice %893 {offsets = [0, 256], sizes = [8, 128], strides = [1, 1]} : vector<8x384xf32> to vector<8x128xf32>
    %921 = vector.extract_strided_slice %899 {offsets = [0, 256], sizes = [8, 128], strides = [1, 1]} : vector<8x384xf32> to vector<8x128xf32>
    %922 = arith.mulf %909, %921 : vector<8x128xf32>
    %923 = arith.addf %920, %922 : vector<8x128xf32>
    %924 = math.tanh %923 : vector<8x128xf32>
    %cst_388 = arith.constant 1.000000e+00 : f32
    %925 = vector.broadcast %cst_388 : f32 to vector<8x128xf32>
    %926 = arith.subf %925, %919 : vector<8x128xf32>
    %927 = arith.mulf %926, %924 : vector<8x128xf32>
    %928 = arith.mulf %919, %892 : vector<8x128xf32>
    %929 = arith.addf %927, %928 : vector<8x128xf32>
    %930 = arith.truncf %929 : vector<8x128xf32> to vector<8x128xbf16>
    %c0_389 = arith.constant 0 : index
    %c0_390 = arith.constant 0 : index
    %931 = vector.load %arg13[%c0_389, %c0_390] : memref<128x128xbf16, #tpu.memory_space<vmem>>, vector<128x128xbf16>
    %cst_391 = arith.constant dense<0.000000e+00> : vector<8x128xf32>
    %932 = tpu.matmul %930, %931, %cst_391 {dimension_numbers = #tpu.dot_dimension_numbers<[1], [0], [0], [1], [0, 0, 1, 1], [], []>} : vector<8x128xbf16>, vector<128x128xbf16>, vector<8x128xf32> -> vector<8x128xf32>
    %c0_392 = arith.constant 0 : index
    %c0_393 = arith.constant 0 : index
    %933 = vector.load %arg14[%c0_392, %c0_393] : memref<1x128xf32, #tpu.memory_space<vmem>>, vector<1x128xf32>
    %934 = vector.broadcast %933 : vector<1x128xf32> to vector<8x128xf32>
    %935 = arith.addf %932, %934 : vector<8x128xf32>
    %cst_394 = arith.constant 0.000000e+00 : f32
    %936 = vector.broadcast %cst_394 : f32 to vector<8x128xf32>
    %937 = arith.maximumf %935, %936 : vector<8x128xf32>
    %c0_395 = arith.constant 0 : index
    %c0_396 = arith.constant 0 : index
    %938 = vector.load %arg15[%c0_395, %c0_396] : memref<8x128xf32, #tpu.memory_space<vmem>>, vector<8x128xf32>
    tpu.vector_store %arg15[%c0_395, %c0_396], %937 {strides = array<i32>} : memref<8x128xf32, #tpu.memory_space<vmem>>, vector<8x128xf32>,
    return
  }
}

</mosaic_0001>

<llo_original>
// kernel: gru_model_forward.1
$region0: #{gru_model_forward.1}
  #allocation0 [shape = 'u32[]', space=smem, size = 0x4, offset = 0x4, fixed_abs, tag = 'smem constant byte address 0x4 - core index']
  #allocation1 [shape = 'u32[144,128]{1,0:T(1,128)}', space=vmem, size = 0x12000, scoped, tag = 'internal scratch']
  #allocation2 [shape = 'f32[64,384]{1,0:T(8,128)}', space=vmem, size = 0x18000, scoped, tag = 'scratch operand']
  #allocation3 [shape = 'f32[64,128]{1,0:T(8,128)}', space=vmem, size = 0x8000, scoped, tag = 'scratch operand']
  %s0 = inlined_call_operand.vmem [shape: bf16[64,128], index: 0, kind: input, shape index: {}]
  %s1 = inlined_call_operand.vmem [shape: bf16[128,384], index: 1, kind: input, shape index: {}]
  %s2 = inlined_call_operand.vmem [shape: bf16[128,384], index: 2, kind: input, shape index: {}]
  %s3 = inlined_call_operand.vmem [shape: f32[1,384], index: 3, kind: input, shape index: {}]
  %s4 = inlined_call_operand.vmem [shape: f32[1,384], index: 4, kind: input, shape index: {}]
  %s5 = inlined_call_operand.vmem [shape: bf16[128,384], index: 5, kind: input, shape index: {}]
  %s6 = inlined_call_operand.vmem [shape: bf16[128,384], index: 6, kind: input, shape index: {}]
  %s7 = inlined_call_operand.vmem [shape: f32[1,384], index: 7, kind: input, shape index: {}]
  %s8 = inlined_call_operand.vmem [shape: f32[1,384], index: 8, kind: input, shape index: {}]
  %s9 = inlined_call_operand.vmem [shape: bf16[128,384], index: 9, kind: input, shape index: {}]
  %s10 = inlined_call_operand.vmem [shape: bf16[128,384], index: 10, kind: input, shape index: {}]
  %s11 = inlined_call_operand.vmem [shape: f32[1,384], index: 11, kind: input, shape index: {}]
  %s12 = inlined_call_operand.vmem [shape: f32[1,384], index: 12, kind: input, shape index: {}]
  %s13 = inlined_call_operand.vmem [shape: bf16[128,128], index: 13, kind: input, shape index: {}]
  %s14 = inlined_call_operand.vmem [shape: f32[1,128], index: 14, kind: input, shape index: {}]
  %s15 = inlined_call_operand.vmem [shape: f32[8,128], index: 15, kind: output, shape index: {}]
  %s16 = sld [smem:[#allocation0]]
  $region70: #{gru_model_forward.1} parent=0
    _
  %s18 = ssub.s32 1, %s16
  %s19 = scalar_select 0, %s18, %s16
  // Predicated region
  $region2: #{gru_model_forward.1} parent=0 // pred_check
    _
  $region3: #{gru_model_forward.1} parent=0 // pred_check_branch
    %21 = sbr.rel (0) target = $region5
  $region4: #{gru_model_forward.1} parent=0 // pred_region
    _
  $region5: #{gru_model_forward.1} parent=0 // pred_fallthru
    _
  // Predicated region
  $region6: #{gru_model_forward.1} parent=0 // pred_check
    _
  $region7: #{gru_model_forward.1} parent=0 // pred_check_branch
    %23 = sbr.rel (0) target = $region9
  $region8: #{gru_model_forward.1} parent=0 // pred_region
    _
  $region9: #{gru_model_forward.1} parent=0 // pred_fallthru
    _
  // Predicated region
  $region10: #{gru_model_forward.1} parent=0 // pred_check
    _
  $region11: #{gru_model_forward.1} parent=0 // pred_check_branch
    %25 = sbr.rel (0) target = $region13
  $region12: #{gru_model_forward.1} parent=0 // pred_region
    _
  $region13: #{gru_model_forward.1} parent=0 // pred_fallthru
    _
  // Predicated region
  $region14: #{gru_model_forward.1} parent=0 // pred_check
    _
  $region15: #{gru_model_forward.1} parent=0 // pred_check_branch
    %27 = sbr.rel (0) target = $region17
  $region16: #{gru_model_forward.1} parent=0 // pred_region
    _
  $region17: #{gru_model_forward.1} parent=0 // pred_fallthru
    _
  // Predicated region
  $region18: #{gru_model_forward.1} parent=0 // pred_check
    _
  $region19: #{gru_model_forward.1} parent=0 // pred_check_branch
    %29 = sbr.rel (0) target = $region21
  $region20: #{gru_model_forward.1} parent=0 // pred_region
    _
  $region21: #{gru_model_forward.1} parent=0 // pred_fallthru
    _
  // Predicated region
  $region22: #{gru_model_forward.1} parent=0 // pred_check
    _
  $region23: #{gru_model_forward.1} parent=0 // pred_check_branch
    %31 = sbr.rel (0) target = $region25
  $region24: #{gru_model_forward.1} parent=0 // pred_region
    _
  $region25: #{gru_model_forward.1} parent=0 // pred_fallthru
    _
  // Predicated region
  $region26: #{gru_model_forward.1} parent=0 // pred_check
    _
  $region27: #{gru_model_forward.1} parent=0 // pred_check_branch
    %33 = sbr.rel (0) target = $region29
  $region28: #{gru_model_forward.1} parent=0 // pred_region
    _
  $region29: #{gru_model_forward.1} parent=0 // pred_fallthru
    _
  // Predicated region
  $region30: #{gru_model_forward.1} parent=0 // pred_check
    _
  $region31: #{gru_model_forward.1} parent=0 // pred_check_branch
    %35 = sbr.rel (0) target = $region33
  $region32: #{gru_model_forward.1} parent=0 // pred_region
    _
  $region33: #{gru_model_forward.1} parent=0 // pred_fallthru
    _
  // Predicated region
  $region34: #{gru_model_forward.1} parent=0 // pred_check
    _
  $region35: #{gru_model_forward.1} parent=0 // pred_check_branch
    %37 = sbr.rel (0) target = $region37
  $region36: #{gru_model_forward.1} parent=0 // pred_region
    _
  $region37: #{gru_model_forward.1} parent=0 // pred_fallthru
    _
  // Predicated region
  $region38: #{gru_model_forward.1} parent=0 // pred_check
    _
  $region39: #{gru_model_forward.1} parent=0 // pred_check_branch
    %39 = sbr.rel (0) target = $region41
  $region40: #{gru_model_forward.1} parent=0 // pred_region
    _
  $region41: #{gru_model_forward.1} parent=0 // pred_fallthru
    _
  // Predicated region
  $region42: #{gru_model_forward.1} parent=0 // pred_check
    _
  $region43: #{gru_model_forward.1} parent=0 // pred_check_branch
    %41 = sbr.rel (0) target = $region45
  $region44: #{gru_model_forward.1} parent=0 // pred_region
    _
  $region45: #{gru_model_forward.1} parent=0 // pred_fallthru
    _
  // Predicated region
  $region46: #{gru_model_forward.1} parent=0 // pred_check
    _
  $region47: #{gru_model_forward.1} parent=0 // pred_check_branch
    %43 = sbr.rel (0) target = $region49
  $region48: #{gru_model_forward.1} parent=0 // pred_region
    _
  $region49: #{gru_model_forward.1} parent=0 // pred_fallthru
    _
  // Predicated region
  $region50: #{gru_model_forward.1} parent=0 // pred_check
    _
  $region51: #{gru_model_forward.1} parent=0 // pred_check_branch
    %45 = sbr.rel (0) target = $region53
  $region52: #{gru_model_forward.1} parent=0 // pred_region
    _
  $region53: #{gru_model_forward.1} parent=0 // pred_fallthru
    _
  // Predicated region
  $region54: #{gru_model_forward.1} parent=0 // pred_check
    _
  $region55: #{gru_model_forward.1} parent=0 // pred_check_branch
    %47 = sbr.rel (0) target = $region57
  $region56: #{gru_model_forward.1} parent=0 // pred_region
    _
  $region57: #{gru_model_forward.1} parent=0 // pred_fallthru
    _
  // Predicated region
  $region58: #{gru_model_forward.1} parent=0 // pred_check
    _
  $region59: #{gru_model_forward.1} parent=0 // pred_check_branch
    %49 = sbr.rel (0) target = $region61
  $region60: #{gru_model_forward.1} parent=0 // pred_region
    _
  $region61: #{gru_model_forward.1} parent=0 // pred_fallthru
    _
  %v51 = vld [vmem:[%s0] sm:$0xf]
  %v52 = vld [vmem:[%s0 + $0x4] sm:$0xf]
  %v53 = vld [vmem:[%s0 + $0x8] sm:$0xf]
  %v54 = vld [vmem:[%s0 + $0xc] sm:$0xf]
  %v55 = vld [vmem:[%s0 + $0x10] sm:$0xf]
  %v56 = vld [vmem:[%s0 + $0x14] sm:$0xf]
  %v57 = vld [vmem:[%s0 + $0x18] sm:$0xf]
  %v58 = vld [vmem:[%s0 + $0x1c] sm:$0xf]
  %v59 = vld [vmem:[%s1] sm:$0xff]
  %v60 = vld [vmem:[%s1 + $0x8] sm:$0xf]
  %v61 = vld [vmem:[%s1 + $0xc] sm:$0xff]
  %v62 = vld [vmem:[%s1 + $0x14] sm:$0xf]
  %v63 = vld [vmem:[%s1 + $0x18] sm:$0xff]
  %v64 = vld [vmem:[%s1 + $0x20] sm:$0xf]
  %v65 = vld [vmem:[%s1 + $0x24] sm:$0xff]
  %v66 = vld [vmem:[%s1 + $0x2c] sm:$0xf]
  %v67 = vld [vmem:[%s1 + $0x30] sm:$0xff]
  %v68 = vld [vmem:[%s1 + $0x38] sm:$0xf]
  %v69 = vld [vmem:[%s1 + $0x3c] sm:$0xff]
  %v70 = vld [vmem:[%s1 + $0x44] sm:$0xf]
  %v71 = vld [vmem:[%s1 + $0x48] sm:$0xff]
  %v72 = vld [vmem:[%s1 + $0x50] sm:$0xf]
  %v73 = vld [vmem:[%s1 + $0x54] sm:$0xff]
  %v74 = vld [vmem:[%s1 + $0x5c] sm:$0xf]
  %v75 = vld [vmem:[%s1 + $0x60] sm:$0xff]
  %v76 = vld [vmem:[%s1 + $0x68] sm:$0xf]
  %v77 = vld [vmem:[%s1 + $0x6c] sm:$0xff]
  %v78 = vld [vmem:[%s1 + $0x74] sm:$0xf]
  %v79 = vld [vmem:[%s1 + $0x78] sm:$0xff]
  %v80 = vld [vmem:[%s1 + $0x80] sm:$0xf]
  %v81 = vld [vmem:[%s1 + $0x84] sm:$0xff]
  %v82 = vld [vmem:[%s1 + $0x8c] sm:$0xf]
  %v83 = vld [vmem:[%s1 + $0x90] sm:$0xff]
  %v84 = vld [vmem:[%s1 + $0x98] sm:$0xf]
  %v85 = vld [vmem:[%s1 + $0x9c] sm:$0xff]
  %v86 = vld [vmem:[%s1 + $0xa4] sm:$0xf]
  %v87 = vld [vmem:[%s1 + $0xa8] sm:$0xff]
  %v88 = vld [vmem:[%s1 + $0xb0] sm:$0xf]
  %v89 = vld [vmem:[%s1 + $0xb4] sm:$0xff]
  %v90 = vld [vmem:[%s1 + $0xbc] sm:$0xf]
  %v91 = vld [vmem:[%s3] sm:$0x7]
  %v93 = vlaneseq
  %v94 = vshrl.u32 %v93, 7
  %v95 = vsub.s32 0, %v94
  %v96 = vrot.slane %v91, %v95
  %v97 = vlaneseq
  %v98 = vshrl.u32 %v97, 7
  %v99 = vsub.s32 1, %v98
  %v100 = vrot.slane %v91, %v99
  %v101 = vlaneseq
  %v102 = vshrl.u32 %v101, 7
  %v103 = vsub.s32 2, %v102
  %v104 = vrot.slane %v91, %v103
  %v116 = vunpack.c.l.b16 %v51
  %v117 = vunpack.c.l.b16 %v52
  %v118 = vunpack.c.l.b16 %v53
  %v119 = vunpack.c.l.b16 %v54
  %v120 = vunpack.c.l.b16 %v55
  %v121 = vunpack.c.l.b16 %v56
  %v122 = vunpack.c.l.b16 %v57
  %v123 = vunpack.c.l.b16 %v58
  %v124 = vpack.c.b16 %v117, %v116
  %v125 = vpack.c.b16 %v119, %v118
  %v126 = vpack.c.b16 %v121, %v120
  %v127 = vpack.c.b16 %v123, %v122
  %v164 = vunpack.c.l.b16 %v59
  %v165 = vunpack.c.h.b16 %v59
  %v166 = vunpack.c.l.b16 %v60
  %v167 = vunpack.c.l.b16 %v61
  %v168 = vunpack.c.h.b16 %v61
  %v169 = vunpack.c.l.b16 %v62
  %v170 = vunpack.c.l.b16 %v63
  %v171 = vunpack.c.h.b16 %v63
  %v172 = vunpack.c.l.b16 %v64
  %v173 = vunpack.c.l.b16 %v65
  %v174 = vunpack.c.h.b16 %v65
  %v175 = vunpack.c.l.b16 %v66
  %v176 = vunpack.c.l.b16 %v67
  %v177 = vunpack.c.h.b16 %v67
  %v178 = vunpack.c.l.b16 %v68
  %v179 = vunpack.c.l.b16 %v69
  %v180 = vunpack.c.h.b16 %v69
  %v181 = vunpack.c.l.b16 %v70
  %v182 = vunpack.c.l.b16 %v71
  %v183 = vunpack.c.h.b16 %v71
  %v184 = vunpack.c.l.b16 %v72
  %v185 = vunpack.c.l.b16 %v73
  %v186 = vunpack.c.h.b16 %v73
  %v187 = vunpack.c.l.b16 %v74
  %v188 = vunpack.c.l.b16 %v75
  %v189 = vunpack.c.h.b16 %v75
  %v190 = vunpack.c.l.b16 %v76
  %v191 = vunpack.c.l.b16 %v77
  %v192 = vunpack.c.h.b16 %v77
  %v193 = vunpack.c.l.b16 %v78
  %v194 = vunpack.c.l.b16 %v79
  %v195 = vunpack.c.h.b16 %v79
  %v196 = vunpack.c.l.b16 %v80
  %v197 = vunpack.c.l.b16 %v81
  %v198 = vunpack.c.h.b16 %v81
  %v199 = vunpack.c.l.b16 %v82
  %v200 = vunpack.c.l.b16 %v83
  %v201 = vunpack.c.h.b16 %v83
  %v202 = vunpack.c.l.b16 %v84
  %v203 = vunpack.c.l.b16 %v85
  %v204 = vunpack.c.h.b16 %v85
  %v205 = vunpack.c.l.b16 %v86
  %v206 = vunpack.c.l.b16 %v87
  %v207 = vunpack.c.h.b16 %v87
  %v208 = vunpack.c.l.b16 %v88
  %v209 = vunpack.c.l.b16 %v89
  %v210 = vunpack.c.h.b16 %v89
  %v211 = vunpack.c.l.b16 %v90
  %v212 = vpack.c.b16 %v167, %v164
  %v213 = vpack.c.b16 %v168, %v165
  %v214 = vpack.c.b16 %v169, %v166
  %v215 = vpack.c.b16 %v173, %v170
  %v216 = vpack.c.b16 %v174, %v171
  %v217 = vpack.c.b16 %v175, %v172
  %v218 = vpack.c.b16 %v179, %v176
  %v219 = vpack.c.b16 %v180, %v177
  %v220 = vpack.c.b16 %v181, %v178
  %v221 = vpack.c.b16 %v185, %v182
  %v222 = vpack.c.b16 %v186, %v183
  %v223 = vpack.c.b16 %v187, %v184
  %v224 = vpack.c.b16 %v191, %v188
  %v225 = vpack.c.b16 %v192, %v189
  %v226 = vpack.c.b16 %v193, %v190
  %v227 = vpack.c.b16 %v197, %v194
  %v228 = vpack.c.b16 %v198, %v195
  %v229 = vpack.c.b16 %v199, %v196
  %v230 = vpack.c.b16 %v203, %v200
  %v231 = vpack.c.b16 %v204, %v201
  %v232 = vpack.c.b16 %v205, %v202
  %v233 = vpack.c.b16 %v209, %v206
  %v234 = vpack.c.b16 %v210, %v207
  %v235 = vpack.c.b16 %v211, %v208
  %260 = vmatprep.subr.bf16.mxu0 %v213
  %261 = vmatpush1.bf16.msra.mxu0 %v212
  %262 = vmatprep.subr.bf16.mxu0 %v216
  %263 = vmatpush1.bf16.msra.mxu0 %v215
  %264 = vmatprep.subr.bf16.mxu0 %v219
  %265 = vmatpush1.bf16.msra.mxu0 %v218
  %266 = vmatprep.subr.bf16.mxu0 %v222
  %267 = vmatpush1.bf16.msra.mxu0 %v221
  %268 = vmatprep.subr.bf16.mxu0 %v225
  %269 = vmatpush1.bf16.msra.mxu0 %v224
  %270 = vmatprep.subr.bf16.mxu0 %v228
  %271 = vmatpush1.bf16.msra.mxu0 %v227
  %272 = vmatprep.subr.bf16.mxu0 %v231
  %273 = vmatpush1.bf16.msra.mxu0 %v230
  %274 = vmatprep.subr.bf16.mxu0 %v234
  %275 = vmatpush1.bf16.msra.mxu0 %v233
  %276 = vmatprep.subr.bf16.mxu0 0
  %277 = vmatpush1.bf16.msra.mxu0 0
  %278 = vmatprep.subr.bf16.mxu0 0
  %279 = vmatpush1.bf16.msra.mxu0 0
  %280 = vmatprep.subr.bf16.mxu0 0
  %281 = vmatpush1.bf16.msra.mxu0 0
  %282 = vmatprep.subr.bf16.mxu0 0
  %283 = vmatpush1.bf16.msra.mxu0 0
  %284 = vmatprep.subr.bf16.mxu0 0
  %285 = vmatpush1.bf16.msra.mxu0 0
  %286 = vmatprep.subr.bf16.mxu0 0
  %287 = vmatpush1.bf16.msra.mxu0 0
  %288 = vmatprep.subr.bf16.mxu0 0
  %289 = vmatpush1.bf16.msra.mxu0 0
  %290 = vmatprep.subr.bf16.mxu0 0
  %291 = vmatpush1.bf16.msra.mxu0 0
  %292 = vmatprep.mubr.bf16.mxu0 0
  %293 = vmatmul.mubr.bf16.gmra.mrb[0].mxu0 %v124
  %v294 = vpop.f32.mrb[0].mxu0
  %v295 = vadd.f32 %v96, %v294
  %v296 = vpop.f32.mrb[0].mxu0
  %v297 = vadd.f32 %v100, %v296
  %v298 = vpop.f32.mrb[0].mxu0
  %v299 = vadd.f32 %v96, %v298
  %v300 = vpop.f32.mrb[0].mxu0
  %v301 = vadd.f32 %v100, %v300
  %302 = vmatprep.mubr.bf16.mxu0 0
  %303 = vmatmul.mubr.bf16.gmra.mrb[0].mxu0 %v125
  %v304 = vpop.f32.mrb[0].mxu0
  %v305 = vadd.f32 %v96, %v304
  %v306 = vpop.f32.mrb[0].mxu0
  %v307 = vadd.f32 %v100, %v306
  %v308 = vpop.f32.mrb[0].mxu0
  %v309 = vadd.f32 %v96, %v308
  %v310 = vpop.f32.mrb[0].mxu0
  %v311 = vadd.f32 %v100, %v310
  %312 = vmatprep.mubr.bf16.mxu0 0
  %313 = vmatmul.mubr.bf16.gmra.mrb[0].mxu0 %v126
  %v314 = vpop.f32.mrb[0].mxu0
  %v315 = vadd.f32 %v96, %v314
  %v316 = vpop.f32.mrb[0].mxu0
  %v317 = vadd.f32 %v100, %v316
  %v318 = vpop.f32.mrb[0].mxu0
  %v319 = vadd.f32 %v96, %v318
  %v320 = vpop.f32.mrb[0].mxu0
  %v321 = vadd.f32 %v100, %v320
  %322 = vmatprep.mubr.bf16.mxu0 0
  %323 = vmatmul.mubr.bf16.gmra.mrb[0].mxu0 %v127
  %v324 = vpop.f32.mrb[0].mxu0
  %v325 = vadd.f32 %v96, %v324
  %v326 = vpop.f32.mrb[0].mxu0
  %v327 = vadd.f32 %v100, %v326
  %v328 = vpop.f32.mrb[0].mxu0
  %v329 = vadd.f32 %v96, %v328
  %v330 = vpop.f32.mrb[0].mxu0
  %v331 = vadd.f32 %v100, %v330
  %332 = vdwg.mxu0
  %333 = vmatprep.subr.bf16.mxu0 0
  %334 = vmatpush1.bf16.msra.mxu0 %v214
  %335 = vmatprep.subr.bf16.mxu0 0
  %336 = vmatpush1.bf16.msra.mxu0 %v217
  %337 = vmatprep.subr.bf16.mxu0 0
  %338 = vmatpush1.bf16.msra.mxu0 %v220
  %339 = vmatprep.subr.bf16.mxu0 0
  %340 = vmatpush1.bf16.msra.mxu0 %v223
  %341 = vmatprep.subr.bf16.mxu0 0
  %342 = vmatpush1.bf16.msra.mxu0 %v226
  %343 = vmatprep.subr.bf16.mxu0 0
  %344 = vmatpush1.bf16.msra.mxu0 %v229
  %345 = vmatprep.subr.bf16.mxu0 0
  %346 = vmatpush1.bf16.msra.mxu0 %v232
  %347 = vmatprep.subr.bf16.mxu0 0
  %348 = vmatpush1.bf16.msra.mxu0 %v235
  %349 = vmatprep.subr.bf16.mxu0 0
  %350 = vmatpush1.bf16.msra.mxu0 0
  %351 = vmatprep.subr.bf16.mxu0 0
  %352 = vmatpush1.bf16.msra.mxu0 0
  %353 = vmatprep.subr.bf16.mxu0 0
  %354 = vmatpush1.bf16.msra.mxu0 0
  %355 = vmatprep.subr.bf16.mxu0 0
  %356 = vmatpush1.bf16.msra.mxu0 0
  %357 = vmatprep.subr.bf16.mxu0 0
  %358 = vmatpush1.bf16.msra.mxu0 0
  %359 = vmatprep.subr.bf16.mxu0 0
  %360 = vmatpush1.bf16.msra.mxu0 0
  %361 = vmatprep.subr.bf16.mxu0 0
  %362 = vmatpush1.bf16.msra.mxu0 0
  %363 = vmatprep.subr.bf16.mxu0 0
  %364 = vmatpush1.bf16.msra.mxu0 0
  %365 = vmatprep.mubr.bf16.mxu0 0
  %366 = vmatmul.mubr.bf16.gmra.mrb[0].mxu0 %v124
  %v367 = vpop.f32.mrb[0].mxu0
  %v368 = vadd.f32 %v104, %v367
  %v369 = vpop.f32.mrb[0].mxu0
  %v370 = vpop.f32.mrb[0].mxu0
  %v371 = vadd.f32 %v104, %v370
  %v372 = vpop.f32.mrb[0].mxu0
  %373 = vmatprep.mubr.bf16.mxu0 0
  %374 = vmatmul.mubr.bf16.gmra.mrb[0].mxu0 %v125
  %v375 = vpop.f32.mrb[0].mxu0
  %v376 = vadd.f32 %v104, %v375
  %v377 = vpop.f32.mrb[0].mxu0
  %v378 = vpop.f32.mrb[0].mxu0
  %v379 = vadd.f32 %v104, %v378
  %v380 = vpop.f32.mrb[0].mxu0
  %381 = vmatprep.mubr.bf16.mxu0 0
  %382 = vmatmul.mubr.bf16.gmra.mrb[0].mxu0 %v126
  %v383 = vpop.f32.mrb[0].mxu0
  %v384 = vadd.f32 %v104, %v383
  %v385 = vpop.f32.mrb[0].mxu0
  %v386 = vpop.f32.mrb[0].mxu0
  %v387 = vadd.f32 %v104, %v386
  %v388 = vpop.f32.mrb[0].mxu0
  %389 = vmatprep.mubr.bf16.mxu0 0
  %390 = vmatmul.mubr.bf16.gmra.mrb[0].mxu0 %v127
  %v391 = vpop.f32.mrb[0].mxu0
  %v392 = vadd.f32 %v104, %v391
  %v393 = vpop.f32.mrb[0].mxu0
  %v394 = vpop.f32.mrb[0].mxu0
  %v395 = vadd.f32 %v104, %v394
  %v396 = vpop.f32.mrb[0].mxu0
  %397 = vdwg.mxu0
  %398 = vst [vmem:[#allocation2] sm:$0xff] %v295
  %399 = vst [vmem:[#allocation2 + $0x8] sm:$0xff] %v297
  %400 = vst [vmem:[#allocation2 + $0x10] sm:$0xff] %v368
  %401 = vst [vmem:[#allocation2 + $0x18] sm:$0xff] %v299
  %402 = vst [vmem:[#allocation2 + $0x20] sm:$0xff] %v301
  %403 = vst [vmem:[#allocation2 + $0x28] sm:$0xff] %v371
  %404 = vst [vmem:[#allocation2 + $0x30] sm:$0xff] %v305
  %405 = vst [vmem:[#allocation2 + $0x38] sm:$0xff] %v307
  %406 = vst [vmem:[#allocation2 + $0x40] sm:$0xff] %v376
  %407 = vst [vmem:[#allocation2 + $0x48] sm:$0xff] %v309
  %408 = vst [vmem:[#allocation2 + $0x50] sm:$0xff] %v311
  %409 = vst [vmem:[#allocation2 + $0x58] sm:$0xff] %v379
  %410 = vst [vmem:[#allocation2 + $0x60] sm:$0xff] %v315
  %411 = vst [vmem:[#allocation2 + $0x68] sm:$0xff] %v317
  %412 = vst [vmem:[#allocation2 + $0x70] sm:$0xff] %v384
  %413 = vst [vmem:[#allocation2 + $0x78] sm:$0xff] %v319
  %414 = vst [vmem:[#allocation2 + $0x80] sm:$0xff] %v321
  %415 = vst [vmem:[#allocation2 + $0x88] sm:$0xff] %v387
  %416 = vst [vmem:[#allocation2 + $0x90] sm:$0xff] %v325
  %417 = vst [vmem:[#allocation2 + $0x98] sm:$0xff] %v327
  %418 = vst [vmem:[#allocation2 + $0xa0] sm:$0xff] %v392
  %419 = vst [vmem:[#allocation2 + $0xa8] sm:$0xff] %v329
  %420 = vst [vmem:[#allocation2 + $0xb0] sm:$0xff] %v331
  %421 = vst [vmem:[#allocation2 + $0xb8] sm:$0xff] %v395
  %v422 = vld [vmem:[#allocation2] sm:$0xff]
  %v423 = vld [vmem:[#allocation2 + $0x8] sm:$0xff]
  %v424 = vld [vmem:[#allocation2 + $0x10] sm:$0xff]
  %v425 = vld [vmem:[%s2] sm:$0xff]
  %v426 = vld [vmem:[%s2 + $0x8] sm:$0xf]
  %v427 = vld [vmem:[%s2 + $0xc] sm:$0xff]
  %v428 = vld [vmem:[%s2 + $0x14] sm:$0xf]
  %v429 = vld [vmem:[%s2 + $0x18] sm:$0xff]
  %v430 = vld [vmem:[%s2 + $0x20] sm:$0xf]
  %v431 = vld [vmem:[%s2 + $0x24] sm:$0xff]
  %v432 = vld [vmem:[%s2 + $0x2c] sm:$0xf]
  %v433 = vld [vmem:[%s2 + $0x30] sm:$0xff]
  %v434 = vld [vmem:[%s2 + $0x38] sm:$0xf]
  %v435 = vld [vmem:[%s2 + $0x3c] sm:$0xff]
  %v436 = vld [vmem:[%s2 + $0x44] sm:$0xf]
  %v437 = vld [vmem:[%s2 + $0x48] sm:$0xff]
  %v438 = vld [vmem:[%s2 + $0x50] sm:$0xf]
  %v439 = vld [vmem:[%s2 + $0x54] sm:$0xff]
  %v440 = vld [vmem:[%s2 + $0x5c] sm:$0xf]
  %v441 = vld [vmem:[%s2 + $0x60] sm:$0xff]
  %v442 = vld [vmem:[%s2 + $0x68] sm:$0xf]
  %v443 = vld [vmem:[%s2 + $0x6c] sm:$0xff]
  %v444 = vld [vmem:[%s2 + $0x74] sm:$0xf]
  %v445 = vld [vmem:[%s2 + $0x78] sm:$0xff]
  %v446 = vld [vmem:[%s2 + $0x80] sm:$0xf]
  %v447 = vld [vmem:[%s2 + $0x84] sm:$0xff]
  %v448 = vld [vmem:[%s2 + $0x8c] sm:$0xf]
  %v449 = vld [vmem:[%s2 + $0x90] sm:$0xff]
  %v450 = vld [vmem:[%s2 + $0x98] sm:$0xf]
  %v451 = vld [vmem:[%s2 + $0x9c] sm:$0xff]
  %v452 = vld [vmem:[%s2 + $0xa4] sm:$0xf]
  %v453 = vld [vmem:[%s2 + $0xa8] sm:$0xff]
  %v454 = vld [vmem:[%s2 + $0xb0] sm:$0xf]
  %v455 = vld [vmem:[%s2 + $0xb4] sm:$0xff]
  %v456 = vld [vmem:[%s2 + $0xbc] sm:$0xf]
  %v457 = vld [vmem:[%s4] sm:$0x7]
  %v459 = vlaneseq
  %v460 = vshrl.u32 %v459, 7
  %v461 = vsub.s32 0, %v460
  %v462 = vrot.slane %v457, %v461
  %v463 = vlaneseq
  %v464 = vshrl.u32 %v463, 7
  %v465 = vsub.s32 1, %v464
  %v466 = vrot.slane %v457, %v465
  %v467 = vlaneseq
  %v468 = vshrl.u32 %v467, 7
  %v469 = vsub.s32 2, %v468
  %v470 = vrot.slane %v457, %v469
  %v506 = vunpack.c.l.b16 %v425
  %v507 = vunpack.c.h.b16 %v425
  %v508 = vunpack.c.l.b16 %v426
  %v509 = vunpack.c.l.b16 %v427
  %v510 = vunpack.c.h.b16 %v427
  %v511 = vunpack.c.l.b16 %v428
  %v512 = vunpack.c.l.b16 %v429
  %v513 = vunpack.c.h.b16 %v429
  %v514 = vunpack.c.l.b16 %v430
  %v515 = vunpack.c.l.b16 %v431
  %v516 = vunpack.c.h.b16 %v431
  %v517 = vunpack.c.l.b16 %v432
  %v518 = vunpack.c.l.b16 %v433
  %v519 = vunpack.c.h.b16 %v433
  %v520 = vunpack.c.l.b16 %v434
  %v521 = vunpack.c.l.b16 %v435
  %v522 = vunpack.c.h.b16 %v435
  %v523 = vunpack.c.l.b16 %v436
  %v524 = vunpack.c.l.b16 %v437
  %v525 = vunpack.c.h.b16 %v437
  %v526 = vunpack.c.l.b16 %v438
  %v527 = vunpack.c.l.b16 %v439
  %v528 = vunpack.c.h.b16 %v439
  %v529 = vunpack.c.l.b16 %v440
  %v530 = vunpack.c.l.b16 %v441
  %v531 = vunpack.c.h.b16 %v441
  %v532 = vunpack.c.l.b16 %v442
  %v533 = vunpack.c.l.b16 %v443
  %v534 = vunpack.c.h.b16 %v443
  %v535 = vunpack.c.l.b16 %v444
  %v536 = vunpack.c.l.b16 %v445
  %v537 = vunpack.c.h.b16 %v445
  %v538 = vunpack.c.l.b16 %v446
  %v539 = vunpack.c.l.b16 %v447
  %v540 = vunpack.c.h.b16 %v447
  %v541 = vunpack.c.l.b16 %v448
  %v542 = vunpack.c.l.b16 %v449
  %v543 = vunpack.c.h.b16 %v449
  %v544 = vunpack.c.l.b16 %v450
  %v545 = vunpack.c.l.b16 %v451
  %v546 = vunpack.c.h.b16 %v451
  %v547 = vunpack.c.l.b16 %v452
  %v548 = vunpack.c.l.b16 %v453
  %v549 = vunpack.c.h.b16 %v453
  %v550 = vunpack.c.l.b16 %v454
  %v551 = vunpack.c.l.b16 %v455
  %v552 = vunpack.c.h.b16 %v455
  %v553 = vunpack.c.l.b16 %v456
  %v554 = vpack.c.b16 %v509, %v506
  %v555 = vpack.c.b16 %v510, %v507
  %v556 = vpack.c.b16 %v511, %v508
  %v557 = vpack.c.b16 %v515, %v512
  %v558 = vpack.c.b16 %v516, %v513
  %v559 = vpack.c.b16 %v517, %v514
  %v560 = vpack.c.b16 %v521, %v518
  %v561 = vpack.c.b16 %v522, %v519
  %v562 = vpack.c.b16 %v523, %v520
  %v563 = vpack.c.b16 %v527, %v524
  %v564 = vpack.c.b16 %v528, %v525
  %v565 = vpack.c.b16 %v529, %v526
  %v566 = vpack.c.b16 %v533, %v530
  %v567 = vpack.c.b16 %v534, %v531
  %v568 = vpack.c.b16 %v535, %v532
  %v569 = vpack.c.b16 %v539, %v536
  %v570 = vpack.c.b16 %v540, %v537
  %v571 = vpack.c.b16 %v541, %v538
  %v572 = vpack.c.b16 %v545, %v542
  %v573 = vpack.c.b16 %v546, %v543
  %v574 = vpack.c.b16 %v547, %v544
  %v575 = vpack.c.b16 %v551, %v548
  %v576 = vpack.c.b16 %v552, %v549
  %v577 = vpack.c.b16 %v553, %v550
  %602 = vmatprep.subr.bf16.mxu0 %v555
  %603 = vmatpush1.bf16.msra.mxu0 %v554
  %604 = vmatprep.subr.bf16.mxu0 %v558
  %605 = vmatpush1.bf16.msra.mxu0 %v557
  %606 = vmatprep.subr.bf16.mxu0 %v561
  %607 = vmatpush1.bf16.msra.mxu0 %v560
  %608 = vmatprep.subr.bf16.mxu0 %v564
  %609 = vmatpush1.bf16.msra.mxu0 %v563
  %610 = vmatprep.subr.bf16.mxu0 %v567
  %611 = vmatpush1.bf16.msra.mxu0 %v566
  %612 = vmatprep.subr.bf16.mxu0 %v570
  %613 = vmatpush1.bf16.msra.mxu0 %v569
  %614 = vmatprep.subr.bf16.mxu0 %v573
  %615 = vmatpush1.bf16.msra.mxu0 %v572
  %616 = vmatprep.subr.bf16.mxu0 %v576
  %617 = vmatpush1.bf16.msra.mxu0 %v575
  %618 = vmatprep.subr.bf16.mxu0 0
  %619 = vmatpush1.bf16.msra.mxu0 0
  %620 = vmatprep.subr.bf16.mxu0 0
  %621 = vmatpush1.bf16.msra.mxu0 0
  %622 = vmatprep.subr.bf16.mxu0 0
  %623 = vmatpush1.bf16.msra.mxu0 0
  %624 = vmatprep.subr.bf16.mxu0 0
  %625 = vmatpush1.bf16.msra.mxu0 0
  %626 = vmatprep.subr.bf16.mxu0 0
  %627 = vmatpush1.bf16.msra.mxu0 0
  %628 = vmatprep.subr.bf16.mxu0 0
  %629 = vmatpush1.bf16.msra.mxu0 0
  %630 = vmatprep.subr.bf16.mxu0 0
  %631 = vmatpush1.bf16.msra.mxu0 0
  %632 = vmatprep.subr.bf16.mxu0 0
  %633 = vmatpush1.bf16.msra.mxu0 0
  %634 = vmatprep.mubr.bf16.mxu0 0
  %635 = vmatmul.mubr.bf16.gmra.mrb[0].mxu0 0
  %v636 = vpop.f32.mrb[0].mxu0
  %v637 = vadd.f32 %v462, %v636
  %v638 = vpop.f32.mrb[0].mxu0
  %v639 = vadd.f32 %v466, %v638
  %v640 = vpop.f32.mrb[0].mxu0
  %v641 = vpop.f32.mrb[0].mxu0
  %642 = vdwg.mxu0
  %643 = vmatprep.subr.bf16.mxu0 0
  %644 = vmatpush1.bf16.msra.mxu0 %v556
  %645 = vmatprep.subr.bf16.mxu0 0
  %646 = vmatpush1.bf16.msra.mxu0 %v559
  %647 = vmatprep.subr.bf16.mxu0 0
  %648 = vmatpush1.bf16.msra.mxu0 %v562
  %649 = vmatprep.subr.bf16.mxu0 0
  %650 = vmatpush1.bf16.msra.mxu0 %v565
  %651 = vmatprep.subr.bf16.mxu0 0
  %652 = vmatpush1.bf16.msra.mxu0 %v568
  %653 = vmatprep.subr.bf16.mxu0 0
  %654 = vmatpush1.bf16.msra.mxu0 %v571
  %655 = vmatprep.subr.bf16.mxu0 0
  %656 = vmatpush1.bf16.msra.mxu0 %v574
  %657 = vmatprep.subr.bf16.mxu0 0
  %658 = vmatpush1.bf16.msra.mxu0 %v577
  %659 = vmatprep.subr.bf16.mxu0 0
  %660 = vmatpush1.bf16.msra.mxu0 0
  %661 = vmatprep.subr.bf16.mxu0 0
  %662 = vmatpush1.bf16.msra.mxu0 0
  %663 = vmatprep.subr.bf16.mxu0 0
  %664 = vmatpush1.bf16.msra.mxu0 0
  %665 = vmatprep.subr.bf16.mxu0 0
  %666 = vmatpush1.bf16.msra.mxu0 0
  %667 = vmatprep.subr.bf16.mxu0 0
  %668 = vmatpush1.bf16.msra.mxu0 0
  %669 = vmatprep.subr.bf16.mxu0 0
  %670 = vmatpush1.bf16.msra.mxu0 0
  %671 = vmatprep.subr.bf16.mxu0 0
  %672 = vmatpush1.bf16.msra.mxu0 0
  %673 = vmatprep.subr.bf16.mxu0 0
  %674 = vmatpush1.bf16.msra.mxu0 0
  %675 = vmatprep.mubr.bf16.mxu0 0
  %676 = vmatmul.mubr.bf16.gmra.mrb[0].mxu0 0
  %v677 = vpop.f32.mrb[0].mxu0
  %v678 = vadd.f32 %v470, %v677
  %v679 = vpop.f32.mrb[0].mxu0
  %v680 = vpop.f32.mrb[0].mxu0
  %v681 = vpop.f32.mrb[0].mxu0
  %682 = vdwg.mxu0
  %v683 = vadd.f32 %v422, %v637
  %v684 = vmul.f32 %v683, 0.5
  %v685 = vtanh.pop %v684
  %v686 = vmul.f32 %v685, 0.5
  %v687 = vadd.f32 %v686, 0.5
  %v688 = vadd.f32 %v423, %v639
  %v689 = vmul.f32 %v688, 0.5
  %v690 = vtanh.pop %v689
  %v691 = vmul.f32 %v690, 0.5
  %v692 = vadd.f32 %v691, 0.5
  %v693 = vmul.f32 %v687, %v678
  %v694 = vadd.f32 %v424, %v693
  %v695 = vtanh.pop %v694
  %v696 = vsub.f32 1.0, %v692
  %v697 = vmul.f32 %v696, %v695
  %v698 = vmul.f32 %v692, 0.0
  %v699 = vadd.f32 %v697, %v698
  %700 = vst [vmem:[#allocation3] sm:$0xff] %v699
  %v701 = vld [vmem:[#allocation2 + $0x18] sm:$0xff]
  %v702 = vld [vmem:[#allocation2 + $0x20] sm:$0xff]
  %v703 = vld [vmem:[#allocation2 + $0x28] sm:$0xff]
  %v704 = vpack.c.bf16 %v699, %v699
  %v705 = vld [vmem:[%s2] sm:$0xff]
  %v706 = vld [vmem:[%s2 + $0x8] sm:$0xf]
  %v707 = vld [vmem:[%s2 + $0xc] sm:$0xff]
  %v708 = vld [vmem:[%s2 + $0x14] sm:$0xf]
  %v709 = vld [vmem:[%s2 + $0x18] sm:$0xff]
  %v710 = vld [vmem:[%s2 + $0x20] sm:$0xf]
  %v711 = vld [vmem:[%s2 + $0x24] sm:$0xff]
  %v712 = vld [vmem:[%s2 + $0x2c] sm:$0xf]
  %v713 = vld [vmem:[%s2 + $0x30] sm:$0xff]
  %v714 = vld [vmem:[%s2 + $0x38] sm:$0xf]
  %v715 = vld [vmem:[%s2 + $0x3c] sm:$0xff]
  %v716 = vld [vmem:[%s2 + $0x44] sm:$0xf]
  %v717 = vld [vmem:[%s2 + $0x48] sm:$0xff]
  %v718 = vld [vmem:[%s2 + $0x50] sm:$0xf]
  %v719 = vld [vmem:[%s2 + $0x54] sm:$0xff]
  %v720 = vld [vmem:[%s2 + $0x5c] sm:$0xf]
  %v721 = vld [vmem:[%s2 + $0x60] sm:$0xff]
  %v722 = vld [vmem:[%s2 + $0x68] sm:$0xf]
  %v723 = vld [vmem:[%s2 + $0x6c] sm:$0xff]
  %v724 = vld [vmem:[%s2 + $0x74] sm:$0xf]
  %v725 = vld [vmem:[%s2 + $0x78] sm:$0xff]
  %v726 = vld [vmem:[%s2 + $0x80] sm:$0xf]
  %v727 = vld [vmem:[%s2 + $0x84] sm:$0xff]
  %v728 = vld [vmem:[%s2 + $0x8c] sm:$0xf]
  %v729 = vld [vmem:[%s2 + $0x90] sm:$0xff]
  %v730 = vld [vmem:[%s2 + $0x98] sm:$0xf]
  %v731 = vld [vmem:[%s2 + $0x9c] sm:$0xff]
  %v732 = vld [vmem:[%s2 + $0xa4] sm:$0xf]
  %v733 = vld [vmem:[%s2 + $0xa8] sm:$0xff]
  %v734 = vld [vmem:[%s2 + $0xb0] sm:$0xf]
  %v735 = vld [vmem:[%s2 + $0xb4] sm:$0xff]
  %v736 = vld [vmem:[%s2 + $0xbc] sm:$0xf]
  %v737 = vld [vmem:[%s4] sm:$0x7]
  %v739 = vlaneseq
  %v740 = vshrl.u32 %v739, 7
  %v741 = vsub.s32 0, %v740
  %v742 = vrot.slane %v737, %v741
  %v743 = vlaneseq
  %v744 = vshrl.u32 %v743, 7
  %v745 = vsub.s32 1, %v744
  %v746 = vrot.slane %v737, %v745
  %v747 = vlaneseq
  %v748 = vshrl.u32 %v747, 7
  %v749 = vsub.s32 2, %v748
  %v750 = vrot.slane %v737, %v749
  %v786 = vunpack.c.l.b16 %v705
  %v787 = vunpack.c.h.b16 %v705
  %v788 = vunpack.c.l.b16 %v706
  %v789 = vunpack.c.l.b16 %v707
  %v790 = vunpack.c.h.b16 %v707
  %v791 = vunpack.c.l.b16 %v708
  %v792 = vunpack.c.l.b16 %v709
  %v793 = vunpack.c.h.b16 %v709
  %v794 = vunpack.c.l.b16 %v710
  %v795 = vunpack.c.l.b16 %v711
  %v796 = vunpack.c.h.b16 %v711
  %v797 = vunpack.c.l.b16 %v712
  %v798 = vunpack.c.l.b16 %v713
  %v799 = vunpack.c.h.b16 %v713
  %v800 = vunpack.c.l.b16 %v714
  %v801 = vunpack.c.l.b16 %v715
  %v802 = vunpack.c.h.b16 %v715
  %v803 = vunpack.c.l.b16 %v716
  %v804 = vunpack.c.l.b16 %v717
  %v805 = vunpack.c.h.b16 %v717
  %v806 = vunpack.c.l.b16 %v718
  %v807 = vunpack.c.l.b16 %v719
  %v808 = vunpack.c.h.b16 %v719
  %v809 = vunpack.c.l.b16 %v720
  %v810 = vunpack.c.l.b16 %v721
  %v811 = vunpack.c.h.b16 %v721
  %v812 = vunpack.c.l.b16 %v722
  %v813 = vunpack.c.l.b16 %v723
  %v814 = vunpack.c.h.b16 %v723
  %v815 = vunpack.c.l.b16 %v724
  %v816 = vunpack.c.l.b16 %v725
  %v817 = vunpack.c.h.b16 %v725
  %v818 = vunpack.c.l.b16 %v726
  %v819 = vunpack.c.l.b16 %v727
  %v820 = vunpack.c.h.b16 %v727
  %v821 = vunpack.c.l.b16 %v728
  %v822 = vunpack.c.l.b16 %v729
  %v823 = vunpack.c.h.b16 %v729
  %v824 = vunpack.c.l.b16 %v730
  %v825 = vunpack.c.l.b16 %v731
  %v826 = vunpack.c.h.b16 %v731
  %v827 = vunpack.c.l.b16 %v732
  %v828 = vunpack.c.l.b16 %v733
  %v829 = vunpack.c.h.b16 %v733
  %v830 = vunpack.c.l.b16 %v734
  %v831 = vunpack.c.l.b16 %v735
  %v832 = vunpack.c.h.b16 %v735
  %v833 = vunpack.c.l.b16 %v736
  %v834 = vpack.c.b16 %v789, %v786
  %v835 = vpack.c.b16 %v790, %v787
  %v836 = vpack.c.b16 %v791, %v788
  %v837 = vpack.c.b16 %v795, %v792
  %v838 = vpack.c.b16 %v796, %v793
  %v839 = vpack.c.b16 %v797, %v794
  %v840 = vpack.c.b16 %v801, %v798
  %v841 = vpack.c.b16 %v802, %v799
  %v842 = vpack.c.b16 %v803, %v800
  %v843 = vpack.c.b16 %v807, %v804
  %v844 = vpack.c.b16 %v808, %v805
  %v845 = vpack.c.b16 %v809, %v806
  %v846 = vpack.c.b16 %v813, %v810
  %v847 = vpack.c.b16 %v814, %v811
  %v848 = vpack.c.b16 %v815, %v812
  %v849 = vpack.c.b16 %v819, %v816
  %v850 = vpack.c.b16 %v820, %v817
  %v851 = vpack.c.b16 %v821, %v818
  %v852 = vpack.c.b16 %v825, %v822
  %v853 = vpack.c.b16 %v826, %v823
  %v854 = vpack.c.b16 %v827, %v824
  %v855 = vpack.c.b16 %v831, %v828
  %v856 = vpack.c.b16 %v832, %v829
  %v857 = vpack.c.b16 %v833, %v830
  %882 = vmatprep.subr.bf16.mxu0 %v835
  %883 = vmatpush1.bf16.msra.mxu0 %v834
  %884 = vmatprep.subr.bf16.mxu0 %v838
  %885 = vmatpush1.bf16.msra.mxu0 %v837
  %886 = vmatprep.subr.bf16.mxu0 %v841
  %887 = vmatpush1.bf16.msra.mxu0 %v840
  %888 = vmatprep.subr.bf16.mxu0 %v844
  %889 = vmatpush1.bf16.msra.mxu0 %v843
  %890 = vmatprep.subr.bf16.mxu0 %v847
  %891 = vmatpush1.bf16.msra.mxu0 %v846
  %892 = vmatprep.subr.bf16.mxu0 %v850
  %893 = vmatpush1.bf16.msra.mxu0 %v849
  %894 = vmatprep.subr.bf16.mxu0 %v853
  %895 = vmatpush1.bf16.msra.mxu0 %v852
  %896 = vmatprep.subr.bf16.mxu0 %v856
  %897 = vmatpush1.bf16.msra.mxu0 %v855
  %898 = vmatprep.subr.bf16.mxu0 0
  %899 = vmatpush1.bf16.msra.mxu0 0
  %900 = vmatprep.subr.bf16.mxu0 0
  %901 = vmatpush1.bf16.msra.mxu0 0
  %902 = vmatprep.subr.bf16.mxu0 0
  %903 = vmatpush1.bf16.msra.mxu0 0
  %904 = vmatprep.subr.bf16.mxu0 0
  %905 = vmatpush1.bf16.msra.mxu0 0
  %906 = vmatprep.subr.bf16.mxu0 0
  %907 = vmatpush1.bf16.msra.mxu0 0
  %908 = vmatprep.subr.bf16.mxu0 0
  %909 = vmatpush1.bf16.msra.mxu0 0
  %910 = vmatprep.subr.bf16.mxu0 0
  %911 = vmatpush1.bf16.msra.mxu0 0
  %912 = vmatprep.subr.bf16.mxu0 0
  %913 = vmatpush1.bf16.msra.mxu0 0
  %914 = vmatprep.mubr.bf16.mxu0 0
  %915 = vmatmul.mubr.bf16.gmra.mrb[0].mxu0 %v704
  %v916 = vpop.f32.mrb[0].mxu0
  %v917 = vadd.f32 %v742, %v916
  %v918 = vpop.f32.mrb[0].mxu0
  %v919 = vadd.f32 %v746, %v918
  %v920 = vpop.f32.mrb[0].mxu0
  %v921 = vpop.f32.mrb[0].mxu0
  %922 = vdwg.mxu0
  %923 = vmatprep.subr.bf16.mxu0 0
  %924 = vmatpush1.bf16.msra.mxu0 %v836
  %925 = vmatprep.subr.bf16.mxu0 0
  %926 = vmatpush1.bf16.msra.mxu0 %v839
  %927 = vmatprep.subr.bf16.mxu0 0
  %928 = vmatpush1.bf16.msra.mxu0 %v842
  %929 = vmatprep.subr.bf16.mxu0 0
  %930 = vmatpush1.bf16.msra.mxu0 %v845
  %931 = vmatprep.subr.bf16.mxu0 0
  %932 = vmatpush1.bf16.msra.mxu0 %v848
  %933 = vmatprep.subr.bf16.mxu0 0
  %934 = vmatpush1.bf16.msra.mxu0 %v851
  %935 = vmatprep.subr.bf16.mxu0 0
  %936 = vmatpush1.bf16.msra.mxu0 %v854
  %937 = vmatprep.subr.bf16.mxu0 0
  %938 = vmatpush1.bf16.msra.mxu0 %v857
  %939 = vmatprep.subr.bf16.mxu0 0
  %940 = vmatpush1.bf16.msra.mxu0 0
  %941 = vmatprep.subr.bf16.mxu0 0
  %942 = vmatpush1.bf16.msra.mxu0 0
  %943 = vmatprep.subr.bf16.mxu0 0
  %944 = vmatpush1.bf16.msra.mxu0 0
  %945 = vmatprep.subr.bf16.mxu0 0
  %946 = vmatpush1.bf16.msra.mxu0 0
  %947 = vmatprep.subr.bf16.mxu0 0
  %948 = vmatpush1.bf16.msra.mxu0 0
  %949 = vmatprep.subr.bf16.mxu0 0
  %950 = vmatpush1.bf16.msra.mxu0 0
  %951 = vmatprep.subr.bf16.mxu0 0
  %952 = vmatpush1.bf16.msra.mxu0 0
  %953 = vmatprep.subr.bf16.mxu0 0
  %954 = vmatpush1.bf16.msra.mxu0 0
  %955 = vmatprep.mubr.bf16.mxu0 0
  %956 = vmatmul.mubr.bf16.gmra.mrb[0].mxu0 %v704
  %v957 = vpop.f32.mrb[0].mxu0
  %v958 = vadd.f32 %v750, %v957
  %v959 = vpop.f32.mrb[0].mxu0
  %v960 = vpop.f32.mrb[0].mxu0
  %v961 = vpop.f32.mrb[0].mxu0
  %962 = vdwg.mxu0
  %v963 = vadd.f32 %v701, %v917
  %v964 = vmul.f32 %v963, 0.5
  %v965 = vtanh.pop %v964
  %v966 = vmul.f32 %v965, 0.5
  %v967 = vadd.f32 %v966, 0.5
  %v968 = vadd.f32 %v702, %v919
  %v969 = vmul.f32 %v968, 0.5
  %v970 = vtanh.pop %v969
  %v971 = vmul.f32 %v970, 0.5
  %v972 = vadd.f32 %v971, 0.5
  %v973 = vmul.f32 %v967, %v958
  %v974 = vadd.f32 %v703, %v973
  %v975 = vtanh.pop %v974
  %v976 = vsub.f32 1.0, %v972
  %v977 = vmul.f32 %v976, %v975
  %v978 = vmul.f32 %v972, %v699
  %v979 = vadd.f32 %v977, %v978
  %980 = vst [vmem:[#allocation3 + $0x8] sm:$0xff] %v979
  %v981 = vld [vmem:[#allocation2 + $0x30] sm:$0xff]
  %v982 = vld [vmem:[#allocation2 + $0x38] sm:$0xff]
  %v983 = vld [vmem:[#allocation2 + $0x40] sm:$0xff]
  %v984 = vpack.c.bf16 %v979, %v979
  %v985 = vld [vmem:[%s2] sm:$0xff]
  %v986 = vld [vmem:[%s2 + $0x8] sm:$0xf]
  %v987 = vld [vmem:[%s2 + $0xc] sm:$0xff]
  %v988 = vld [vmem:[%s2 + $0x14] sm:$0xf]
  %v989 = vld [vmem:[%s2 + $0x18] sm:$0xff]
  %v990 = vld [vmem:[%s2 + $0x20] sm:$0xf]
  %v991 = vld [vmem:[%s2 + $0x24] sm:$0xff]
  %v992 = vld [vmem:[%s2 + $0x2c] sm:$0xf]
  %v993 = vld [vmem:[%s2 + $0x30] sm:$0xff]
  %v994 = vld [vmem:[%s2 + $0x38] sm:$0xf]
  %v995 = vld [vmem:[%s2 + $0x3c] sm:$0xff]
  %v996 = vld [vmem:[%s2 + $0x44] sm:$0xf]
  %v997 = vld [vmem:[%s2 + $0x48] sm:$0xff]
  %v998 = vld [vmem:[%s2 + $0x50] sm:$0xf]
  %v999 = vld [vmem:[%s2 + $0x54] sm:$0xff]
  %v1000 = vld [vmem:[%s2 + $0x5c] sm:$0xf]
  %v1001 = vld [vmem:[%s2 + $0x60] sm:$0xff]
  %v1002 = vld [vmem:[%s2 + $0x68] sm:$0xf]
  %v1003 = vld [vmem:[%s2 + $0x6c] sm:$0xff]
  %v1004 = vld [vmem:[%s2 + $0x74] sm:$0xf]
  %v1005 = vld [vmem:[%s2 + $0x78] sm:$0xff]
  %v1006 = vld [vmem:[%s2 + $0x80] sm:$0xf]
  %v1007 = vld [vmem:[%s2 + $0x84] sm:$0xff]
  %v1008 = vld [vmem:[%s2 + $0x8c] sm:$0xf]
  %v1009 = vld [vmem:[%s2 + $0x90] sm:$0xff]
  %v1010 = vld [vmem:[%s2 + $0x98] sm:$0xf]
  %v1011 = vld [vmem:[%s2 + $0x9c] sm:$0xff]
  %v1012 = vld [vmem:[%s2 + $0xa4] sm:$0xf]
  %v1013 = vld [vmem:[%s2 + $0xa8] sm:$0xff]
  %v1014 = vld [vmem:[%s2 + $0xb0] sm:$0xf]
  %v1015 = vld [vmem:[%s2 + $0xb4] sm:$0xff]
  %v1016 = vld [vmem:[%s2 + $0xbc] sm:$0xf]
  %v1017 = vld [vmem:[%s4] sm:$0x7]
  %v1019 = vlaneseq
  %v1020 = vshrl.u32 %v1019, 7
  %v1021 = vsub.s32 0, %v1020
  %v1022 = vrot.slane %v1017, %v1021
  %v1023 = vlaneseq
  %v1024 = vshrl.u32 %v1023, 7
  %v1025 = vsub.s32 1, %v1024
  %v1026 = vrot.slane %v1017, %v1025
  %v1027 = vlaneseq
  %v1028 = vshrl.u32 %v1027, 7
  %v1029 = vsub.s32 2, %v1028
  %v1030 = vrot.slane %v1017, %v1029
  %v1066 = vunpack.c.l.b16 %v985
  %v1067 = vunpack.c.h.b16 %v985
  %v1068 = vunpack.c.l.b16 %v986
  %v1069 = vunpack.c.l.b16 %v987
  %v1070 = vunpack.c.h.b16 %v987
  %v1071 = vunpack.c.l.b16 %v988
  %v1072 = vunpack.c.l.b16 %v989
  %v1073 = vunpack.c.h.b16 %v989
  %v1074 = vunpack.c.l.b16 %v990
  %v1075 = vunpack.c.l.b16 %v991
  %v1076 = vunpack.c.h.b16 %v991
  %v1077 = vunpack.c.l.b16 %v992
  %v1078 = vunpack.c.l.b16 %v993
  %v1079 = vunpack.c.h.b16 %v993
  %v1080 = vunpack.c.l.b16 %v994
  %v1081 = vunpack.c.l.b16 %v995
  %v1082 = vunpack.c.h.b16 %v995
  %v1083 = vunpack.c.l.b16 %v996
  %v1084 = vunpack.c.l.b16 %v997
  %v1085 = vunpack.c.h.b16 %v997
  %v1086 = vunpack.c.l.b16 %v998
  %v1087 = vunpack.c.l.b16 %v999
  %v1088 = vunpack.c.h.b16 %v999
  %v1089 = vunpack.c.l.b16 %v1000
  %v1090 = vunpack.c.l.b16 %v1001
  %v1091 = vunpack.c.h.b16 %v1001
  %v1092 = vunpack.c.l.b16 %v1002
  %v1093 = vunpack.c.l.b16 %v1003
  %v1094 = vunpack.c.h.b16 %v1003
  %v1095 = vunpack.c.l.b16 %v1004
  %v1096 = vunpack.c.l.b16 %v1005
  %v1097 = vunpack.c.h.b16 %v1005
  %v1098 = vunpack.c.l.b16 %v1006
  %v1099 = vunpack.c.l.b16 %v1007
  %v1100 = vunpack.c.h.b16 %v1007
  %v1101 = vunpack.c.l.b16 %v1008
  %v1102 = vunpack.c.l.b16 %v1009
  %v1103 = vunpack.c.h.b16 %v1009
  %v1104 = vunpack.c.l.b16 %v1010
  %v1105 = vunpack.c.l.b16 %v1011
  %v1106 = vunpack.c.h.b16 %v1011
  %v1107 = vunpack.c.l.b16 %v1012
  %v1108 = vunpack.c.l.b16 %v1013
  %v1109 = vunpack.c.h.b16 %v1013
  %v1110 = vunpack.c.l.b16 %v1014
  %v1111 = vunpack.c.l.b16 %v1015
  %v1112 = vunpack.c.h.b16 %v1015
  %v1113 = vunpack.c.l.b16 %v1016
  %v1114 = vpack.c.b16 %v1069, %v1066
  %v1115 = vpack.c.b16 %v1070, %v1067
  %v1116 = vpack.c.b16 %v1071, %v1068
  %v1117 = vpack.c.b16 %v1075, %v1072
  %v1118 = vpack.c.b16 %v1076, %v1073
  %v1119 = vpack.c.b16 %v1077, %v1074
  %v1120 = vpack.c.b16 %v1081, %v1078
  %v1121 = vpack.c.b16 %v1082, %v1079
  %v1122 = vpack.c.b16 %v1083, %v1080
  %v1123 = vpack.c.b16 %v1087, %v1084
  %v1124 = vpack.c.b16 %v1088, %v1085
  %v1125 = vpack.c.b16 %v1089, %v1086
  %v1126 = vpack.c.b16 %v1093, %v1090
  %v1127 = vpack.c.b16 %v1094, %v1091
  %v1128 = vpack.c.b16 %v1095, %v1092
  %v1129 = vpack.c.b16 %v1099, %v1096
  %v1130 = vpack.c.b16 %v1100, %v1097
  %v1131 = vpack.c.b16 %v1101, %v1098
  %v1132 = vpack.c.b16 %v1105, %v1102
  %v1133 = vpack.c.b16 %v1106, %v1103
  %v1134 = vpack.c.b16 %v1107, %v1104
  %v1135 = vpack.c.b16 %v1111, %v1108
  %v1136 = vpack.c.b16 %v1112, %v1109
  %v1137 = vpack.c.b16 %v1113, %v1110
  %1162 = vmatprep.subr.bf16.mxu0 %v1115
  %1163 = vmatpush1.bf16.msra.mxu0 %v1114
  %1164 = vmatprep.subr.bf16.mxu0 %v1118
  %1165 = vmatpush1.bf16.msra.mxu0 %v1117
  %1166 = vmatprep.subr.bf16.mxu0 %v1121
  %1167 = vmatpush1.bf16.msra.mxu0 %v1120
  %1168 = vmatprep.subr.bf16.mxu0 %v1124
  %1169 = vmatpush1.bf16.msra.mxu0 %v1123
  %1170 = vmatprep.subr.bf16.mxu0 %v1127
  %1171 = vmatpush1.bf16.msra.mxu0 %v1126
  %1172 = vmatprep.subr.bf16.mxu0 %v1130
  %1173 = vmatpush1.bf16.msra.mxu0 %v1129
  %1174 = vmatprep.subr.bf16.mxu0 %v1133
  %1175 = vmatpush1.bf16.msra.mxu0 %v1132
  %1176 = vmatprep.subr.bf16.mxu0 %v1136
  %1177 = vmatpush1.bf16.msra.mxu0 %v1135
  %1178 = vmatprep.subr.bf16.mxu0 0
  %1179 = vmatpush1.bf16.msra.mxu0 0
  %1180 = vmatprep.subr.bf16.mxu0 0
  %1181 = vmatpush1.bf16.msra.mxu0 0
  %1182 = vmatprep.subr.bf16.mxu0 0
  %1183 = vmatpush1.bf16.msra.mxu0 0
  %1184 = vmatprep.subr.bf16.mxu0 0
  %1185 = vmatpush1.bf16.msra.mxu0 0
  %1186 = vmatprep.subr.bf16.mxu0 0
  %1187 = vmatpush1.bf16.msra.mxu0 0
  %1188 = vmatprep.subr.bf16.mxu0 0
  %1189 = vmatpush1.bf16.msra.mxu0 0
  %1190 = vmatprep.subr.bf16.mxu0 0
  %1191 = vmatpush1.bf16.msra.mxu0 0
  %1192 = vmatprep.subr.bf16.mxu0 0
  %1193 = vmatpush1.bf16.msra.mxu0 0
  %1194 = vmatprep.mubr.bf16.mxu0 0
  %1195 = vmatmul.mubr.bf16.gmra.mrb[0].mxu0 %v984
  %v1196 = vpop.f32.mrb[0].mxu0
  %v1197 = vadd.f32 %v1022, %v1196
  %v1198 = vpop.f32.mrb[0].mxu0
  %v1199 = vadd.f32 %v1026, %v1198
  %v1200 = vpop.f32.mrb[0].mxu0
  %v1201 = vpop.f32.mrb[0].mxu0
  %1202 = vdwg.mxu0
  %1203 = vmatprep.subr.bf16.mxu0 0
  %1204 = vmatpush1.bf16.msra.mxu0 %v1116
  %1205 = vmatprep.subr.bf16.mxu0 0
  %1206 = vmatpush1.bf16.msra.mxu0 %v1119
  %1207 = vmatprep.subr.bf16.mxu0 0
  %1208 = vmatpush1.bf16.msra.mxu0 %v1122
  %1209 = vmatprep.subr.bf16.mxu0 0
  %1210 = vmatpush1.bf16.msra.mxu0 %v1125
  %1211 = vmatprep.subr.bf16.mxu0 0
  %1212 = vmatpush1.bf16.msra.mxu0 %v1128
  %1213 = vmatprep.subr.bf16.mxu0 0
  %1214 = vmatpush1.bf16.msra.mxu0 %v1131
  %1215 = vmatprep.subr.bf16.mxu0 0
  %1216 = vmatpush1.bf16.msra.mxu0 %v1134
  %1217 = vmatprep.subr.bf16.mxu0 0
  %1218 = vmatpush1.bf16.msra.mxu0 %v1137
  %1219 = vmatprep.subr.bf16.mxu0 0
  %1220 = vmatpush1.bf16.msra.mxu0 0
  %1221 = vmatprep.subr.bf16.mxu0 0
  %1222 = vmatpush1.bf16.msra.mxu0 0
  %1223 = vmatprep.subr.bf16.mxu0 0
  %1224 = vmatpush1.bf16.msra.mxu0 0
  %1225 = vmatprep.subr.bf16.mxu0 0
  %1226 = vmatpush1.bf16.msra.mxu0 0
  %1227 = vmatprep.subr.bf16.mxu0 0
  %1228 = vmatpush1.bf16.msra.mxu0 0
  %1229 = vmatprep.subr.bf16.mxu0 0
  %1230 = vmatpush1.bf16.msra.mxu0 0
  %1231 = vmatprep.subr.bf16.mxu0 0
  %1232 = vmatpush1.bf16.msra.mxu0 0
  %1233 = vmatprep.subr.bf16.mxu0 0
  %1234 = vmatpush1.bf16.msra.mxu0 0
  %1235 = vmatprep.mubr.bf16.mxu0 0
  %1236 = vmatmul.mubr.bf16.gmra.mrb[0].mxu0 %v984
  %v1237 = vpop.f32.mrb[0].mxu0
  %v1238 = vadd.f32 %v1030, %v1237
  %v1239 = vpop.f32.mrb[0].mxu0
  %v1240 = vpop.f32.mrb[0].mxu0
  %v1241 = vpop.f32.mrb[0].mxu0
  %1242 = vdwg.mxu0
  %v1243 = vadd.f32 %v981, %v1197
  %v1244 = vmul.f32 %v1243, 0.5
  %v1245 = vtanh.pop %v1244
  %v1246 = vmul.f32 %v1245, 0.5
  %v1247 = vadd.f32 %v1246, 0.5
  %v1248 = vadd.f32 %v982, %v1199
  %v1249 = vmul.f32 %v1248, 0.5
  %v1250 = vtanh.pop %v1249
  %v1251 = vmul.f32 %v1250, 0.5
  %v1252 = vadd.f32 %v1251, 0.5
  %v1253 = vmul.f32 %v1247, %v1238
  %v1254 = vadd.f32 %v983, %v1253
  %v1255 = vtanh.pop %v1254
  %v1256 = vsub.f32 1.0, %v1252
  %v1257 = vmul.f32 %v1256, %v1255
  %v1258 = vmul.f32 %v1252, %v979
  %v1259 = vadd.f32 %v1257, %v1258
  %1260 = vst [vmem:[#allocation3 + $0x10] sm:$0xff] %v1259
  %v1261 = vld [vmem:[#allocation2 + $0x48] sm:$0xff]
  %v1262 = vld [vmem:[#allocation2 + $0x50] sm:$0xff]
  %v1263 = vld [vmem:[#allocation2 + $0x58] sm:$0xff]
  %v1264 = vpack.c.bf16 %v1259, %v1259
  %v1265 = vld [vmem:[%s2] sm:$0xff]
  %v1266 = vld [vmem:[%s2 + $0x8] sm:$0xf]
  %v1267 = vld [vmem:[%s2 + $0xc] sm:$0xff]
  %v1268 = vld [vmem:[%s2 + $0x14] sm:$0xf]
  %v1269 = vld [vmem:[%s2 + $0x18] sm:$0xff]
  %v1270 = vld [vmem:[%s2 + $0x20] sm:$0xf]
  %v1271 = vld [vmem:[%s2 + $0x24] sm:$0xff]
  %v1272 = vld [vmem:[%s2 + $0x2c] sm:$0xf]
  %v1273 = vld [vmem:[%s2 + $0x30] sm:$0xff]
  %v1274 = vld [vmem:[%s2 + $0x38] sm:$0xf]
  %v1275 = vld [vmem:[%s2 + $0x3c] sm:$0xff]
  %v1276 = vld [vmem:[%s2 + $0x44] sm:$0xf]
  %v1277 = vld [vmem:[%s2 + $0x48] sm:$0xff]
  %v1278 = vld [vmem:[%s2 + $0x50] sm:$0xf]
  %v1279 = vld [vmem:[%s2 + $0x54] sm:$0xff]
  %v1280 = vld [vmem:[%s2 + $0x5c] sm:$0xf]
  %v1281 = vld [vmem:[%s2 + $0x60] sm:$0xff]
  %v1282 = vld [vmem:[%s2 + $0x68] sm:$0xf]
  %v1283 = vld [vmem:[%s2 + $0x6c] sm:$0xff]
  %v1284 = vld [vmem:[%s2 + $0x74] sm:$0xf]
  %v1285 = vld [vmem:[%s2 + $0x78] sm:$0xff]
  %v1286 = vld [vmem:[%s2 + $0x80] sm:$0xf]
  %v1287 = vld [vmem:[%s2 + $0x84] sm:$0xff]
  %v1288 = vld [vmem:[%s2 + $0x8c] sm:$0xf]
  %v1289 = vld [vmem:[%s2 + $0x90] sm:$0xff]
  %v1290 = vld [vmem:[%s2 + $0x98] sm:$0xf]
  %v1291 = vld [vmem:[%s2 + $0x9c] sm:$0xff]
  %v1292 = vld [vmem:[%s2 + $0xa4] sm:$0xf]
  %v1293 = vld [vmem:[%s2 + $0xa8] sm:$0xff]
  %v1294 = vld [vmem:[%s2 + $0xb0] sm:$0xf]
  %v1295 = vld [vmem:[%s2 + $0xb4] sm:$0xff]
  %v1296 = vld [vmem:[%s2 + $0xbc] sm:$0xf]
  %v1297 = vld [vmem:[%s4] sm:$0x7]
  %v1299 = vlaneseq
  %v1300 = vshrl.u32 %v1299, 7
  %v1301 = vsub.s32 0, %v1300
  %v1302 = vrot.slane %v1297, %v1301
  %v1303 = vlaneseq
  %v1304 = vshrl.u32 %v1303, 7
  %v1305 = vsub.s32 1, %v1304
  %v1306 = vrot.slane %v1297, %v1305
  %v1307 = vlaneseq
  %v1308 = vshrl.u32 %v1307, 7
  %v1309 = vsub.s32 2, %v1308
  %v1310 = vrot.slane %v1297, %v1309
  %v1346 = vunpack.c.l.b16 %v1265
  %v1347 = vunpack.c.h.b16 %v1265
  %v1348 = vunpack.c.l.b16 %v1266
  %v1349 = vunpack.c.l.b16 %v1267
  %v1350 = vunpack.c.h.b16 %v1267
  %v1351 = vunpack.c.l.b16 %v1268
  %v1352 = vunpack.c.l.b16 %v1269
  %v1353 = vunpack.c.h.b16 %v1269
  %v1354 = vunpack.c.l.b16 %v1270
  %v1355 = vunpack.c.l.b16 %v1271
  %v1356 = vunpack.c.h.b16 %v1271
  %v1357 = vunpack.c.l.b16 %v1272
  %v1358 = vunpack.c.l.b16 %v1273
  %v1359 = vunpack.c.h.b16 %v1273
  %v1360 = vunpack.c.l.b16 %v1274
  %v1361 = vunpack.c.l.b16 %v1275
  %v1362 = vunpack.c.h.b16 %v1275
  %v1363 = vunpack.c.l.b16 %v1276
  %v1364 = vunpack.c.l.b16 %v1277
  %v1365 = vunpack.c.h.b16 %v1277
  %v1366 = vunpack.c.l.b16 %v1278
  %v1367 = vunpack.c.l.b16 %v1279
  %v1368 = vunpack.c.h.b16 %v1279
  %v1369 = vunpack.c.l.b16 %v1280
  %v1370 = vunpack.c.l.b16 %v1281
  %v1371 = vunpack.c.h.b16 %v1281
  %v1372 = vunpack.c.l.b16 %v1282
  %v1373 = vunpack.c.l.b16 %v1283
  %v1374 = vunpack.c.h.b16 %v1283
  %v1375 = vunpack.c.l.b16 %v1284
  %v1376 = vunpack.c.l.b16 %v1285
  %v1377 = vunpack.c.h.b16 %v1285
  %v1378 = vunpack.c.l.b16 %v1286
  %v1379 = vunpack.c.l.b16 %v1287
  %v1380 = vunpack.c.h.b16 %v1287
  %v1381 = vunpack.c.l.b16 %v1288
  %v1382 = vunpack.c.l.b16 %v1289
  %v1383 = vunpack.c.h.b16 %v1289
  %v1384 = vunpack.c.l.b16 %v1290
  %v1385 = vunpack.c.l.b16 %v1291
  %v1386 = vunpack.c.h.b16 %v1291
  %v1387 = vunpack.c.l.b16 %v1292
  %v1388 = vunpack.c.l.b16 %v1293
  %v1389 = vunpack.c.h.b16 %v1293
  %v1390 = vunpack.c.l.b16 %v1294
  %v1391 = vunpack.c.l.b16 %v1295
  %v1392 = vunpack.c.h.b16 %v1295
  %v1393 = vunpack.c.l.b16 %v1296
  %v1394 = vpack.c.b16 %v1349, %v1346
  %v1395 = vpack.c.b16 %v1350, %v1347
  %v1396 = vpack.c.b16 %v1351, %v1348
  %v1397 = vpack.c.b16 %v1355, %v1352
  %v1398 = vpack.c.b16 %v1356, %v1353
  %v1399 = vpack.c.b16 %v1357, %v1354
  %v1400 = vpack.c.b16 %v1361, %v1358
  %v1401 = vpack.c.b16 %v1362, %v1359
  %v1402 = vpack.c.b16 %v1363, %v1360
  %v1403 = vpack.c.b16 %v1367, %v1364
  %v1404 = vpack.c.b16 %v1368, %v1365
  %v1405 = vpack.c.b16 %v1369, %v1366
  %v1406 = vpack.c.b16 %v1373, %v1370
  %v1407 = vpack.c.b16 %v1374, %v1371
  %v1408 = vpack.c.b16 %v1375, %v1372
  %v1409 = vpack.c.b16 %v1379, %v1376
  %v1410 = vpack.c.b16 %v1380, %v1377
  %v1411 = vpack.c.b16 %v1381, %v1378
  %v1412 = vpack.c.b16 %v1385, %v1382
  %v1413 = vpack.c.b16 %v1386, %v1383
  %v1414 = vpack.c.b16 %v1387, %v1384
  %v1415 = vpack.c.b16 %v1391, %v1388
  %v1416 = vpack.c.b16 %v1392, %v1389
  %v1417 = vpack.c.b16 %v1393, %v1390
  %1442 = vmatprep.subr.bf16.mxu0 %v1395
  %1443 = vmatpush1.bf16.msra.mxu0 %v1394
  %1444 = vmatprep.subr.bf16.mxu0 %v1398
  %1445 = vmatpush1.bf16.msra.mxu0 %v1397
  %1446 = vmatprep.subr.bf16.mxu0 %v1401
  %1447 = vmatpush1.bf16.msra.mxu0 %v1400
  %1448 = vmatprep.subr.bf16.mxu0 %v1404
  %1449 = vmatpush1.bf16.msra.mxu0 %v1403
  %1450 = vmatprep.subr.bf16.mxu0 %v1407
  %1451 = vmatpush1.bf16.msra.mxu0 %v1406
  %1452 = vmatprep.subr.bf16.mxu0 %v1410
  %1453 = vmatpush1.bf16.msra.mxu0 %v1409
  %1454 = vmatprep.subr.bf16.mxu0 %v1413
  %1455 = vmatpush1.bf16.msra.mxu0 %v1412
  %1456 = vmatprep.subr.bf16.mxu0 %v1416
  %1457 = vmatpush1.bf16.msra.mxu0 %v1415
  %1458 = vmatprep.subr.bf16.mxu0 0
  %1459 = vmatpush1.bf16.msra.mxu0 0
  %1460 = vmatprep.subr.bf16.mxu0 0
  %1461 = vmatpush1.bf16.msra.mxu0 0
  %1462 = vmatprep.subr.bf16.mxu0 0
  %1463 = vmatpush1.bf16.msra.mxu0 0
  %1464 = vmatprep.subr.bf16.mxu0 0
  %1465 = vmatpush1.bf16.msra.mxu0 0
  %1466 = vmatprep.subr.bf16.mxu0 0
  %1467 = vmatpush1.bf16.msra.mxu0 0
  %1468 = vmatprep.subr.bf16.mxu0 0
  %1469 = vmatpush1.bf16.msra.mxu0 0
  %1470 = vmatprep.subr.bf16.mxu0 0
  %1471 = vmatpush1.bf16.msra.mxu0 0
  %1472 = vmatprep.subr.bf16.mxu0 0
  %1473 = vmatpush1.bf16.msra.mxu0 0
  %1474 = vmatprep.mubr.bf16.mxu0 0
  %1475 = vmatmul.mubr.bf16.gmra.mrb[0].mxu0 %v1264
  %v1476 = vpop.f32.mrb[0].mxu0
  %v1477 = vadd.f32 %v1302, %v1476
  %v1478 = vpop.f32.mrb[0].mxu0
  %v1479 = vadd.f32 %v1306, %v1478
  %v1480 = vpop.f32.mrb[0].mxu0
  %v1481 = vpop.f32.mrb[0].mxu0
  %1482 = vdwg.mxu0
  %1483 = vmatprep.subr.bf16.mxu0 0
  %1484 = vmatpush1.bf16.msra.mxu0 %v1396
  %1485 = vmatprep.subr.bf16.mxu0 0
  %1486 = vmatpush1.bf16.msra.mxu0 %v1399
  %1487 = vmatprep.subr.bf16.mxu0 0
  %1488 = vmatpush1.bf16.msra.mxu0 %v1402
  %1489 = vmatprep.subr.bf16.mxu0 0
  %1490 = vmatpush1.bf16.msra.mxu0 %v1405
  %1491 = vmatprep.subr.bf16.mxu0 0
  %1492 = vmatpush1.bf16.msra.mxu0 %v1408
  %1493 = vmatprep.subr.bf16.mxu0 0
  %1494 = vmatpush1.bf16.msra.mxu0 %v1411
  %1495 = vmatprep.subr.bf16.mxu0 0
  %1496 = vmatpush1.bf16.msra.mxu0 %v1414
  %1497 = vmatprep.subr.bf16.mxu0 0
  %1498 = vmatpush1.bf16.msra.mxu0 %v1417
  %1499 = vmatprep.subr.bf16.mxu0 0
  %1500 = vmatpush1.bf16.msra.mxu0 0
  %1501 = vmatprep.subr.bf16.mxu0 0
  %1502 = vmatpush1.bf16.msra.mxu0 0
  %1503 = vmatprep.subr.bf16.mxu0 0
  %1504 = vmatpush1.bf16.msra.mxu0 0
  %1505 = vmatprep.subr.bf16.mxu0 0
  %1506 = vmatpush1.bf16.msra.mxu0 0
  %1507 = vmatprep.subr.bf16.mxu0 0
  %1508 = vmatpush1.bf16.msra.mxu0 0
  %1509 = vmatprep.subr.bf16.mxu0 0
  %1510 = vmatpush1.bf16.msra.mxu0 0
  %1511 = vmatprep.subr.bf16.mxu0 0
  %1512 = vmatpush1.bf16.msra.mxu0 0
  %1513 = vmatprep.subr.bf16.mxu0 0
  %1514 = vmatpush1.bf16.msra.mxu0 0
  %1515 = vmatprep.mubr.bf16.mxu0 0
  %1516 = vmatmul.mubr.bf16.gmra.mrb[0].mxu0 %v1264
  %v1517 = vpop.f32.mrb[0].mxu0
  %v1518 = vadd.f32 %v1310, %v1517
  %v1519 = vpop.f32.mrb[0].mxu0
  %v1520 = vpop.f32.mrb[0].mxu0
  %v1521 = vpop.f32.mrb[0].mxu0
  %1522 = vdwg.mxu0
  %v1523 = vadd.f32 %v1261, %v1477
  %v1524 = vmul.f32 %v1523, 0.5
  %v1525 = vtanh.pop %v1524
  %v1526 = vmul.f32 %v1525, 0.5
  %v1527 = vadd.f32 %v1526, 0.5
  %v1528 = vadd.f32 %v1262, %v1479
  %v1529 = vmul.f32 %v1528, 0.5
  %v1530 = vtanh.pop %v1529
  %v1531 = vmul.f32 %v1530, 0.5
  %v1532 = vadd.f32 %v1531, 0.5
  %v1533 = vmul.f32 %v1527, %v1518
  %v1534 = vadd.f32 %v1263, %v1533
  %v1535 = vtanh.pop %v1534
  %v1536 = vsub.f32 1.0, %v1532
  %v1537 = vmul.f32 %v1536, %v1535
  %v1538 = vmul.f32 %v1532, %v1259
  %v1539 = vadd.f32 %v1537, %v1538
  %1540 = vst [vmem:[#allocation3 + $0x18] sm:$0xff] %v1539
  %v1541 = vld [vmem:[#allocation2 + $0x60] sm:$0xff]
  %v1542 = vld [vmem:[#allocation2 + $0x68] sm:$0xff]
  %v1543 = vld [vmem:[#allocation2 + $0x70] sm:$0xff]
  %v1544 = vpack.c.bf16 %v1539, %v1539
  %v1545 = vld [vmem:[%s2] sm:$0xff]
  %v1546 = vld [vmem:[%s2 + $0x8] sm:$0xf]
  %v1547 = vld [vmem:[%s2 + $0xc] sm:$0xff]
  %v1548 = vld [vmem:[%s2 + $0x14] sm:$0xf]
  %v1549 = vld [vmem:[%s2 + $0x18] sm:$0xff]
  %v1550 = vld [vmem:[%s2 + $0x20] sm:$0xf]
  %v1551 = vld [vmem:[%s2 + $0x24] sm:$0xff]
  %v1552 = vld [vmem:[%s2 + $0x2c] sm:$0xf]
  %v1553 = vld [vmem:[%s2 + $0x30] sm:$0xff]
  %v1554 = vld [vmem:[%s2 + $0x38] sm:$0xf]
  %v1555 = vld [vmem:[%s2 + $0x3c] sm:$0xff]
  %v1556 = vld [vmem:[%s2 + $0x44] sm:$0xf]
  %v1557 = vld [vmem:[%s2 + $0x48] sm:$0xff]
  %v1558 = vld [vmem:[%s2 + $0x50] sm:$0xf]
  %v1559 = vld [vmem:[%s2 + $0x54] sm:$0xff]
  %v1560 = vld [vmem:[%s2 + $0x5c] sm:$0xf]
  %v1561 = vld [vmem:[%s2 + $0x60] sm:$0xff]
  %v1562 = vld [vmem:[%s2 + $0x68] sm:$0xf]
  %v1563 = vld [vmem:[%s2 + $0x6c] sm:$0xff]
  %v1564 = vld [vmem:[%s2 + $0x74] sm:$0xf]
  %v1565 = vld [vmem:[%s2 + $0x78] sm:$0xff]
  %v1566 = vld [vmem:[%s2 + $0x80] sm:$0xf]
  %v1567 = vld [vmem:[%s2 + $0x84] sm:$0xff]
  %v1568 = vld [vmem:[%s2 + $0x8c] sm:$0xf]
  %v1569 = vld [vmem:[%s2 + $0x90] sm:$0xff]
  %v1570 = vld [vmem:[%s2 + $0x98] sm:$0xf]
  %v1571 = vld [vmem:[%s2 + $0x9c] sm:$0xff]
  %v1572 = vld [vmem:[%s2 + $0xa4] sm:$0xf]
  %v1573 = vld [vmem:[%s2 + $0xa8] sm:$0xff]
  %v1574 = vld [vmem:[%s2 + $0xb0] sm:$0xf]
  %v1575 = vld [vmem:[%s2 + $0xb4] sm:$0xff]
  %v1576 = vld [vmem:[%s2 + $0xbc] sm:$0xf]
  %v1577 = vld [vmem:[%s4] sm:$0x7]
  %v1579 = vlaneseq
  %v1580 = vshrl.u32 %v1579, 7
  %v1581 = vsub.s32 0, %v1580
  %v1582 = vrot.slane %v1577, %v1581
  %v1583 = vlaneseq
  %v1584 = vshrl.u32 %v1583, 7
  %v1585 = vsub.s32 1, %v1584
  %v1586 = vrot.slane %v1577, %v1585
  %v1587 = vlaneseq
  %v1588 = vshrl.u32 %v1587, 7
  %v1589 = vsub.s32 2, %v1588
  %v1590 = vrot.slane %v1577, %v1589
  %v1626 = vunpack.c.l.b16 %v1545
  %v1627 = vunpack.c.h.b16 %v1545
  %v1628 = vunpack.c.l.b16 %v1546
  %v1629 = vunpack.c.l.b16 %v1547
  %v1630 = vunpack.c.h.b16 %v1547
  %v1631 = vunpack.c.l.b16 %v1548
  %v1632 = vunpack.c.l.b16 %v1549
  %v1633 = vunpack.c.h.b16 %v1549
  %v1634 = vunpack.c.l.b16 %v1550
  %v1635 = vunpack.c.l.b16 %v1551
  %v1636 = vunpack.c.h.b16 %v1551
  %v1637 = vunpack.c.l.b16 %v1552
  %v1638 = vunpack.c.l.b16 %v1553
  %v1639 = vunpack.c.h.b16 %v1553
  %v1640 = vunpack.c.l.b16 %v1554
  %v1641 = vunpack.c.l.b16 %v1555
  %v1642 = vunpack.c.h.b16 %v1555
  %v1643 = vunpack.c.l.b16 %v1556
  %v1644 = vunpack.c.l.b16 %v1557
  %v1645 = vunpack.c.h.b16 %v1557
  %v1646 = vunpack.c.l.b16 %v1558
  %v1647 = vunpack.c.l.b16 %v1559
  %v1648 = vunpack.c.h.b16 %v1559
  %v1649 = vunpack.c.l.b16 %v1560
  %v1650 = vunpack.c.l.b16 %v1561
  %v1651 = vunpack.c.h.b16 %v1561
  %v1652 = vunpack.c.l.b16 %v1562
  %v1653 = vunpack.c.l.b16 %v1563
  %v1654 = vunpack.c.h.b16 %v1563
  %v1655 = vunpack.c.l.b16 %v1564
  %v1656 = vunpack.c.l.b16 %v1565
  %v1657 = vunpack.c.h.b16 %v1565
  %v1658 = vunpack.c.l.b16 %v1566
  %v1659 = vunpack.c.l.b16 %v1567
  %v1660 = vunpack.c.h.b16 %v1567
  %v1661 = vunpack.c.l.b16 %v1568
  %v1662 = vunpack.c.l.b16 %v1569
  %v1663 = vunpack.c.h.b16 %v1569
  %v1664 = vunpack.c.l.b16 %v1570
  %v1665 = vunpack.c.l.b16 %v1571
  %v1666 = vunpack.c.h.b16 %v1571
  %v1667 = vunpack.c.l.b16 %v1572
  %v1668 = vunpack.c.l.b16 %v1573
  %v1669 = vunpack.c.h.b16 %v1573
  %v1670 = vunpack.c.l.b16 %v1574
  %v1671 = vunpack.c.l.b16 %v1575
  %v1672 = vunpack.c.h.b16 %v1575
  %v1673 = vunpack.c.l.b16 %v1576
  %v1674 = vpack.c.b16 %v1629, %v1626
  %v1675 = vpack.c.b16 %v1630, %v1627
  %v1676 = vpack.c.b16 %v1631, %v1628
  %v1677 = vpack.c.b16 %v1635, %v1632
  %v1678 = vpack.c.b16 %v1636, %v1633
  %v1679 = vpack.c.b16 %v1637, %v1634
  %v1680 = vpack.c.b16 %v1641, %v1638
  %v1681 = vpack.c.b16 %v1642, %v1639
  %v1682 = vpack.c.b16 %v1643, %v1640
  %v1683 = vpack.c.b16 %v1647, %v1644
  %v1684 = vpack.c.b16 %v1648, %v1645
  %v1685 = vpack.c.b16 %v1649, %v1646
  %v1686 = vpack.c.b16 %v1653, %v1650
  %v1687 = vpack.c.b16 %v1654, %v1651
  %v1688 = vpack.c.b16 %v1655, %v1652
  %v1689 = vpack.c.b16 %v1659, %v1656
  %v1690 = vpack.c.b16 %v1660, %v1657
  %v1691 = vpack.c.b16 %v1661, %v1658
  %v1692 = vpack.c.b16 %v1665, %v1662
  %v1693 = vpack.c.b16 %v1666, %v1663
  %v1694 = vpack.c.b16 %v1667, %v1664
  %v1695 = vpack.c.b16 %v1671, %v1668
  %v1696 = vpack.c.b16 %v1672, %v1669
  %v1697 = vpack.c.b16 %v1673, %v1670
  %1722 = vmatprep.subr.bf16.mxu0 %v1675
  %1723 = vmatpush1.bf16.msra.mxu0 %v1674
  %1724 = vmatprep.subr.bf16.mxu0 %v1678
  %1725 = vmatpush1.bf16.msra.mxu0 %v1677
  %1726 = vmatprep.subr.bf16.mxu0 %v1681
  %1727 = vmatpush1.bf16.msra.mxu0 %v1680
  %1728 = vmatprep.subr.bf16.mxu0 %v1684
  %1729 = vmatpush1.bf16.msra.mxu0 %v1683
  %1730 = vmatprep.subr.bf16.mxu0 %v1687
  %1731 = vmatpush1.bf16.msra.mxu0 %v1686
  %1732 = vmatprep.subr.bf16.mxu0 %v1690
  %1733 = vmatpush1.bf16.msra.mxu0 %v1689
  %1734 = vmatprep.subr.bf16.mxu0 %v1693
  %1735 = vmatpush1.bf16.msra.mxu0 %v1692
  %1736 = vmatprep.subr.bf16.mxu0 %v1696
  %1737 = vmatpush1.bf16.msra.mxu0 %v1695
  %1738 = vmatprep.subr.bf16.mxu0 0
  %1739 = vmatpush1.bf16.msra.mxu0 0
  %1740 = vmatprep.subr.bf16.mxu0 0
  %1741 = vmatpush1.bf16.msra.mxu0 0
  %1742 = vmatprep.subr.bf16.mxu0 0
  %1743 = vmatpush1.bf16.msra.mxu0 0
  %1744 = vmatprep.subr.bf16.mxu0 0
  %1745 = vmatpush1.bf16.msra.mxu0 0
  %1746 = vmatprep.subr.bf16.mxu0 0
  %1747 = vmatpush1.bf16.msra.mxu0 0
  %1748 = vmatprep.subr.bf16.mxu0 0
  %1749 = vmatpush1.bf16.msra.mxu0 0
  %1750 = vmatprep.subr.bf16.mxu0 0
  %1751 = vmatpush1.bf16.msra.mxu0 0
  %1752 = vmatprep.subr.bf16.mxu0 0
  %1753 = vmatpush1.bf16.msra.mxu0 0
  %1754 = vmatprep.mubr.bf16.mxu0 0
  %1755 = vmatmul.mubr.bf16.gmra.mrb[0].mxu0 %v1544
  %v1756 = vpop.f32.mrb[0].mxu0
  %v1757 = vadd.f32 %v1582, %v1756
  %v1758 = vpop.f32.mrb[0].mxu0
  %v1759 = vadd.f32 %v1586, %v1758
  %v1760 = vpop.f32.mrb[0].mxu0
  %v1761 = vpop.f32.mrb[0].mxu0
  %1762 = vdwg.mxu0
  %1763 = vmatprep.subr.bf16.mxu0 0
  %1764 = vmatpush1.bf16.msra.mxu0 %v1676
  %1765 = vmatprep.subr.bf16.mxu0 0
  %1766 = vmatpush1.bf16.msra.mxu0 %v1679
  %1767 = vmatprep.subr.bf16.mxu0 0
  %1768 = vmatpush1.bf16.msra.mxu0 %v1682
  %1769 = vmatprep.subr.bf16.mxu0 0
  %1770 = vmatpush1.bf16.msra.mxu0 %v1685
  %1771 = vmatprep.subr.bf16.mxu0 0
  %1772 = vmatpush1.bf16.msra.mxu0 %v1688
  %1773 = vmatprep.subr.bf16.mxu0 0
  %1774 = vmatpush1.bf16.msra.mxu0 %v1691
  %1775 = vmatprep.subr.bf16.mxu0 0
  %1776 = vmatpush1.bf16.msra.mxu0 %v1694
  %1777 = vmatprep.subr.bf16.mxu0 0
  %1778 = vmatpush1.bf16.msra.mxu0 %v1697
  %1779 = vmatprep.subr.bf16.mxu0 0
  %1780 = vmatpush1.bf16.msra.mxu0 0
  %1781 = vmatprep.subr.bf16.mxu0 0
  %1782 = vmatpush1.bf16.msra.mxu0 0
  %1783 = vmatprep.subr.bf16.mxu0 0
  %1784 = vmatpush1.bf16.msra.mxu0 0
  %1785 = vmatprep.subr.bf16.mxu0 0
  %1786 = vmatpush1.bf16.msra.mxu0 0
  %1787 = vmatprep.subr.bf16.mxu0 0
  %1788 = vmatpush1.bf16.msra.mxu0 0
  %1789 = vmatprep.subr.bf16.mxu0 0
  %1790 = vmatpush1.bf16.msra.mxu0 0
  %1791 = vmatprep.subr.bf16.mxu0 0
  %1792 = vmatpush1.bf16.msra.mxu0 0
  %1793 = vmatprep.subr.bf16.mxu0 0
  %1794 = vmatpush1.bf16.msra.mxu0 0
  %1795 = vmatprep.mubr.bf16.mxu0 0
  %1796 = vmatmul.mubr.bf16.gmra.mrb[0].mxu0 %v1544
  %v1797 = vpop.f32.mrb[0].mxu0
  %v1798 = vadd.f32 %v1590, %v1797
  %v1799 = vpop.f32.mrb[0].mxu0
  %v1800 = vpop.f32.mrb[0].mxu0
  %v1801 = vpop.f32.mrb[0].mxu0
  %1802 = vdwg.mxu0
  %v1803 = vadd.f32 %v1541, %v1757
  %v1804 = vmul.f32 %v1803, 0.5
  %v1805 = vtanh.pop %v1804
  %v1806 = vmul.f32 %v1805, 0.5
  %v1807 = vadd.f32 %v1806, 0.5
  %v1808 = vadd.f32 %v1542, %v1759
  %v1809 = vmul.f32 %v1808, 0.5
  %v1810 = vtanh.pop %v1809
  %v1811 = vmul.f32 %v1810, 0.5
  %v1812 = vadd.f32 %v1811, 0.5
  %v1813 = vmul.f32 %v1807, %v1798
  %v1814 = vadd.f32 %v1543, %v1813
  %v1815 = vtanh.pop %v1814
  %v1816 = vsub.f32 1.0, %v1812
  %v1817 = vmul.f32 %v1816, %v1815
  %v1818 = vmul.f32 %v1812, %v1539
  %v1819 = vadd.f32 %v1817, %v1818
  %1820 = vst [vmem:[#allocation3 + $0x20] sm:$0xff] %v1819
  %v1821 = vld [vmem:[#allocation2 + $0x78] sm:$0xff]
  %v1822 = vld [vmem:[#allocation2 + $0x80] sm:$0xff]
  %v1823 = vld [vmem:[#allocation2 + $0x88] sm:$0xff]
  %v1824 = vpack.c.bf16 %v1819, %v1819
  %v1825 = vld [vmem:[%s2] sm:$0xff]
  %v1826 = vld [vmem:[%s2 + $0x8] sm:$0xf]
  %v1827 = vld [vmem:[%s2 + $0xc] sm:$0xff]
  %v1828 = vld [vmem:[%s2 + $0x14] sm:$0xf]
  %v1829 = vld [vmem:[%s2 + $0x18] sm:$0xff]
  %v1830 = vld [vmem:[%s2 + $0x20] sm:$0xf]
  %v1831 = vld [vmem:[%s2 + $0x24] sm:$0xff]
  %v1832 = vld [vmem:[%s2 + $0x2c] sm:$0xf]
  %v1833 = vld [vmem:[%s2 + $0x30] sm:$0xff]
  %v1834 = vld [vmem:[%s2 + $0x38] sm:$0xf]
  %v1835 = vld [vmem:[%s2 + $0x3c] sm:$0xff]
  %v1836 = vld [vmem:[%s2 + $0x44] sm:$0xf]
  %v1837 = vld [vmem:[%s2 + $0x48] sm:$0xff]
  %v1838 = vld [vmem:[%s2 + $0x50] sm:$0xf]
  %v1839 = vld [vmem:[%s2 + $0x54] sm:$0xff]
  %v1840 = vld [vmem:[%s2 + $0x5c] sm:$0xf]
  %v1841 = vld [vmem:[%s2 + $0x60] sm:$0xff]
  %v1842 = vld [vmem:[%s2 + $0x68] sm:$0xf]
  %v1843 = vld [vmem:[%s2 + $0x6c] sm:$0xff]
  %v1844 = vld [vmem:[%s2 + $0x74] sm:$0xf]
  %v1845 = vld [vmem:[%s2 + $0x78] sm:$0xff]
  %v1846 = vld [vmem:[%s2 + $0x80] sm:$0xf]
  %v1847 = vld [vmem:[%s2 + $0x84] sm:$0xff]
  %v1848 = vld [vmem:[%s2 + $0x8c] sm:$0xf]
  %v1849 = vld [vmem:[%s2 + $0x90] sm:$0xff]
  %v1850 = vld [vmem:[%s2 + $0x98] sm:$0xf]
  %v1851 = vld [vmem:[%s2 + $0x9c] sm:$0xff]
  %v1852 = vld [vmem:[%s2 + $0xa4] sm:$0xf]
  %v1853 = vld [vmem:[%s2 + $0xa8] sm:$0xff]
  %v1854 = vld [vmem:[%s2 + $0xb0] sm:$0xf]
  %v1855 = vld [vmem:[%s2 + $0xb4] sm:$0xff]
  %v1856 = vld [vmem:[%s2 + $0xbc] sm:$0xf]
  %v1857 = vld [vmem:[%s4] sm:$0x7]
  %v1859 = vlaneseq
  %v1860 = vshrl.u32 %v1859, 7
  %v1861 = vsub.s32 0, %v1860
  %v1862 = vrot.slane %v1857, %v1861
  %v1863 = vlaneseq
  %v1864 = vshrl.u32 %v1863, 7
  %v1865 = vsub.s32 1, %v1864
  %v1866 = vrot.slane %v1857, %v1865
  %v1867 = vlaneseq
  %v1868 = vshrl.u32 %v1867, 7
  %v1869 = vsub.s32 2, %v1868
  %v1870 = vrot.slane %v1857, %v1869
  %v1906 = vunpack.c.l.b16 %v1825
  %v1907 = vunpack.c.h.b16 %v1825
  %v1908 = vunpack.c.l.b16 %v1826
  %v1909 = vunpack.c.l.b16 %v1827
  %v1910 = vunpack.c.h.b16 %v1827
  %v1911 = vunpack.c.l.b16 %v1828
  %v1912 = vunpack.c.l.b16 %v1829
  %v1913 = vunpack.c.h.b16 %v1829
  %v1914 = vunpack.c.l.b16 %v1830
  %v1915 = vunpack.c.l.b16 %v1831
  %v1916 = vunpack.c.h.b16 %v1831
  %v1917 = vunpack.c.l.b16 %v1832
  %v1918 = vunpack.c.l.b16 %v1833
  %v1919 = vunpack.c.h.b16 %v1833
  %v1920 = vunpack.c.l.b16 %v1834
  %v1921 = vunpack.c.l.b16 %v1835
  %v1922 = vunpack.c.h.b16 %v1835
  %v1923 = vunpack.c.l.b16 %v1836
  %v1924 = vunpack.c.l.b16 %v1837
  %v1925 = vunpack.c.h.b16 %v1837
  %v1926 = vunpack.c.l.b16 %v1838
  %v1927 = vunpack.c.l.b16 %v1839
  %v1928 = vunpack.c.h.b16 %v1839
  %v1929 = vunpack.c.l.b16 %v1840
  %v1930 = vunpack.c.l.b16 %v1841
  %v1931 = vunpack.c.h.b16 %v1841
  %v1932 = vunpack.c.l.b16 %v1842
  %v1933 = vunpack.c.l.b16 %v1843
  %v1934 = vunpack.c.h.b16 %v1843
  %v1935 = vunpack.c.l.b16 %v1844
  %v1936 = vunpack.c.l.b16 %v1845
  %v1937 = vunpack.c.h.b16 %v1845
  %v1938 = vunpack.c.l.b16 %v1846
  %v1939 = vunpack.c.l.b16 %v1847
  %v1940 = vunpack.c.h.b16 %v1847
  %v1941 = vunpack.c.l.b16 %v1848
  %v1942 = vunpack.c.l.b16 %v1849
  %v1943 = vunpack.c.h.b16 %v1849
  %v1944 = vunpack.c.l.b16 %v1850
  %v1945 = vunpack.c.l.b16 %v1851
  %v1946 = vunpack.c.h.b16 %v1851
  %v1947 = vunpack.c.l.b16 %v1852
  %v1948 = vunpack.c.l.b16 %v1853
  %v1949 = vunpack.c.h.b16 %v1853
  %v1950 = vunpack.c.l.b16 %v1854
  %v1951 = vunpack.c.l.b16 %v1855
  %v1952 = vunpack.c.h.b16 %v1855
  %v1953 = vunpack.c.l.b16 %v1856
  %v1954 = vpack.c.b16 %v1909, %v1906
  %v1955 = vpack.c.b16 %v1910, %v1907
  %v1956 = vpack.c.b16 %v1911, %v1908
  %v1957 = vpack.c.b16 %v1915, %v1912
  %v1958 = vpack.c.b16 %v1916, %v1913
  %v1959 = vpack.c.b16 %v1917, %v1914
  %v1960 = vpack.c.b16 %v1921, %v1918
  %v1961 = vpack.c.b16 %v1922, %v1919
  %v1962 = vpack.c.b16 %v1923, %v1920
  %v1963 = vpack.c.b16 %v1927, %v1924
  %v1964 = vpack.c.b16 %v1928, %v1925
  %v1965 = vpack.c.b16 %v1929, %v1926
  %v1966 = vpack.c.b16 %v1933, %v1930
  %v1967 = vpack.c.b16 %v1934, %v1931
  %v1968 = vpack.c.b16 %v1935, %v1932
  %v1969 = vpack.c.b16 %v1939, %v1936
  %v1970 = vpack.c.b16 %v1940, %v1937
  %v1971 = vpack.c.b16 %v1941, %v1938
  %v1972 = vpack.c.b16 %v1945, %v1942
  %v1973 = vpack.c.b16 %v1946, %v1943
  %v1974 = vpack.c.b16 %v1947, %v1944
  %v1975 = vpack.c.b16 %v1951, %v1948
  %v1976 = vpack.c.b16 %v1952, %v1949
  %v1977 = vpack.c.b16 %v1953, %v1950
  %2002 = vmatprep.subr.bf16.mxu0 %v1955
  %2003 = vmatpush1.bf16.msra.mxu0 %v1954
  %2004 = vmatprep.subr.bf16.mxu0 %v1958
  %2005 = vmatpush1.bf16.msra.mxu0 %v1957
  %2006 = vmatprep.subr.bf16.mxu0 %v1961
  %2007 = vmatpush1.bf16.msra.mxu0 %v1960
  %2008 = vmatprep.subr.bf16.mxu0 %v1964
  %2009 = vmatpush1.bf16.msra.mxu0 %v1963
  %2010 = vmatprep.subr.bf16.mxu0 %v1967
  %2011 = vmatpush1.bf16.msra.mxu0 %v1966
  %2012 = vmatprep.subr.bf16.mxu0 %v1970
  %2013 = vmatpush1.bf16.msra.mxu0 %v1969
  %2014 = vmatprep.subr.bf16.mxu0 %v1973
  %2015 = vmatpush1.bf16.msra.mxu0 %v1972
  %2016 = vmatprep.subr.bf16.mxu0 %v1976
  %2017 = vmatpush1.bf16.msra.mxu0 %v1975
  %2018 = vmatprep.subr.bf16.mxu0 0
  %2019 = vmatpush1.bf16.msra.mxu0 0
  %2020 = vmatprep.subr.bf16.mxu0 0
  %2021 = vmatpush1.bf16.msra.mxu0 0
  %2022 = vmatprep.subr.bf16.mxu0 0
  %2023 = vmatpush1.bf16.msra.mxu0 0
  %2024 = vmatprep.subr.bf16.mxu0 0
  %2025 = vmatpush1.bf16.msra.mxu0 0
  %2026 = vmatprep.subr.bf16.mxu0 0
  %2027 = vmatpush1.bf16.msra.mxu0 0
  %2028 = vmatprep.subr.bf16.mxu0 0
  %2029 = vmatpush1.bf16.msra.mxu0 0
  %2030 = vmatprep.subr.bf16.mxu0 0
  %2031 = vmatpush1.bf16.msra.mxu0 0
  %2032 = vmatprep.subr.bf16.mxu0 0
  %2033 = vmatpush1.bf16.msra.mxu0 0
  %2034 = vmatprep.mubr.bf16.mxu0 0
  %2035 = vmatmul.mubr.bf16.gmra.mrb[0].mxu0 %v1824
  %v2036 = vpop.f32.mrb[0].mxu0
  %v2037 = vadd.f32 %v1862, %v2036
  %v2038 = vpop.f32.mrb[0].mxu0
  %v2039 = vadd.f32 %v1866, %v2038
  %v2040 = vpop.f32.mrb[0].mxu0
  %v2041 = vpop.f32.mrb[0].mxu0
  %2042 = vdwg.mxu0
  %2043 = vmatprep.subr.bf16.mxu0 0
  %2044 = vmatpush1.bf16.msra.mxu0 %v1956
  %2045 = vmatprep.subr.bf16.mxu0 0
  %2046 = vmatpush1.bf16.msra.mxu0 %v1959
  %2047 = vmatprep.subr.bf16.mxu0 0
  %2048 = vmatpush1.bf16.msra.mxu0 %v1962
  %2049 = vmatprep.subr.bf16.mxu0 0
  %2050 = vmatpush1.bf16.msra.mxu0 %v1965
  %2051 = vmatprep.subr.bf16.mxu0 0
  %2052 = vmatpush1.bf16.msra.mxu0 %v1968
  %2053 = vmatprep.subr.bf16.mxu0 0
  %2054 = vmatpush1.bf16.msra.mxu0 %v1971
  %2055 = vmatprep.subr.bf16.mxu0 0
  %2056 = vmatpush1.bf16.msra.mxu0 %v1974
  %2057 = vmatprep.subr.bf16.mxu0 0
  %2058 = vmatpush1.bf16.msra.mxu0 %v1977
  %2059 = vmatprep.subr.bf16.mxu0 0
  %2060 = vmatpush1.bf16.msra.mxu0 0
  %2061 = vmatprep.subr.bf16.mxu0 0
  %2062 = vmatpush1.bf16.msra.mxu0 0
  %2063 = vmatprep.subr.bf16.mxu0 0
  %2064 = vmatpush1.bf16.msra.mxu0 0
  %2065 = vmatprep.subr.bf16.mxu0 0
  %2066 = vmatpush1.bf16.msra.mxu0 0
  %2067 = vmatprep.subr.bf16.mxu0 0
  %2068 = vmatpush1.bf16.msra.mxu0 0
  %2069 = vmatprep.subr.bf16.mxu0 0
  %2070 = vmatpush1.bf16.msra.mxu0 0
  %2071 = vmatprep.subr.bf16.mxu0 0
  %2072 = vmatpush1.bf16.msra.mxu0 0
  %2073 = vmatprep.subr.bf16.mxu0 0
  %2074 = vmatpush1.bf16.msra.mxu0 0
  %2075 = vmatprep.mubr.bf16.mxu0 0
  %2076 = vmatmul.mubr.bf16.gmra.mrb[0].mxu0 %v1824
  %v2077 = vpop.f32.mrb[0].mxu0
  %v2078 = vadd.f32 %v1870, %v2077
  %v2079 = vpop.f32.mrb[0].mxu0
  %v2080 = vpop.f32.mrb[0].mxu0
  %v2081 = vpop.f32.mrb[0].mxu0
  %2082 = vdwg.mxu0
  %v2083 = vadd.f32 %v1821, %v2037
  %v2084 = vmul.f32 %v2083, 0.5
  %v2085 = vtanh.pop %v2084
  %v2086 = vmul.f32 %v2085, 0.5
  %v2087 = vadd.f32 %v2086, 0.5
  %v2088 = vadd.f32 %v1822, %v2039
  %v2089 = vmul.f32 %v2088, 0.5
  %v2090 = vtanh.pop %v2089
  %v2091 = vmul.f32 %v2090, 0.5
  %v2092 = vadd.f32 %v2091, 0.5
  %v2093 = vmul.f32 %v2087, %v2078
  %v2094 = vadd.f32 %v1823, %v2093
  %v2095 = vtanh.pop %v2094
  %v2096 = vsub.f32 1.0, %v2092
  %v2097 = vmul.f32 %v2096, %v2095
  %v2098 = vmul.f32 %v2092, %v1819
  %v2099 = vadd.f32 %v2097, %v2098
  %2100 = vst [vmem:[#allocation3 + $0x28] sm:$0xff] %v2099
  %v2101 = vld [vmem:[#allocation2 + $0x90] sm:$0xff]
  %v2102 = vld [vmem:[#allocation2 + $0x98] sm:$0xff]
  %v2103 = vld [vmem:[#allocation2 + $0xa0] sm:$0xff]
  %v2104 = vpack.c.bf16 %v2099, %v2099
  %v2105 = vld [vmem:[%s2] sm:$0xff]
  %v2106 = vld [vmem:[%s2 + $0x8] sm:$0xf]
  %v2107 = vld [vmem:[%s2 + $0xc] sm:$0xff]
  %v2108 = vld [vmem:[%s2 + $0x14] sm:$0xf]
  %v2109 = vld [vmem:[%s2 + $0x18] sm:$0xff]
  %v2110 = vld [vmem:[%s2 + $0x20] sm:$0xf]
  %v2111 = vld [vmem:[%s2 + $0x24] sm:$0xff]
  %v2112 = vld [vmem:[%s2 + $0x2c] sm:$0xf]
  %v2113 = vld [vmem:[%s2 + $0x30] sm:$0xff]
  %v2114 = vld [vmem:[%s2 + $0x38] sm:$0xf]
  %v2115 = vld [vmem:[%s2 + $0x3c] sm:$0xff]
  %v2116 = vld [vmem:[%s2 + $0x44] sm:$0xf]
  %v2117 = vld [vmem:[%s2 + $0x48] sm:$0xff]
  %v2118 = vld [vmem:[%s2 + $0x50] sm:$0xf]
  %v2119 = vld [vmem:[%s2 + $0x54] sm:$0xff]
  %v2120 = vld [vmem:[%s2 + $0x5c] sm:$0xf]
  %v2121 = vld [vmem:[%s2 + $0x60] sm:$0xff]
  %v2122 = vld [vmem:[%s2 + $0x68] sm:$0xf]
  %v2123 = vld [vmem:[%s2 + $0x6c] sm:$0xff]
  %v2124 = vld [vmem:[%s2 + $0x74] sm:$0xf]
  %v2125 = vld [vmem:[%s2 + $0x78] sm:$0xff]
  %v2126 = vld [vmem:[%s2 + $0x80] sm:$0xf]
  %v2127 = vld [vmem:[%s2 + $0x84] sm:$0xff]
  %v2128 = vld [vmem:[%s2 + $0x8c] sm:$0xf]
  %v2129 = vld [vmem:[%s2 + $0x90] sm:$0xff]
  %v2130 = vld [vmem:[%s2 + $0x98] sm:$0xf]
  %v2131 = vld [vmem:[%s2 + $0x9c] sm:$0xff]
  %v2132 = vld [vmem:[%s2 + $0xa4] sm:$0xf]
  %v2133 = vld [vmem:[%s2 + $0xa8] sm:$0xff]
  %v2134 = vld [vmem:[%s2 + $0xb0] sm:$0xf]
  %v2135 = vld [vmem:[%s2 + $0xb4] sm:$0xff]
  %v2136 = vld [vmem:[%s2 + $0xbc] sm:$0xf]
  %v2137 = vld [vmem:[%s4] sm:$0x7]
  %v2139 = vlaneseq
  %v2140 = vshrl.u32 %v2139, 7
  %v2141 = vsub.s32 0, %v2140
  %v2142 = vrot.slane %v2137, %v2141
  %v2143 = vlaneseq
  %v2144 = vshrl.u32 %v2143, 7
  %v2145 = vsub.s32 1, %v2144
  %v2146 = vrot.slane %v2137, %v2145
  %v2147 = vlaneseq
  %v2148 = vshrl.u32 %v2147, 7
  %v2149 = vsub.s32 2, %v2148
  %v2150 = vrot.slane %v2137, %v2149
  %v2186 = vunpack.c.l.b16 %v2105
  %v2187 = vunpack.c.h.b16 %v2105
  %v2188 = vunpack.c.l.b16 %v2106
  %v2189 = vunpack.c.l.b16 %v2107
  %v2190 = vunpack.c.h.b16 %v2107
  %v2191 = vunpack.c.l.b16 %v2108
  %v2192 = vunpack.c.l.b16 %v2109
  %v2193 = vunpack.c.h.b16 %v2109
  %v2194 = vunpack.c.l.b16 %v2110
  %v2195 = vunpack.c.l.b16 %v2111
  %v2196 = vunpack.c.h.b16 %v2111
  %v2197 = vunpack.c.l.b16 %v2112
  %v2198 = vunpack.c.l.b16 %v2113
  %v2199 = vunpack.c.h.b16 %v2113
  %v2200 = vunpack.c.l.b16 %v2114
  %v2201 = vunpack.c.l.b16 %v2115
  %v2202 = vunpack.c.h.b16 %v2115
  %v2203 = vunpack.c.l.b16 %v2116
  %v2204 = vunpack.c.l.b16 %v2117
  %v2205 = vunpack.c.h.b16 %v2117
  %v2206 = vunpack.c.l.b16 %v2118
  %v2207 = vunpack.c.l.b16 %v2119
  %v2208 = vunpack.c.h.b16 %v2119
  %v2209 = vunpack.c.l.b16 %v2120
  %v2210 = vunpack.c.l.b16 %v2121
  %v2211 = vunpack.c.h.b16 %v2121
  %v2212 = vunpack.c.l.b16 %v2122
  %v2213 = vunpack.c.l.b16 %v2123
  %v2214 = vunpack.c.h.b16 %v2123
  %v2215 = vunpack.c.l.b16 %v2124
  %v2216 = vunpack.c.l.b16 %v2125
  %v2217 = vunpack.c.h.b16 %v2125
  %v2218 = vunpack.c.l.b16 %v2126
  %v2219 = vunpack.c.l.b16 %v2127
  %v2220 = vunpack.c.h.b16 %v2127
  %v2221 = vunpack.c.l.b16 %v2128
  %v2222 = vunpack.c.l.b16 %v2129
  %v2223 = vunpack.c.h.b16 %v2129
  %v2224 = vunpack.c.l.b16 %v2130
  %v2225 = vunpack.c.l.b16 %v2131
  %v2226 = vunpack.c.h.b16 %v2131
  %v2227 = vunpack.c.l.b16 %v2132
  %v2228 = vunpack.c.l.b16 %v2133
  %v2229 = vunpack.c.h.b16 %v2133
  %v2230 = vunpack.c.l.b16 %v2134
  %v2231 = vunpack.c.l.b16 %v2135
  %v2232 = vunpack.c.h.b16 %v2135
  %v2233 = vunpack.c.l.b16 %v2136
  %v2234 = vpack.c.b16 %v2189, %v2186
  %v2235 = vpack.c.b16 %v2190, %v2187
  %v2236 = vpack.c.b16 %v2191, %v2188
  %v2237 = vpack.c.b16 %v2195, %v2192
  %v2238 = vpack.c.b16 %v2196, %v2193
  %v2239 = vpack.c.b16 %v2197, %v2194
  %v2240 = vpack.c.b16 %v2201, %v2198
  %v2241 = vpack.c.b16 %v2202, %v2199
  %v2242 = vpack.c.b16 %v2203, %v2200
  %v2243 = vpack.c.b16 %v2207, %v2204
  %v2244 = vpack.c.b16 %v2208, %v2205
  %v2245 = vpack.c.b16 %v2209, %v2206
  %v2246 = vpack.c.b16 %v2213, %v2210
  %v2247 = vpack.c.b16 %v2214, %v2211
  %v2248 = vpack.c.b16 %v2215, %v2212
  %v2249 = vpack.c.b16 %v2219, %v2216
  %v2250 = vpack.c.b16 %v2220, %v2217
  %v2251 = vpack.c.b16 %v2221, %v2218
  %v2252 = vpack.c.b16 %v2225, %v2222
  %v2253 = vpack.c.b16 %v2226, %v2223
  %v2254 = vpack.c.b16 %v2227, %v2224
  %v2255 = vpack.c.b16 %v2231, %v2228
  %v2256 = vpack.c.b16 %v2232, %v2229
  %v2257 = vpack.c.b16 %v2233, %v2230
  %2282 = vmatprep.subr.bf16.mxu0 %v2235
  %2283 = vmatpush1.bf16.msra.mxu0 %v2234
  %2284 = vmatprep.subr.bf16.mxu0 %v2238
  %2285 = vmatpush1.bf16.msra.mxu0 %v2237
  %2286 = vmatprep.subr.bf16.mxu0 %v2241
  %2287 = vmatpush1.bf16.msra.mxu0 %v2240
  %2288 = vmatprep.subr.bf16.mxu0 %v2244
  %2289 = vmatpush1.bf16.msra.mxu0 %v2243
  %2290 = vmatprep.subr.bf16.mxu0 %v2247
  %2291 = vmatpush1.bf16.msra.mxu0 %v2246
  %2292 = vmatprep.subr.bf16.mxu0 %v2250
  %2293 = vmatpush1.bf16.msra.mxu0 %v2249
  %2294 = vmatprep.subr.bf16.mxu0 %v2253
  %2295 = vmatpush1.bf16.msra.mxu0 %v2252
  %2296 = vmatprep.subr.bf16.mxu0 %v2256
  %2297 = vmatpush1.bf16.msra.mxu0 %v2255
  %2298 = vmatprep.subr.bf16.mxu0 0
  %2299 = vmatpush1.bf16.msra.mxu0 0
  %2300 = vmatprep.subr.bf16.mxu0 0
  %2301 = vmatpush1.bf16.msra.mxu0 0
  %2302 = vmatprep.subr.bf16.mxu0 0
  %2303 = vmatpush1.bf16.msra.mxu0 0
  %2304 = vmatprep.subr.bf16.mxu0 0
  %2305 = vmatpush1.bf16.msra.mxu0 0
  %2306 = vmatprep.subr.bf16.mxu0 0
  %2307 = vmatpush1.bf16.msra.mxu0 0
  %2308 = vmatprep.subr.bf16.mxu0 0
  %2309 = vmatpush1.bf16.msra.mxu0 0
  %2310 = vmatprep.subr.bf16.mxu0 0
  %2311 = vmatpush1.bf16.msra.mxu0 0
  %2312 = vmatprep.subr.bf16.mxu0 0
  %2313 = vmatpush1.bf16.msra.mxu0 0
  %2314 = vmatprep.mubr.bf16.mxu0 0
  %2315 = vmatmul.mubr.bf16.gmra.mrb[0].mxu0 %v2104
  %v2316 = vpop.f32.mrb[0].mxu0
  %v2317 = vadd.f32 %v2142, %v2316
  %v2318 = vpop.f32.mrb[0].mxu0
  %v2319 = vadd.f32 %v2146, %v2318
  %v2320 = vpop.f32.mrb[0].mxu0
  %v2321 = vpop.f32.mrb[0].mxu0
  %2322 = vdwg.mxu0
  %2323 = vmatprep.subr.bf16.mxu0 0
  %2324 = vmatpush1.bf16.msra.mxu0 %v2236
  %2325 = vmatprep.subr.bf16.mxu0 0
  %2326 = vmatpush1.bf16.msra.mxu0 %v2239
  %2327 = vmatprep.subr.bf16.mxu0 0
  %2328 = vmatpush1.bf16.msra.mxu0 %v2242
  %2329 = vmatprep.subr.bf16.mxu0 0
  %2330 = vmatpush1.bf16.msra.mxu0 %v2245
  %2331 = vmatprep.subr.bf16.mxu0 0
  %2332 = vmatpush1.bf16.msra.mxu0 %v2248
  %2333 = vmatprep.subr.bf16.mxu0 0
  %2334 = vmatpush1.bf16.msra.mxu0 %v2251
  %2335 = vmatprep.subr.bf16.mxu0 0
  %2336 = vmatpush1.bf16.msra.mxu0 %v2254
  %2337 = vmatprep.subr.bf16.mxu0 0
  %2338 = vmatpush1.bf16.msra.mxu0 %v2257
  %2339 = vmatprep.subr.bf16.mxu0 0
  %2340 = vmatpush1.bf16.msra.mxu0 0
  %2341 = vmatprep.subr.bf16.mxu0 0
  %2342 = vmatpush1.bf16.msra.mxu0 0
  %2343 = vmatprep.subr.bf16.mxu0 0
  %2344 = vmatpush1.bf16.msra.mxu0 0
  %2345 = vmatprep.subr.bf16.mxu0 0
  %2346 = vmatpush1.bf16.msra.mxu0 0
  %2347 = vmatprep.subr.bf16.mxu0 0
  %2348 = vmatpush1.bf16.msra.mxu0 0
  %2349 = vmatprep.subr.bf16.mxu0 0
  %2350 = vmatpush1.bf16.msra.mxu0 0
  %2351 = vmatprep.subr.bf16.mxu0 0
  %2352 = vmatpush1.bf16.msra.mxu0 0
  %2353 = vmatprep.subr.bf16.mxu0 0
  %2354 = vmatpush1.bf16.msra.mxu0 0
  %2355 = vmatprep.mubr.bf16.mxu0 0
  %2356 = vmatmul.mubr.bf16.gmra.mrb[0].mxu0 %v2104
  %v2357 = vpop.f32.mrb[0].mxu0
  %v2358 = vadd.f32 %v2150, %v2357
  %v2359 = vpop.f32.mrb[0].mxu0
  %v2360 = vpop.f32.mrb[0].mxu0
  %v2361 = vpop.f32.mrb[0].mxu0
  %2362 = vdwg.mxu0
  %v2363 = vadd.f32 %v2101, %v2317
  %v2364 = vmul.f32 %v2363, 0.5
  %v2365 = vtanh.pop %v2364
  %v2366 = vmul.f32 %v2365, 0.5
  %v2367 = vadd.f32 %v2366, 0.5
  %v2368 = vadd.f32 %v2102, %v2319
  %v2369 = vmul.f32 %v2368, 0.5
  %v2370 = vtanh.pop %v2369
  %v2371 = vmul.f32 %v2370, 0.5
  %v2372 = vadd.f32 %v2371, 0.5
  %v2373 = vmul.f32 %v2367, %v2358
  %v2374 = vadd.f32 %v2103, %v2373
  %v2375 = vtanh.pop %v2374
  %v2376 = vsub.f32 1.0, %v2372
  %v2377 = vmul.f32 %v2376, %v2375
  %v2378 = vmul.f32 %v2372, %v2099
  %v2379 = vadd.f32 %v2377, %v2378
  %2380 = vst [vmem:[#allocation3 + $0x30] sm:$0xff] %v2379
  %v2381 = vld [vmem:[#allocation2 + $0xa8] sm:$0xff]
  %v2382 = vld [vmem:[#allocation2 + $0xb0] sm:$0xff]
  %v2383 = vld [vmem:[#allocation2 + $0xb8] sm:$0xff]
  %v2384 = vpack.c.bf16 %v2379, %v2379
  %v2385 = vld [vmem:[%s2] sm:$0xff]
  %v2386 = vld [vmem:[%s2 + $0x8] sm:$0xf]
  %v2387 = vld [vmem:[%s2 + $0xc] sm:$0xff]
  %v2388 = vld [vmem:[%s2 + $0x14] sm:$0xf]
  %v2389 = vld [vmem:[%s2 + $0x18] sm:$0xff]
  %v2390 = vld [vmem:[%s2 + $0x20] sm:$0xf]
  %v2391 = vld [vmem:[%s2 + $0x24] sm:$0xff]
  %v2392 = vld [vmem:[%s2 + $0x2c] sm:$0xf]
  %v2393 = vld [vmem:[%s2 + $0x30] sm:$0xff]
  %v2394 = vld [vmem:[%s2 + $0x38] sm:$0xf]
  %v2395 = vld [vmem:[%s2 + $0x3c] sm:$0xff]
  %v2396 = vld [vmem:[%s2 + $0x44] sm:$0xf]
  %v2397 = vld [vmem:[%s2 + $0x48] sm:$0xff]
  %v2398 = vld [vmem:[%s2 + $0x50] sm:$0xf]
  %v2399 = vld [vmem:[%s2 + $0x54] sm:$0xff]
  %v2400 = vld [vmem:[%s2 + $0x5c] sm:$0xf]
  %v2401 = vld [vmem:[%s2 + $0x60] sm:$0xff]
  %v2402 = vld [vmem:[%s2 + $0x68] sm:$0xf]
  %v2403 = vld [vmem:[%s2 + $0x6c] sm:$0xff]
  %v2404 = vld [vmem:[%s2 + $0x74] sm:$0xf]
  %v2405 = vld [vmem:[%s2 + $0x78] sm:$0xff]
  %v2406 = vld [vmem:[%s2 + $0x80] sm:$0xf]
  %v2407 = vld [vmem:[%s2 + $0x84] sm:$0xff]
  %v2408 = vld [vmem:[%s2 + $0x8c] sm:$0xf]
  %v2409 = vld [vmem:[%s2 + $0x90] sm:$0xff]
  %v2410 = vld [vmem:[%s2 + $0x98] sm:$0xf]
  %v2411 = vld [vmem:[%s2 + $0x9c] sm:$0xff]
  %v2412 = vld [vmem:[%s2 + $0xa4] sm:$0xf]
  %v2413 = vld [vmem:[%s2 + $0xa8] sm:$0xff]
  %v2414 = vld [vmem:[%s2 + $0xb0] sm:$0xf]
  %v2415 = vld [vmem:[%s2 + $0xb4] sm:$0xff]
  %v2416 = vld [vmem:[%s2 + $0xbc] sm:$0xf]
  %v2417 = vld [vmem:[%s4] sm:$0x7]
  %v2419 = vlaneseq
  %v2420 = vshrl.u32 %v2419, 7
  %v2421 = vsub.s32 0, %v2420
  %v2422 = vrot.slane %v2417, %v2421
  %v2423 = vlaneseq
  %v2424 = vshrl.u32 %v2423, 7
  %v2425 = vsub.s32 1, %v2424
  %v2426 = vrot.slane %v2417, %v2425
  %v2427 = vlaneseq
  %v2428 = vshrl.u32 %v2427, 7
  %v2429 = vsub.s32 2, %v2428
  %v2430 = vrot.slane %v2417, %v2429
  %v2466 = vunpack.c.l.b16 %v2385
  %v2467 = vunpack.c.h.b16 %v2385
  %v2468 = vunpack.c.l.b16 %v2386
  %v2469 = vunpack.c.l.b16 %v2387
  %v2470 = vunpack.c.h.b16 %v2387
  %v2471 = vunpack.c.l.b16 %v2388
  %v2472 = vunpack.c.l.b16 %v2389
  %v2473 = vunpack.c.h.b16 %v2389
  %v2474 = vunpack.c.l.b16 %v2390
  %v2475 = vunpack.c.l.b16 %v2391
  %v2476 = vunpack.c.h.b16 %v2391
  %v2477 = vunpack.c.l.b16 %v2392
  %v2478 = vunpack.c.l.b16 %v2393
  %v2479 = vunpack.c.h.b16 %v2393
  %v2480 = vunpack.c.l.b16 %v2394
  %v2481 = vunpack.c.l.b16 %v2395
  %v2482 = vunpack.c.h.b16 %v2395
  %v2483 = vunpack.c.l.b16 %v2396
  %v2484 = vunpack.c.l.b16 %v2397
  %v2485 = vunpack.c.h.b16 %v2397
  %v2486 = vunpack.c.l.b16 %v2398
  %v2487 = vunpack.c.l.b16 %v2399
  %v2488 = vunpack.c.h.b16 %v2399
  %v2489 = vunpack.c.l.b16 %v2400
  %v2490 = vunpack.c.l.b16 %v2401
  %v2491 = vunpack.c.h.b16 %v2401
  %v2492 = vunpack.c.l.b16 %v2402
  %v2493 = vunpack.c.l.b16 %v2403
  %v2494 = vunpack.c.h.b16 %v2403
  %v2495 = vunpack.c.l.b16 %v2404
  %v2496 = vunpack.c.l.b16 %v2405
  %v2497 = vunpack.c.h.b16 %v2405
  %v2498 = vunpack.c.l.b16 %v2406
  %v2499 = vunpack.c.l.b16 %v2407
  %v2500 = vunpack.c.h.b16 %v2407
  %v2501 = vunpack.c.l.b16 %v2408
  %v2502 = vunpack.c.l.b16 %v2409
  %v2503 = vunpack.c.h.b16 %v2409
  %v2504 = vunpack.c.l.b16 %v2410
  %v2505 = vunpack.c.l.b16 %v2411
  %v2506 = vunpack.c.h.b16 %v2411
  %v2507 = vunpack.c.l.b16 %v2412
  %v2508 = vunpack.c.l.b16 %v2413
  %v2509 = vunpack.c.h.b16 %v2413
  %v2510 = vunpack.c.l.b16 %v2414
  %v2511 = vunpack.c.l.b16 %v2415
  %v2512 = vunpack.c.h.b16 %v2415
  %v2513 = vunpack.c.l.b16 %v2416
  %v2514 = vpack.c.b16 %v2469, %v2466
  %v2515 = vpack.c.b16 %v2470, %v2467
  %v2516 = vpack.c.b16 %v2471, %v2468
  %v2517 = vpack.c.b16 %v2475, %v2472
  %v2518 = vpack.c.b16 %v2476, %v2473
  %v2519 = vpack.c.b16 %v2477, %v2474
  %v2520 = vpack.c.b16 %v2481, %v2478
  %v2521 = vpack.c.b16 %v2482, %v2479
  %v2522 = vpack.c.b16 %v2483, %v2480
  %v2523 = vpack.c.b16 %v2487, %v2484
  %v2524 = vpack.c.b16 %v2488, %v2485
  %v2525 = vpack.c.b16 %v2489, %v2486
  %v2526 = vpack.c.b16 %v2493, %v2490
  %v2527 = vpack.c.b16 %v2494, %v2491
  %v2528 = vpack.c.b16 %v2495, %v2492
  %v2529 = vpack.c.b16 %v2499, %v2496
  %v2530 = vpack.c.b16 %v2500, %v2497
  %v2531 = vpack.c.b16 %v2501, %v2498
  %v2532 = vpack.c.b16 %v2505, %v2502
  %v2533 = vpack.c.b16 %v2506, %v2503
  %v2534 = vpack.c.b16 %v2507, %v2504
  %v2535 = vpack.c.b16 %v2511, %v2508
  %v2536 = vpack.c.b16 %v2512, %v2509
  %v2537 = vpack.c.b16 %v2513, %v2510
  %2562 = vmatprep.subr.bf16.mxu0 %v2515
  %2563 = vmatpush1.bf16.msra.mxu0 %v2514
  %2564 = vmatprep.subr.bf16.mxu0 %v2518
  %2565 = vmatpush1.bf16.msra.mxu0 %v2517
  %2566 = vmatprep.subr.bf16.mxu0 %v2521
  %2567 = vmatpush1.bf16.msra.mxu0 %v2520
  %2568 = vmatprep.subr.bf16.mxu0 %v2524
  %2569 = vmatpush1.bf16.msra.mxu0 %v2523
  %2570 = vmatprep.subr.bf16.mxu0 %v2527
  %2571 = vmatpush1.bf16.msra.mxu0 %v2526
  %2572 = vmatprep.subr.bf16.mxu0 %v2530
  %2573 = vmatpush1.bf16.msra.mxu0 %v2529
  %2574 = vmatprep.subr.bf16.mxu0 %v2533
  %2575 = vmatpush1.bf16.msra.mxu0 %v2532
  %2576 = vmatprep.subr.bf16.mxu0 %v2536
  %2577 = vmatpush1.bf16.msra.mxu0 %v2535
  %2578 = vmatprep.subr.bf16.mxu0 0
  %2579 = vmatpush1.bf16.msra.mxu0 0
  %2580 = vmatprep.subr.bf16.mxu0 0
  %2581 = vmatpush1.bf16.msra.mxu0 0
  %2582 = vmatprep.subr.bf16.mxu0 0
  %2583 = vmatpush1.bf16.msra.mxu0 0
  %2584 = vmatprep.subr.bf16.mxu0 0
  %2585 = vmatpush1.bf16.msra.mxu0 0
  %2586 = vmatprep.subr.bf16.mxu0 0
  %2587 = vmatpush1.bf16.msra.mxu0 0
  %2588 = vmatprep.subr.bf16.mxu0 0
  %2589 = vmatpush1.bf16.msra.mxu0 0
  %2590 = vmatprep.subr.bf16.mxu0 0
  %2591 = vmatpush1.bf16.msra.mxu0 0
  %2592 = vmatprep.subr.bf16.mxu0 0
  %2593 = vmatpush1.bf16.msra.mxu0 0
  %2594 = vmatprep.mubr.bf16.mxu0 0
  %2595 = vmatmul.mubr.bf16.gmra.mrb[0].mxu0 %v2384
  %v2596 = vpop.f32.mrb[0].mxu0
  %v2597 = vadd.f32 %v2422, %v2596
  %v2598 = vpop.f32.mrb[0].mxu0
  %v2599 = vadd.f32 %v2426, %v2598
  %v2600 = vpop.f32.mrb[0].mxu0
  %v2601 = vpop.f32.mrb[0].mxu0
  %2602 = vdwg.mxu0
  %2603 = vmatprep.subr.bf16.mxu0 0
  %2604 = vmatpush1.bf16.msra.mxu0 %v2516
  %2605 = vmatprep.subr.bf16.mxu0 0
  %2606 = vmatpush1.bf16.msra.mxu0 %v2519
  %2607 = vmatprep.subr.bf16.mxu0 0
  %2608 = vmatpush1.bf16.msra.mxu0 %v2522
  %2609 = vmatprep.subr.bf16.mxu0 0
  %2610 = vmatpush1.bf16.msra.mxu0 %v2525
  %2611 = vmatprep.subr.bf16.mxu0 0
  %2612 = vmatpush1.bf16.msra.mxu0 %v2528
  %2613 = vmatprep.subr.bf16.mxu0 0
  %2614 = vmatpush1.bf16.msra.mxu0 %v2531
  %2615 = vmatprep.subr.bf16.mxu0 0
  %2616 = vmatpush1.bf16.msra.mxu0 %v2534
  %2617 = vmatprep.subr.bf16.mxu0 0
  %2618 = vmatpush1.bf16.msra.mxu0 %v2537
  %2619 = vmatprep.subr.bf16.mxu0 0
  %2620 = vmatpush1.bf16.msra.mxu0 0
  %2621 = vmatprep.subr.bf16.mxu0 0
  %2622 = vmatpush1.bf16.msra.mxu0 0
  %2623 = vmatprep.subr.bf16.mxu0 0
  %2624 = vmatpush1.bf16.msra.mxu0 0
  %2625 = vmatprep.subr.bf16.mxu0 0
  %2626 = vmatpush1.bf16.msra.mxu0 0
  %2627 = vmatprep.subr.bf16.mxu0 0
  %2628 = vmatpush1.bf16.msra.mxu0 0
  %2629 = vmatprep.subr.bf16.mxu0 0
  %2630 = vmatpush1.bf16.msra.mxu0 0
  %2631 = vmatprep.subr.bf16.mxu0 0
  %2632 = vmatpush1.bf16.msra.mxu0 0
  %2633 = vmatprep.subr.bf16.mxu0 0
  %2634 = vmatpush1.bf16.msra.mxu0 0
  %2635 = vmatprep.mubr.bf16.mxu0 0
  %2636 = vmatmul.mubr.bf16.gmra.mrb[0].mxu0 %v2384
  %v2637 = vpop.f32.mrb[0].mxu0
  %v2638 = vadd.f32 %v2430, %v2637
  %v2639 = vpop.f32.mrb[0].mxu0
  %v2640 = vpop.f32.mrb[0].mxu0
  %v2641 = vpop.f32.mrb[0].mxu0
  %2642 = vdwg.mxu0
  %v2643 = vadd.f32 %v2381, %v2597
  %v2644 = vmul.f32 %v2643, 0.5
  %v2645 = vtanh.pop %v2644
  %v2646 = vmul.f32 %v2645, 0.5
  %v2647 = vadd.f32 %v2646, 0.5
  %v2648 = vadd.f32 %v2382, %v2599
  %v2649 = vmul.f32 %v2648, 0.5
  %v2650 = vtanh.pop %v2649
  %v2651 = vmul.f32 %v2650, 0.5
  %v2652 = vadd.f32 %v2651, 0.5
  %v2653 = vmul.f32 %v2647, %v2638
  %v2654 = vadd.f32 %v2383, %v2653
  %v2655 = vtanh.pop %v2654
  %v2656 = vsub.f32 1.0, %v2652
  %v2657 = vmul.f32 %v2656, %v2655
  %v2658 = vmul.f32 %v2652, %v2379
  %v2659 = vadd.f32 %v2657, %v2658
  %2660 = vst [vmem:[#allocation3 + $0x38] sm:$0xff] %v2659
  %v2661 = vld [vmem:[#allocation3] sm:$0xff]
  %v2662 = vld [vmem:[#allocation3 + $0x8] sm:$0xff]
  %v2663 = vld [vmem:[#allocation3 + $0x10] sm:$0xff]
  %v2664 = vld [vmem:[#allocation3 + $0x18] sm:$0xff]
  %v2665 = vld [vmem:[#allocation3 + $0x20] sm:$0xff]
  %v2666 = vld [vmem:[#allocation3 + $0x28] sm:$0xff]
  %v2667 = vld [vmem:[#allocation3 + $0x30] sm:$0xff]
  %v2668 = vld [vmem:[#allocation3 + $0x38] sm:$0xff]
  %v2669 = vpack.c.bf16 %v2662, %v2661
  %v2670 = vpack.c.bf16 %v2664, %v2663
  %v2671 = vpack.c.bf16 %v2666, %v2665
  %v2672 = vpack.c.bf16 %v2668, %v2667
  %v2673 = vld [vmem:[%s5] sm:$0xff]
  %v2674 = vld [vmem:[%s5 + $0x8] sm:$0xf]
  %v2675 = vld [vmem:[%s5 + $0xc] sm:$0xff]
  %v2676 = vld [vmem:[%s5 + $0x14] sm:$0xf]
  %v2677 = vld [vmem:[%s5 + $0x18] sm:$0xff]
  %v2678 = vld [vmem:[%s5 + $0x20] sm:$0xf]
  %v2679 = vld [vmem:[%s5 + $0x24] sm:$0xff]
  %v2680 = vld [vmem:[%s5 + $0x2c] sm:$0xf]
  %v2681 = vld [vmem:[%s5 + $0x30] sm:$0xff]
  %v2682 = vld [vmem:[%s5 + $0x38] sm:$0xf]
  %v2683 = vld [vmem:[%s5 + $0x3c] sm:$0xff]
  %v2684 = vld [vmem:[%s5 + $0x44] sm:$0xf]
  %v2685 = vld [vmem:[%s5 + $0x48] sm:$0xff]
  %v2686 = vld [vmem:[%s5 + $0x50] sm:$0xf]
  %v2687 = vld [vmem:[%s5 + $0x54] sm:$0xff]
  %v2688 = vld [vmem:[%s5 + $0x5c] sm:$0xf]
  %v2689 = vld [vmem:[%s5 + $0x60] sm:$0xff]
  %v2690 = vld [vmem:[%s5 + $0x68] sm:$0xf]
  %v2691 = vld [vmem:[%s5 + $0x6c] sm:$0xff]
  %v2692 = vld [vmem:[%s5 + $0x74] sm:$0xf]
  %v2693 = vld [vmem:[%s5 + $0x78] sm:$0xff]
  %v2694 = vld [vmem:[%s5 + $0x80] sm:$0xf]
  %v2695 = vld [vmem:[%s5 + $0x84] sm:$0xff]
  %v2696 = vld [vmem:[%s5 + $0x8c] sm:$0xf]
  %v2697 = vld [vmem:[%s5 + $0x90] sm:$0xff]
  %v2698 = vld [vmem:[%s5 + $0x98] sm:$0xf]
  %v2699 = vld [vmem:[%s5 + $0x9c] sm:$0xff]
  %v2700 = vld [vmem:[%s5 + $0xa4] sm:$0xf]
  %v2701 = vld [vmem:[%s5 + $0xa8] sm:$0xff]
  %v2702 = vld [vmem:[%s5 + $0xb0] sm:$0xf]
  %v2703 = vld [vmem:[%s5 + $0xb4] sm:$0xff]
  %v2704 = vld [vmem:[%s5 + $0xbc] sm:$0xf]
  %v2705 = vld [vmem:[%s7] sm:$0x7]
  %v2707 = vlaneseq
  %v2708 = vshrl.u32 %v2707, 7
  %v2709 = vsub.s32 0, %v2708
  %v2710 = vrot.slane %v2705, %v2709
  %v2711 = vlaneseq
  %v2712 = vshrl.u32 %v2711, 7
  %v2713 = vsub.s32 1, %v2712
  %v2714 = vrot.slane %v2705, %v2713
  %v2715 = vlaneseq
  %v2716 = vshrl.u32 %v2715, 7
  %v2717 = vsub.s32 2, %v2716
  %v2718 = vrot.slane %v2705, %v2717
  %v2754 = vunpack.c.l.b16 %v2673
  %v2755 = vunpack.c.h.b16 %v2673
  %v2756 = vunpack.c.l.b16 %v2674
  %v2757 = vunpack.c.l.b16 %v2675
  %v2758 = vunpack.c.h.b16 %v2675
  %v2759 = vunpack.c.l.b16 %v2676
  %v2760 = vunpack.c.l.b16 %v2677
  %v2761 = vunpack.c.h.b16 %v2677
  %v2762 = vunpack.c.l.b16 %v2678
  %v2763 = vunpack.c.l.b16 %v2679
  %v2764 = vunpack.c.h.b16 %v2679
  %v2765 = vunpack.c.l.b16 %v2680
  %v2766 = vunpack.c.l.b16 %v2681
  %v2767 = vunpack.c.h.b16 %v2681
  %v2768 = vunpack.c.l.b16 %v2682
  %v2769 = vunpack.c.l.b16 %v2683
  %v2770 = vunpack.c.h.b16 %v2683
  %v2771 = vunpack.c.l.b16 %v2684
  %v2772 = vunpack.c.l.b16 %v2685
  %v2773 = vunpack.c.h.b16 %v2685
  %v2774 = vunpack.c.l.b16 %v2686
  %v2775 = vunpack.c.l.b16 %v2687
  %v2776 = vunpack.c.h.b16 %v2687
  %v2777 = vunpack.c.l.b16 %v2688
  %v2778 = vunpack.c.l.b16 %v2689
  %v2779 = vunpack.c.h.b16 %v2689
  %v2780 = vunpack.c.l.b16 %v2690
  %v2781 = vunpack.c.l.b16 %v2691
  %v2782 = vunpack.c.h.b16 %v2691
  %v2783 = vunpack.c.l.b16 %v2692
  %v2784 = vunpack.c.l.b16 %v2693
  %v2785 = vunpack.c.h.b16 %v2693
  %v2786 = vunpack.c.l.b16 %v2694
  %v2787 = vunpack.c.l.b16 %v2695
  %v2788 = vunpack.c.h.b16 %v2695
  %v2789 = vunpack.c.l.b16 %v2696
  %v2790 = vunpack.c.l.b16 %v2697
  %v2791 = vunpack.c.h.b16 %v2697
  %v2792 = vunpack.c.l.b16 %v2698
  %v2793 = vunpack.c.l.b16 %v2699
  %v2794 = vunpack.c.h.b16 %v2699
  %v2795 = vunpack.c.l.b16 %v2700
  %v2796 = vunpack.c.l.b16 %v2701
  %v2797 = vunpack.c.h.b16 %v2701
  %v2798 = vunpack.c.l.b16 %v2702
  %v2799 = vunpack.c.l.b16 %v2703
  %v2800 = vunpack.c.h.b16 %v2703
  %v2801 = vunpack.c.l.b16 %v2704
  %v2802 = vpack.c.b16 %v2757, %v2754
  %v2803 = vpack.c.b16 %v2758, %v2755
  %v2804 = vpack.c.b16 %v2759, %v2756
  %v2805 = vpack.c.b16 %v2763, %v2760
  %v2806 = vpack.c.b16 %v2764, %v2761
  %v2807 = vpack.c.b16 %v2765, %v2762
  %v2808 = vpack.c.b16 %v2769, %v2766
  %v2809 = vpack.c.b16 %v2770, %v2767
  %v2810 = vpack.c.b16 %v2771, %v2768
  %v2811 = vpack.c.b16 %v2775, %v2772
  %v2812 = vpack.c.b16 %v2776, %v2773
  %v2813 = vpack.c.b16 %v2777, %v2774
  %v2814 = vpack.c.b16 %v2781, %v2778
  %v2815 = vpack.c.b16 %v2782, %v2779
  %v2816 = vpack.c.b16 %v2783, %v2780
  %v2817 = vpack.c.b16 %v2787, %v2784
  %v2818 = vpack.c.b16 %v2788, %v2785
  %v2819 = vpack.c.b16 %v2789, %v2786
  %v2820 = vpack.c.b16 %v2793, %v2790
  %v2821 = vpack.c.b16 %v2794, %v2791
  %v2822 = vpack.c.b16 %v2795, %v2792
  %v2823 = vpack.c.b16 %v2799, %v2796
  %v2824 = vpack.c.b16 %v2800, %v2797
  %v2825 = vpack.c.b16 %v2801, %v2798
  %2850 = vmatprep.subr.bf16.mxu0 %v2803
  %2851 = vmatpush1.bf16.msra.mxu0 %v2802
  %2852 = vmatprep.subr.bf16.mxu0 %v2806
  %2853 = vmatpush1.bf16.msra.mxu0 %v2805
  %2854 = vmatprep.subr.bf16.mxu0 %v2809
  %2855 = vmatpush1.bf16.msra.mxu0 %v2808
  %2856 = vmatprep.subr.bf16.mxu0 %v2812
  %2857 = vmatpush1.bf16.msra.mxu0 %v2811
  %2858 = vmatprep.subr.bf16.mxu0 %v2815
  %2859 = vmatpush1.bf16.msra.mxu0 %v2814
  %2860 = vmatprep.subr.bf16.mxu0 %v2818
  %2861 = vmatpush1.bf16.msra.mxu0 %v2817
  %2862 = vmatprep.subr.bf16.mxu0 %v2821
  %2863 = vmatpush1.bf16.msra.mxu0 %v2820
  %2864 = vmatprep.subr.bf16.mxu0 %v2824
  %2865 = vmatpush1.bf16.msra.mxu0 %v2823
  %2866 = vmatprep.subr.bf16.mxu0 0
  %2867 = vmatpush1.bf16.msra.mxu0 0
  %2868 = vmatprep.subr.bf16.mxu0 0
  %2869 = vmatpush1.bf16.msra.mxu0 0
  %2870 = vmatprep.subr.bf16.mxu0 0
  %2871 = vmatpush1.bf16.msra.mxu0 0
  %2872 = vmatprep.subr.bf16.mxu0 0
  %2873 = vmatpush1.bf16.msra.mxu0 0
  %2874 = vmatprep.subr.bf16.mxu0 0
  %2875 = vmatpush1.bf16.msra.mxu0 0
  %2876 = vmatprep.subr.bf16.mxu0 0
  %2877 = vmatpush1.bf16.msra.mxu0 0
  %2878 = vmatprep.subr.bf16.mxu0 0
  %2879 = vmatpush1.bf16.msra.mxu0 0
  %2880 = vmatprep.subr.bf16.mxu0 0
  %2881 = vmatpush1.bf16.msra.mxu0 0
  %2882 = vmatprep.mubr.bf16.mxu0 0
  %2883 = vmatmul.mubr.bf16.gmra.mrb[0].mxu0 %v2669
  %v2884 = vpop.f32.mrb[0].mxu0
  %v2885 = vadd.f32 %v2710, %v2884
  %v2886 = vpop.f32.mrb[0].mxu0
  %v2887 = vadd.f32 %v2714, %v2886
  %v2888 = vpop.f32.mrb[0].mxu0
  %v2889 = vadd.f32 %v2710, %v2888
  %v2890 = vpop.f32.mrb[0].mxu0
  %v2891 = vadd.f32 %v2714, %v2890
  %2892 = vmatprep.mubr.bf16.mxu0 0
  %2893 = vmatmul.mubr.bf16.gmra.mrb[0].mxu0 %v2670
  %v2894 = vpop.f32.mrb[0].mxu0
  %v2895 = vadd.f32 %v2710, %v2894
  %v2896 = vpop.f32.mrb[0].mxu0
  %v2897 = vadd.f32 %v2714, %v2896
  %v2898 = vpop.f32.mrb[0].mxu0
  %v2899 = vadd.f32 %v2710, %v2898
  %v2900 = vpop.f32.mrb[0].mxu0
  %v2901 = vadd.f32 %v2714, %v2900
  %2902 = vmatprep.mubr.bf16.mxu0 0
  %2903 = vmatmul.mubr.bf16.gmra.mrb[0].mxu0 %v2671
  %v2904 = vpop.f32.mrb[0].mxu0
  %v2905 = vadd.f32 %v2710, %v2904
  %v2906 = vpop.f32.mrb[0].mxu0
  %v2907 = vadd.f32 %v2714, %v2906
  %v2908 = vpop.f32.mrb[0].mxu0
  %v2909 = vadd.f32 %v2710, %v2908
  %v2910 = vpop.f32.mrb[0].mxu0
  %v2911 = vadd.f32 %v2714, %v2910
  %2912 = vmatprep.mubr.bf16.mxu0 0
  %2913 = vmatmul.mubr.bf16.gmra.mrb[0].mxu0 %v2672
  %v2914 = vpop.f32.mrb[0].mxu0
  %v2915 = vadd.f32 %v2710, %v2914
  %v2916 = vpop.f32.mrb[0].mxu0
  %v2917 = vadd.f32 %v2714, %v2916
  %v2918 = vpop.f32.mrb[0].mxu0
  %v2919 = vadd.f32 %v2710, %v2918
  %v2920 = vpop.f32.mrb[0].mxu0
  %v2921 = vadd.f32 %v2714, %v2920
  %2922 = vdwg.mxu0
  %2923 = vmatprep.subr.bf16.mxu0 0
  %2924 = vmatpush1.bf16.msra.mxu0 %v2804
  %2925 = vmatprep.subr.bf16.mxu0 0
  %2926 = vmatpush1.bf16.msra.mxu0 %v2807
  %2927 = vmatprep.subr.bf16.mxu0 0
  %2928 = vmatpush1.bf16.msra.mxu0 %v2810
  %2929 = vmatprep.subr.bf16.mxu0 0
  %2930 = vmatpush1.bf16.msra.mxu0 %v2813
  %2931 = vmatprep.subr.bf16.mxu0 0
  %2932 = vmatpush1.bf16.msra.mxu0 %v2816
  %2933 = vmatprep.subr.bf16.mxu0 0
  %2934 = vmatpush1.bf16.msra.mxu0 %v2819
  %2935 = vmatprep.subr.bf16.mxu0 0
  %2936 = vmatpush1.bf16.msra.mxu0 %v2822
  %2937 = vmatprep.subr.bf16.mxu0 0
  %2938 = vmatpush1.bf16.msra.mxu0 %v2825
  %2939 = vmatprep.subr.bf16.mxu0 0
  %2940 = vmatpush1.bf16.msra.mxu0 0
  %2941 = vmatprep.subr.bf16.mxu0 0
  %2942 = vmatpush1.bf16.msra.mxu0 0
  %2943 = vmatprep.subr.bf16.mxu0 0
  %2944 = vmatpush1.bf16.msra.mxu0 0
  %2945 = vmatprep.subr.bf16.mxu0 0
  %2946 = vmatpush1.bf16.msra.mxu0 0
  %2947 = vmatprep.subr.bf16.mxu0 0
  %2948 = vmatpush1.bf16.msra.mxu0 0
  %2949 = vmatprep.subr.bf16.mxu0 0
  %2950 = vmatpush1.bf16.msra.mxu0 0
  %2951 = vmatprep.subr.bf16.mxu0 0
  %2952 = vmatpush1.bf16.msra.mxu0 0
  %2953 = vmatprep.subr.bf16.mxu0 0
  %2954 = vmatpush1.bf16.msra.mxu0 0
  %2955 = vmatprep.mubr.bf16.mxu0 0
  %2956 = vmatmul.mubr.bf16.gmra.mrb[0].mxu0 %v2669
  %v2957 = vpop.f32.mrb[0].mxu0
  %v2958 = vadd.f32 %v2718, %v2957
  %v2959 = vpop.f32.mrb[0].mxu0
  %v2960 = vpop.f32.mrb[0].mxu0
  %v2961 = vadd.f32 %v2718, %v2960
  %v2962 = vpop.f32.mrb[0].mxu0
  %2963 = vmatprep.mubr.bf16.mxu0 0
  %2964 = vmatmul.mubr.bf16.gmra.mrb[0].mxu0 %v2670
  %v2965 = vpop.f32.mrb[0].mxu0
  %v2966 = vadd.f32 %v2718, %v2965
  %v2967 = vpop.f32.mrb[0].mxu0
  %v2968 = vpop.f32.mrb[0].mxu0
  %v2969 = vadd.f32 %v2718, %v2968
  %v2970 = vpop.f32.mrb[0].mxu0
  %2971 = vmatprep.mubr.bf16.mxu0 0
  %2972 = vmatmul.mubr.bf16.gmra.mrb[0].mxu0 %v2671
  %v2973 = vpop.f32.mrb[0].mxu0
  %v2974 = vadd.f32 %v2718, %v2973
  %v2975 = vpop.f32.mrb[0].mxu0
  %v2976 = vpop.f32.mrb[0].mxu0
  %v2977 = vadd.f32 %v2718, %v2976
  %v2978 = vpop.f32.mrb[0].mxu0
  %2979 = vmatprep.mubr.bf16.mxu0 0
  %2980 = vmatmul.mubr.bf16.gmra.mrb[0].mxu0 %v2672
  %v2981 = vpop.f32.mrb[0].mxu0
  %v2982 = vadd.f32 %v2718, %v2981
  %v2983 = vpop.f32.mrb[0].mxu0
  %v2984 = vpop.f32.mrb[0].mxu0
  %v2985 = vadd.f32 %v2718, %v2984
  %v2986 = vpop.f32.mrb[0].mxu0
  %2987 = vdwg.mxu0
  %2988 = vst [vmem:[#allocation2] sm:$0xff] %v2885
  %2989 = vst [vmem:[#allocation2 + $0x8] sm:$0xff] %v2887
  %2990 = vst [vmem:[#allocation2 + $0x10] sm:$0xff] %v2958
  %2991 = vst [vmem:[#allocation2 + $0x18] sm:$0xff] %v2889
  %2992 = vst [vmem:[#allocation2 + $0x20] sm:$0xff] %v2891
  %2993 = vst [vmem:[#allocation2 + $0x28] sm:$0xff] %v2961
  %2994 = vst [vmem:[#allocation2 + $0x30] sm:$0xff] %v2895
  %2995 = vst [vmem:[#allocation2 + $0x38] sm:$0xff] %v2897
  %2996 = vst [vmem:[#allocation2 + $0x40] sm:$0xff] %v2966
  %2997 = vst [vmem:[#allocation2 + $0x48] sm:$0xff] %v2899
  %2998 = vst [vmem:[#allocation2 + $0x50] sm:$0xff] %v2901
  %2999 = vst [vmem:[#allocation2 + $0x58] sm:$0xff] %v2969
  %3000 = vst [vmem:[#allocation2 + $0x60] sm:$0xff] %v2905
  %3001 = vst [vmem:[#allocation2 + $0x68] sm:$0xff] %v2907
  %3002 = vst [vmem:[#allocation2 + $0x70] sm:$0xff] %v2974
  %3003 = vst [vmem:[#allocation2 + $0x78] sm:$0xff] %v2909
  %3004 = vst [vmem:[#allocation2 + $0x80] sm:$0xff] %v2911
  %3005 = vst [vmem:[#allocation2 + $0x88] sm:$0xff] %v2977
  %3006 = vst [vmem:[#allocation2 + $0x90] sm:$0xff] %v2915
  %3007 = vst [vmem:[#allocation2 + $0x98] sm:$0xff] %v2917
  %3008 = vst [vmem:[#allocation2 + $0xa0] sm:$0xff] %v2982
  %3009 = vst [vmem:[#allocation2 + $0xa8] sm:$0xff] %v2919
  %3010 = vst [vmem:[#allocation2 + $0xb0] sm:$0xff] %v2921
  %3011 = vst [vmem:[#allocation2 + $0xb8] sm:$0xff] %v2985
  %v3012 = vld [vmem:[#allocation2] sm:$0xff]
  %v3013 = vld [vmem:[#allocation2 + $0x8] sm:$0xff]
  %v3014 = vld [vmem:[#allocation2 + $0x10] sm:$0xff]
  %v3015 = vld [vmem:[%s6] sm:$0xff]
  %v3016 = vld [vmem:[%s6 + $0x8] sm:$0xf]
  %v3017 = vld [vmem:[%s6 + $0xc] sm:$0xff]
  %v3018 = vld [vmem:[%s6 + $0x14] sm:$0xf]
  %v3019 = vld [vmem:[%s6 + $0x18] sm:$0xff]
  %v3020 = vld [vmem:[%s6 + $0x20] sm:$0xf]
  %v3021 = vld [vmem:[%s6 + $0x24] sm:$0xff]
  %v3022 = vld [vmem:[%s6 + $0x2c] sm:$0xf]
  %v3023 = vld [vmem:[%s6 + $0x30] sm:$0xff]
  %v3024 = vld [vmem:[%s6 + $0x38] sm:$0xf]
  %v3025 = vld [vmem:[%s6 + $0x3c] sm:$0xff]
  %v3026 = vld [vmem:[%s6 + $0x44] sm:$0xf]
  %v3027 = vld [vmem:[%s6 + $0x48] sm:$0xff]
  %v3028 = vld [vmem:[%s6 + $0x50] sm:$0xf]
  %v3029 = vld [vmem:[%s6 + $0x54] sm:$0xff]
  %v3030 = vld [vmem:[%s6 + $0x5c] sm:$0xf]
  %v3031 = vld [vmem:[%s6 + $0x60] sm:$0xff]
  %v3032 = vld [vmem:[%s6 + $0x68] sm:$0xf]
  %v3033 = vld [vmem:[%s6 + $0x6c] sm:$0xff]
  %v3034 = vld [vmem:[%s6 + $0x74] sm:$0xf]
  %v3035 = vld [vmem:[%s6 + $0x78] sm:$0xff]
  %v3036 = vld [vmem:[%s6 + $0x80] sm:$0xf]
  %v3037 = vld [vmem:[%s6 + $0x84] sm:$0xff]
  %v3038 = vld [vmem:[%s6 + $0x8c] sm:$0xf]
  %v3039 = vld [vmem:[%s6 + $0x90] sm:$0xff]
  %v3040 = vld [vmem:[%s6 + $0x98] sm:$0xf]
  %v3041 = vld [vmem:[%s6 + $0x9c] sm:$0xff]
  %v3042 = vld [vmem:[%s6 + $0xa4] sm:$0xf]
  %v3043 = vld [vmem:[%s6 + $0xa8] sm:$0xff]
  %v3044 = vld [vmem:[%s6 + $0xb0] sm:$0xf]
  %v3045 = vld [vmem:[%s6 + $0xb4] sm:$0xff]
  %v3046 = vld [vmem:[%s6 + $0xbc] sm:$0xf]
  %v3047 = vld [vmem:[%s8] sm:$0x7]
  %v3049 = vlaneseq
  %v3050 = vshrl.u32 %v3049, 7
  %v3051 = vsub.s32 0, %v3050
  %v3052 = vrot.slane %v3047, %v3051
  %v3053 = vlaneseq
  %v3054 = vshrl.u32 %v3053, 7
  %v3055 = vsub.s32 1, %v3054
  %v3056 = vrot.slane %v3047, %v3055
  %v3057 = vlaneseq
  %v3058 = vshrl.u32 %v3057, 7
  %v3059 = vsub.s32 2, %v3058
  %v3060 = vrot.slane %v3047, %v3059
  %v3096 = vunpack.c.l.b16 %v3015
  %v3097 = vunpack.c.h.b16 %v3015
  %v3098 = vunpack.c.l.b16 %v3016
  %v3099 = vunpack.c.l.b16 %v3017
  %v3100 = vunpack.c.h.b16 %v3017
  %v3101 = vunpack.c.l.b16 %v3018
  %v3102 = vunpack.c.l.b16 %v3019
  %v3103 = vunpack.c.h.b16 %v3019
  %v3104 = vunpack.c.l.b16 %v3020
  %v3105 = vunpack.c.l.b16 %v3021
  %v3106 = vunpack.c.h.b16 %v3021
  %v3107 = vunpack.c.l.b16 %v3022
  %v3108 = vunpack.c.l.b16 %v3023
  %v3109 = vunpack.c.h.b16 %v3023
  %v3110 = vunpack.c.l.b16 %v3024
  %v3111 = vunpack.c.l.b16 %v3025
  %v3112 = vunpack.c.h.b16 %v3025
  %v3113 = vunpack.c.l.b16 %v3026
  %v3114 = vunpack.c.l.b16 %v3027
  %v3115 = vunpack.c.h.b16 %v3027
  %v3116 = vunpack.c.l.b16 %v3028
  %v3117 = vunpack.c.l.b16 %v3029
  %v3118 = vunpack.c.h.b16 %v3029
  %v3119 = vunpack.c.l.b16 %v3030
  %v3120 = vunpack.c.l.b16 %v3031
  %v3121 = vunpack.c.h.b16 %v3031
  %v3122 = vunpack.c.l.b16 %v3032
  %v3123 = vunpack.c.l.b16 %v3033
  %v3124 = vunpack.c.h.b16 %v3033
  %v3125 = vunpack.c.l.b16 %v3034
  %v3126 = vunpack.c.l.b16 %v3035
  %v3127 = vunpack.c.h.b16 %v3035
  %v3128 = vunpack.c.l.b16 %v3036
  %v3129 = vunpack.c.l.b16 %v3037
  %v3130 = vunpack.c.h.b16 %v3037
  %v3131 = vunpack.c.l.b16 %v3038
  %v3132 = vunpack.c.l.b16 %v3039
  %v3133 = vunpack.c.h.b16 %v3039
  %v3134 = vunpack.c.l.b16 %v3040
  %v3135 = vunpack.c.l.b16 %v3041
  %v3136 = vunpack.c.h.b16 %v3041
  %v3137 = vunpack.c.l.b16 %v3042
  %v3138 = vunpack.c.l.b16 %v3043
  %v3139 = vunpack.c.h.b16 %v3043
  %v3140 = vunpack.c.l.b16 %v3044
  %v3141 = vunpack.c.l.b16 %v3045
  %v3142 = vunpack.c.h.b16 %v3045
  %v3143 = vunpack.c.l.b16 %v3046
  %v3144 = vpack.c.b16 %v3099, %v3096
  %v3145 = vpack.c.b16 %v3100, %v3097
  %v3146 = vpack.c.b16 %v3101, %v3098
  %v3147 = vpack.c.b16 %v3105, %v3102
  %v3148 = vpack.c.b16 %v3106, %v3103
  %v3149 = vpack.c.b16 %v3107, %v3104
  %v3150 = vpack.c.b16 %v3111, %v3108
  %v3151 = vpack.c.b16 %v3112, %v3109
  %v3152 = vpack.c.b16 %v3113, %v3110
  %v3153 = vpack.c.b16 %v3117, %v3114
  %v3154 = vpack.c.b16 %v3118, %v3115
  %v3155 = vpack.c.b16 %v3119, %v3116
  %v3156 = vpack.c.b16 %v3123, %v3120
  %v3157 = vpack.c.b16 %v3124, %v3121
  %v3158 = vpack.c.b16 %v3125, %v3122
  %v3159 = vpack.c.b16 %v3129, %v3126
  %v3160 = vpack.c.b16 %v3130, %v3127
  %v3161 = vpack.c.b16 %v3131, %v3128
  %v3162 = vpack.c.b16 %v3135, %v3132
  %v3163 = vpack.c.b16 %v3136, %v3133
  %v3164 = vpack.c.b16 %v3137, %v3134
  %v3165 = vpack.c.b16 %v3141, %v3138
  %v3166 = vpack.c.b16 %v3142, %v3139
  %v3167 = vpack.c.b16 %v3143, %v3140
  %3192 = vmatprep.subr.bf16.mxu0 %v3145
  %3193 = vmatpush1.bf16.msra.mxu0 %v3144
  %3194 = vmatprep.subr.bf16.mxu0 %v3148
  %3195 = vmatpush1.bf16.msra.mxu0 %v3147
  %3196 = vmatprep.subr.bf16.mxu0 %v3151
  %3197 = vmatpush1.bf16.msra.mxu0 %v3150
  %3198 = vmatprep.subr.bf16.mxu0 %v3154
  %3199 = vmatpush1.bf16.msra.mxu0 %v3153
  %3200 = vmatprep.subr.bf16.mxu0 %v3157
  %3201 = vmatpush1.bf16.msra.mxu0 %v3156
  %3202 = vmatprep.subr.bf16.mxu0 %v3160
  %3203 = vmatpush1.bf16.msra.mxu0 %v3159
  %3204 = vmatprep.subr.bf16.mxu0 %v3163
  %3205 = vmatpush1.bf16.msra.mxu0 %v3162
  %3206 = vmatprep.subr.bf16.mxu0 %v3166
  %3207 = vmatpush1.bf16.msra.mxu0 %v3165
  %3208 = vmatprep.subr.bf16.mxu0 0
  %3209 = vmatpush1.bf16.msra.mxu0 0
  %3210 = vmatprep.subr.bf16.mxu0 0
  %3211 = vmatpush1.bf16.msra.mxu0 0
  %3212 = vmatprep.subr.bf16.mxu0 0
  %3213 = vmatpush1.bf16.msra.mxu0 0
  %3214 = vmatprep.subr.bf16.mxu0 0
  %3215 = vmatpush1.bf16.msra.mxu0 0
  %3216 = vmatprep.subr.bf16.mxu0 0
  %3217 = vmatpush1.bf16.msra.mxu0 0
  %3218 = vmatprep.subr.bf16.mxu0 0
  %3219 = vmatpush1.bf16.msra.mxu0 0
  %3220 = vmatprep.subr.bf16.mxu0 0
  %3221 = vmatpush1.bf16.msra.mxu0 0
  %3222 = vmatprep.subr.bf16.mxu0 0
  %3223 = vmatpush1.bf16.msra.mxu0 0
  %3224 = vmatprep.mubr.bf16.mxu0 0
  %3225 = vmatmul.mubr.bf16.gmra.mrb[0].mxu0 0
  %v3226 = vpop.f32.mrb[0].mxu0
  %v3227 = vadd.f32 %v3052, %v3226
  %v3228 = vpop.f32.mrb[0].mxu0
  %v3229 = vadd.f32 %v3056, %v3228
  %v3230 = vpop.f32.mrb[0].mxu0
  %v3231 = vpop.f32.mrb[0].mxu0
  %3232 = vdwg.mxu0
  %3233 = vmatprep.subr.bf16.mxu0 0
  %3234 = vmatpush1.bf16.msra.mxu0 %v3146
  %3235 = vmatprep.subr.bf16.mxu0 0
  %3236 = vmatpush1.bf16.msra.mxu0 %v3149
  %3237 = vmatprep.subr.bf16.mxu0 0
  %3238 = vmatpush1.bf16.msra.mxu0 %v3152
  %3239 = vmatprep.subr.bf16.mxu0 0
  %3240 = vmatpush1.bf16.msra.mxu0 %v3155
  %3241 = vmatprep.subr.bf16.mxu0 0
  %3242 = vmatpush1.bf16.msra.mxu0 %v3158
  %3243 = vmatprep.subr.bf16.mxu0 0
  %3244 = vmatpush1.bf16.msra.mxu0 %v3161
  %3245 = vmatprep.subr.bf16.mxu0 0
  %3246 = vmatpush1.bf16.msra.mxu0 %v3164
  %3247 = vmatprep.subr.bf16.mxu0 0
  %3248 = vmatpush1.bf16.msra.mxu0 %v3167
  %3249 = vmatprep.subr.bf16.mxu0 0
  %3250 = vmatpush1.bf16.msra.mxu0 0
  %3251 = vmatprep.subr.bf16.mxu0 0
  %3252 = vmatpush1.bf16.msra.mxu0 0
  %3253 = vmatprep.subr.bf16.mxu0 0
  %3254 = vmatpush1.bf16.msra.mxu0 0
  %3255 = vmatprep.subr.bf16.mxu0 0
  %3256 = vmatpush1.bf16.msra.mxu0 0
  %3257 = vmatprep.subr.bf16.mxu0 0
  %3258 = vmatpush1.bf16.msra.mxu0 0
  %3259 = vmatprep.subr.bf16.mxu0 0
  %3260 = vmatpush1.bf16.msra.mxu0 0
  %3261 = vmatprep.subr.bf16.mxu0 0
  %3262 = vmatpush1.bf16.msra.mxu0 0
  %3263 = vmatprep.subr.bf16.mxu0 0
  %3264 = vmatpush1.bf16.msra.mxu0 0
  %3265 = vmatprep.mubr.bf16.mxu0 0
  %3266 = vmatmul.mubr.bf16.gmra.mrb[0].mxu0 0
  %v3267 = vpop.f32.mrb[0].mxu0
  %v3268 = vadd.f32 %v3060, %v3267
  %v3269 = vpop.f32.mrb[0].mxu0
  %v3270 = vpop.f32.mrb[0].mxu0
  %v3271 = vpop.f32.mrb[0].mxu0
  %3272 = vdwg.mxu0
  %v3273 = vadd.f32 %v3012, %v3227
  %v3274 = vmul.f32 %v3273, 0.5
  %v3275 = vtanh.pop %v3274
  %v3276 = vmul.f32 %v3275, 0.5
  %v3277 = vadd.f32 %v3276, 0.5
  %v3278 = vadd.f32 %v3013, %v3229
  %v3279 = vmul.f32 %v3278, 0.5
  %v3280 = vtanh.pop %v3279
  %v3281 = vmul.f32 %v3280, 0.5
  %v3282 = vadd.f32 %v3281, 0.5
  %v3283 = vmul.f32 %v3277, %v3268
  %v3284 = vadd.f32 %v3014, %v3283
  %v3285 = vtanh.pop %v3284
  %v3286 = vsub.f32 1.0, %v3282
  %v3287 = vmul.f32 %v3286, %v3285
  %v3288 = vmul.f32 %v3282, 0.0
  %v3289 = vadd.f32 %v3287, %v3288
  %3290 = vst [vmem:[#allocation3] sm:$0xff] %v3289
  %v3291 = vld [vmem:[#allocation2 + $0x18] sm:$0xff]
  %v3292 = vld [vmem:[#allocation2 + $0x20] sm:$0xff]
  %v3293 = vld [vmem:[#allocation2 + $0x28] sm:$0xff]
  %v3294 = vpack.c.bf16 %v3289, %v3289
  %v3295 = vld [vmem:[%s6] sm:$0xff]
  %v3296 = vld [vmem:[%s6 + $0x8] sm:$0xf]
  %v3297 = vld [vmem:[%s6 + $0xc] sm:$0xff]
  %v3298 = vld [vmem:[%s6 + $0x14] sm:$0xf]
  %v3299 = vld [vmem:[%s6 + $0x18] sm:$0xff]
  %v3300 = vld [vmem:[%s6 + $0x20] sm:$0xf]
  %v3301 = vld [vmem:[%s6 + $0x24] sm:$0xff]
  %v3302 = vld [vmem:[%s6 + $0x2c] sm:$0xf]
  %v3303 = vld [vmem:[%s6 + $0x30] sm:$0xff]
  %v3304 = vld [vmem:[%s6 + $0x38] sm:$0xf]
  %v3305 = vld [vmem:[%s6 + $0x3c] sm:$0xff]
  %v3306 = vld [vmem:[%s6 + $0x44] sm:$0xf]
  %v3307 = vld [vmem:[%s6 + $0x48] sm:$0xff]
  %v3308 = vld [vmem:[%s6 + $0x50] sm:$0xf]
  %v3309 = vld [vmem:[%s6 + $0x54] sm:$0xff]
  %v3310 = vld [vmem:[%s6 + $0x5c] sm:$0xf]
  %v3311 = vld [vmem:[%s6 + $0x60] sm:$0xff]
  %v3312 = vld [vmem:[%s6 + $0x68] sm:$0xf]
  %v3313 = vld [vmem:[%s6 + $0x6c] sm:$0xff]
  %v3314 = vld [vmem:[%s6 + $0x74] sm:$0xf]
  %v3315 = vld [vmem:[%s6 + $0x78] sm:$0xff]
  %v3316 = vld [vmem:[%s6 + $0x80] sm:$0xf]
  %v3317 = vld [vmem:[%s6 + $0x84] sm:$0xff]
  %v3318 = vld [vmem:[%s6 + $0x8c] sm:$0xf]
  %v3319 = vld [vmem:[%s6 + $0x90] sm:$0xff]
  %v3320 = vld [vmem:[%s6 + $0x98] sm:$0xf]
  %v3321 = vld [vmem:[%s6 + $0x9c] sm:$0xff]
  %v3322 = vld [vmem:[%s6 + $0xa4] sm:$0xf]
  %v3323 = vld [vmem:[%s6 + $0xa8] sm:$0xff]
  %v3324 = vld [vmem:[%s6 + $0xb0] sm:$0xf]
  %v3325 = vld [vmem:[%s6 + $0xb4] sm:$0xff]
  %v3326 = vld [vmem:[%s6 + $0xbc] sm:$0xf]
  %v3327 = vld [vmem:[%s8] sm:$0x7]
  %v3329 = vlaneseq
  %v3330 = vshrl.u32 %v3329, 7
  %v3331 = vsub.s32 0, %v3330
  %v3332 = vrot.slane %v3327, %v3331
  %v3333 = vlaneseq
  %v3334 = vshrl.u32 %v3333, 7
  %v3335 = vsub.s32 1, %v3334
  %v3336 = vrot.slane %v3327, %v3335
  %v3337 = vlaneseq
  %v3338 = vshrl.u32 %v3337, 7
  %v3339 = vsub.s32 2, %v3338
  %v3340 = vrot.slane %v3327, %v3339
  %v3376 = vunpack.c.l.b16 %v3295
  %v3377 = vunpack.c.h.b16 %v3295
  %v3378 = vunpack.c.l.b16 %v3296
  %v3379 = vunpack.c.l.b16 %v3297
  %v3380 = vunpack.c.h.b16 %v3297
  %v3381 = vunpack.c.l.b16 %v3298
  %v3382 = vunpack.c.l.b16 %v3299
  %v3383 = vunpack.c.h.b16 %v3299
  %v3384 = vunpack.c.l.b16 %v3300
  %v3385 = vunpack.c.l.b16 %v3301
  %v3386 = vunpack.c.h.b16 %v3301
  %v3387 = vunpack.c.l.b16 %v3302
  %v3388 = vunpack.c.l.b16 %v3303
  %v3389 = vunpack.c.h.b16 %v3303
  %v3390 = vunpack.c.l.b16 %v3304
  %v3391 = vunpack.c.l.b16 %v3305
  %v3392 = vunpack.c.h.b16 %v3305
  %v3393 = vunpack.c.l.b16 %v3306
  %v3394 = vunpack.c.l.b16 %v3307
  %v3395 = vunpack.c.h.b16 %v3307
  %v3396 = vunpack.c.l.b16 %v3308
  %v3397 = vunpack.c.l.b16 %v3309
  %v3398 = vunpack.c.h.b16 %v3309
  %v3399 = vunpack.c.l.b16 %v3310
  %v3400 = vunpack.c.l.b16 %v3311
  %v3401 = vunpack.c.h.b16 %v3311
  %v3402 = vunpack.c.l.b16 %v3312
  %v3403 = vunpack.c.l.b16 %v3313
  %v3404 = vunpack.c.h.b16 %v3313
  %v3405 = vunpack.c.l.b16 %v3314
  %v3406 = vunpack.c.l.b16 %v3315
  %v3407 = vunpack.c.h.b16 %v3315
  %v3408 = vunpack.c.l.b16 %v3316
  %v3409 = vunpack.c.l.b16 %v3317
  %v3410 = vunpack.c.h.b16 %v3317
  %v3411 = vunpack.c.l.b16 %v3318
  %v3412 = vunpack.c.l.b16 %v3319
  %v3413 = vunpack.c.h.b16 %v3319
  %v3414 = vunpack.c.l.b16 %v3320
  %v3415 = vunpack.c.l.b16 %v3321
  %v3416 = vunpack.c.h.b16 %v3321
  %v3417 = vunpack.c.l.b16 %v3322
  %v3418 = vunpack.c.l.b16 %v3323
  %v3419 = vunpack.c.h.b16 %v3323
  %v3420 = vunpack.c.l.b16 %v3324
  %v3421 = vunpack.c.l.b16 %v3325
  %v3422 = vunpack.c.h.b16 %v3325
  %v3423 = vunpack.c.l.b16 %v3326
  %v3424 = vpack.c.b16 %v3379, %v3376
  %v3425 = vpack.c.b16 %v3380, %v3377
  %v3426 = vpack.c.b16 %v3381, %v3378
  %v3427 = vpack.c.b16 %v3385, %v3382
  %v3428 = vpack.c.b16 %v3386, %v3383
  %v3429 = vpack.c.b16 %v3387, %v3384
  %v3430 = vpack.c.b16 %v3391, %v3388
  %v3431 = vpack.c.b16 %v3392, %v3389
  %v3432 = vpack.c.b16 %v3393, %v3390
  %v3433 = vpack.c.b16 %v3397, %v3394
  %v3434 = vpack.c.b16 %v3398, %v3395
  %v3435 = vpack.c.b16 %v3399, %v3396
  %v3436 = vpack.c.b16 %v3403, %v3400
  %v3437 = vpack.c.b16 %v3404, %v3401
  %v3438 = vpack.c.b16 %v3405, %v3402
  %v3439 = vpack.c.b16 %v3409, %v3406
  %v3440 = vpack.c.b16 %v3410, %v3407
  %v3441 = vpack.c.b16 %v3411, %v3408
  %v3442 = vpack.c.b16 %v3415, %v3412
  %v3443 = vpack.c.b16 %v3416, %v3413
  %v3444 = vpack.c.b16 %v3417, %v3414
  %v3445 = vpack.c.b16 %v3421, %v3418
  %v3446 = vpack.c.b16 %v3422, %v3419
  %v3447 = vpack.c.b16 %v3423, %v3420
  %3472 = vmatprep.subr.bf16.mxu0 %v3425
  %3473 = vmatpush1.bf16.msra.mxu0 %v3424
  %3474 = vmatprep.subr.bf16.mxu0 %v3428
  %3475 = vmatpush1.bf16.msra.mxu0 %v3427
  %3476 = vmatprep.subr.bf16.mxu0 %v3431
  %3477 = vmatpush1.bf16.msra.mxu0 %v3430
  %3478 = vmatprep.subr.bf16.mxu0 %v3434
  %3479 = vmatpush1.bf16.msra.mxu0 %v3433
  %3480 = vmatprep.subr.bf16.mxu0 %v3437
  %3481 = vmatpush1.bf16.msra.mxu0 %v3436
  %3482 = vmatprep.subr.bf16.mxu0 %v3440
  %3483 = vmatpush1.bf16.msra.mxu0 %v3439
  %3484 = vmatprep.subr.bf16.mxu0 %v3443
  %3485 = vmatpush1.bf16.msra.mxu0 %v3442
  %3486 = vmatprep.subr.bf16.mxu0 %v3446
  %3487 = vmatpush1.bf16.msra.mxu0 %v3445
  %3488 = vmatprep.subr.bf16.mxu0 0
  %3489 = vmatpush1.bf16.msra.mxu0 0
  %3490 = vmatprep.subr.bf16.mxu0 0
  %3491 = vmatpush1.bf16.msra.mxu0 0
  %3492 = vmatprep.subr.bf16.mxu0 0
  %3493 = vmatpush1.bf16.msra.mxu0 0
  %3494 = vmatprep.subr.bf16.mxu0 0
  %3495 = vmatpush1.bf16.msra.mxu0 0
  %3496 = vmatprep.subr.bf16.mxu0 0
  %3497 = vmatpush1.bf16.msra.mxu0 0
  %3498 = vmatprep.subr.bf16.mxu0 0
  %3499 = vmatpush1.bf16.msra.mxu0 0
  %3500 = vmatprep.subr.bf16.mxu0 0
  %3501 = vmatpush1.bf16.msra.mxu0 0
  %3502 = vmatprep.subr.bf16.mxu0 0
  %3503 = vmatpush1.bf16.msra.mxu0 0
  %3504 = vmatprep.mubr.bf16.mxu0 0
  %3505 = vmatmul.mubr.bf16.gmra.mrb[0].mxu0 %v3294
  %v3506 = vpop.f32.mrb[0].mxu0
  %v3507 = vadd.f32 %v3332, %v3506
  %v3508 = vpop.f32.mrb[0].mxu0
  %v3509 = vadd.f32 %v3336, %v3508
  %v3510 = vpop.f32.mrb[0].mxu0
  %v3511 = vpop.f32.mrb[0].mxu0
  %3512 = vdwg.mxu0
  %3513 = vmatprep.subr.bf16.mxu0 0
  %3514 = vmatpush1.bf16.msra.mxu0 %v3426
  %3515 = vmatprep.subr.bf16.mxu0 0
  %3516 = vmatpush1.bf16.msra.mxu0 %v3429
  %3517 = vmatprep.subr.bf16.mxu0 0
  %3518 = vmatpush1.bf16.msra.mxu0 %v3432
  %3519 = vmatprep.subr.bf16.mxu0 0
  %3520 = vmatpush1.bf16.msra.mxu0 %v3435
  %3521 = vmatprep.subr.bf16.mxu0 0
  %3522 = vmatpush1.bf16.msra.mxu0 %v3438
  %3523 = vmatprep.subr.bf16.mxu0 0
  %3524 = vmatpush1.bf16.msra.mxu0 %v3441
  %3525 = vmatprep.subr.bf16.mxu0 0
  %3526 = vmatpush1.bf16.msra.mxu0 %v3444
  %3527 = vmatprep.subr.bf16.mxu0 0
  %3528 = vmatpush1.bf16.msra.mxu0 %v3447
  %3529 = vmatprep.subr.bf16.mxu0 0
  %3530 = vmatpush1.bf16.msra.mxu0 0
  %3531 = vmatprep.subr.bf16.mxu0 0
  %3532 = vmatpush1.bf16.msra.mxu0 0
  %3533 = vmatprep.subr.bf16.mxu0 0
  %3534 = vmatpush1.bf16.msra.mxu0 0
  %3535 = vmatprep.subr.bf16.mxu0 0
  %3536 = vmatpush1.bf16.msra.mxu0 0
  %3537 = vmatprep.subr.bf16.mxu0 0
  %3538 = vmatpush1.bf16.msra.mxu0 0
  %3539 = vmatprep.subr.bf16.mxu0 0
  %3540 = vmatpush1.bf16.msra.mxu0 0
  %3541 = vmatprep.subr.bf16.mxu0 0
  %3542 = vmatpush1.bf16.msra.mxu0 0
  %3543 = vmatprep.subr.bf16.mxu0 0
  %3544 = vmatpush1.bf16.msra.mxu0 0
  %3545 = vmatprep.mubr.bf16.mxu0 0
  %3546 = vmatmul.mubr.bf16.gmra.mrb[0].mxu0 %v3294
  %v3547 = vpop.f32.mrb[0].mxu0
  %v3548 = vadd.f32 %v3340, %v3547
  %v3549 = vpop.f32.mrb[0].mxu0
  %v3550 = vpop.f32.mrb[0].mxu0
  %v3551 = vpop.f32.mrb[0].mxu0
  %3552 = vdwg.mxu0
  %v3553 = vadd.f32 %v3291, %v3507
  %v3554 = vmul.f32 %v3553, 0.5
  %v3555 = vtanh.pop %v3554
  %v3556 = vmul.f32 %v3555, 0.5
  %v3557 = vadd.f32 %v3556, 0.5
  %v3558 = vadd.f32 %v3292, %v3509
  %v3559 = vmul.f32 %v3558, 0.5
  %v3560 = vtanh.pop %v3559
  %v3561 = vmul.f32 %v3560, 0.5
  %v3562 = vadd.f32 %v3561, 0.5
  %v3563 = vmul.f32 %v3557, %v3548
  %v3564 = vadd.f32 %v3293, %v3563
  %v3565 = vtanh.pop %v3564
  %v3566 = vsub.f32 1.0, %v3562
  %v3567 = vmul.f32 %v3566, %v3565
  %v3568 = vmul.f32 %v3562, %v3289
  %v3569 = vadd.f32 %v3567, %v3568
  %3570 = vst [vmem:[#allocation3 + $0x8] sm:$0xff] %v3569
  %v3571 = vld [vmem:[#allocation2 + $0x30] sm:$0xff]
  %v3572 = vld [vmem:[#allocation2 + $0x38] sm:$0xff]
  %v3573 = vld [vmem:[#allocation2 + $0x40] sm:$0xff]
  %v3574 = vpack.c.bf16 %v3569, %v3569
  %v3575 = vld [vmem:[%s6] sm:$0xff]
  %v3576 = vld [vmem:[%s6 + $0x8] sm:$0xf]
  %v3577 = vld [vmem:[%s6 + $0xc] sm:$0xff]
  %v3578 = vld [vmem:[%s6 + $0x14] sm:$0xf]
  %v3579 = vld [vmem:[%s6 + $0x18] sm:$0xff]
  %v3580 = vld [vmem:[%s6 + $0x20] sm:$0xf]
  %v3581 = vld [vmem:[%s6 + $0x24] sm:$0xff]
  %v3582 = vld [vmem:[%s6 + $0x2c] sm:$0xf]
  %v3583 = vld [vmem:[%s6 + $0x30] sm:$0xff]
  %v3584 = vld [vmem:[%s6 + $0x38] sm:$0xf]
  %v3585 = vld [vmem:[%s6 + $0x3c] sm:$0xff]
  %v3586 = vld [vmem:[%s6 + $0x44] sm:$0xf]
  %v3587 = vld [vmem:[%s6 + $0x48] sm:$0xff]
  %v3588 = vld [vmem:[%s6 + $0x50] sm:$0xf]
  %v3589 = vld [vmem:[%s6 + $0x54] sm:$0xff]
  %v3590 = vld [vmem:[%s6 + $0x5c] sm:$0xf]
  %v3591 = vld [vmem:[%s6 + $0x60] sm:$0xff]
  %v3592 = vld [vmem:[%s6 + $0x68] sm:$0xf]
  %v3593 = vld [vmem:[%s6 + $0x6c] sm:$0xff]
  %v3594 = vld [vmem:[%s6 + $0x74] sm:$0xf]
  %v3595 = vld [vmem:[%s6 + $0x78] sm:$0xff]
  %v3596 = vld [vmem:[%s6 + $0x80] sm:$0xf]
  %v3597 = vld [vmem:[%s6 + $0x84] sm:$0xff]
  %v3598 = vld [vmem:[%s6 + $0x8c] sm:$0xf]
  %v3599 = vld [vmem:[%s6 + $0x90] sm:$0xff]
  %v3600 = vld [vmem:[%s6 + $0x98] sm:$0xf]
  %v3601 = vld [vmem:[%s6 + $0x9c] sm:$0xff]
  %v3602 = vld [vmem:[%s6 + $0xa4] sm:$0xf]
  %v3603 = vld [vmem:[%s6 + $0xa8] sm:$0xff]
  %v3604 = vld [vmem:[%s6 + $0xb0] sm:$0xf]
  %v3605 = vld [vmem:[%s6 + $0xb4] sm:$0xff]
  %v3606 = vld [vmem:[%s6 + $0xbc] sm:$0xf]
  %v3607 = vld [vmem:[%s8] sm:$0x7]
  %v3609 = vlaneseq
  %v3610 = vshrl.u32 %v3609, 7
  %v3611 = vsub.s32 0, %v3610
  %v3612 = vrot.slane %v3607, %v3611
  %v3613 = vlaneseq
  %v3614 = vshrl.u32 %v3613, 7
  %v3615 = vsub.s32 1, %v3614
  %v3616 = vrot.slane %v3607, %v3615
  %v3617 = vlaneseq
  %v3618 = vshrl.u32 %v3617, 7
  %v3619 = vsub.s32 2, %v3618
  %v3620 = vrot.slane %v3607, %v3619
  %v3656 = vunpack.c.l.b16 %v3575
  %v3657 = vunpack.c.h.b16 %v3575
  %v3658 = vunpack.c.l.b16 %v3576
  %v3659 = vunpack.c.l.b16 %v3577
  %v3660 = vunpack.c.h.b16 %v3577
  %v3661 = vunpack.c.l.b16 %v3578
  %v3662 = vunpack.c.l.b16 %v3579
  %v3663 = vunpack.c.h.b16 %v3579
  %v3664 = vunpack.c.l.b16 %v3580
  %v3665 = vunpack.c.l.b16 %v3581
  %v3666 = vunpack.c.h.b16 %v3581
  %v3667 = vunpack.c.l.b16 %v3582
  %v3668 = vunpack.c.l.b16 %v3583
  %v3669 = vunpack.c.h.b16 %v3583
  %v3670 = vunpack.c.l.b16 %v3584
  %v3671 = vunpack.c.l.b16 %v3585
  %v3672 = vunpack.c.h.b16 %v3585
  %v3673 = vunpack.c.l.b16 %v3586
  %v3674 = vunpack.c.l.b16 %v3587
  %v3675 = vunpack.c.h.b16 %v3587
  %v3676 = vunpack.c.l.b16 %v3588
  %v3677 = vunpack.c.l.b16 %v3589
  %v3678 = vunpack.c.h.b16 %v3589
  %v3679 = vunpack.c.l.b16 %v3590
  %v3680 = vunpack.c.l.b16 %v3591
  %v3681 = vunpack.c.h.b16 %v3591
  %v3682 = vunpack.c.l.b16 %v3592
  %v3683 = vunpack.c.l.b16 %v3593
  %v3684 = vunpack.c.h.b16 %v3593
  %v3685 = vunpack.c.l.b16 %v3594
  %v3686 = vunpack.c.l.b16 %v3595
  %v3687 = vunpack.c.h.b16 %v3595
  %v3688 = vunpack.c.l.b16 %v3596
  %v3689 = vunpack.c.l.b16 %v3597
  %v3690 = vunpack.c.h.b16 %v3597
  %v3691 = vunpack.c.l.b16 %v3598
  %v3692 = vunpack.c.l.b16 %v3599
  %v3693 = vunpack.c.h.b16 %v3599
  %v3694 = vunpack.c.l.b16 %v3600
  %v3695 = vunpack.c.l.b16 %v3601
  %v3696 = vunpack.c.h.b16 %v3601
  %v3697 = vunpack.c.l.b16 %v3602
  %v3698 = vunpack.c.l.b16 %v3603
  %v3699 = vunpack.c.h.b16 %v3603
  %v3700 = vunpack.c.l.b16 %v3604
  %v3701 = vunpack.c.l.b16 %v3605
  %v3702 = vunpack.c.h.b16 %v3605
  %v3703 = vunpack.c.l.b16 %v3606
  %v3704 = vpack.c.b16 %v3659, %v3656
  %v3705 = vpack.c.b16 %v3660, %v3657
  %v3706 = vpack.c.b16 %v3661, %v3658
  %v3707 = vpack.c.b16 %v3665, %v3662
  %v3708 = vpack.c.b16 %v3666, %v3663
  %v3709 = vpack.c.b16 %v3667, %v3664
  %v3710 = vpack.c.b16 %v3671, %v3668
  %v3711 = vpack.c.b16 %v3672, %v3669
  %v3712 = vpack.c.b16 %v3673, %v3670
  %v3713 = vpack.c.b16 %v3677, %v3674
  %v3714 = vpack.c.b16 %v3678, %v3675
  %v3715 = vpack.c.b16 %v3679, %v3676
  %v3716 = vpack.c.b16 %v3683, %v3680
  %v3717 = vpack.c.b16 %v3684, %v3681
  %v3718 = vpack.c.b16 %v3685, %v3682
  %v3719 = vpack.c.b16 %v3689, %v3686
  %v3720 = vpack.c.b16 %v3690, %v3687
  %v3721 = vpack.c.b16 %v3691, %v3688
  %v3722 = vpack.c.b16 %v3695, %v3692
  %v3723 = vpack.c.b16 %v3696, %v3693
  %v3724 = vpack.c.b16 %v3697, %v3694
  %v3725 = vpack.c.b16 %v3701, %v3698
  %v3726 = vpack.c.b16 %v3702, %v3699
  %v3727 = vpack.c.b16 %v3703, %v3700
  %3752 = vmatprep.subr.bf16.mxu0 %v3705
  %3753 = vmatpush1.bf16.msra.mxu0 %v3704
  %3754 = vmatprep.subr.bf16.mxu0 %v3708
  %3755 = vmatpush1.bf16.msra.mxu0 %v3707
  %3756 = vmatprep.subr.bf16.mxu0 %v3711
  %3757 = vmatpush1.bf16.msra.mxu0 %v3710
  %3758 = vmatprep.subr.bf16.mxu0 %v3714
  %3759 = vmatpush1.bf16.msra.mxu0 %v3713
  %3760 = vmatprep.subr.bf16.mxu0 %v3717
  %3761 = vmatpush1.bf16.msra.mxu0 %v3716
  %3762 = vmatprep.subr.bf16.mxu0 %v3720
  %3763 = vmatpush1.bf16.msra.mxu0 %v3719
  %3764 = vmatprep.subr.bf16.mxu0 %v3723
  %3765 = vmatpush1.bf16.msra.mxu0 %v3722
  %3766 = vmatprep.subr.bf16.mxu0 %v3726
  %3767 = vmatpush1.bf16.msra.mxu0 %v3725
  %3768 = vmatprep.subr.bf16.mxu0 0
  %3769 = vmatpush1.bf16.msra.mxu0 0
  %3770 = vmatprep.subr.bf16.mxu0 0
  %3771 = vmatpush1.bf16.msra.mxu0 0
  %3772 = vmatprep.subr.bf16.mxu0 0
  %3773 = vmatpush1.bf16.msra.mxu0 0
  %3774 = vmatprep.subr.bf16.mxu0 0
  %3775 = vmatpush1.bf16.msra.mxu0 0
  %3776 = vmatprep.subr.bf16.mxu0 0
  %3777 = vmatpush1.bf16.msra.mxu0 0
  %3778 = vmatprep.subr.bf16.mxu0 0
  %3779 = vmatpush1.bf16.msra.mxu0 0
  %3780 = vmatprep.subr.bf16.mxu0 0
  %3781 = vmatpush1.bf16.msra.mxu0 0
  %3782 = vmatprep.subr.bf16.mxu0 0
  %3783 = vmatpush1.bf16.msra.mxu0 0
  %3784 = vmatprep.mubr.bf16.mxu0 0
  %3785 = vmatmul.mubr.bf16.gmra.mrb[0].mxu0 %v3574
  %v3786 = vpop.f32.mrb[0].mxu0
  %v3787 = vadd.f32 %v3612, %v3786
  %v3788 = vpop.f32.mrb[0].mxu0
  %v3789 = vadd.f32 %v3616, %v3788
  %v3790 = vpop.f32.mrb[0].mxu0
  %v3791 = vpop.f32.mrb[0].mxu0
  %3792 = vdwg.mxu0
  %3793 = vmatprep.subr.bf16.mxu0 0
  %3794 = vmatpush1.bf16.msra.mxu0 %v3706
  %3795 = vmatprep.subr.bf16.mxu0 0
  %3796 = vmatpush1.bf16.msra.mxu0 %v3709
  %3797 = vmatprep.subr.bf16.mxu0 0
  %3798 = vmatpush1.bf16.msra.mxu0 %v3712
  %3799 = vmatprep.subr.bf16.mxu0 0
  %3800 = vmatpush1.bf16.msra.mxu0 %v3715
  %3801 = vmatprep.subr.bf16.mxu0 0
  %3802 = vmatpush1.bf16.msra.mxu0 %v3718
  %3803 = vmatprep.subr.bf16.mxu0 0
  %3804 = vmatpush1.bf16.msra.mxu0 %v3721
  %3805 = vmatprep.subr.bf16.mxu0 0
  %3806 = vmatpush1.bf16.msra.mxu0 %v3724
  %3807 = vmatprep.subr.bf16.mxu0 0
  %3808 = vmatpush1.bf16.msra.mxu0 %v3727
  %3809 = vmatprep.subr.bf16.mxu0 0
  %3810 = vmatpush1.bf16.msra.mxu0 0
  %3811 = vmatprep.subr.bf16.mxu0 0
  %3812 = vmatpush1.bf16.msra.mxu0 0
  %3813 = vmatprep.subr.bf16.mxu0 0
  %3814 = vmatpush1.bf16.msra.mxu0 0
  %3815 = vmatprep.subr.bf16.mxu0 0
  %3816 = vmatpush1.bf16.msra.mxu0 0
  %3817 = vmatprep.subr.bf16.mxu0 0
  %3818 = vmatpush1.bf16.msra.mxu0 0
  %3819 = vmatprep.subr.bf16.mxu0 0
  %3820 = vmatpush1.bf16.msra.mxu0 0
  %3821 = vmatprep.subr.bf16.mxu0 0
  %3822 = vmatpush1.bf16.msra.mxu0 0
  %3823 = vmatprep.subr.bf16.mxu0 0
  %3824 = vmatpush1.bf16.msra.mxu0 0
  %3825 = vmatprep.mubr.bf16.mxu0 0
  %3826 = vmatmul.mubr.bf16.gmra.mrb[0].mxu0 %v3574
  %v3827 = vpop.f32.mrb[0].mxu0
  %v3828 = vadd.f32 %v3620, %v3827
  %v3829 = vpop.f32.mrb[0].mxu0
  %v3830 = vpop.f32.mrb[0].mxu0
  %v3831 = vpop.f32.mrb[0].mxu0
  %3832 = vdwg.mxu0
  %v3833 = vadd.f32 %v3571, %v3787
  %v3834 = vmul.f32 %v3833, 0.5
  %v3835 = vtanh.pop %v3834
  %v3836 = vmul.f32 %v3835, 0.5
  %v3837 = vadd.f32 %v3836, 0.5
  %v3838 = vadd.f32 %v3572, %v3789
  %v3839 = vmul.f32 %v3838, 0.5
  %v3840 = vtanh.pop %v3839
  %v3841 = vmul.f32 %v3840, 0.5
  %v3842 = vadd.f32 %v3841, 0.5
  %v3843 = vmul.f32 %v3837, %v3828
  %v3844 = vadd.f32 %v3573, %v3843
  %v3845 = vtanh.pop %v3844
  %v3846 = vsub.f32 1.0, %v3842
  %v3847 = vmul.f32 %v3846, %v3845
  %v3848 = vmul.f32 %v3842, %v3569
  %v3849 = vadd.f32 %v3847, %v3848
  %3850 = vst [vmem:[#allocation3 + $0x10] sm:$0xff] %v3849
  %v3851 = vld [vmem:[#allocation2 + $0x48] sm:$0xff]
  %v3852 = vld [vmem:[#allocation2 + $0x50] sm:$0xff]
  %v3853 = vld [vmem:[#allocation2 + $0x58] sm:$0xff]
  %v3854 = vpack.c.bf16 %v3849, %v3849
  %v3855 = vld [vmem:[%s6] sm:$0xff]
  %v3856 = vld [vmem:[%s6 + $0x8] sm:$0xf]
  %v3857 = vld [vmem:[%s6 + $0xc] sm:$0xff]
  %v3858 = vld [vmem:[%s6 + $0x14] sm:$0xf]
  %v3859 = vld [vmem:[%s6 + $0x18] sm:$0xff]
  %v3860 = vld [vmem:[%s6 + $0x20] sm:$0xf]
  %v3861 = vld [vmem:[%s6 + $0x24] sm:$0xff]
  %v3862 = vld [vmem:[%s6 + $0x2c] sm:$0xf]
  %v3863 = vld [vmem:[%s6 + $0x30] sm:$0xff]
  %v3864 = vld [vmem:[%s6 + $0x38] sm:$0xf]
  %v3865 = vld [vmem:[%s6 + $0x3c] sm:$0xff]
  %v3866 = vld [vmem:[%s6 + $0x44] sm:$0xf]
  %v3867 = vld [vmem:[%s6 + $0x48] sm:$0xff]
  %v3868 = vld [vmem:[%s6 + $0x50] sm:$0xf]
  %v3869 = vld [vmem:[%s6 + $0x54] sm:$0xff]
  %v3870 = vld [vmem:[%s6 + $0x5c] sm:$0xf]
  %v3871 = vld [vmem:[%s6 + $0x60] sm:$0xff]
  %v3872 = vld [vmem:[%s6 + $0x68] sm:$0xf]
  %v3873 = vld [vmem:[%s6 + $0x6c] sm:$0xff]
  %v3874 = vld [vmem:[%s6 + $0x74] sm:$0xf]
  %v3875 = vld [vmem:[%s6 + $0x78] sm:$0xff]
  %v3876 = vld [vmem:[%s6 + $0x80] sm:$0xf]
  %v3877 = vld [vmem:[%s6 + $0x84] sm:$0xff]
  %v3878 = vld [vmem:[%s6 + $0x8c] sm:$0xf]
  %v3879 = vld [vmem:[%s6 + $0x90] sm:$0xff]
  %v3880 = vld [vmem:[%s6 + $0x98] sm:$0xf]
  %v3881 = vld [vmem:[%s6 + $0x9c] sm:$0xff]
  %v3882 = vld [vmem:[%s6 + $0xa4] sm:$0xf]
  %v3883 = vld [vmem:[%s6 + $0xa8] sm:$0xff]
  %v3884 = vld [vmem:[%s6 + $0xb0] sm:$0xf]
  %v3885 = vld [vmem:[%s6 + $0xb4] sm:$0xff]
  %v3886 = vld [vmem:[%s6 + $0xbc] sm:$0xf]
  %v3887 = vld [vmem:[%s8] sm:$0x7]
  %v3889 = vlaneseq
  %v3890 = vshrl.u32 %v3889, 7
  %v3891 = vsub.s32 0, %v3890
  %v3892 = vrot.slane %v3887, %v3891
  %v3893 = vlaneseq
  %v3894 = vshrl.u32 %v3893, 7
  %v3895 = vsub.s32 1, %v3894
  %v3896 = vrot.slane %v3887, %v3895
  %v3897 = vlaneseq
  %v3898 = vshrl.u32 %v3897, 7
  %v3899 = vsub.s32 2, %v3898
  %v3900 = vrot.slane %v3887, %v3899
  %v3936 = vunpack.c.l.b16 %v3855
  %v3937 = vunpack.c.h.b16 %v3855
  %v3938 = vunpack.c.l.b16 %v3856
  %v3939 = vunpack.c.l.b16 %v3857
  %v3940 = vunpack.c.h.b16 %v3857
  %v3941 = vunpack.c.l.b16 %v3858
  %v3942 = vunpack.c.l.b16 %v3859
  %v3943 = vunpack.c.h.b16 %v3859
  %v3944 = vunpack.c.l.b16 %v3860
  %v3945 = vunpack.c.l.b16 %v3861
  %v3946 = vunpack.c.h.b16 %v3861
  %v3947 = vunpack.c.l.b16 %v3862
  %v3948 = vunpack.c.l.b16 %v3863
  %v3949 = vunpack.c.h.b16 %v3863
  %v3950 = vunpack.c.l.b16 %v3864
  %v3951 = vunpack.c.l.b16 %v3865
  %v3952 = vunpack.c.h.b16 %v3865
  %v3953 = vunpack.c.l.b16 %v3866
  %v3954 = vunpack.c.l.b16 %v3867
  %v3955 = vunpack.c.h.b16 %v3867
  %v3956 = vunpack.c.l.b16 %v3868
  %v3957 = vunpack.c.l.b16 %v3869
  %v3958 = vunpack.c.h.b16 %v3869
  %v3959 = vunpack.c.l.b16 %v3870
  %v3960 = vunpack.c.l.b16 %v3871
  %v3961 = vunpack.c.h.b16 %v3871
  %v3962 = vunpack.c.l.b16 %v3872
  %v3963 = vunpack.c.l.b16 %v3873
  %v3964 = vunpack.c.h.b16 %v3873
  %v3965 = vunpack.c.l.b16 %v3874
  %v3966 = vunpack.c.l.b16 %v3875
  %v3967 = vunpack.c.h.b16 %v3875
  %v3968 = vunpack.c.l.b16 %v3876
  %v3969 = vunpack.c.l.b16 %v3877
  %v3970 = vunpack.c.h.b16 %v3877
  %v3971 = vunpack.c.l.b16 %v3878
  %v3972 = vunpack.c.l.b16 %v3879
  %v3973 = vunpack.c.h.b16 %v3879
  %v3974 = vunpack.c.l.b16 %v3880
  %v3975 = vunpack.c.l.b16 %v3881
  %v3976 = vunpack.c.h.b16 %v3881
  %v3977 = vunpack.c.l.b16 %v3882
  %v3978 = vunpack.c.l.b16 %v3883
  %v3979 = vunpack.c.h.b16 %v3883
  %v3980 = vunpack.c.l.b16 %v3884
  %v3981 = vunpack.c.l.b16 %v3885
  %v3982 = vunpack.c.h.b16 %v3885
  %v3983 = vunpack.c.l.b16 %v3886
  %v3984 = vpack.c.b16 %v3939, %v3936
  %v3985 = vpack.c.b16 %v3940, %v3937
  %v3986 = vpack.c.b16 %v3941, %v3938
  %v3987 = vpack.c.b16 %v3945, %v3942
  %v3988 = vpack.c.b16 %v3946, %v3943
  %v3989 = vpack.c.b16 %v3947, %v3944
  %v3990 = vpack.c.b16 %v3951, %v3948
  %v3991 = vpack.c.b16 %v3952, %v3949
  %v3992 = vpack.c.b16 %v3953, %v3950
  %v3993 = vpack.c.b16 %v3957, %v3954
  %v3994 = vpack.c.b16 %v3958, %v3955
  %v3995 = vpack.c.b16 %v3959, %v3956
  %v3996 = vpack.c.b16 %v3963, %v3960
  %v3997 = vpack.c.b16 %v3964, %v3961
  %v3998 = vpack.c.b16 %v3965, %v3962
  %v3999 = vpack.c.b16 %v3969, %v3966
  %v4000 = vpack.c.b16 %v3970, %v3967
  %v4001 = vpack.c.b16 %v3971, %v3968
  %v4002 = vpack.c.b16 %v3975, %v3972
  %v4003 = vpack.c.b16 %v3976, %v3973
  %v4004 = vpack.c.b16 %v3977, %v3974
  %v4005 = vpack.c.b16 %v3981, %v3978
  %v4006 = vpack.c.b16 %v3982, %v3979
  %v4007 = vpack.c.b16 %v3983, %v3980
  %4032 = vmatprep.subr.bf16.mxu0 %v3985
  %4033 = vmatpush1.bf16.msra.mxu0 %v3984
  %4034 = vmatprep.subr.bf16.mxu0 %v3988
  %4035 = vmatpush1.bf16.msra.mxu0 %v3987
  %4036 = vmatprep.subr.bf16.mxu0 %v3991
  %4037 = vmatpush1.bf16.msra.mxu0 %v3990
  %4038 = vmatprep.subr.bf16.mxu0 %v3994
  %4039 = vmatpush1.bf16.msra.mxu0 %v3993
  %4040 = vmatprep.subr.bf16.mxu0 %v3997
  %4041 = vmatpush1.bf16.msra.mxu0 %v3996
  %4042 = vmatprep.subr.bf16.mxu0 %v4000
  %4043 = vmatpush1.bf16.msra.mxu0 %v3999
  %4044 = vmatprep.subr.bf16.mxu0 %v4003
  %4045 = vmatpush1.bf16.msra.mxu0 %v4002
  %4046 = vmatprep.subr.bf16.mxu0 %v4006
  %4047 = vmatpush1.bf16.msra.mxu0 %v4005
  %4048 = vmatprep.subr.bf16.mxu0 0
  %4049 = vmatpush1.bf16.msra.mxu0 0
  %4050 = vmatprep.subr.bf16.mxu0 0
  %4051 = vmatpush1.bf16.msra.mxu0 0
  %4052 = vmatprep.subr.bf16.mxu0 0
  %4053 = vmatpush1.bf16.msra.mxu0 0
  %4054 = vmatprep.subr.bf16.mxu0 0
  %4055 = vmatpush1.bf16.msra.mxu0 0
  %4056 = vmatprep.subr.bf16.mxu0 0
  %4057 = vmatpush1.bf16.msra.mxu0 0
  %4058 = vmatprep.subr.bf16.mxu0 0
  %4059 = vmatpush1.bf16.msra.mxu0 0
  %4060 = vmatprep.subr.bf16.mxu0 0
  %4061 = vmatpush1.bf16.msra.mxu0 0
  %4062 = vmatprep.subr.bf16.mxu0 0
  %4063 = vmatpush1.bf16.msra.mxu0 0
  %4064 = vmatprep.mubr.bf16.mxu0 0
  %4065 = vmatmul.mubr.bf16.gmra.mrb[0].mxu0 %v3854
  %v4066 = vpop.f32.mrb[0].mxu0
  %v4067 = vadd.f32 %v3892, %v4066
  %v4068 = vpop.f32.mrb[0].mxu0
  %v4069 = vadd.f32 %v3896, %v4068
  %v4070 = vpop.f32.mrb[0].mxu0
  %v4071 = vpop.f32.mrb[0].mxu0
  %4072 = vdwg.mxu0
  %4073 = vmatprep.subr.bf16.mxu0 0
  %4074 = vmatpush1.bf16.msra.mxu0 %v3986
  %4075 = vmatprep.subr.bf16.mxu0 0
  %4076 = vmatpush1.bf16.msra.mxu0 %v3989
  %4077 = vmatprep.subr.bf16.mxu0 0
  %4078 = vmatpush1.bf16.msra.mxu0 %v3992
  %4079 = vmatprep.subr.bf16.mxu0 0
  %4080 = vmatpush1.bf16.msra.mxu0 %v3995
  %4081 = vmatprep.subr.bf16.mxu0 0
  %4082 = vmatpush1.bf16.msra.mxu0 %v3998
  %4083 = vmatprep.subr.bf16.mxu0 0
  %4084 = vmatpush1.bf16.msra.mxu0 %v4001
  %4085 = vmatprep.subr.bf16.mxu0 0
  %4086 = vmatpush1.bf16.msra.mxu0 %v4004
  %4087 = vmatprep.subr.bf16.mxu0 0
  %4088 = vmatpush1.bf16.msra.mxu0 %v4007
  %4089 = vmatprep.subr.bf16.mxu0 0
  %4090 = vmatpush1.bf16.msra.mxu0 0
  %4091 = vmatprep.subr.bf16.mxu0 0
  %4092 = vmatpush1.bf16.msra.mxu0 0
  %4093 = vmatprep.subr.bf16.mxu0 0
  %4094 = vmatpush1.bf16.msra.mxu0 0
  %4095 = vmatprep.subr.bf16.mxu0 0
  %4096 = vmatpush1.bf16.msra.mxu0 0
  %4097 = vmatprep.subr.bf16.mxu0 0
  %4098 = vmatpush1.bf16.msra.mxu0 0
  %4099 = vmatprep.subr.bf16.mxu0 0
  %4100 = vmatpush1.bf16.msra.mxu0 0
  %4101 = vmatprep.subr.bf16.mxu0 0
  %4102 = vmatpush1.bf16.msra.mxu0 0
  %4103 = vmatprep.subr.bf16.mxu0 0
  %4104 = vmatpush1.bf16.msra.mxu0 0
  %4105 = vmatprep.mubr.bf16.mxu0 0
  %4106 = vmatmul.mubr.bf16.gmra.mrb[0].mxu0 %v3854
  %v4107 = vpop.f32.mrb[0].mxu0
  %v4108 = vadd.f32 %v3900, %v4107
  %v4109 = vpop.f32.mrb[0].mxu0
  %v4110 = vpop.f32.mrb[0].mxu0
  %v4111 = vpop.f32.mrb[0].mxu0
  %4112 = vdwg.mxu0
  %v4113 = vadd.f32 %v3851, %v4067
  %v4114 = vmul.f32 %v4113, 0.5
  %v4115 = vtanh.pop %v4114
  %v4116 = vmul.f32 %v4115, 0.5
  %v4117 = vadd.f32 %v4116, 0.5
  %v4118 = vadd.f32 %v3852, %v4069
  %v4119 = vmul.f32 %v4118, 0.5
  %v4120 = vtanh.pop %v4119
  %v4121 = vmul.f32 %v4120, 0.5
  %v4122 = vadd.f32 %v4121, 0.5
  %v4123 = vmul.f32 %v4117, %v4108
  %v4124 = vadd.f32 %v3853, %v4123
  %v4125 = vtanh.pop %v4124
  %v4126 = vsub.f32 1.0, %v4122
  %v4127 = vmul.f32 %v4126, %v4125
  %v4128 = vmul.f32 %v4122, %v3849
  %v4129 = vadd.f32 %v4127, %v4128
  %4130 = vst [vmem:[#allocation3 + $0x18] sm:$0xff] %v4129
  %v4131 = vld [vmem:[#allocation2 + $0x60] sm:$0xff]
  %v4132 = vld [vmem:[#allocation2 + $0x68] sm:$0xff]
  %v4133 = vld [vmem:[#allocation2 + $0x70] sm:$0xff]
  %v4134 = vpack.c.bf16 %v4129, %v4129
  %v4135 = vld [vmem:[%s6] sm:$0xff]
  %v4136 = vld [vmem:[%s6 + $0x8] sm:$0xf]
  %v4137 = vld [vmem:[%s6 + $0xc] sm:$0xff]
  %v4138 = vld [vmem:[%s6 + $0x14] sm:$0xf]
  %v4139 = vld [vmem:[%s6 + $0x18] sm:$0xff]
  %v4140 = vld [vmem:[%s6 + $0x20] sm:$0xf]
  %v4141 = vld [vmem:[%s6 + $0x24] sm:$0xff]
  %v4142 = vld [vmem:[%s6 + $0x2c] sm:$0xf]
  %v4143 = vld [vmem:[%s6 + $0x30] sm:$0xff]
  %v4144 = vld [vmem:[%s6 + $0x38] sm:$0xf]
  %v4145 = vld [vmem:[%s6 + $0x3c] sm:$0xff]
  %v4146 = vld [vmem:[%s6 + $0x44] sm:$0xf]
  %v4147 = vld [vmem:[%s6 + $0x48] sm:$0xff]
  %v4148 = vld [vmem:[%s6 + $0x50] sm:$0xf]
  %v4149 = vld [vmem:[%s6 + $0x54] sm:$0xff]
  %v4150 = vld [vmem:[%s6 + $0x5c] sm:$0xf]
  %v4151 = vld [vmem:[%s6 + $0x60] sm:$0xff]
  %v4152 = vld [vmem:[%s6 + $0x68] sm:$0xf]
  %v4153 = vld [vmem:[%s6 + $0x6c] sm:$0xff]
  %v4154 = vld [vmem:[%s6 + $0x74] sm:$0xf]
  %v4155 = vld [vmem:[%s6 + $0x78] sm:$0xff]
  %v4156 = vld [vmem:[%s6 + $0x80] sm:$0xf]
  %v4157 = vld [vmem:[%s6 + $0x84] sm:$0xff]
  %v4158 = vld [vmem:[%s6 + $0x8c] sm:$0xf]
  %v4159 = vld [vmem:[%s6 + $0x90] sm:$0xff]
  %v4160 = vld [vmem:[%s6 + $0x98] sm:$0xf]
  %v4161 = vld [vmem:[%s6 + $0x9c] sm:$0xff]
  %v4162 = vld [vmem:[%s6 + $0xa4] sm:$0xf]
  %v4163 = vld [vmem:[%s6 + $0xa8] sm:$0xff]
  %v4164 = vld [vmem:[%s6 + $0xb0] sm:$0xf]
  %v4165 = vld [vmem:[%s6 + $0xb4] sm:$0xff]
  %v4166 = vld [vmem:[%s6 + $0xbc] sm:$0xf]
  %v4167 = vld [vmem:[%s8] sm:$0x7]
  %v4169 = vlaneseq
  %v4170 = vshrl.u32 %v4169, 7
  %v4171 = vsub.s32 0, %v4170
  %v4172 = vrot.slane %v4167, %v4171
  %v4173 = vlaneseq
  %v4174 = vshrl.u32 %v4173, 7
  %v4175 = vsub.s32 1, %v4174
  %v4176 = vrot.slane %v4167, %v4175
  %v4177 = vlaneseq
  %v4178 = vshrl.u32 %v4177, 7
  %v4179 = vsub.s32 2, %v4178
  %v4180 = vrot.slane %v4167, %v4179
  %v4216 = vunpack.c.l.b16 %v4135
  %v4217 = vunpack.c.h.b16 %v4135
  %v4218 = vunpack.c.l.b16 %v4136
  %v4219 = vunpack.c.l.b16 %v4137
  %v4220 = vunpack.c.h.b16 %v4137
  %v4221 = vunpack.c.l.b16 %v4138
  %v4222 = vunpack.c.l.b16 %v4139
  %v4223 = vunpack.c.h.b16 %v4139
  %v4224 = vunpack.c.l.b16 %v4140
  %v4225 = vunpack.c.l.b16 %v4141
  %v4226 = vunpack.c.h.b16 %v4141
  %v4227 = vunpack.c.l.b16 %v4142
  %v4228 = vunpack.c.l.b16 %v4143
  %v4229 = vunpack.c.h.b16 %v4143
  %v4230 = vunpack.c.l.b16 %v4144
  %v4231 = vunpack.c.l.b16 %v4145
  %v4232 = vunpack.c.h.b16 %v4145
  %v4233 = vunpack.c.l.b16 %v4146
  %v4234 = vunpack.c.l.b16 %v4147
  %v4235 = vunpack.c.h.b16 %v4147
  %v4236 = vunpack.c.l.b16 %v4148
  %v4237 = vunpack.c.l.b16 %v4149
  %v4238 = vunpack.c.h.b16 %v4149
  %v4239 = vunpack.c.l.b16 %v4150
  %v4240 = vunpack.c.l.b16 %v4151
  %v4241 = vunpack.c.h.b16 %v4151
  %v4242 = vunpack.c.l.b16 %v4152
  %v4243 = vunpack.c.l.b16 %v4153
  %v4244 = vunpack.c.h.b16 %v4153
  %v4245 = vunpack.c.l.b16 %v4154
  %v4246 = vunpack.c.l.b16 %v4155
  %v4247 = vunpack.c.h.b16 %v4155
  %v4248 = vunpack.c.l.b16 %v4156
  %v4249 = vunpack.c.l.b16 %v4157
  %v4250 = vunpack.c.h.b16 %v4157
  %v4251 = vunpack.c.l.b16 %v4158
  %v4252 = vunpack.c.l.b16 %v4159
  %v4253 = vunpack.c.h.b16 %v4159
  %v4254 = vunpack.c.l.b16 %v4160
  %v4255 = vunpack.c.l.b16 %v4161
  %v4256 = vunpack.c.h.b16 %v4161
  %v4257 = vunpack.c.l.b16 %v4162
  %v4258 = vunpack.c.l.b16 %v4163
  %v4259 = vunpack.c.h.b16 %v4163
  %v4260 = vunpack.c.l.b16 %v4164
  %v4261 = vunpack.c.l.b16 %v4165
  %v4262 = vunpack.c.h.b16 %v4165
  %v4263 = vunpack.c.l.b16 %v4166
  %v4264 = vpack.c.b16 %v4219, %v4216
  %v4265 = vpack.c.b16 %v4220, %v4217
  %v4266 = vpack.c.b16 %v4221, %v4218
  %v4267 = vpack.c.b16 %v4225, %v4222
  %v4268 = vpack.c.b16 %v4226, %v4223
  %v4269 = vpack.c.b16 %v4227, %v4224
  %v4270 = vpack.c.b16 %v4231, %v4228
  %v4271 = vpack.c.b16 %v4232, %v4229
  %v4272 = vpack.c.b16 %v4233, %v4230
  %v4273 = vpack.c.b16 %v4237, %v4234
  %v4274 = vpack.c.b16 %v4238, %v4235
  %v4275 = vpack.c.b16 %v4239, %v4236
  %v4276 = vpack.c.b16 %v4243, %v4240
  %v4277 = vpack.c.b16 %v4244, %v4241
  %v4278 = vpack.c.b16 %v4245, %v4242
  %v4279 = vpack.c.b16 %v4249, %v4246
  %v4280 = vpack.c.b16 %v4250, %v4247
  %v4281 = vpack.c.b16 %v4251, %v4248
  %v4282 = vpack.c.b16 %v4255, %v4252
  %v4283 = vpack.c.b16 %v4256, %v4253
  %v4284 = vpack.c.b16 %v4257, %v4254
  %v4285 = vpack.c.b16 %v4261, %v4258
  %v4286 = vpack.c.b16 %v4262, %v4259
  %v4287 = vpack.c.b16 %v4263, %v4260
  %4312 = vmatprep.subr.bf16.mxu0 %v4265
  %4313 = vmatpush1.bf16.msra.mxu0 %v4264
  %4314 = vmatprep.subr.bf16.mxu0 %v4268
  %4315 = vmatpush1.bf16.msra.mxu0 %v4267
  %4316 = vmatprep.subr.bf16.mxu0 %v4271
  %4317 = vmatpush1.bf16.msra.mxu0 %v4270
  %4318 = vmatprep.subr.bf16.mxu0 %v4274
  %4319 = vmatpush1.bf16.msra.mxu0 %v4273
  %4320 = vmatprep.subr.bf16.mxu0 %v4277
  %4321 = vmatpush1.bf16.msra.mxu0 %v4276
  %4322 = vmatprep.subr.bf16.mxu0 %v4280
  %4323 = vmatpush1.bf16.msra.mxu0 %v4279
  %4324 = vmatprep.subr.bf16.mxu0 %v4283
  %4325 = vmatpush1.bf16.msra.mxu0 %v4282
  %4326 = vmatprep.subr.bf16.mxu0 %v4286
  %4327 = vmatpush1.bf16.msra.mxu0 %v4285
  %4328 = vmatprep.subr.bf16.mxu0 0
  %4329 = vmatpush1.bf16.msra.mxu0 0
  %4330 = vmatprep.subr.bf16.mxu0 0
  %4331 = vmatpush1.bf16.msra.mxu0 0
  %4332 = vmatprep.subr.bf16.mxu0 0
  %4333 = vmatpush1.bf16.msra.mxu0 0
  %4334 = vmatprep.subr.bf16.mxu0 0
  %4335 = vmatpush1.bf16.msra.mxu0 0
  %4336 = vmatprep.subr.bf16.mxu0 0
  %4337 = vmatpush1.bf16.msra.mxu0 0
  %4338 = vmatprep.subr.bf16.mxu0 0
  %4339 = vmatpush1.bf16.msra.mxu0 0
  %4340 = vmatprep.subr.bf16.mxu0 0
  %4341 = vmatpush1.bf16.msra.mxu0 0
  %4342 = vmatprep.subr.bf16.mxu0 0
  %4343 = vmatpush1.bf16.msra.mxu0 0
  %4344 = vmatprep.mubr.bf16.mxu0 0
  %4345 = vmatmul.mubr.bf16.gmra.mrb[0].mxu0 %v4134
  %v4346 = vpop.f32.mrb[0].mxu0
  %v4347 = vadd.f32 %v4172, %v4346
  %v4348 = vpop.f32.mrb[0].mxu0
  %v4349 = vadd.f32 %v4176, %v4348
  %v4350 = vpop.f32.mrb[0].mxu0
  %v4351 = vpop.f32.mrb[0].mxu0
  %4352 = vdwg.mxu0
  %4353 = vmatprep.subr.bf16.mxu0 0
  %4354 = vmatpush1.bf16.msra.mxu0 %v4266
  %4355 = vmatprep.subr.bf16.mxu0 0
  %4356 = vmatpush1.bf16.msra.mxu0 %v4269
  %4357 = vmatprep.subr.bf16.mxu0 0
  %4358 = vmatpush1.bf16.msra.mxu0 %v4272
  %4359 = vmatprep.subr.bf16.mxu0 0
  %4360 = vmatpush1.bf16.msra.mxu0 %v4275
  %4361 = vmatprep.subr.bf16.mxu0 0
  %4362 = vmatpush1.bf16.msra.mxu0 %v4278
  %4363 = vmatprep.subr.bf16.mxu0 0
  %4364 = vmatpush1.bf16.msra.mxu0 %v4281
  %4365 = vmatprep.subr.bf16.mxu0 0
  %4366 = vmatpush1.bf16.msra.mxu0 %v4284
  %4367 = vmatprep.subr.bf16.mxu0 0
  %4368 = vmatpush1.bf16.msra.mxu0 %v4287
  %4369 = vmatprep.subr.bf16.mxu0 0
  %4370 = vmatpush1.bf16.msra.mxu0 0
  %4371 = vmatprep.subr.bf16.mxu0 0
  %4372 = vmatpush1.bf16.msra.mxu0 0
  %4373 = vmatprep.subr.bf16.mxu0 0
  %4374 = vmatpush1.bf16.msra.mxu0 0
  %4375 = vmatprep.subr.bf16.mxu0 0
  %4376 = vmatpush1.bf16.msra.mxu0 0
  %4377 = vmatprep.subr.bf16.mxu0 0
  %4378 = vmatpush1.bf16.msra.mxu0 0
  %4379 = vmatprep.subr.bf16.mxu0 0
  %4380 = vmatpush1.bf16.msra.mxu0 0
  %4381 = vmatprep.subr.bf16.mxu0 0
  %4382 = vmatpush1.bf16.msra.mxu0 0
  %4383 = vmatprep.subr.bf16.mxu0 0
  %4384 = vmatpush1.bf16.msra.mxu0 0
  %4385 = vmatprep.mubr.bf16.mxu0 0
  %4386 = vmatmul.mubr.bf16.gmra.mrb[0].mxu0 %v4134
  %v4387 = vpop.f32.mrb[0].mxu0
  %v4388 = vadd.f32 %v4180, %v4387
  %v4389 = vpop.f32.mrb[0].mxu0
  %v4390 = vpop.f32.mrb[0].mxu0
  %v4391 = vpop.f32.mrb[0].mxu0
  %4392 = vdwg.mxu0
  %v4393 = vadd.f32 %v4131, %v4347
  %v4394 = vmul.f32 %v4393, 0.5
  %v4395 = vtanh.pop %v4394
  %v4396 = vmul.f32 %v4395, 0.5
  %v4397 = vadd.f32 %v4396, 0.5
  %v4398 = vadd.f32 %v4132, %v4349
  %v4399 = vmul.f32 %v4398, 0.5
  %v4400 = vtanh.pop %v4399
  %v4401 = vmul.f32 %v4400, 0.5
  %v4402 = vadd.f32 %v4401, 0.5
  %v4403 = vmul.f32 %v4397, %v4388
  %v4404 = vadd.f32 %v4133, %v4403
  %v4405 = vtanh.pop %v4404
  %v4406 = vsub.f32 1.0, %v4402
  %v4407 = vmul.f32 %v4406, %v4405
  %v4408 = vmul.f32 %v4402, %v4129
  %v4409 = vadd.f32 %v4407, %v4408
  %4410 = vst [vmem:[#allocation3 + $0x20] sm:$0xff] %v4409
  %v4411 = vld [vmem:[#allocation2 + $0x78] sm:$0xff]
  %v4412 = vld [vmem:[#allocation2 + $0x80] sm:$0xff]
  %v4413 = vld [vmem:[#allocation2 + $0x88] sm:$0xff]
  %v4414 = vpack.c.bf16 %v4409, %v4409
  %v4415 = vld [vmem:[%s6] sm:$0xff]
  %v4416 = vld [vmem:[%s6 + $0x8] sm:$0xf]
  %v4417 = vld [vmem:[%s6 + $0xc] sm:$0xff]
  %v4418 = vld [vmem:[%s6 + $0x14] sm:$0xf]
  %v4419 = vld [vmem:[%s6 + $0x18] sm:$0xff]
  %v4420 = vld [vmem:[%s6 + $0x20] sm:$0xf]
  %v4421 = vld [vmem:[%s6 + $0x24] sm:$0xff]
  %v4422 = vld [vmem:[%s6 + $0x2c] sm:$0xf]
  %v4423 = vld [vmem:[%s6 + $0x30] sm:$0xff]
  %v4424 = vld [vmem:[%s6 + $0x38] sm:$0xf]
  %v4425 = vld [vmem:[%s6 + $0x3c] sm:$0xff]
  %v4426 = vld [vmem:[%s6 + $0x44] sm:$0xf]
  %v4427 = vld [vmem:[%s6 + $0x48] sm:$0xff]
  %v4428 = vld [vmem:[%s6 + $0x50] sm:$0xf]
  %v4429 = vld [vmem:[%s6 + $0x54] sm:$0xff]
  %v4430 = vld [vmem:[%s6 + $0x5c] sm:$0xf]
  %v4431 = vld [vmem:[%s6 + $0x60] sm:$0xff]
  %v4432 = vld [vmem:[%s6 + $0x68] sm:$0xf]
  %v4433 = vld [vmem:[%s6 + $0x6c] sm:$0xff]
  %v4434 = vld [vmem:[%s6 + $0x74] sm:$0xf]
  %v4435 = vld [vmem:[%s6 + $0x78] sm:$0xff]
  %v4436 = vld [vmem:[%s6 + $0x80] sm:$0xf]
  %v4437 = vld [vmem:[%s6 + $0x84] sm:$0xff]
  %v4438 = vld [vmem:[%s6 + $0x8c] sm:$0xf]
  %v4439 = vld [vmem:[%s6 + $0x90] sm:$0xff]
  %v4440 = vld [vmem:[%s6 + $0x98] sm:$0xf]
  %v4441 = vld [vmem:[%s6 + $0x9c] sm:$0xff]
  %v4442 = vld [vmem:[%s6 + $0xa4] sm:$0xf]
  %v4443 = vld [vmem:[%s6 + $0xa8] sm:$0xff]
  %v4444 = vld [vmem:[%s6 + $0xb0] sm:$0xf]
  %v4445 = vld [vmem:[%s6 + $0xb4] sm:$0xff]
  %v4446 = vld [vmem:[%s6 + $0xbc] sm:$0xf]
  %v4447 = vld [vmem:[%s8] sm:$0x7]
  %v4449 = vlaneseq
  %v4450 = vshrl.u32 %v4449, 7
  %v4451 = vsub.s32 0, %v4450
  %v4452 = vrot.slane %v4447, %v4451
  %v4453 = vlaneseq
  %v4454 = vshrl.u32 %v4453, 7
  %v4455 = vsub.s32 1, %v4454
  %v4456 = vrot.slane %v4447, %v4455
  %v4457 = vlaneseq
  %v4458 = vshrl.u32 %v4457, 7
  %v4459 = vsub.s32 2, %v4458
  %v4460 = vrot.slane %v4447, %v4459
  %v4496 = vunpack.c.l.b16 %v4415
  %v4497 = vunpack.c.h.b16 %v4415
  %v4498 = vunpack.c.l.b16 %v4416
  %v4499 = vunpack.c.l.b16 %v4417
  %v4500 = vunpack.c.h.b16 %v4417
  %v4501 = vunpack.c.l.b16 %v4418
  %v4502 = vunpack.c.l.b16 %v4419
  %v4503 = vunpack.c.h.b16 %v4419
  %v4504 = vunpack.c.l.b16 %v4420
  %v4505 = vunpack.c.l.b16 %v4421
  %v4506 = vunpack.c.h.b16 %v4421
  %v4507 = vunpack.c.l.b16 %v4422
  %v4508 = vunpack.c.l.b16 %v4423
  %v4509 = vunpack.c.h.b16 %v4423
  %v4510 = vunpack.c.l.b16 %v4424
  %v4511 = vunpack.c.l.b16 %v4425
  %v4512 = vunpack.c.h.b16 %v4425
  %v4513 = vunpack.c.l.b16 %v4426
  %v4514 = vunpack.c.l.b16 %v4427
  %v4515 = vunpack.c.h.b16 %v4427
  %v4516 = vunpack.c.l.b16 %v4428
  %v4517 = vunpack.c.l.b16 %v4429
  %v4518 = vunpack.c.h.b16 %v4429
  %v4519 = vunpack.c.l.b16 %v4430
  %v4520 = vunpack.c.l.b16 %v4431
  %v4521 = vunpack.c.h.b16 %v4431
  %v4522 = vunpack.c.l.b16 %v4432
  %v4523 = vunpack.c.l.b16 %v4433
  %v4524 = vunpack.c.h.b16 %v4433
  %v4525 = vunpack.c.l.b16 %v4434
  %v4526 = vunpack.c.l.b16 %v4435
  %v4527 = vunpack.c.h.b16 %v4435
  %v4528 = vunpack.c.l.b16 %v4436
  %v4529 = vunpack.c.l.b16 %v4437
  %v4530 = vunpack.c.h.b16 %v4437
  %v4531 = vunpack.c.l.b16 %v4438
  %v4532 = vunpack.c.l.b16 %v4439
  %v4533 = vunpack.c.h.b16 %v4439
  %v4534 = vunpack.c.l.b16 %v4440
  %v4535 = vunpack.c.l.b16 %v4441
  %v4536 = vunpack.c.h.b16 %v4441
  %v4537 = vunpack.c.l.b16 %v4442
  %v4538 = vunpack.c.l.b16 %v4443
  %v4539 = vunpack.c.h.b16 %v4443
  %v4540 = vunpack.c.l.b16 %v4444
  %v4541 = vunpack.c.l.b16 %v4445
  %v4542 = vunpack.c.h.b16 %v4445
  %v4543 = vunpack.c.l.b16 %v4446
  %v4544 = vpack.c.b16 %v4499, %v4496
  %v4545 = vpack.c.b16 %v4500, %v4497
  %v4546 = vpack.c.b16 %v4501, %v4498
  %v4547 = vpack.c.b16 %v4505, %v4502
  %v4548 = vpack.c.b16 %v4506, %v4503
  %v4549 = vpack.c.b16 %v4507, %v4504
  %v4550 = vpack.c.b16 %v4511, %v4508
  %v4551 = vpack.c.b16 %v4512, %v4509
  %v4552 = vpack.c.b16 %v4513, %v4510
  %v4553 = vpack.c.b16 %v4517, %v4514
  %v4554 = vpack.c.b16 %v4518, %v4515
  %v4555 = vpack.c.b16 %v4519, %v4516
  %v4556 = vpack.c.b16 %v4523, %v4520
  %v4557 = vpack.c.b16 %v4524, %v4521
  %v4558 = vpack.c.b16 %v4525, %v4522
  %v4559 = vpack.c.b16 %v4529, %v4526
  %v4560 = vpack.c.b16 %v4530, %v4527
  %v4561 = vpack.c.b16 %v4531, %v4528
  %v4562 = vpack.c.b16 %v4535, %v4532
  %v4563 = vpack.c.b16 %v4536, %v4533
  %v4564 = vpack.c.b16 %v4537, %v4534
  %v4565 = vpack.c.b16 %v4541, %v4538
  %v4566 = vpack.c.b16 %v4542, %v4539
  %v4567 = vpack.c.b16 %v4543, %v4540
  %4592 = vmatprep.subr.bf16.mxu0 %v4545
  %4593 = vmatpush1.bf16.msra.mxu0 %v4544
  %4594 = vmatprep.subr.bf16.mxu0 %v4548
  %4595 = vmatpush1.bf16.msra.mxu0 %v4547
  %4596 = vmatprep.subr.bf16.mxu0 %v4551
  %4597 = vmatpush1.bf16.msra.mxu0 %v4550
  %4598 = vmatprep.subr.bf16.mxu0 %v4554
  %4599 = vmatpush1.bf16.msra.mxu0 %v4553
  %4600 = vmatprep.subr.bf16.mxu0 %v4557
  %4601 = vmatpush1.bf16.msra.mxu0 %v4556
  %4602 = vmatprep.subr.bf16.mxu0 %v4560
  %4603 = vmatpush1.bf16.msra.mxu0 %v4559
  %4604 = vmatprep.subr.bf16.mxu0 %v4563
  %4605 = vmatpush1.bf16.msra.mxu0 %v4562
  %4606 = vmatprep.subr.bf16.mxu0 %v4566
  %4607 = vmatpush1.bf16.msra.mxu0 %v4565
  %4608 = vmatprep.subr.bf16.mxu0 0
  %4609 = vmatpush1.bf16.msra.mxu0 0
  %4610 = vmatprep.subr.bf16.mxu0 0
  %4611 = vmatpush1.bf16.msra.mxu0 0
  %4612 = vmatprep.subr.bf16.mxu0 0
  %4613 = vmatpush1.bf16.msra.mxu0 0
  %4614 = vmatprep.subr.bf16.mxu0 0
  %4615 = vmatpush1.bf16.msra.mxu0 0
  %4616 = vmatprep.subr.bf16.mxu0 0
  %4617 = vmatpush1.bf16.msra.mxu0 0
  %4618 = vmatprep.subr.bf16.mxu0 0
  %4619 = vmatpush1.bf16.msra.mxu0 0
  %4620 = vmatprep.subr.bf16.mxu0 0
  %4621 = vmatpush1.bf16.msra.mxu0 0
  %4622 = vmatprep.subr.bf16.mxu0 0
  %4623 = vmatpush1.bf16.msra.mxu0 0
  %4624 = vmatprep.mubr.bf16.mxu0 0
  %4625 = vmatmul.mubr.bf16.gmra.mrb[0].mxu0 %v4414
  %v4626 = vpop.f32.mrb[0].mxu0
  %v4627 = vadd.f32 %v4452, %v4626
  %v4628 = vpop.f32.mrb[0].mxu0
  %v4629 = vadd.f32 %v4456, %v4628
  %v4630 = vpop.f32.mrb[0].mxu0
  %v4631 = vpop.f32.mrb[0].mxu0
  %4632 = vdwg.mxu0
  %4633 = vmatprep.subr.bf16.mxu0 0
  %4634 = vmatpush1.bf16.msra.mxu0 %v4546
  %4635 = vmatprep.subr.bf16.mxu0 0
  %4636 = vmatpush1.bf16.msra.mxu0 %v4549
  %4637 = vmatprep.subr.bf16.mxu0 0
  %4638 = vmatpush1.bf16.msra.mxu0 %v4552
  %4639 = vmatprep.subr.bf16.mxu0 0
  %4640 = vmatpush1.bf16.msra.mxu0 %v4555
  %4641 = vmatprep.subr.bf16.mxu0 0
  %4642 = vmatpush1.bf16.msra.mxu0 %v4558
  %4643 = vmatprep.subr.bf16.mxu0 0
  %4644 = vmatpush1.bf16.msra.mxu0 %v4561
  %4645 = vmatprep.subr.bf16.mxu0 0
  %4646 = vmatpush1.bf16.msra.mxu0 %v4564
  %4647 = vmatprep.subr.bf16.mxu0 0
  %4648 = vmatpush1.bf16.msra.mxu0 %v4567
  %4649 = vmatprep.subr.bf16.mxu0 0
  %4650 = vmatpush1.bf16.msra.mxu0 0
  %4651 = vmatprep.subr.bf16.mxu0 0
  %4652 = vmatpush1.bf16.msra.mxu0 0
  %4653 = vmatprep.subr.bf16.mxu0 0
  %4654 = vmatpush1.bf16.msra.mxu0 0
  %4655 = vmatprep.subr.bf16.mxu0 0
  %4656 = vmatpush1.bf16.msra.mxu0 0
  %4657 = vmatprep.subr.bf16.mxu0 0
  %4658 = vmatpush1.bf16.msra.mxu0 0
  %4659 = vmatprep.subr.bf16.mxu0 0
  %4660 = vmatpush1.bf16.msra.mxu0 0
  %4661 = vmatprep.subr.bf16.mxu0 0
  %4662 = vmatpush1.bf16.msra.mxu0 0
  %4663 = vmatprep.subr.bf16.mxu0 0
  %4664 = vmatpush1.bf16.msra.mxu0 0
  %4665 = vmatprep.mubr.bf16.mxu0 0
  %4666 = vmatmul.mubr.bf16.gmra.mrb[0].mxu0 %v4414
  %v4667 = vpop.f32.mrb[0].mxu0
  %v4668 = vadd.f32 %v4460, %v4667
  %v4669 = vpop.f32.mrb[0].mxu0
  %v4670 = vpop.f32.mrb[0].mxu0
  %v4671 = vpop.f32.mrb[0].mxu0
  %4672 = vdwg.mxu0
  %v4673 = vadd.f32 %v4411, %v4627
  %v4674 = vmul.f32 %v4673, 0.5
  %v4675 = vtanh.pop %v4674
  %v4676 = vmul.f32 %v4675, 0.5
  %v4677 = vadd.f32 %v4676, 0.5
  %v4678 = vadd.f32 %v4412, %v4629
  %v4679 = vmul.f32 %v4678, 0.5
  %v4680 = vtanh.pop %v4679
  %v4681 = vmul.f32 %v4680, 0.5
  %v4682 = vadd.f32 %v4681, 0.5
  %v4683 = vmul.f32 %v4677, %v4668
  %v4684 = vadd.f32 %v4413, %v4683
  %v4685 = vtanh.pop %v4684
  %v4686 = vsub.f32 1.0, %v4682
  %v4687 = vmul.f32 %v4686, %v4685
  %v4688 = vmul.f32 %v4682, %v4409
  %v4689 = vadd.f32 %v4687, %v4688
  %4690 = vst [vmem:[#allocation3 + $0x28] sm:$0xff] %v4689
  %v4691 = vld [vmem:[#allocation2 + $0x90] sm:$0xff]
  %v4692 = vld [vmem:[#allocation2 + $0x98] sm:$0xff]
  %v4693 = vld [vmem:[#allocation2 + $0xa0] sm:$0xff]
  %v4694 = vpack.c.bf16 %v4689, %v4689
  %v4695 = vld [vmem:[%s6] sm:$0xff]
  %v4696 = vld [vmem:[%s6 + $0x8] sm:$0xf]
  %v4697 = vld [vmem:[%s6 + $0xc] sm:$0xff]
  %v4698 = vld [vmem:[%s6 + $0x14] sm:$0xf]
  %v4699 = vld [vmem:[%s6 + $0x18] sm:$0xff]
  %v4700 = vld [vmem:[%s6 + $0x20] sm:$0xf]
  %v4701 = vld [vmem:[%s6 + $0x24] sm:$0xff]
  %v4702 = vld [vmem:[%s6 + $0x2c] sm:$0xf]
  %v4703 = vld [vmem:[%s6 + $0x30] sm:$0xff]
  %v4704 = vld [vmem:[%s6 + $0x38] sm:$0xf]
  %v4705 = vld [vmem:[%s6 + $0x3c] sm:$0xff]
  %v4706 = vld [vmem:[%s6 + $0x44] sm:$0xf]
  %v4707 = vld [vmem:[%s6 + $0x48] sm:$0xff]
  %v4708 = vld [vmem:[%s6 + $0x50] sm:$0xf]
  %v4709 = vld [vmem:[%s6 + $0x54] sm:$0xff]
  %v4710 = vld [vmem:[%s6 + $0x5c] sm:$0xf]
  %v4711 = vld [vmem:[%s6 + $0x60] sm:$0xff]
  %v4712 = vld [vmem:[%s6 + $0x68] sm:$0xf]
  %v4713 = vld [vmem:[%s6 + $0x6c] sm:$0xff]
  %v4714 = vld [vmem:[%s6 + $0x74] sm:$0xf]
  %v4715 = vld [vmem:[%s6 + $0x78] sm:$0xff]
  %v4716 = vld [vmem:[%s6 + $0x80] sm:$0xf]
  %v4717 = vld [vmem:[%s6 + $0x84] sm:$0xff]
  %v4718 = vld [vmem:[%s6 + $0x8c] sm:$0xf]
  %v4719 = vld [vmem:[%s6 + $0x90] sm:$0xff]
  %v4720 = vld [vmem:[%s6 + $0x98] sm:$0xf]
  %v4721 = vld [vmem:[%s6 + $0x9c] sm:$0xff]
  %v4722 = vld [vmem:[%s6 + $0xa4] sm:$0xf]
  %v4723 = vld [vmem:[%s6 + $0xa8] sm:$0xff]
  %v4724 = vld [vmem:[%s6 + $0xb0] sm:$0xf]
  %v4725 = vld [vmem:[%s6 + $0xb4] sm:$0xff]
  %v4726 = vld [vmem:[%s6 + $0xbc] sm:$0xf]
  %v4727 = vld [vmem:[%s8] sm:$0x7]
  %v4729 = vlaneseq
  %v4730 = vshrl.u32 %v4729, 7
  %v4731 = vsub.s32 0, %v4730
  %v4732 = vrot.slane %v4727, %v4731
  %v4733 = vlaneseq
  %v4734 = vshrl.u32 %v4733, 7
  %v4735 = vsub.s32 1, %v4734
  %v4736 = vrot.slane %v4727, %v4735
  %v4737 = vlaneseq
  %v4738 = vshrl.u32 %v4737, 7
  %v4739 = vsub.s32 2, %v4738
  %v4740 = vrot.slane %v4727, %v4739
  %v4776 = vunpack.c.l.b16 %v4695
  %v4777 = vunpack.c.h.b16 %v4695
  %v4778 = vunpack.c.l.b16 %v4696
  %v4779 = vunpack.c.l.b16 %v4697
  %v4780 = vunpack.c.h.b16 %v4697
  %v4781 = vunpack.c.l.b16 %v4698
  %v4782 = vunpack.c.l.b16 %v4699
  %v4783 = vunpack.c.h.b16 %v4699
  %v4784 = vunpack.c.l.b16 %v4700
  %v4785 = vunpack.c.l.b16 %v4701
  %v4786 = vunpack.c.h.b16 %v4701
  %v4787 = vunpack.c.l.b16 %v4702
  %v4788 = vunpack.c.l.b16 %v4703
  %v4789 = vunpack.c.h.b16 %v4703
  %v4790 = vunpack.c.l.b16 %v4704
  %v4791 = vunpack.c.l.b16 %v4705
  %v4792 = vunpack.c.h.b16 %v4705
  %v4793 = vunpack.c.l.b16 %v4706
  %v4794 = vunpack.c.l.b16 %v4707
  %v4795 = vunpack.c.h.b16 %v4707
  %v4796 = vunpack.c.l.b16 %v4708
  %v4797 = vunpack.c.l.b16 %v4709
  %v4798 = vunpack.c.h.b16 %v4709
  %v4799 = vunpack.c.l.b16 %v4710
  %v4800 = vunpack.c.l.b16 %v4711
  %v4801 = vunpack.c.h.b16 %v4711
  %v4802 = vunpack.c.l.b16 %v4712
  %v4803 = vunpack.c.l.b16 %v4713
  %v4804 = vunpack.c.h.b16 %v4713
  %v4805 = vunpack.c.l.b16 %v4714
  %v4806 = vunpack.c.l.b16 %v4715
  %v4807 = vunpack.c.h.b16 %v4715
  %v4808 = vunpack.c.l.b16 %v4716
  %v4809 = vunpack.c.l.b16 %v4717
  %v4810 = vunpack.c.h.b16 %v4717
  %v4811 = vunpack.c.l.b16 %v4718
  %v4812 = vunpack.c.l.b16 %v4719
  %v4813 = vunpack.c.h.b16 %v4719
  %v4814 = vunpack.c.l.b16 %v4720
  %v4815 = vunpack.c.l.b16 %v4721
  %v4816 = vunpack.c.h.b16 %v4721
  %v4817 = vunpack.c.l.b16 %v4722
  %v4818 = vunpack.c.l.b16 %v4723
  %v4819 = vunpack.c.h.b16 %v4723
  %v4820 = vunpack.c.l.b16 %v4724
  %v4821 = vunpack.c.l.b16 %v4725
  %v4822 = vunpack.c.h.b16 %v4725
  %v4823 = vunpack.c.l.b16 %v4726
  %v4824 = vpack.c.b16 %v4779, %v4776
  %v4825 = vpack.c.b16 %v4780, %v4777
  %v4826 = vpack.c.b16 %v4781, %v4778
  %v4827 = vpack.c.b16 %v4785, %v4782
  %v4828 = vpack.c.b16 %v4786, %v4783
  %v4829 = vpack.c.b16 %v4787, %v4784
  %v4830 = vpack.c.b16 %v4791, %v4788
  %v4831 = vpack.c.b16 %v4792, %v4789
  %v4832 = vpack.c.b16 %v4793, %v4790
  %v4833 = vpack.c.b16 %v4797, %v4794
  %v4834 = vpack.c.b16 %v4798, %v4795
  %v4835 = vpack.c.b16 %v4799, %v4796
  %v4836 = vpack.c.b16 %v4803, %v4800
  %v4837 = vpack.c.b16 %v4804, %v4801
  %v4838 = vpack.c.b16 %v4805, %v4802
  %v4839 = vpack.c.b16 %v4809, %v4806
  %v4840 = vpack.c.b16 %v4810, %v4807
  %v4841 = vpack.c.b16 %v4811, %v4808
  %v4842 = vpack.c.b16 %v4815, %v4812
  %v4843 = vpack.c.b16 %v4816, %v4813
  %v4844 = vpack.c.b16 %v4817, %v4814
  %v4845 = vpack.c.b16 %v4821, %v4818
  %v4846 = vpack.c.b16 %v4822, %v4819
  %v4847 = vpack.c.b16 %v4823, %v4820
  %4872 = vmatprep.subr.bf16.mxu0 %v4825
  %4873 = vmatpush1.bf16.msra.mxu0 %v4824
  %4874 = vmatprep.subr.bf16.mxu0 %v4828
  %4875 = vmatpush1.bf16.msra.mxu0 %v4827
  %4876 = vmatprep.subr.bf16.mxu0 %v4831
  %4877 = vmatpush1.bf16.msra.mxu0 %v4830
  %4878 = vmatprep.subr.bf16.mxu0 %v4834
  %4879 = vmatpush1.bf16.msra.mxu0 %v4833
  %4880 = vmatprep.subr.bf16.mxu0 %v4837
  %4881 = vmatpush1.bf16.msra.mxu0 %v4836
  %4882 = vmatprep.subr.bf16.mxu0 %v4840
  %4883 = vmatpush1.bf16.msra.mxu0 %v4839
  %4884 = vmatprep.subr.bf16.mxu0 %v4843
  %4885 = vmatpush1.bf16.msra.mxu0 %v4842
  %4886 = vmatprep.subr.bf16.mxu0 %v4846
  %4887 = vmatpush1.bf16.msra.mxu0 %v4845
  %4888 = vmatprep.subr.bf16.mxu0 0
  %4889 = vmatpush1.bf16.msra.mxu0 0
  %4890 = vmatprep.subr.bf16.mxu0 0
  %4891 = vmatpush1.bf16.msra.mxu0 0
  %4892 = vmatprep.subr.bf16.mxu0 0
  %4893 = vmatpush1.bf16.msra.mxu0 0
  %4894 = vmatprep.subr.bf16.mxu0 0
  %4895 = vmatpush1.bf16.msra.mxu0 0
  %4896 = vmatprep.subr.bf16.mxu0 0
  %4897 = vmatpush1.bf16.msra.mxu0 0
  %4898 = vmatprep.subr.bf16.mxu0 0
  %4899 = vmatpush1.bf16.msra.mxu0 0
  %4900 = vmatprep.subr.bf16.mxu0 0
  %4901 = vmatpush1.bf16.msra.mxu0 0
  %4902 = vmatprep.subr.bf16.mxu0 0
  %4903 = vmatpush1.bf16.msra.mxu0 0
  %4904 = vmatprep.mubr.bf16.mxu0 0
  %4905 = vmatmul.mubr.bf16.gmra.mrb[0].mxu0 %v4694
  %v4906 = vpop.f32.mrb[0].mxu0
  %v4907 = vadd.f32 %v4732, %v4906
  %v4908 = vpop.f32.mrb[0].mxu0
  %v4909 = vadd.f32 %v4736, %v4908
  %v4910 = vpop.f32.mrb[0].mxu0
  %v4911 = vpop.f32.mrb[0].mxu0
  %4912 = vdwg.mxu0
  %4913 = vmatprep.subr.bf16.mxu0 0
  %4914 = vmatpush1.bf16.msra.mxu0 %v4826
  %4915 = vmatprep.subr.bf16.mxu0 0
  %4916 = vmatpush1.bf16.msra.mxu0 %v4829
  %4917 = vmatprep.subr.bf16.mxu0 0
  %4918 = vmatpush1.bf16.msra.mxu0 %v4832
  %4919 = vmatprep.subr.bf16.mxu0 0
  %4920 = vmatpush1.bf16.msra.mxu0 %v4835
  %4921 = vmatprep.subr.bf16.mxu0 0
  %4922 = vmatpush1.bf16.msra.mxu0 %v4838
  %4923 = vmatprep.subr.bf16.mxu0 0
  %4924 = vmatpush1.bf16.msra.mxu0 %v4841
  %4925 = vmatprep.subr.bf16.mxu0 0
  %4926 = vmatpush1.bf16.msra.mxu0 %v4844
  %4927 = vmatprep.subr.bf16.mxu0 0
  %4928 = vmatpush1.bf16.msra.mxu0 %v4847
  %4929 = vmatprep.subr.bf16.mxu0 0
  %4930 = vmatpush1.bf16.msra.mxu0 0
  %4931 = vmatprep.subr.bf16.mxu0 0
  %4932 = vmatpush1.bf16.msra.mxu0 0
  %4933 = vmatprep.subr.bf16.mxu0 0
  %4934 = vmatpush1.bf16.msra.mxu0 0
  %4935 = vmatprep.subr.bf16.mxu0 0
  %4936 = vmatpush1.bf16.msra.mxu0 0
  %4937 = vmatprep.subr.bf16.mxu0 0
  %4938 = vmatpush1.bf16.msra.mxu0 0
  %4939 = vmatprep.subr.bf16.mxu0 0
  %4940 = vmatpush1.bf16.msra.mxu0 0
  %4941 = vmatprep.subr.bf16.mxu0 0
  %4942 = vmatpush1.bf16.msra.mxu0 0
  %4943 = vmatprep.subr.bf16.mxu0 0
  %4944 = vmatpush1.bf16.msra.mxu0 0
  %4945 = vmatprep.mubr.bf16.mxu0 0
  %4946 = vmatmul.mubr.bf16.gmra.mrb[0].mxu0 %v4694
  %v4947 = vpop.f32.mrb[0].mxu0
  %v4948 = vadd.f32 %v4740, %v4947
  %v4949 = vpop.f32.mrb[0].mxu0
  %v4950 = vpop.f32.mrb[0].mxu0
  %v4951 = vpop.f32.mrb[0].mxu0
  %4952 = vdwg.mxu0
  %v4953 = vadd.f32 %v4691, %v4907
  %v4954 = vmul.f32 %v4953, 0.5
  %v4955 = vtanh.pop %v4954
  %v4956 = vmul.f32 %v4955, 0.5
  %v4957 = vadd.f32 %v4956, 0.5
  %v4958 = vadd.f32 %v4692, %v4909
  %v4959 = vmul.f32 %v4958, 0.5
  %v4960 = vtanh.pop %v4959
  %v4961 = vmul.f32 %v4960, 0.5
  %v4962 = vadd.f32 %v4961, 0.5
  %v4963 = vmul.f32 %v4957, %v4948
  %v4964 = vadd.f32 %v4693, %v4963
  %v4965 = vtanh.pop %v4964
  %v4966 = vsub.f32 1.0, %v4962
  %v4967 = vmul.f32 %v4966, %v4965
  %v4968 = vmul.f32 %v4962, %v4689
  %v4969 = vadd.f32 %v4967, %v4968
  %4970 = vst [vmem:[#allocation3 + $0x30] sm:$0xff] %v4969
  %v4971 = vld [vmem:[#allocation2 + $0xa8] sm:$0xff]
  %v4972 = vld [vmem:[#allocation2 + $0xb0] sm:$0xff]
  %v4973 = vld [vmem:[#allocation2 + $0xb8] sm:$0xff]
  %v4974 = vpack.c.bf16 %v4969, %v4969
  %v4975 = vld [vmem:[%s6] sm:$0xff]
  %v4976 = vld [vmem:[%s6 + $0x8] sm:$0xf]
  %v4977 = vld [vmem:[%s6 + $0xc] sm:$0xff]
  %v4978 = vld [vmem:[%s6 + $0x14] sm:$0xf]
  %v4979 = vld [vmem:[%s6 + $0x18] sm:$0xff]
  %v4980 = vld [vmem:[%s6 + $0x20] sm:$0xf]
  %v4981 = vld [vmem:[%s6 + $0x24] sm:$0xff]
  %v4982 = vld [vmem:[%s6 + $0x2c] sm:$0xf]
  %v4983 = vld [vmem:[%s6 + $0x30] sm:$0xff]
  %v4984 = vld [vmem:[%s6 + $0x38] sm:$0xf]
  %v4985 = vld [vmem:[%s6 + $0x3c] sm:$0xff]
  %v4986 = vld [vmem:[%s6 + $0x44] sm:$0xf]
  %v4987 = vld [vmem:[%s6 + $0x48] sm:$0xff]
  %v4988 = vld [vmem:[%s6 + $0x50] sm:$0xf]
  %v4989 = vld [vmem:[%s6 + $0x54] sm:$0xff]
  %v4990 = vld [vmem:[%s6 + $0x5c] sm:$0xf]
  %v4991 = vld [vmem:[%s6 + $0x60] sm:$0xff]
  %v4992 = vld [vmem:[%s6 + $0x68] sm:$0xf]
  %v4993 = vld [vmem:[%s6 + $0x6c] sm:$0xff]
  %v4994 = vld [vmem:[%s6 + $0x74] sm:$0xf]
  %v4995 = vld [vmem:[%s6 + $0x78] sm:$0xff]
  %v4996 = vld [vmem:[%s6 + $0x80] sm:$0xf]
  %v4997 = vld [vmem:[%s6 + $0x84] sm:$0xff]
  %v4998 = vld [vmem:[%s6 + $0x8c] sm:$0xf]
  %v4999 = vld [vmem:[%s6 + $0x90] sm:$0xff]
  %v5000 = vld [vmem:[%s6 + $0x98] sm:$0xf]
  %v5001 = vld [vmem:[%s6 + $0x9c] sm:$0xff]
  %v5002 = vld [vmem:[%s6 + $0xa4] sm:$0xf]
  %v5003 = vld [vmem:[%s6 + $0xa8] sm:$0xff]
  %v5004 = vld [vmem:[%s6 + $0xb0] sm:$0xf]
  %v5005 = vld [vmem:[%s6 + $0xb4] sm:$0xff]
  %v5006 = vld [vmem:[%s6 + $0xbc] sm:$0xf]
  %v5007 = vld [vmem:[%s8] sm:$0x7]
  %v5009 = vlaneseq
  %v5010 = vshrl.u32 %v5009, 7
  %v5011 = vsub.s32 0, %v5010
  %v5012 = vrot.slane %v5007, %v5011
  %v5013 = vlaneseq
  %v5014 = vshrl.u32 %v5013, 7
  %v5015 = vsub.s32 1, %v5014
  %v5016 = vrot.slane %v5007, %v5015
  %v5017 = vlaneseq
  %v5018 = vshrl.u32 %v5017, 7
  %v5019 = vsub.s32 2, %v5018
  %v5020 = vrot.slane %v5007, %v5019
  %v5056 = vunpack.c.l.b16 %v4975
  %v5057 = vunpack.c.h.b16 %v4975
  %v5058 = vunpack.c.l.b16 %v4976
  %v5059 = vunpack.c.l.b16 %v4977
  %v5060 = vunpack.c.h.b16 %v4977
  %v5061 = vunpack.c.l.b16 %v4978
  %v5062 = vunpack.c.l.b16 %v4979
  %v5063 = vunpack.c.h.b16 %v4979
  %v5064 = vunpack.c.l.b16 %v4980
  %v5065 = vunpack.c.l.b16 %v4981
  %v5066 = vunpack.c.h.b16 %v4981
  %v5067 = vunpack.c.l.b16 %v4982
  %v5068 = vunpack.c.l.b16 %v4983
  %v5069 = vunpack.c.h.b16 %v4983
  %v5070 = vunpack.c.l.b16 %v4984
  %v5071 = vunpack.c.l.b16 %v4985
  %v5072 = vunpack.c.h.b16 %v4985
  %v5073 = vunpack.c.l.b16 %v4986
  %v5074 = vunpack.c.l.b16 %v4987
  %v5075 = vunpack.c.h.b16 %v4987
  %v5076 = vunpack.c.l.b16 %v4988
  %v5077 = vunpack.c.l.b16 %v4989
  %v5078 = vunpack.c.h.b16 %v4989
  %v5079 = vunpack.c.l.b16 %v4990
  %v5080 = vunpack.c.l.b16 %v4991
  %v5081 = vunpack.c.h.b16 %v4991
  %v5082 = vunpack.c.l.b16 %v4992
  %v5083 = vunpack.c.l.b16 %v4993
  %v5084 = vunpack.c.h.b16 %v4993
  %v5085 = vunpack.c.l.b16 %v4994
  %v5086 = vunpack.c.l.b16 %v4995
  %v5087 = vunpack.c.h.b16 %v4995
  %v5088 = vunpack.c.l.b16 %v4996
  %v5089 = vunpack.c.l.b16 %v4997
  %v5090 = vunpack.c.h.b16 %v4997
  %v5091 = vunpack.c.l.b16 %v4998
  %v5092 = vunpack.c.l.b16 %v4999
  %v5093 = vunpack.c.h.b16 %v4999
  %v5094 = vunpack.c.l.b16 %v5000
  %v5095 = vunpack.c.l.b16 %v5001
  %v5096 = vunpack.c.h.b16 %v5001
  %v5097 = vunpack.c.l.b16 %v5002
  %v5098 = vunpack.c.l.b16 %v5003
  %v5099 = vunpack.c.h.b16 %v5003
  %v5100 = vunpack.c.l.b16 %v5004
  %v5101 = vunpack.c.l.b16 %v5005
  %v5102 = vunpack.c.h.b16 %v5005
  %v5103 = vunpack.c.l.b16 %v5006
  %v5104 = vpack.c.b16 %v5059, %v5056
  %v5105 = vpack.c.b16 %v5060, %v5057
  %v5106 = vpack.c.b16 %v5061, %v5058
  %v5107 = vpack.c.b16 %v5065, %v5062
  %v5108 = vpack.c.b16 %v5066, %v5063
  %v5109 = vpack.c.b16 %v5067, %v5064
  %v5110 = vpack.c.b16 %v5071, %v5068
  %v5111 = vpack.c.b16 %v5072, %v5069
  %v5112 = vpack.c.b16 %v5073, %v5070
  %v5113 = vpack.c.b16 %v5077, %v5074
  %v5114 = vpack.c.b16 %v5078, %v5075
  %v5115 = vpack.c.b16 %v5079, %v5076
  %v5116 = vpack.c.b16 %v5083, %v5080
  %v5117 = vpack.c.b16 %v5084, %v5081
  %v5118 = vpack.c.b16 %v5085, %v5082
  %v5119 = vpack.c.b16 %v5089, %v5086
  %v5120 = vpack.c.b16 %v5090, %v5087
  %v5121 = vpack.c.b16 %v5091, %v5088
  %v5122 = vpack.c.b16 %v5095, %v5092
  %v5123 = vpack.c.b16 %v5096, %v5093
  %v5124 = vpack.c.b16 %v5097, %v5094
  %v5125 = vpack.c.b16 %v5101, %v5098
  %v5126 = vpack.c.b16 %v5102, %v5099
  %v5127 = vpack.c.b16 %v5103, %v5100
  %5152 = vmatprep.subr.bf16.mxu0 %v5105
  %5153 = vmatpush1.bf16.msra.mxu0 %v5104
  %5154 = vmatprep.subr.bf16.mxu0 %v5108
  %5155 = vmatpush1.bf16.msra.mxu0 %v5107
  %5156 = vmatprep.subr.bf16.mxu0 %v5111
  %5157 = vmatpush1.bf16.msra.mxu0 %v5110
  %5158 = vmatprep.subr.bf16.mxu0 %v5114
  %5159 = vmatpush1.bf16.msra.mxu0 %v5113
  %5160 = vmatprep.subr.bf16.mxu0 %v5117
  %5161 = vmatpush1.bf16.msra.mxu0 %v5116
  %5162 = vmatprep.subr.bf16.mxu0 %v5120
  %5163 = vmatpush1.bf16.msra.mxu0 %v5119
  %5164 = vmatprep.subr.bf16.mxu0 %v5123
  %5165 = vmatpush1.bf16.msra.mxu0 %v5122
  %5166 = vmatprep.subr.bf16.mxu0 %v5126
  %5167 = vmatpush1.bf16.msra.mxu0 %v5125
  %5168 = vmatprep.subr.bf16.mxu0 0
  %5169 = vmatpush1.bf16.msra.mxu0 0
  %5170 = vmatprep.subr.bf16.mxu0 0
  %5171 = vmatpush1.bf16.msra.mxu0 0
  %5172 = vmatprep.subr.bf16.mxu0 0
  %5173 = vmatpush1.bf16.msra.mxu0 0
  %5174 = vmatprep.subr.bf16.mxu0 0
  %5175 = vmatpush1.bf16.msra.mxu0 0
  %5176 = vmatprep.subr.bf16.mxu0 0
  %5177 = vmatpush1.bf16.msra.mxu0 0
  %5178 = vmatprep.subr.bf16.mxu0 0
  %5179 = vmatpush1.bf16.msra.mxu0 0
  %5180 = vmatprep.subr.bf16.mxu0 0
  %5181 = vmatpush1.bf16.msra.mxu0 0
  %5182 = vmatprep.subr.bf16.mxu0 0
  %5183 = vmatpush1.bf16.msra.mxu0 0
  %5184 = vmatprep.mubr.bf16.mxu0 0
  %5185 = vmatmul.mubr.bf16.gmra.mrb[0].mxu0 %v4974
  %v5186 = vpop.f32.mrb[0].mxu0
  %v5187 = vadd.f32 %v5012, %v5186
  %v5188 = vpop.f32.mrb[0].mxu0
  %v5189 = vadd.f32 %v5016, %v5188
  %v5190 = vpop.f32.mrb[0].mxu0
  %v5191 = vpop.f32.mrb[0].mxu0
  %5192 = vdwg.mxu0
  %5193 = vmatprep.subr.bf16.mxu0 0
  %5194 = vmatpush1.bf16.msra.mxu0 %v5106
  %5195 = vmatprep.subr.bf16.mxu0 0
  %5196 = vmatpush1.bf16.msra.mxu0 %v5109
  %5197 = vmatprep.subr.bf16.mxu0 0
  %5198 = vmatpush1.bf16.msra.mxu0 %v5112
  %5199 = vmatprep.subr.bf16.mxu0 0
  %5200 = vmatpush1.bf16.msra.mxu0 %v5115
  %5201 = vmatprep.subr.bf16.mxu0 0
  %5202 = vmatpush1.bf16.msra.mxu0 %v5118
  %5203 = vmatprep.subr.bf16.mxu0 0
  %5204 = vmatpush1.bf16.msra.mxu0 %v5121
  %5205 = vmatprep.subr.bf16.mxu0 0
  %5206 = vmatpush1.bf16.msra.mxu0 %v5124
  %5207 = vmatprep.subr.bf16.mxu0 0
  %5208 = vmatpush1.bf16.msra.mxu0 %v5127
  %5209 = vmatprep.subr.bf16.mxu0 0
  %5210 = vmatpush1.bf16.msra.mxu0 0
  %5211 = vmatprep.subr.bf16.mxu0 0
  %5212 = vmatpush1.bf16.msra.mxu0 0
  %5213 = vmatprep.subr.bf16.mxu0 0
  %5214 = vmatpush1.bf16.msra.mxu0 0
  %5215 = vmatprep.subr.bf16.mxu0 0
  %5216 = vmatpush1.bf16.msra.mxu0 0
  %5217 = vmatprep.subr.bf16.mxu0 0
  %5218 = vmatpush1.bf16.msra.mxu0 0
  %5219 = vmatprep.subr.bf16.mxu0 0
  %5220 = vmatpush1.bf16.msra.mxu0 0
  %5221 = vmatprep.subr.bf16.mxu0 0
  %5222 = vmatpush1.bf16.msra.mxu0 0
  %5223 = vmatprep.subr.bf16.mxu0 0
  %5224 = vmatpush1.bf16.msra.mxu0 0
  %5225 = vmatprep.mubr.bf16.mxu0 0
  %5226 = vmatmul.mubr.bf16.gmra.mrb[0].mxu0 %v4974
  %v5227 = vpop.f32.mrb[0].mxu0
  %v5228 = vadd.f32 %v5020, %v5227
  %v5229 = vpop.f32.mrb[0].mxu0
  %v5230 = vpop.f32.mrb[0].mxu0
  %v5231 = vpop.f32.mrb[0].mxu0
  %5232 = vdwg.mxu0
  %v5233 = vadd.f32 %v4971, %v5187
  %v5234 = vmul.f32 %v5233, 0.5
  %v5235 = vtanh.pop %v5234
  %v5236 = vmul.f32 %v5235, 0.5
  %v5237 = vadd.f32 %v5236, 0.5
  %v5238 = vadd.f32 %v4972, %v5189
  %v5239 = vmul.f32 %v5238, 0.5
  %v5240 = vtanh.pop %v5239
  %v5241 = vmul.f32 %v5240, 0.5
  %v5242 = vadd.f32 %v5241, 0.5
  %v5243 = vmul.f32 %v5237, %v5228
  %v5244 = vadd.f32 %v4973, %v5243
  %v5245 = vtanh.pop %v5244
  %v5246 = vsub.f32 1.0, %v5242
  %v5247 = vmul.f32 %v5246, %v5245
  %v5248 = vmul.f32 %v5242, %v4969
  %v5249 = vadd.f32 %v5247, %v5248
  %5250 = vst [vmem:[#allocation3 + $0x38] sm:$0xff] %v5249
  %v5251 = vld [vmem:[#allocation3] sm:$0xff]
  %v5252 = vld [vmem:[#allocation3 + $0x8] sm:$0xff]
  %v5253 = vld [vmem:[#allocation3 + $0x10] sm:$0xff]
  %v5254 = vld [vmem:[#allocation3 + $0x18] sm:$0xff]
  %v5255 = vld [vmem:[#allocation3 + $0x20] sm:$0xff]
  %v5256 = vld [vmem:[#allocation3 + $0x28] sm:$0xff]
  %v5257 = vld [vmem:[#allocation3 + $0x30] sm:$0xff]
  %v5258 = vld [vmem:[#allocation3 + $0x38] sm:$0xff]
  %v5259 = vpack.c.bf16 %v5252, %v5251
  %v5260 = vpack.c.bf16 %v5254, %v5253
  %v5261 = vpack.c.bf16 %v5256, %v5255
  %v5262 = vpack.c.bf16 %v5258, %v5257
  %v5263 = vld [vmem:[%s9] sm:$0xff]
  %v5264 = vld [vmem:[%s9 + $0x8] sm:$0xf]
  %v5265 = vld [vmem:[%s9 + $0xc] sm:$0xff]
  %v5266 = vld [vmem:[%s9 + $0x14] sm:$0xf]
  %v5267 = vld [vmem:[%s9 + $0x18] sm:$0xff]
  %v5268 = vld [vmem:[%s9 + $0x20] sm:$0xf]
  %v5269 = vld [vmem:[%s9 + $0x24] sm:$0xff]
  %v5270 = vld [vmem:[%s9 + $0x2c] sm:$0xf]
  %v5271 = vld [vmem:[%s9 + $0x30] sm:$0xff]
  %v5272 = vld [vmem:[%s9 + $0x38] sm:$0xf]
  %v5273 = vld [vmem:[%s9 + $0x3c] sm:$0xff]
  %v5274 = vld [vmem:[%s9 + $0x44] sm:$0xf]
  %v5275 = vld [vmem:[%s9 + $0x48] sm:$0xff]
  %v5276 = vld [vmem:[%s9 + $0x50] sm:$0xf]
  %v5277 = vld [vmem:[%s9 + $0x54] sm:$0xff]
  %v5278 = vld [vmem:[%s9 + $0x5c] sm:$0xf]
  %v5279 = vld [vmem:[%s9 + $0x60] sm:$0xff]
  %v5280 = vld [vmem:[%s9 + $0x68] sm:$0xf]
  %v5281 = vld [vmem:[%s9 + $0x6c] sm:$0xff]
  %v5282 = vld [vmem:[%s9 + $0x74] sm:$0xf]
  %v5283 = vld [vmem:[%s9 + $0x78] sm:$0xff]
  %v5284 = vld [vmem:[%s9 + $0x80] sm:$0xf]
  %v5285 = vld [vmem:[%s9 + $0x84] sm:$0xff]
  %v5286 = vld [vmem:[%s9 + $0x8c] sm:$0xf]
  %v5287 = vld [vmem:[%s9 + $0x90] sm:$0xff]
  %v5288 = vld [vmem:[%s9 + $0x98] sm:$0xf]
  %v5289 = vld [vmem:[%s9 + $0x9c] sm:$0xff]
  %v5290 = vld [vmem:[%s9 + $0xa4] sm:$0xf]
  %v5291 = vld [vmem:[%s9 + $0xa8] sm:$0xff]
  %v5292 = vld [vmem:[%s9 + $0xb0] sm:$0xf]
  %v5293 = vld [vmem:[%s9 + $0xb4] sm:$0xff]
  %v5294 = vld [vmem:[%s9 + $0xbc] sm:$0xf]
  %v5295 = vld [vmem:[%s11] sm:$0x7]
  %v5297 = vlaneseq
  %v5298 = vshrl.u32 %v5297, 7
  %v5299 = vsub.s32 0, %v5298
  %v5300 = vrot.slane %v5295, %v5299
  %v5301 = vlaneseq
  %v5302 = vshrl.u32 %v5301, 7
  %v5303 = vsub.s32 1, %v5302
  %v5304 = vrot.slane %v5295, %v5303
  %v5305 = vlaneseq
  %v5306 = vshrl.u32 %v5305, 7
  %v5307 = vsub.s32 2, %v5306
  %v5308 = vrot.slane %v5295, %v5307
  %v5344 = vunpack.c.l.b16 %v5263
  %v5345 = vunpack.c.h.b16 %v5263
  %v5346 = vunpack.c.l.b16 %v5264
  %v5347 = vunpack.c.l.b16 %v5265
  %v5348 = vunpack.c.h.b16 %v5265
  %v5349 = vunpack.c.l.b16 %v5266
  %v5350 = vunpack.c.l.b16 %v5267
  %v5351 = vunpack.c.h.b16 %v5267
  %v5352 = vunpack.c.l.b16 %v5268
  %v5353 = vunpack.c.l.b16 %v5269
  %v5354 = vunpack.c.h.b16 %v5269
  %v5355 = vunpack.c.l.b16 %v5270
  %v5356 = vunpack.c.l.b16 %v5271
  %v5357 = vunpack.c.h.b16 %v5271
  %v5358 = vunpack.c.l.b16 %v5272
  %v5359 = vunpack.c.l.b16 %v5273
  %v5360 = vunpack.c.h.b16 %v5273
  %v5361 = vunpack.c.l.b16 %v5274
  %v5362 = vunpack.c.l.b16 %v5275
  %v5363 = vunpack.c.h.b16 %v5275
  %v5364 = vunpack.c.l.b16 %v5276
  %v5365 = vunpack.c.l.b16 %v5277
  %v5366 = vunpack.c.h.b16 %v5277
  %v5367 = vunpack.c.l.b16 %v5278
  %v5368 = vunpack.c.l.b16 %v5279
  %v5369 = vunpack.c.h.b16 %v5279
  %v5370 = vunpack.c.l.b16 %v5280
  %v5371 = vunpack.c.l.b16 %v5281
  %v5372 = vunpack.c.h.b16 %v5281
  %v5373 = vunpack.c.l.b16 %v5282
  %v5374 = vunpack.c.l.b16 %v5283
  %v5375 = vunpack.c.h.b16 %v5283
  %v5376 = vunpack.c.l.b16 %v5284
  %v5377 = vunpack.c.l.b16 %v5285
  %v5378 = vunpack.c.h.b16 %v5285
  %v5379 = vunpack.c.l.b16 %v5286
  %v5380 = vunpack.c.l.b16 %v5287
  %v5381 = vunpack.c.h.b16 %v5287
  %v5382 = vunpack.c.l.b16 %v5288
  %v5383 = vunpack.c.l.b16 %v5289
  %v5384 = vunpack.c.h.b16 %v5289
  %v5385 = vunpack.c.l.b16 %v5290
  %v5386 = vunpack.c.l.b16 %v5291
  %v5387 = vunpack.c.h.b16 %v5291
  %v5388 = vunpack.c.l.b16 %v5292
  %v5389 = vunpack.c.l.b16 %v5293
  %v5390 = vunpack.c.h.b16 %v5293
  %v5391 = vunpack.c.l.b16 %v5294
  %v5392 = vpack.c.b16 %v5347, %v5344
  %v5393 = vpack.c.b16 %v5348, %v5345
  %v5394 = vpack.c.b16 %v5349, %v5346
  %v5395 = vpack.c.b16 %v5353, %v5350
  %v5396 = vpack.c.b16 %v5354, %v5351
  %v5397 = vpack.c.b16 %v5355, %v5352
  %v5398 = vpack.c.b16 %v5359, %v5356
  %v5399 = vpack.c.b16 %v5360, %v5357
  %v5400 = vpack.c.b16 %v5361, %v5358
  %v5401 = vpack.c.b16 %v5365, %v5362
  %v5402 = vpack.c.b16 %v5366, %v5363
  %v5403 = vpack.c.b16 %v5367, %v5364
  %v5404 = vpack.c.b16 %v5371, %v5368
  %v5405 = vpack.c.b16 %v5372, %v5369
  %v5406 = vpack.c.b16 %v5373, %v5370
  %v5407 = vpack.c.b16 %v5377, %v5374
  %v5408 = vpack.c.b16 %v5378, %v5375
  %v5409 = vpack.c.b16 %v5379, %v5376
  %v5410 = vpack.c.b16 %v5383, %v5380
  %v5411 = vpack.c.b16 %v5384, %v5381
  %v5412 = vpack.c.b16 %v5385, %v5382
  %v5413 = vpack.c.b16 %v5389, %v5386
  %v5414 = vpack.c.b16 %v5390, %v5387
  %v5415 = vpack.c.b16 %v5391, %v5388
  %5440 = vmatprep.subr.bf16.mxu0 %v5393
  %5441 = vmatpush1.bf16.msra.mxu0 %v5392
  %5442 = vmatprep.subr.bf16.mxu0 %v5396
  %5443 = vmatpush1.bf16.msra.mxu0 %v5395
  %5444 = vmatprep.subr.bf16.mxu0 %v5399
  %5445 = vmatpush1.bf16.msra.mxu0 %v5398
  %5446 = vmatprep.subr.bf16.mxu0 %v5402
  %5447 = vmatpush1.bf16.msra.mxu0 %v5401
  %5448 = vmatprep.subr.bf16.mxu0 %v5405
  %5449 = vmatpush1.bf16.msra.mxu0 %v5404
  %5450 = vmatprep.subr.bf16.mxu0 %v5408
  %5451 = vmatpush1.bf16.msra.mxu0 %v5407
  %5452 = vmatprep.subr.bf16.mxu0 %v5411
  %5453 = vmatpush1.bf16.msra.mxu0 %v5410
  %5454 = vmatprep.subr.bf16.mxu0 %v5414
  %5455 = vmatpush1.bf16.msra.mxu0 %v5413
  %5456 = vmatprep.subr.bf16.mxu0 0
  %5457 = vmatpush1.bf16.msra.mxu0 0
  %5458 = vmatprep.subr.bf16.mxu0 0
  %5459 = vmatpush1.bf16.msra.mxu0 0
  %5460 = vmatprep.subr.bf16.mxu0 0
  %5461 = vmatpush1.bf16.msra.mxu0 0
  %5462 = vmatprep.subr.bf16.mxu0 0
  %5463 = vmatpush1.bf16.msra.mxu0 0
  %5464 = vmatprep.subr.bf16.mxu0 0
  %5465 = vmatpush1.bf16.msra.mxu0 0
  %5466 = vmatprep.subr.bf16.mxu0 0
  %5467 = vmatpush1.bf16.msra.mxu0 0
  %5468 = vmatprep.subr.bf16.mxu0 0
  %5469 = vmatpush1.bf16.msra.mxu0 0
  %5470 = vmatprep.subr.bf16.mxu0 0
  %5471 = vmatpush1.bf16.msra.mxu0 0
  %5472 = vmatprep.mubr.bf16.mxu0 0
  %5473 = vmatmul.mubr.bf16.gmra.mrb[0].mxu0 %v5259
  %v5474 = vpop.f32.mrb[0].mxu0
  %v5475 = vadd.f32 %v5300, %v5474
  %v5476 = vpop.f32.mrb[0].mxu0
  %v5477 = vadd.f32 %v5304, %v5476
  %v5478 = vpop.f32.mrb[0].mxu0
  %v5479 = vadd.f32 %v5300, %v5478
  %v5480 = vpop.f32.mrb[0].mxu0
  %v5481 = vadd.f32 %v5304, %v5480
  %5482 = vmatprep.mubr.bf16.mxu0 0
  %5483 = vmatmul.mubr.bf16.gmra.mrb[0].mxu0 %v5260
  %v5484 = vpop.f32.mrb[0].mxu0
  %v5485 = vadd.f32 %v5300, %v5484
  %v5486 = vpop.f32.mrb[0].mxu0
  %v5487 = vadd.f32 %v5304, %v5486
  %v5488 = vpop.f32.mrb[0].mxu0
  %v5489 = vadd.f32 %v5300, %v5488
  %v5490 = vpop.f32.mrb[0].mxu0
  %v5491 = vadd.f32 %v5304, %v5490
  %5492 = vmatprep.mubr.bf16.mxu0 0
  %5493 = vmatmul.mubr.bf16.gmra.mrb[0].mxu0 %v5261
  %v5494 = vpop.f32.mrb[0].mxu0
  %v5495 = vadd.f32 %v5300, %v5494
  %v5496 = vpop.f32.mrb[0].mxu0
  %v5497 = vadd.f32 %v5304, %v5496
  %v5498 = vpop.f32.mrb[0].mxu0
  %v5499 = vadd.f32 %v5300, %v5498
  %v5500 = vpop.f32.mrb[0].mxu0
  %v5501 = vadd.f32 %v5304, %v5500
  %5502 = vmatprep.mubr.bf16.mxu0 0
  %5503 = vmatmul.mubr.bf16.gmra.mrb[0].mxu0 %v5262
  %v5504 = vpop.f32.mrb[0].mxu0
  %v5505 = vadd.f32 %v5300, %v5504
  %v5506 = vpop.f32.mrb[0].mxu0
  %v5507 = vadd.f32 %v5304, %v5506
  %v5508 = vpop.f32.mrb[0].mxu0
  %v5509 = vadd.f32 %v5300, %v5508
  %v5510 = vpop.f32.mrb[0].mxu0
  %v5511 = vadd.f32 %v5304, %v5510
  %5512 = vdwg.mxu0
  %5513 = vmatprep.subr.bf16.mxu0 0
  %5514 = vmatpush1.bf16.msra.mxu0 %v5394
  %5515 = vmatprep.subr.bf16.mxu0 0
  %5516 = vmatpush1.bf16.msra.mxu0 %v5397
  %5517 = vmatprep.subr.bf16.mxu0 0
  %5518 = vmatpush1.bf16.msra.mxu0 %v5400
  %5519 = vmatprep.subr.bf16.mxu0 0
  %5520 = vmatpush1.bf16.msra.mxu0 %v5403
  %5521 = vmatprep.subr.bf16.mxu0 0
  %5522 = vmatpush1.bf16.msra.mxu0 %v5406
  %5523 = vmatprep.subr.bf16.mxu0 0
  %5524 = vmatpush1.bf16.msra.mxu0 %v5409
  %5525 = vmatprep.subr.bf16.mxu0 0
  %5526 = vmatpush1.bf16.msra.mxu0 %v5412
  %5527 = vmatprep.subr.bf16.mxu0 0
  %5528 = vmatpush1.bf16.msra.mxu0 %v5415
  %5529 = vmatprep.subr.bf16.mxu0 0
  %5530 = vmatpush1.bf16.msra.mxu0 0
  %5531 = vmatprep.subr.bf16.mxu0 0
  %5532 = vmatpush1.bf16.msra.mxu0 0
  %5533 = vmatprep.subr.bf16.mxu0 0
  %5534 = vmatpush1.bf16.msra.mxu0 0
  %5535 = vmatprep.subr.bf16.mxu0 0
  %5536 = vmatpush1.bf16.msra.mxu0 0
  %5537 = vmatprep.subr.bf16.mxu0 0
  %5538 = vmatpush1.bf16.msra.mxu0 0
  %5539 = vmatprep.subr.bf16.mxu0 0
  %5540 = vmatpush1.bf16.msra.mxu0 0
  %5541 = vmatprep.subr.bf16.mxu0 0
  %5542 = vmatpush1.bf16.msra.mxu0 0
  %5543 = vmatprep.subr.bf16.mxu0 0
  %5544 = vmatpush1.bf16.msra.mxu0 0
  %5545 = vmatprep.mubr.bf16.mxu0 0
  %5546 = vmatmul.mubr.bf16.gmra.mrb[0].mxu0 %v5259
  %v5547 = vpop.f32.mrb[0].mxu0
  %v5548 = vadd.f32 %v5308, %v5547
  %v5549 = vpop.f32.mrb[0].mxu0
  %v5550 = vpop.f32.mrb[0].mxu0
  %v5551 = vadd.f32 %v5308, %v5550
  %v5552 = vpop.f32.mrb[0].mxu0
  %5553 = vmatprep.mubr.bf16.mxu0 0
  %5554 = vmatmul.mubr.bf16.gmra.mrb[0].mxu0 %v5260
  %v5555 = vpop.f32.mrb[0].mxu0
  %v5556 = vadd.f32 %v5308, %v5555
  %v5557 = vpop.f32.mrb[0].mxu0
  %v5558 = vpop.f32.mrb[0].mxu0
  %v5559 = vadd.f32 %v5308, %v5558
  %v5560 = vpop.f32.mrb[0].mxu0
  %5561 = vmatprep.mubr.bf16.mxu0 0
  %5562 = vmatmul.mubr.bf16.gmra.mrb[0].mxu0 %v5261
  %v5563 = vpop.f32.mrb[0].mxu0
  %v5564 = vadd.f32 %v5308, %v5563
  %v5565 = vpop.f32.mrb[0].mxu0
  %v5566 = vpop.f32.mrb[0].mxu0
  %v5567 = vadd.f32 %v5308, %v5566
  %v5568 = vpop.f32.mrb[0].mxu0
  %5569 = vmatprep.mubr.bf16.mxu0 0
  %5570 = vmatmul.mubr.bf16.gmra.mrb[0].mxu0 %v5262
  %v5571 = vpop.f32.mrb[0].mxu0
  %v5572 = vadd.f32 %v5308, %v5571
  %v5573 = vpop.f32.mrb[0].mxu0
  %v5574 = vpop.f32.mrb[0].mxu0
  %v5575 = vadd.f32 %v5308, %v5574
  %v5576 = vpop.f32.mrb[0].mxu0
  %5577 = vdwg.mxu0
  %5578 = vst [vmem:[#allocation2] sm:$0xff] %v5475
  %5579 = vst [vmem:[#allocation2 + $0x8] sm:$0xff] %v5477
  %5580 = vst [vmem:[#allocation2 + $0x10] sm:$0xff] %v5548
  %5581 = vst [vmem:[#allocation2 + $0x18] sm:$0xff] %v5479
  %5582 = vst [vmem:[#allocation2 + $0x20] sm:$0xff] %v5481
  %5583 = vst [vmem:[#allocation2 + $0x28] sm:$0xff] %v5551
  %5584 = vst [vmem:[#allocation2 + $0x30] sm:$0xff] %v5485
  %5585 = vst [vmem:[#allocation2 + $0x38] sm:$0xff] %v5487
  %5586 = vst [vmem:[#allocation2 + $0x40] sm:$0xff] %v5556
  %5587 = vst [vmem:[#allocation2 + $0x48] sm:$0xff] %v5489
  %5588 = vst [vmem:[#allocation2 + $0x50] sm:$0xff] %v5491
  %5589 = vst [vmem:[#allocation2 + $0x58] sm:$0xff] %v5559
  %5590 = vst [vmem:[#allocation2 + $0x60] sm:$0xff] %v5495
  %5591 = vst [vmem:[#allocation2 + $0x68] sm:$0xff] %v5497
  %5592 = vst [vmem:[#allocation2 + $0x70] sm:$0xff] %v5564
  %5593 = vst [vmem:[#allocation2 + $0x78] sm:$0xff] %v5499
  %5594 = vst [vmem:[#allocation2 + $0x80] sm:$0xff] %v5501
  %5595 = vst [vmem:[#allocation2 + $0x88] sm:$0xff] %v5567
  %5596 = vst [vmem:[#allocation2 + $0x90] sm:$0xff] %v5505
  %5597 = vst [vmem:[#allocation2 + $0x98] sm:$0xff] %v5507
  %5598 = vst [vmem:[#allocation2 + $0xa0] sm:$0xff] %v5572
  %5599 = vst [vmem:[#allocation2 + $0xa8] sm:$0xff] %v5509
  %5600 = vst [vmem:[#allocation2 + $0xb0] sm:$0xff] %v5511
  %5601 = vst [vmem:[#allocation2 + $0xb8] sm:$0xff] %v5575
  %v5602 = vld [vmem:[#allocation2] sm:$0xff]
  %v5603 = vld [vmem:[#allocation2 + $0x8] sm:$0xff]
  %v5604 = vld [vmem:[#allocation2 + $0x10] sm:$0xff]
  %v5605 = vld [vmem:[%s10] sm:$0xff]
  %v5606 = vld [vmem:[%s10 + $0x8] sm:$0xf]
  %v5607 = vld [vmem:[%s10 + $0xc] sm:$0xff]
  %v5608 = vld [vmem:[%s10 + $0x14] sm:$0xf]
  %v5609 = vld [vmem:[%s10 + $0x18] sm:$0xff]
  %v5610 = vld [vmem:[%s10 + $0x20] sm:$0xf]
  %v5611 = vld [vmem:[%s10 + $0x24] sm:$0xff]
  %v5612 = vld [vmem:[%s10 + $0x2c] sm:$0xf]
  %v5613 = vld [vmem:[%s10 + $0x30] sm:$0xff]
  %v5614 = vld [vmem:[%s10 + $0x38] sm:$0xf]
  %v5615 = vld [vmem:[%s10 + $0x3c] sm:$0xff]
  %v5616 = vld [vmem:[%s10 + $0x44] sm:$0xf]
  %v5617 = vld [vmem:[%s10 + $0x48] sm:$0xff]
  %v5618 = vld [vmem:[%s10 + $0x50] sm:$0xf]
  %v5619 = vld [vmem:[%s10 + $0x54] sm:$0xff]
  %v5620 = vld [vmem:[%s10 + $0x5c] sm:$0xf]
  %v5621 = vld [vmem:[%s10 + $0x60] sm:$0xff]
  %v5622 = vld [vmem:[%s10 + $0x68] sm:$0xf]
  %v5623 = vld [vmem:[%s10 + $0x6c] sm:$0xff]
  %v5624 = vld [vmem:[%s10 + $0x74] sm:$0xf]
  %v5625 = vld [vmem:[%s10 + $0x78] sm:$0xff]
  %v5626 = vld [vmem:[%s10 + $0x80] sm:$0xf]
  %v5627 = vld [vmem:[%s10 + $0x84] sm:$0xff]
  %v5628 = vld [vmem:[%s10 + $0x8c] sm:$0xf]
  %v5629 = vld [vmem:[%s10 + $0x90] sm:$0xff]
  %v5630 = vld [vmem:[%s10 + $0x98] sm:$0xf]
  %v5631 = vld [vmem:[%s10 + $0x9c] sm:$0xff]
  %v5632 = vld [vmem:[%s10 + $0xa4] sm:$0xf]
  %v5633 = vld [vmem:[%s10 + $0xa8] sm:$0xff]
  %v5634 = vld [vmem:[%s10 + $0xb0] sm:$0xf]
  %v5635 = vld [vmem:[%s10 + $0xb4] sm:$0xff]
  %v5636 = vld [vmem:[%s10 + $0xbc] sm:$0xf]
  %v5637 = vld [vmem:[%s12] sm:$0x7]
  %v5639 = vlaneseq
  %v5640 = vshrl.u32 %v5639, 7
  %v5641 = vsub.s32 0, %v5640
  %v5642 = vrot.slane %v5637, %v5641
  %v5643 = vlaneseq
  %v5644 = vshrl.u32 %v5643, 7
  %v5645 = vsub.s32 1, %v5644
  %v5646 = vrot.slane %v5637, %v5645
  %v5647 = vlaneseq
  %v5648 = vshrl.u32 %v5647, 7
  %v5649 = vsub.s32 2, %v5648
  %v5650 = vrot.slane %v5637, %v5649
  %v5686 = vunpack.c.l.b16 %v5605
  %v5687 = vunpack.c.h.b16 %v5605
  %v5688 = vunpack.c.l.b16 %v5606
  %v5689 = vunpack.c.l.b16 %v5607
  %v5690 = vunpack.c.h.b16 %v5607
  %v5691 = vunpack.c.l.b16 %v5608
  %v5692 = vunpack.c.l.b16 %v5609
  %v5693 = vunpack.c.h.b16 %v5609
  %v5694 = vunpack.c.l.b16 %v5610
  %v5695 = vunpack.c.l.b16 %v5611
  %v5696 = vunpack.c.h.b16 %v5611
  %v5697 = vunpack.c.l.b16 %v5612
  %v5698 = vunpack.c.l.b16 %v5613
  %v5699 = vunpack.c.h.b16 %v5613
  %v5700 = vunpack.c.l.b16 %v5614
  %v5701 = vunpack.c.l.b16 %v5615
  %v5702 = vunpack.c.h.b16 %v5615
  %v5703 = vunpack.c.l.b16 %v5616
  %v5704 = vunpack.c.l.b16 %v5617
  %v5705 = vunpack.c.h.b16 %v5617
  %v5706 = vunpack.c.l.b16 %v5618
  %v5707 = vunpack.c.l.b16 %v5619
  %v5708 = vunpack.c.h.b16 %v5619
  %v5709 = vunpack.c.l.b16 %v5620
  %v5710 = vunpack.c.l.b16 %v5621
  %v5711 = vunpack.c.h.b16 %v5621
  %v5712 = vunpack.c.l.b16 %v5622
  %v5713 = vunpack.c.l.b16 %v5623
  %v5714 = vunpack.c.h.b16 %v5623
  %v5715 = vunpack.c.l.b16 %v5624
  %v5716 = vunpack.c.l.b16 %v5625
  %v5717 = vunpack.c.h.b16 %v5625
  %v5718 = vunpack.c.l.b16 %v5626
  %v5719 = vunpack.c.l.b16 %v5627
  %v5720 = vunpack.c.h.b16 %v5627
  %v5721 = vunpack.c.l.b16 %v5628
  %v5722 = vunpack.c.l.b16 %v5629
  %v5723 = vunpack.c.h.b16 %v5629
  %v5724 = vunpack.c.l.b16 %v5630
  %v5725 = vunpack.c.l.b16 %v5631
  %v5726 = vunpack.c.h.b16 %v5631
  %v5727 = vunpack.c.l.b16 %v5632
  %v5728 = vunpack.c.l.b16 %v5633
  %v5729 = vunpack.c.h.b16 %v5633
  %v5730 = vunpack.c.l.b16 %v5634
  %v5731 = vunpack.c.l.b16 %v5635
  %v5732 = vunpack.c.h.b16 %v5635
  %v5733 = vunpack.c.l.b16 %v5636
  %v5734 = vpack.c.b16 %v5689, %v5686
  %v5735 = vpack.c.b16 %v5690, %v5687
  %v5736 = vpack.c.b16 %v5691, %v5688
  %v5737 = vpack.c.b16 %v5695, %v5692
  %v5738 = vpack.c.b16 %v5696, %v5693
  %v5739 = vpack.c.b16 %v5697, %v5694
  %v5740 = vpack.c.b16 %v5701, %v5698
  %v5741 = vpack.c.b16 %v5702, %v5699
  %v5742 = vpack.c.b16 %v5703, %v5700
  %v5743 = vpack.c.b16 %v5707, %v5704
  %v5744 = vpack.c.b16 %v5708, %v5705
  %v5745 = vpack.c.b16 %v5709, %v5706
  %v5746 = vpack.c.b16 %v5713, %v5710
  %v5747 = vpack.c.b16 %v5714, %v5711
  %v5748 = vpack.c.b16 %v5715, %v5712
  %v5749 = vpack.c.b16 %v5719, %v5716
  %v5750 = vpack.c.b16 %v5720, %v5717
  %v5751 = vpack.c.b16 %v5721, %v5718
  %v5752 = vpack.c.b16 %v5725, %v5722
  %v5753 = vpack.c.b16 %v5726, %v5723
  %v5754 = vpack.c.b16 %v5727, %v5724
  %v5755 = vpack.c.b16 %v5731, %v5728
  %v5756 = vpack.c.b16 %v5732, %v5729
  %v5757 = vpack.c.b16 %v5733, %v5730
  %5782 = vmatprep.subr.bf16.mxu0 %v5735
  %5783 = vmatpush1.bf16.msra.mxu0 %v5734
  %5784 = vmatprep.subr.bf16.mxu0 %v5738
  %5785 = vmatpush1.bf16.msra.mxu0 %v5737
  %5786 = vmatprep.subr.bf16.mxu0 %v5741
  %5787 = vmatpush1.bf16.msra.mxu0 %v5740
  %5788 = vmatprep.subr.bf16.mxu0 %v5744
  %5789 = vmatpush1.bf16.msra.mxu0 %v5743
  %5790 = vmatprep.subr.bf16.mxu0 %v5747
  %5791 = vmatpush1.bf16.msra.mxu0 %v5746
  %5792 = vmatprep.subr.bf16.mxu0 %v5750
  %5793 = vmatpush1.bf16.msra.mxu0 %v5749
  %5794 = vmatprep.subr.bf16.mxu0 %v5753
  %5795 = vmatpush1.bf16.msra.mxu0 %v5752
  %5796 = vmatprep.subr.bf16.mxu0 %v5756
  %5797 = vmatpush1.bf16.msra.mxu0 %v5755
  %5798 = vmatprep.subr.bf16.mxu0 0
  %5799 = vmatpush1.bf16.msra.mxu0 0
  %5800 = vmatprep.subr.bf16.mxu0 0
  %5801 = vmatpush1.bf16.msra.mxu0 0
  %5802 = vmatprep.subr.bf16.mxu0 0
  %5803 = vmatpush1.bf16.msra.mxu0 0
  %5804 = vmatprep.subr.bf16.mxu0 0
  %5805 = vmatpush1.bf16.msra.mxu0 0
  %5806 = vmatprep.subr.bf16.mxu0 0
  %5807 = vmatpush1.bf16.msra.mxu0 0
  %5808 = vmatprep.subr.bf16.mxu0 0
  %5809 = vmatpush1.bf16.msra.mxu0 0
  %5810 = vmatprep.subr.bf16.mxu0 0
  %5811 = vmatpush1.bf16.msra.mxu0 0
  %5812 = vmatprep.subr.bf16.mxu0 0
  %5813 = vmatpush1.bf16.msra.mxu0 0
  %5814 = vmatprep.mubr.bf16.mxu0 0
  %5815 = vmatmul.mubr.bf16.gmra.mrb[0].mxu0 0
  %v5816 = vpop.f32.mrb[0].mxu0
  %v5817 = vadd.f32 %v5642, %v5816
  %v5818 = vpop.f32.mrb[0].mxu0
  %v5819 = vadd.f32 %v5646, %v5818
  %v5820 = vpop.f32.mrb[0].mxu0
  %v5821 = vpop.f32.mrb[0].mxu0
  %5822 = vdwg.mxu0
  %5823 = vmatprep.subr.bf16.mxu0 0
  %5824 = vmatpush1.bf16.msra.mxu0 %v5736
  %5825 = vmatprep.subr.bf16.mxu0 0
  %5826 = vmatpush1.bf16.msra.mxu0 %v5739
  %5827 = vmatprep.subr.bf16.mxu0 0
  %5828 = vmatpush1.bf16.msra.mxu0 %v5742
  %5829 = vmatprep.subr.bf16.mxu0 0
  %5830 = vmatpush1.bf16.msra.mxu0 %v5745
  %5831 = vmatprep.subr.bf16.mxu0 0
  %5832 = vmatpush1.bf16.msra.mxu0 %v5748
  %5833 = vmatprep.subr.bf16.mxu0 0
  %5834 = vmatpush1.bf16.msra.mxu0 %v5751
  %5835 = vmatprep.subr.bf16.mxu0 0
  %5836 = vmatpush1.bf16.msra.mxu0 %v5754
  %5837 = vmatprep.subr.bf16.mxu0 0
  %5838 = vmatpush1.bf16.msra.mxu0 %v5757
  %5839 = vmatprep.subr.bf16.mxu0 0
  %5840 = vmatpush1.bf16.msra.mxu0 0
  %5841 = vmatprep.subr.bf16.mxu0 0
  %5842 = vmatpush1.bf16.msra.mxu0 0
  %5843 = vmatprep.subr.bf16.mxu0 0
  %5844 = vmatpush1.bf16.msra.mxu0 0
  %5845 = vmatprep.subr.bf16.mxu0 0
  %5846 = vmatpush1.bf16.msra.mxu0 0
  %5847 = vmatprep.subr.bf16.mxu0 0
  %5848 = vmatpush1.bf16.msra.mxu0 0
  %5849 = vmatprep.subr.bf16.mxu0 0
  %5850 = vmatpush1.bf16.msra.mxu0 0
  %5851 = vmatprep.subr.bf16.mxu0 0
  %5852 = vmatpush1.bf16.msra.mxu0 0
  %5853 = vmatprep.subr.bf16.mxu0 0
  %5854 = vmatpush1.bf16.msra.mxu0 0
  %5855 = vmatprep.mubr.bf16.mxu0 0
  %5856 = vmatmul.mubr.bf16.gmra.mrb[0].mxu0 0
  %v5857 = vpop.f32.mrb[0].mxu0
  %v5858 = vadd.f32 %v5650, %v5857
  %v5859 = vpop.f32.mrb[0].mxu0
  %v5860 = vpop.f32.mrb[0].mxu0
  %v5861 = vpop.f32.mrb[0].mxu0
  %5862 = vdwg.mxu0
  %v5863 = vadd.f32 %v5602, %v5817
  %v5864 = vmul.f32 %v5863, 0.5
  %v5865 = vtanh.pop %v5864
  %v5866 = vmul.f32 %v5865, 0.5
  %v5867 = vadd.f32 %v5866, 0.5
  %v5868 = vadd.f32 %v5603, %v5819
  %v5869 = vmul.f32 %v5868, 0.5
  %v5870 = vtanh.pop %v5869
  %v5871 = vmul.f32 %v5870, 0.5
  %v5872 = vadd.f32 %v5871, 0.5
  %v5873 = vmul.f32 %v5867, %v5858
  %v5874 = vadd.f32 %v5604, %v5873
  %v5875 = vtanh.pop %v5874
  %v5876 = vsub.f32 1.0, %v5872
  %v5877 = vmul.f32 %v5876, %v5875
  %v5878 = vmul.f32 %v5872, 0.0
  %v5879 = vadd.f32 %v5877, %v5878
  %v5880 = vld [vmem:[#allocation2 + $0x18] sm:$0xff]
  %v5881 = vld [vmem:[#allocation2 + $0x20] sm:$0xff]
  %v5882 = vld [vmem:[#allocation2 + $0x28] sm:$0xff]
  %v5883 = vpack.c.bf16 %v5879, %v5879
  %5884 = vmatprep.subr.bf16.mxu0 %v5735
  %5885 = vmatpush1.bf16.msra.mxu0 %v5734
  %5886 = vmatprep.subr.bf16.mxu0 %v5738
  %5887 = vmatpush1.bf16.msra.mxu0 %v5737
  %5888 = vmatprep.subr.bf16.mxu0 %v5741
  %5889 = vmatpush1.bf16.msra.mxu0 %v5740
  %5890 = vmatprep.subr.bf16.mxu0 %v5744
  %5891 = vmatpush1.bf16.msra.mxu0 %v5743
  %5892 = vmatprep.subr.bf16.mxu0 %v5747
  %5893 = vmatpush1.bf16.msra.mxu0 %v5746
  %5894 = vmatprep.subr.bf16.mxu0 %v5750
  %5895 = vmatpush1.bf16.msra.mxu0 %v5749
  %5896 = vmatprep.subr.bf16.mxu0 %v5753
  %5897 = vmatpush1.bf16.msra.mxu0 %v5752
  %5898 = vmatprep.subr.bf16.mxu0 %v5756
  %5899 = vmatpush1.bf16.msra.mxu0 %v5755
  %5900 = vmatprep.subr.bf16.mxu0 0
  %5901 = vmatpush1.bf16.msra.mxu0 0
  %5902 = vmatprep.subr.bf16.mxu0 0
  %5903 = vmatpush1.bf16.msra.mxu0 0
  %5904 = vmatprep.subr.bf16.mxu0 0
  %5905 = vmatpush1.bf16.msra.mxu0 0
  %5906 = vmatprep.subr.bf16.mxu0 0
  %5907 = vmatpush1.bf16.msra.mxu0 0
  %5908 = vmatprep.subr.bf16.mxu0 0
  %5909 = vmatpush1.bf16.msra.mxu0 0
  %5910 = vmatprep.subr.bf16.mxu0 0
  %5911 = vmatpush1.bf16.msra.mxu0 0
  %5912 = vmatprep.subr.bf16.mxu0 0
  %5913 = vmatpush1.bf16.msra.mxu0 0
  %5914 = vmatprep.subr.bf16.mxu0 0
  %5915 = vmatpush1.bf16.msra.mxu0 0
  %5916 = vmatprep.mubr.bf16.mxu0 0
  %5917 = vmatmul.mubr.bf16.gmra.mrb[0].mxu0 %v5883
  %v5918 = vpop.f32.mrb[0].mxu0
  %v5919 = vadd.f32 %v5642, %v5918
  %v5920 = vpop.f32.mrb[0].mxu0
  %v5921 = vadd.f32 %v5646, %v5920
  %v5922 = vpop.f32.mrb[0].mxu0
  %v5923 = vpop.f32.mrb[0].mxu0
  %5924 = vdwg.mxu0
  %5925 = vmatprep.subr.bf16.mxu0 0
  %5926 = vmatpush1.bf16.msra.mxu0 %v5736
  %5927 = vmatprep.subr.bf16.mxu0 0
  %5928 = vmatpush1.bf16.msra.mxu0 %v5739
  %5929 = vmatprep.subr.bf16.mxu0 0
  %5930 = vmatpush1.bf16.msra.mxu0 %v5742
  %5931 = vmatprep.subr.bf16.mxu0 0
  %5932 = vmatpush1.bf16.msra.mxu0 %v5745
  %5933 = vmatprep.subr.bf16.mxu0 0
  %5934 = vmatpush1.bf16.msra.mxu0 %v5748
  %5935 = vmatprep.subr.bf16.mxu0 0
  %5936 = vmatpush1.bf16.msra.mxu0 %v5751
  %5937 = vmatprep.subr.bf16.mxu0 0
  %5938 = vmatpush1.bf16.msra.mxu0 %v5754
  %5939 = vmatprep.subr.bf16.mxu0 0
  %5940 = vmatpush1.bf16.msra.mxu0 %v5757
  %5941 = vmatprep.subr.bf16.mxu0 0
  %5942 = vmatpush1.bf16.msra.mxu0 0
  %5943 = vmatprep.subr.bf16.mxu0 0
  %5944 = vmatpush1.bf16.msra.mxu0 0
  %5945 = vmatprep.subr.bf16.mxu0 0
  %5946 = vmatpush1.bf16.msra.mxu0 0
  %5947 = vmatprep.subr.bf16.mxu0 0
  %5948 = vmatpush1.bf16.msra.mxu0 0
  %5949 = vmatprep.subr.bf16.mxu0 0
  %5950 = vmatpush1.bf16.msra.mxu0 0
  %5951 = vmatprep.subr.bf16.mxu0 0
  %5952 = vmatpush1.bf16.msra.mxu0 0
  %5953 = vmatprep.subr.bf16.mxu0 0
  %5954 = vmatpush1.bf16.msra.mxu0 0
  %5955 = vmatprep.subr.bf16.mxu0 0
  %5956 = vmatpush1.bf16.msra.mxu0 0
  %5957 = vmatprep.mubr.bf16.mxu0 0
  %5958 = vmatmul.mubr.bf16.gmra.mrb[0].mxu0 %v5883
  %v5959 = vpop.f32.mrb[0].mxu0
  %v5960 = vadd.f32 %v5650, %v5959
  %v5961 = vpop.f32.mrb[0].mxu0
  %v5962 = vpop.f32.mrb[0].mxu0
  %v5963 = vpop.f32.mrb[0].mxu0
  %5964 = vdwg.mxu0
  %v5965 = vadd.f32 %v5880, %v5919
  %v5966 = vmul.f32 %v5965, 0.5
  %v5967 = vtanh.pop %v5966
  %v5968 = vmul.f32 %v5967, 0.5
  %v5969 = vadd.f32 %v5968, 0.5
  %v5970 = vadd.f32 %v5881, %v5921
  %v5971 = vmul.f32 %v5970, 0.5
  %v5972 = vtanh.pop %v5971
  %v5973 = vmul.f32 %v5972, 0.5
  %v5974 = vadd.f32 %v5973, 0.5
  %v5975 = vmul.f32 %v5969, %v5960
  %v5976 = vadd.f32 %v5882, %v5975
  %v5977 = vtanh.pop %v5976
  %v5978 = vsub.f32 1.0, %v5974
  %v5979 = vmul.f32 %v5978, %v5977
  %v5980 = vmul.f32 %v5974, %v5879
  %v5981 = vadd.f32 %v5979, %v5980
  %v5982 = vld [vmem:[#allocation2 + $0x30] sm:$0xff]
  %v5983 = vld [vmem:[#allocation2 + $0x38] sm:$0xff]
  %v5984 = vld [vmem:[#allocation2 + $0x40] sm:$0xff]
  %v5985 = vpack.c.bf16 %v5981, %v5981
  %5986 = vmatprep.subr.bf16.mxu0 %v5735
  %5987 = vmatpush1.bf16.msra.mxu0 %v5734
  %5988 = vmatprep.subr.bf16.mxu0 %v5738
  %5989 = vmatpush1.bf16.msra.mxu0 %v5737
  %5990 = vmatprep.subr.bf16.mxu0 %v5741
  %5991 = vmatpush1.bf16.msra.mxu0 %v5740
  %5992 = vmatprep.subr.bf16.mxu0 %v5744
  %5993 = vmatpush1.bf16.msra.mxu0 %v5743
  %5994 = vmatprep.subr.bf16.mxu0 %v5747
  %5995 = vmatpush1.bf16.msra.mxu0 %v5746
  %5996 = vmatprep.subr.bf16.mxu0 %v5750
  %5997 = vmatpush1.bf16.msra.mxu0 %v5749
  %5998 = vmatprep.subr.bf16.mxu0 %v5753
  %5999 = vmatpush1.bf16.msra.mxu0 %v5752
  %6000 = vmatprep.subr.bf16.mxu0 %v5756
  %6001 = vmatpush1.bf16.msra.mxu0 %v5755
  %6002 = vmatprep.subr.bf16.mxu0 0
  %6003 = vmatpush1.bf16.msra.mxu0 0
  %6004 = vmatprep.subr.bf16.mxu0 0
  %6005 = vmatpush1.bf16.msra.mxu0 0
  %6006 = vmatprep.subr.bf16.mxu0 0
  %6007 = vmatpush1.bf16.msra.mxu0 0
  %6008 = vmatprep.subr.bf16.mxu0 0
  %6009 = vmatpush1.bf16.msra.mxu0 0
  %6010 = vmatprep.subr.bf16.mxu0 0
  %6011 = vmatpush1.bf16.msra.mxu0 0
  %6012 = vmatprep.subr.bf16.mxu0 0
  %6013 = vmatpush1.bf16.msra.mxu0 0
  %6014 = vmatprep.subr.bf16.mxu0 0
  %6015 = vmatpush1.bf16.msra.mxu0 0
  %6016 = vmatprep.subr.bf16.mxu0 0
  %6017 = vmatpush1.bf16.msra.mxu0 0
  %6018 = vmatprep.mubr.bf16.mxu0 0
  %6019 = vmatmul.mubr.bf16.gmra.mrb[0].mxu0 %v5985
  %v6020 = vpop.f32.mrb[0].mxu0
  %v6021 = vadd.f32 %v5642, %v6020
  %v6022 = vpop.f32.mrb[0].mxu0
  %v6023 = vadd.f32 %v5646, %v6022
  %v6024 = vpop.f32.mrb[0].mxu0
  %v6025 = vpop.f32.mrb[0].mxu0
  %6026 = vdwg.mxu0
  %6027 = vmatprep.subr.bf16.mxu0 0
  %6028 = vmatpush1.bf16.msra.mxu0 %v5736
  %6029 = vmatprep.subr.bf16.mxu0 0
  %6030 = vmatpush1.bf16.msra.mxu0 %v5739
  %6031 = vmatprep.subr.bf16.mxu0 0
  %6032 = vmatpush1.bf16.msra.mxu0 %v5742
  %6033 = vmatprep.subr.bf16.mxu0 0
  %6034 = vmatpush1.bf16.msra.mxu0 %v5745
  %6035 = vmatprep.subr.bf16.mxu0 0
  %6036 = vmatpush1.bf16.msra.mxu0 %v5748
  %6037 = vmatprep.subr.bf16.mxu0 0
  %6038 = vmatpush1.bf16.msra.mxu0 %v5751
  %6039 = vmatprep.subr.bf16.mxu0 0
  %6040 = vmatpush1.bf16.msra.mxu0 %v5754
  %6041 = vmatprep.subr.bf16.mxu0 0
  %6042 = vmatpush1.bf16.msra.mxu0 %v5757
  %6043 = vmatprep.subr.bf16.mxu0 0
  %6044 = vmatpush1.bf16.msra.mxu0 0
  %6045 = vmatprep.subr.bf16.mxu0 0
  %6046 = vmatpush1.bf16.msra.mxu0 0
  %6047 = vmatprep.subr.bf16.mxu0 0
  %6048 = vmatpush1.bf16.msra.mxu0 0
  %6049 = vmatprep.subr.bf16.mxu0 0
  %6050 = vmatpush1.bf16.msra.mxu0 0
  %6051 = vmatprep.subr.bf16.mxu0 0
  %6052 = vmatpush1.bf16.msra.mxu0 0
  %6053 = vmatprep.subr.bf16.mxu0 0
  %6054 = vmatpush1.bf16.msra.mxu0 0
  %6055 = vmatprep.subr.bf16.mxu0 0
  %6056 = vmatpush1.bf16.msra.mxu0 0
  %6057 = vmatprep.subr.bf16.mxu0 0
  %6058 = vmatpush1.bf16.msra.mxu0 0
  %6059 = vmatprep.mubr.bf16.mxu0 0
  %6060 = vmatmul.mubr.bf16.gmra.mrb[0].mxu0 %v5985
  %v6061 = vpop.f32.mrb[0].mxu0
  %v6062 = vadd.f32 %v5650, %v6061
  %v6063 = vpop.f32.mrb[0].mxu0
  %v6064 = vpop.f32.mrb[0].mxu0
  %v6065 = vpop.f32.mrb[0].mxu0
  %6066 = vdwg.mxu0
  %v6067 = vadd.f32 %v5982, %v6021
  %v6068 = vmul.f32 %v6067, 0.5
  %v6069 = vtanh.pop %v6068
  %v6070 = vmul.f32 %v6069, 0.5
  %v6071 = vadd.f32 %v6070, 0.5
  %v6072 = vadd.f32 %v5983, %v6023
  %v6073 = vmul.f32 %v6072, 0.5
  %v6074 = vtanh.pop %v6073
  %v6075 = vmul.f32 %v6074, 0.5
  %v6076 = vadd.f32 %v6075, 0.5
  %v6077 = vmul.f32 %v6071, %v6062
  %v6078 = vadd.f32 %v5984, %v6077
  %v6079 = vtanh.pop %v6078
  %v6080 = vsub.f32 1.0, %v6076
  %v6081 = vmul.f32 %v6080, %v6079
  %v6082 = vmul.f32 %v6076, %v5981
  %v6083 = vadd.f32 %v6081, %v6082
  %v6084 = vld [vmem:[#allocation2 + $0x48] sm:$0xff]
  %v6085 = vld [vmem:[#allocation2 + $0x50] sm:$0xff]
  %v6086 = vld [vmem:[#allocation2 + $0x58] sm:$0xff]
  %v6087 = vpack.c.bf16 %v6083, %v6083
  %6088 = vmatprep.subr.bf16.mxu0 %v5735
  %6089 = vmatpush1.bf16.msra.mxu0 %v5734
  %6090 = vmatprep.subr.bf16.mxu0 %v5738
  %6091 = vmatpush1.bf16.msra.mxu0 %v5737
  %6092 = vmatprep.subr.bf16.mxu0 %v5741
  %6093 = vmatpush1.bf16.msra.mxu0 %v5740
  %6094 = vmatprep.subr.bf16.mxu0 %v5744
  %6095 = vmatpush1.bf16.msra.mxu0 %v5743
  %6096 = vmatprep.subr.bf16.mxu0 %v5747
  %6097 = vmatpush1.bf16.msra.mxu0 %v5746
  %6098 = vmatprep.subr.bf16.mxu0 %v5750
  %6099 = vmatpush1.bf16.msra.mxu0 %v5749
  %6100 = vmatprep.subr.bf16.mxu0 %v5753
  %6101 = vmatpush1.bf16.msra.mxu0 %v5752
  %6102 = vmatprep.subr.bf16.mxu0 %v5756
  %6103 = vmatpush1.bf16.msra.mxu0 %v5755
  %6104 = vmatprep.subr.bf16.mxu0 0
  %6105 = vmatpush1.bf16.msra.mxu0 0
  %6106 = vmatprep.subr.bf16.mxu0 0
  %6107 = vmatpush1.bf16.msra.mxu0 0
  %6108 = vmatprep.subr.bf16.mxu0 0
  %6109 = vmatpush1.bf16.msra.mxu0 0
  %6110 = vmatprep.subr.bf16.mxu0 0
  %6111 = vmatpush1.bf16.msra.mxu0 0
  %6112 = vmatprep.subr.bf16.mxu0 0
  %6113 = vmatpush1.bf16.msra.mxu0 0
  %6114 = vmatprep.subr.bf16.mxu0 0
  %6115 = vmatpush1.bf16.msra.mxu0 0
  %6116 = vmatprep.subr.bf16.mxu0 0
  %6117 = vmatpush1.bf16.msra.mxu0 0
  %6118 = vmatprep.subr.bf16.mxu0 0
  %6119 = vmatpush1.bf16.msra.mxu0 0
  %6120 = vmatprep.mubr.bf16.mxu0 0
  %6121 = vmatmul.mubr.bf16.gmra.mrb[0].mxu0 %v6087
  %v6122 = vpop.f32.mrb[0].mxu0
  %v6123 = vadd.f32 %v5642, %v6122
  %v6124 = vpop.f32.mrb[0].mxu0
  %v6125 = vadd.f32 %v5646, %v6124
  %v6126 = vpop.f32.mrb[0].mxu0
  %v6127 = vpop.f32.mrb[0].mxu0
  %6128 = vdwg.mxu0
  %6129 = vmatprep.subr.bf16.mxu0 0
  %6130 = vmatpush1.bf16.msra.mxu0 %v5736
  %6131 = vmatprep.subr.bf16.mxu0 0
  %6132 = vmatpush1.bf16.msra.mxu0 %v5739
  %6133 = vmatprep.subr.bf16.mxu0 0
  %6134 = vmatpush1.bf16.msra.mxu0 %v5742
  %6135 = vmatprep.subr.bf16.mxu0 0
  %6136 = vmatpush1.bf16.msra.mxu0 %v5745
  %6137 = vmatprep.subr.bf16.mxu0 0
  %6138 = vmatpush1.bf16.msra.mxu0 %v5748
  %6139 = vmatprep.subr.bf16.mxu0 0
  %6140 = vmatpush1.bf16.msra.mxu0 %v5751
  %6141 = vmatprep.subr.bf16.mxu0 0
  %6142 = vmatpush1.bf16.msra.mxu0 %v5754
  %6143 = vmatprep.subr.bf16.mxu0 0
  %6144 = vmatpush1.bf16.msra.mxu0 %v5757
  %6145 = vmatprep.subr.bf16.mxu0 0
  %6146 = vmatpush1.bf16.msra.mxu0 0
  %6147 = vmatprep.subr.bf16.mxu0 0
  %6148 = vmatpush1.bf16.msra.mxu0 0
  %6149 = vmatprep.subr.bf16.mxu0 0
  %6150 = vmatpush1.bf16.msra.mxu0 0
  %6151 = vmatprep.subr.bf16.mxu0 0
  %6152 = vmatpush1.bf16.msra.mxu0 0
  %6153 = vmatprep.subr.bf16.mxu0 0
  %6154 = vmatpush1.bf16.msra.mxu0 0
  %6155 = vmatprep.subr.bf16.mxu0 0
  %6156 = vmatpush1.bf16.msra.mxu0 0
  %6157 = vmatprep.subr.bf16.mxu0 0
  %6158 = vmatpush1.bf16.msra.mxu0 0
  %6159 = vmatprep.subr.bf16.mxu0 0
  %6160 = vmatpush1.bf16.msra.mxu0 0
  %6161 = vmatprep.mubr.bf16.mxu0 0
  %6162 = vmatmul.mubr.bf16.gmra.mrb[0].mxu0 %v6087
  %v6163 = vpop.f32.mrb[0].mxu0
  %v6164 = vadd.f32 %v5650, %v6163
  %v6165 = vpop.f32.mrb[0].mxu0
  %v6166 = vpop.f32.mrb[0].mxu0
  %v6167 = vpop.f32.mrb[0].mxu0
  %6168 = vdwg.mxu0
  %v6169 = vadd.f32 %v6084, %v6123
  %v6170 = vmul.f32 %v6169, 0.5
  %v6171 = vtanh.pop %v6170
  %v6172 = vmul.f32 %v6171, 0.5
  %v6173 = vadd.f32 %v6172, 0.5
  %v6174 = vadd.f32 %v6085, %v6125
  %v6175 = vmul.f32 %v6174, 0.5
  %v6176 = vtanh.pop %v6175
  %v6177 = vmul.f32 %v6176, 0.5
  %v6178 = vadd.f32 %v6177, 0.5
  %v6179 = vmul.f32 %v6173, %v6164
  %v6180 = vadd.f32 %v6086, %v6179
  %v6181 = vtanh.pop %v6180
  %v6182 = vsub.f32 1.0, %v6178
  %v6183 = vmul.f32 %v6182, %v6181
  %v6184 = vmul.f32 %v6178, %v6083
  %v6185 = vadd.f32 %v6183, %v6184
  %v6186 = vld [vmem:[#allocation2 + $0x60] sm:$0xff]
  %v6187 = vld [vmem:[#allocation2 + $0x68] sm:$0xff]
  %v6188 = vld [vmem:[#allocation2 + $0x70] sm:$0xff]
  %v6189 = vpack.c.bf16 %v6185, %v6185
  %6190 = vmatprep.subr.bf16.mxu0 %v5735
  %6191 = vmatpush1.bf16.msra.mxu0 %v5734
  %6192 = vmatprep.subr.bf16.mxu0 %v5738
  %6193 = vmatpush1.bf16.msra.mxu0 %v5737
  %6194 = vmatprep.subr.bf16.mxu0 %v5741
  %6195 = vmatpush1.bf16.msra.mxu0 %v5740
  %6196 = vmatprep.subr.bf16.mxu0 %v5744
  %6197 = vmatpush1.bf16.msra.mxu0 %v5743
  %6198 = vmatprep.subr.bf16.mxu0 %v5747
  %6199 = vmatpush1.bf16.msra.mxu0 %v5746
  %6200 = vmatprep.subr.bf16.mxu0 %v5750
  %6201 = vmatpush1.bf16.msra.mxu0 %v5749
  %6202 = vmatprep.subr.bf16.mxu0 %v5753
  %6203 = vmatpush1.bf16.msra.mxu0 %v5752
  %6204 = vmatprep.subr.bf16.mxu0 %v5756
  %6205 = vmatpush1.bf16.msra.mxu0 %v5755
  %6206 = vmatprep.subr.bf16.mxu0 0
  %6207 = vmatpush1.bf16.msra.mxu0 0
  %6208 = vmatprep.subr.bf16.mxu0 0
  %6209 = vmatpush1.bf16.msra.mxu0 0
  %6210 = vmatprep.subr.bf16.mxu0 0
  %6211 = vmatpush1.bf16.msra.mxu0 0
  %6212 = vmatprep.subr.bf16.mxu0 0
  %6213 = vmatpush1.bf16.msra.mxu0 0
  %6214 = vmatprep.subr.bf16.mxu0 0
  %6215 = vmatpush1.bf16.msra.mxu0 0
  %6216 = vmatprep.subr.bf16.mxu0 0
  %6217 = vmatpush1.bf16.msra.mxu0 0
  %6218 = vmatprep.subr.bf16.mxu0 0
  %6219 = vmatpush1.bf16.msra.mxu0 0
  %6220 = vmatprep.subr.bf16.mxu0 0
  %6221 = vmatpush1.bf16.msra.mxu0 0
  %6222 = vmatprep.mubr.bf16.mxu0 0
  %6223 = vmatmul.mubr.bf16.gmra.mrb[0].mxu0 %v6189
  %v6224 = vpop.f32.mrb[0].mxu0
  %v6225 = vadd.f32 %v5642, %v6224
  %v6226 = vpop.f32.mrb[0].mxu0
  %v6227 = vadd.f32 %v5646, %v6226
  %v6228 = vpop.f32.mrb[0].mxu0
  %v6229 = vpop.f32.mrb[0].mxu0
  %6230 = vdwg.mxu0
  %6231 = vmatprep.subr.bf16.mxu0 0
  %6232 = vmatpush1.bf16.msra.mxu0 %v5736
  %6233 = vmatprep.subr.bf16.mxu0 0
  %6234 = vmatpush1.bf16.msra.mxu0 %v5739
  %6235 = vmatprep.subr.bf16.mxu0 0
  %6236 = vmatpush1.bf16.msra.mxu0 %v5742
  %6237 = vmatprep.subr.bf16.mxu0 0
  %6238 = vmatpush1.bf16.msra.mxu0 %v5745
  %6239 = vmatprep.subr.bf16.mxu0 0
  %6240 = vmatpush1.bf16.msra.mxu0 %v5748
  %6241 = vmatprep.subr.bf16.mxu0 0
  %6242 = vmatpush1.bf16.msra.mxu0 %v5751
  %6243 = vmatprep.subr.bf16.mxu0 0
  %6244 = vmatpush1.bf16.msra.mxu0 %v5754
  %6245 = vmatprep.subr.bf16.mxu0 0
  %6246 = vmatpush1.bf16.msra.mxu0 %v5757
  %6247 = vmatprep.subr.bf16.mxu0 0
  %6248 = vmatpush1.bf16.msra.mxu0 0
  %6249 = vmatprep.subr.bf16.mxu0 0
  %6250 = vmatpush1.bf16.msra.mxu0 0
  %6251 = vmatprep.subr.bf16.mxu0 0
  %6252 = vmatpush1.bf16.msra.mxu0 0
  %6253 = vmatprep.subr.bf16.mxu0 0
  %6254 = vmatpush1.bf16.msra.mxu0 0
  %6255 = vmatprep.subr.bf16.mxu0 0
  %6256 = vmatpush1.bf16.msra.mxu0 0
  %6257 = vmatprep.subr.bf16.mxu0 0
  %6258 = vmatpush1.bf16.msra.mxu0 0
  %6259 = vmatprep.subr.bf16.mxu0 0
  %6260 = vmatpush1.bf16.msra.mxu0 0
  %6261 = vmatprep.subr.bf16.mxu0 0
  %6262 = vmatpush1.bf16.msra.mxu0 0
  %6263 = vmatprep.mubr.bf16.mxu0 0
  %6264 = vmatmul.mubr.bf16.gmra.mrb[0].mxu0 %v6189
  %v6265 = vpop.f32.mrb[0].mxu0
  %v6266 = vadd.f32 %v5650, %v6265
  %v6267 = vpop.f32.mrb[0].mxu0
  %v6268 = vpop.f32.mrb[0].mxu0
  %v6269 = vpop.f32.mrb[0].mxu0
  %6270 = vdwg.mxu0
  %v6271 = vadd.f32 %v6186, %v6225
  %v6272 = vmul.f32 %v6271, 0.5
  %v6273 = vtanh.pop %v6272
  %v6274 = vmul.f32 %v6273, 0.5
  %v6275 = vadd.f32 %v6274, 0.5
  %v6276 = vadd.f32 %v6187, %v6227
  %v6277 = vmul.f32 %v6276, 0.5
  %v6278 = vtanh.pop %v6277
  %v6279 = vmul.f32 %v6278, 0.5
  %v6280 = vadd.f32 %v6279, 0.5
  %v6281 = vmul.f32 %v6275, %v6266
  %v6282 = vadd.f32 %v6188, %v6281
  %v6283 = vtanh.pop %v6282
  %v6284 = vsub.f32 1.0, %v6280
  %v6285 = vmul.f32 %v6284, %v6283
  %v6286 = vmul.f32 %v6280, %v6185
  %v6287 = vadd.f32 %v6285, %v6286
  %v6288 = vld [vmem:[#allocation2 + $0x78] sm:$0xff]
  %v6289 = vld [vmem:[#allocation2 + $0x80] sm:$0xff]
  %v6290 = vld [vmem:[#allocation2 + $0x88] sm:$0xff]
  %v6291 = vpack.c.bf16 %v6287, %v6287
  %6292 = vmatprep.subr.bf16.mxu0 %v5735
  %6293 = vmatpush1.bf16.msra.mxu0 %v5734
  %6294 = vmatprep.subr.bf16.mxu0 %v5738
  %6295 = vmatpush1.bf16.msra.mxu0 %v5737
  %6296 = vmatprep.subr.bf16.mxu0 %v5741
  %6297 = vmatpush1.bf16.msra.mxu0 %v5740
  %6298 = vmatprep.subr.bf16.mxu0 %v5744
  %6299 = vmatpush1.bf16.msra.mxu0 %v5743
  %6300 = vmatprep.subr.bf16.mxu0 %v5747
  %6301 = vmatpush1.bf16.msra.mxu0 %v5746
  %6302 = vmatprep.subr.bf16.mxu0 %v5750
  %6303 = vmatpush1.bf16.msra.mxu0 %v5749
  %6304 = vmatprep.subr.bf16.mxu0 %v5753
  %6305 = vmatpush1.bf16.msra.mxu0 %v5752
  %6306 = vmatprep.subr.bf16.mxu0 %v5756
  %6307 = vmatpush1.bf16.msra.mxu0 %v5755
  %6308 = vmatprep.subr.bf16.mxu0 0
  %6309 = vmatpush1.bf16.msra.mxu0 0
  %6310 = vmatprep.subr.bf16.mxu0 0
  %6311 = vmatpush1.bf16.msra.mxu0 0
  %6312 = vmatprep.subr.bf16.mxu0 0
  %6313 = vmatpush1.bf16.msra.mxu0 0
  %6314 = vmatprep.subr.bf16.mxu0 0
  %6315 = vmatpush1.bf16.msra.mxu0 0
  %6316 = vmatprep.subr.bf16.mxu0 0
  %6317 = vmatpush1.bf16.msra.mxu0 0
  %6318 = vmatprep.subr.bf16.mxu0 0
  %6319 = vmatpush1.bf16.msra.mxu0 0
  %6320 = vmatprep.subr.bf16.mxu0 0
  %6321 = vmatpush1.bf16.msra.mxu0 0
  %6322 = vmatprep.subr.bf16.mxu0 0
  %6323 = vmatpush1.bf16.msra.mxu0 0
  %6324 = vmatprep.mubr.bf16.mxu0 0
  %6325 = vmatmul.mubr.bf16.gmra.mrb[0].mxu0 %v6291
  %v6326 = vpop.f32.mrb[0].mxu0
  %v6327 = vadd.f32 %v5642, %v6326
  %v6328 = vpop.f32.mrb[0].mxu0
  %v6329 = vadd.f32 %v5646, %v6328
  %v6330 = vpop.f32.mrb[0].mxu0
  %v6331 = vpop.f32.mrb[0].mxu0
  %6332 = vdwg.mxu0
  %6333 = vmatprep.subr.bf16.mxu0 0
  %6334 = vmatpush1.bf16.msra.mxu0 %v5736
  %6335 = vmatprep.subr.bf16.mxu0 0
  %6336 = vmatpush1.bf16.msra.mxu0 %v5739
  %6337 = vmatprep.subr.bf16.mxu0 0
  %6338 = vmatpush1.bf16.msra.mxu0 %v5742
  %6339 = vmatprep.subr.bf16.mxu0 0
  %6340 = vmatpush1.bf16.msra.mxu0 %v5745
  %6341 = vmatprep.subr.bf16.mxu0 0
  %6342 = vmatpush1.bf16.msra.mxu0 %v5748
  %6343 = vmatprep.subr.bf16.mxu0 0
  %6344 = vmatpush1.bf16.msra.mxu0 %v5751
  %6345 = vmatprep.subr.bf16.mxu0 0
  %6346 = vmatpush1.bf16.msra.mxu0 %v5754
  %6347 = vmatprep.subr.bf16.mxu0 0
  %6348 = vmatpush1.bf16.msra.mxu0 %v5757
  %6349 = vmatprep.subr.bf16.mxu0 0
  %6350 = vmatpush1.bf16.msra.mxu0 0
  %6351 = vmatprep.subr.bf16.mxu0 0
  %6352 = vmatpush1.bf16.msra.mxu0 0
  %6353 = vmatprep.subr.bf16.mxu0 0
  %6354 = vmatpush1.bf16.msra.mxu0 0
  %6355 = vmatprep.subr.bf16.mxu0 0
  %6356 = vmatpush1.bf16.msra.mxu0 0
  %6357 = vmatprep.subr.bf16.mxu0 0
  %6358 = vmatpush1.bf16.msra.mxu0 0
  %6359 = vmatprep.subr.bf16.mxu0 0
  %6360 = vmatpush1.bf16.msra.mxu0 0
  %6361 = vmatprep.subr.bf16.mxu0 0
  %6362 = vmatpush1.bf16.msra.mxu0 0
  %6363 = vmatprep.subr.bf16.mxu0 0
  %6364 = vmatpush1.bf16.msra.mxu0 0
  %6365 = vmatprep.mubr.bf16.mxu0 0
  %6366 = vmatmul.mubr.bf16.gmra.mrb[0].mxu0 %v6291
  %v6367 = vpop.f32.mrb[0].mxu0
  %v6368 = vadd.f32 %v5650, %v6367
  %v6369 = vpop.f32.mrb[0].mxu0
  %v6370 = vpop.f32.mrb[0].mxu0
  %v6371 = vpop.f32.mrb[0].mxu0
  %6372 = vdwg.mxu0
  %v6373 = vadd.f32 %v6288, %v6327
  %v6374 = vmul.f32 %v6373, 0.5
  %v6375 = vtanh.pop %v6374
  %v6376 = vmul.f32 %v6375, 0.5
  %v6377 = vadd.f32 %v6376, 0.5
  %v6378 = vadd.f32 %v6289, %v6329
  %v6379 = vmul.f32 %v6378, 0.5
  %v6380 = vtanh.pop %v6379
  %v6381 = vmul.f32 %v6380, 0.5
  %v6382 = vadd.f32 %v6381, 0.5
  %v6383 = vmul.f32 %v6377, %v6368
  %v6384 = vadd.f32 %v6290, %v6383
  %v6385 = vtanh.pop %v6384
  %v6386 = vsub.f32 1.0, %v6382
  %v6387 = vmul.f32 %v6386, %v6385
  %v6388 = vmul.f32 %v6382, %v6287
  %v6389 = vadd.f32 %v6387, %v6388
  %v6390 = vld [vmem:[#allocation2 + $0x90] sm:$0xff]
  %v6391 = vld [vmem:[#allocation2 + $0x98] sm:$0xff]
  %v6392 = vld [vmem:[#allocation2 + $0xa0] sm:$0xff]
  %v6393 = vpack.c.bf16 %v6389, %v6389
  %6394 = vmatprep.subr.bf16.mxu0 %v5735
  %6395 = vmatpush1.bf16.msra.mxu0 %v5734
  %6396 = vmatprep.subr.bf16.mxu0 %v5738
  %6397 = vmatpush1.bf16.msra.mxu0 %v5737
  %6398 = vmatprep.subr.bf16.mxu0 %v5741
  %6399 = vmatpush1.bf16.msra.mxu0 %v5740
  %6400 = vmatprep.subr.bf16.mxu0 %v5744
  %6401 = vmatpush1.bf16.msra.mxu0 %v5743
  %6402 = vmatprep.subr.bf16.mxu0 %v5747
  %6403 = vmatpush1.bf16.msra.mxu0 %v5746
  %6404 = vmatprep.subr.bf16.mxu0 %v5750
  %6405 = vmatpush1.bf16.msra.mxu0 %v5749
  %6406 = vmatprep.subr.bf16.mxu0 %v5753
  %6407 = vmatpush1.bf16.msra.mxu0 %v5752
  %6408 = vmatprep.subr.bf16.mxu0 %v5756
  %6409 = vmatpush1.bf16.msra.mxu0 %v5755
  %6410 = vmatprep.subr.bf16.mxu0 0
  %6411 = vmatpush1.bf16.msra.mxu0 0
  %6412 = vmatprep.subr.bf16.mxu0 0
  %6413 = vmatpush1.bf16.msra.mxu0 0
  %6414 = vmatprep.subr.bf16.mxu0 0
  %6415 = vmatpush1.bf16.msra.mxu0 0
  %6416 = vmatprep.subr.bf16.mxu0 0
  %6417 = vmatpush1.bf16.msra.mxu0 0
  %6418 = vmatprep.subr.bf16.mxu0 0
  %6419 = vmatpush1.bf16.msra.mxu0 0
  %6420 = vmatprep.subr.bf16.mxu0 0
  %6421 = vmatpush1.bf16.msra.mxu0 0
  %6422 = vmatprep.subr.bf16.mxu0 0
  %6423 = vmatpush1.bf16.msra.mxu0 0
  %6424 = vmatprep.subr.bf16.mxu0 0
  %6425 = vmatpush1.bf16.msra.mxu0 0
  %6426 = vmatprep.mubr.bf16.mxu0 0
  %6427 = vmatmul.mubr.bf16.gmra.mrb[0].mxu0 %v6393
  %v6428 = vpop.f32.mrb[0].mxu0
  %v6429 = vadd.f32 %v5642, %v6428
  %v6430 = vpop.f32.mrb[0].mxu0
  %v6431 = vadd.f32 %v5646, %v6430
  %v6432 = vpop.f32.mrb[0].mxu0
  %v6433 = vpop.f32.mrb[0].mxu0
  %6434 = vdwg.mxu0
  %6435 = vmatprep.subr.bf16.mxu0 0
  %6436 = vmatpush1.bf16.msra.mxu0 %v5736
  %6437 = vmatprep.subr.bf16.mxu0 0
  %6438 = vmatpush1.bf16.msra.mxu0 %v5739
  %6439 = vmatprep.subr.bf16.mxu0 0
  %6440 = vmatpush1.bf16.msra.mxu0 %v5742
  %6441 = vmatprep.subr.bf16.mxu0 0
  %6442 = vmatpush1.bf16.msra.mxu0 %v5745
  %6443 = vmatprep.subr.bf16.mxu0 0
  %6444 = vmatpush1.bf16.msra.mxu0 %v5748
  %6445 = vmatprep.subr.bf16.mxu0 0
  %6446 = vmatpush1.bf16.msra.mxu0 %v5751
  %6447 = vmatprep.subr.bf16.mxu0 0
  %6448 = vmatpush1.bf16.msra.mxu0 %v5754
  %6449 = vmatprep.subr.bf16.mxu0 0
  %6450 = vmatpush1.bf16.msra.mxu0 %v5757
  %6451 = vmatprep.subr.bf16.mxu0 0
  %6452 = vmatpush1.bf16.msra.mxu0 0
  %6453 = vmatprep.subr.bf16.mxu0 0
  %6454 = vmatpush1.bf16.msra.mxu0 0
  %6455 = vmatprep.subr.bf16.mxu0 0
  %6456 = vmatpush1.bf16.msra.mxu0 0
  %6457 = vmatprep.subr.bf16.mxu0 0
  %6458 = vmatpush1.bf16.msra.mxu0 0
  %6459 = vmatprep.subr.bf16.mxu0 0
  %6460 = vmatpush1.bf16.msra.mxu0 0
  %6461 = vmatprep.subr.bf16.mxu0 0
  %6462 = vmatpush1.bf16.msra.mxu0 0
  %6463 = vmatprep.subr.bf16.mxu0 0
  %6464 = vmatpush1.bf16.msra.mxu0 0
  %6465 = vmatprep.subr.bf16.mxu0 0
  %6466 = vmatpush1.bf16.msra.mxu0 0
  %6467 = vmatprep.mubr.bf16.mxu0 0
  %6468 = vmatmul.mubr.bf16.gmra.mrb[0].mxu0 %v6393
  %v6469 = vpop.f32.mrb[0].mxu0
  %v6470 = vadd.f32 %v5650, %v6469
  %v6471 = vpop.f32.mrb[0].mxu0
  %v6472 = vpop.f32.mrb[0].mxu0
  %v6473 = vpop.f32.mrb[0].mxu0
  %6474 = vdwg.mxu0
  %v6475 = vadd.f32 %v6390, %v6429
  %v6476 = vmul.f32 %v6475, 0.5
  %v6477 = vtanh.pop %v6476
  %v6478 = vmul.f32 %v6477, 0.5
  %v6479 = vadd.f32 %v6478, 0.5
  %v6480 = vadd.f32 %v6391, %v6431
  %v6481 = vmul.f32 %v6480, 0.5
  %v6482 = vtanh.pop %v6481
  %v6483 = vmul.f32 %v6482, 0.5
  %v6484 = vadd.f32 %v6483, 0.5
  %v6485 = vmul.f32 %v6479, %v6470
  %v6486 = vadd.f32 %v6392, %v6485
  %v6487 = vtanh.pop %v6486
  %v6488 = vsub.f32 1.0, %v6484
  %v6489 = vmul.f32 %v6488, %v6487
  %v6490 = vmul.f32 %v6484, %v6389
  %v6491 = vadd.f32 %v6489, %v6490
  %v6492 = vld [vmem:[#allocation2 + $0xa8] sm:$0xff]
  %v6493 = vld [vmem:[#allocation2 + $0xb0] sm:$0xff]
  %v6494 = vld [vmem:[#allocation2 + $0xb8] sm:$0xff]
  %v6495 = vpack.c.bf16 %v6491, %v6491
  %6496 = vmatprep.subr.bf16.mxu0 %v5735
  %6497 = vmatpush1.bf16.msra.mxu0 %v5734
  %6498 = vmatprep.subr.bf16.mxu0 %v5738
  %6499 = vmatpush1.bf16.msra.mxu0 %v5737
  %6500 = vmatprep.subr.bf16.mxu0 %v5741
  %6501 = vmatpush1.bf16.msra.mxu0 %v5740
  %6502 = vmatprep.subr.bf16.mxu0 %v5744
  %6503 = vmatpush1.bf16.msra.mxu0 %v5743
  %6504 = vmatprep.subr.bf16.mxu0 %v5747
  %6505 = vmatpush1.bf16.msra.mxu0 %v5746
  %6506 = vmatprep.subr.bf16.mxu0 %v5750
  %6507 = vmatpush1.bf16.msra.mxu0 %v5749
  %6508 = vmatprep.subr.bf16.mxu0 %v5753
  %6509 = vmatpush1.bf16.msra.mxu0 %v5752
  %6510 = vmatprep.subr.bf16.mxu0 %v5756
  %6511 = vmatpush1.bf16.msra.mxu0 %v5755
  %6512 = vmatprep.subr.bf16.mxu0 0
  %6513 = vmatpush1.bf16.msra.mxu0 0
  %6514 = vmatprep.subr.bf16.mxu0 0
  %6515 = vmatpush1.bf16.msra.mxu0 0
  %6516 = vmatprep.subr.bf16.mxu0 0
  %6517 = vmatpush1.bf16.msra.mxu0 0
  %6518 = vmatprep.subr.bf16.mxu0 0
  %6519 = vmatpush1.bf16.msra.mxu0 0
  %6520 = vmatprep.subr.bf16.mxu0 0
  %6521 = vmatpush1.bf16.msra.mxu0 0
  %6522 = vmatprep.subr.bf16.mxu0 0
  %6523 = vmatpush1.bf16.msra.mxu0 0
  %6524 = vmatprep.subr.bf16.mxu0 0
  %6525 = vmatpush1.bf16.msra.mxu0 0
  %6526 = vmatprep.subr.bf16.mxu0 0
  %6527 = vmatpush1.bf16.msra.mxu0 0
  %6528 = vmatprep.mubr.bf16.mxu0 0
  %6529 = vmatmul.mubr.bf16.gmra.mrb[0].mxu0 %v6495
  %v6530 = vpop.f32.mrb[0].mxu0
  %v6531 = vadd.f32 %v5642, %v6530
  %v6532 = vpop.f32.mrb[0].mxu0
  %v6533 = vadd.f32 %v5646, %v6532
  %v6534 = vpop.f32.mrb[0].mxu0
  %v6535 = vpop.f32.mrb[0].mxu0
  %6536 = vdwg.mxu0
  %6537 = vmatprep.subr.bf16.mxu0 0
  %6538 = vmatpush1.bf16.msra.mxu0 %v5736
  %6539 = vmatprep.subr.bf16.mxu0 0
  %6540 = vmatpush1.bf16.msra.mxu0 %v5739
  %6541 = vmatprep.subr.bf16.mxu0 0
  %6542 = vmatpush1.bf16.msra.mxu0 %v5742
  %6543 = vmatprep.subr.bf16.mxu0 0
  %6544 = vmatpush1.bf16.msra.mxu0 %v5745
  %6545 = vmatprep.subr.bf16.mxu0 0
  %6546 = vmatpush1.bf16.msra.mxu0 %v5748
  %6547 = vmatprep.subr.bf16.mxu0 0
  %6548 = vmatpush1.bf16.msra.mxu0 %v5751
  %6549 = vmatprep.subr.bf16.mxu0 0
  %6550 = vmatpush1.bf16.msra.mxu0 %v5754
  %6551 = vmatprep.subr.bf16.mxu0 0
  %6552 = vmatpush1.bf16.msra.mxu0 %v5757
  %6553 = vmatprep.subr.bf16.mxu0 0
  %6554 = vmatpush1.bf16.msra.mxu0 0
  %6555 = vmatprep.subr.bf16.mxu0 0
  %6556 = vmatpush1.bf16.msra.mxu0 0
  %6557 = vmatprep.subr.bf16.mxu0 0
  %6558 = vmatpush1.bf16.msra.mxu0 0
  %6559 = vmatprep.subr.bf16.mxu0 0
  %6560 = vmatpush1.bf16.msra.mxu0 0
  %6561 = vmatprep.subr.bf16.mxu0 0
  %6562 = vmatpush1.bf16.msra.mxu0 0
  %6563 = vmatprep.subr.bf16.mxu0 0
  %6564 = vmatpush1.bf16.msra.mxu0 0
  %6565 = vmatprep.subr.bf16.mxu0 0
  %6566 = vmatpush1.bf16.msra.mxu0 0
  %6567 = vmatprep.subr.bf16.mxu0 0
  %6568 = vmatpush1.bf16.msra.mxu0 0
  %6569 = vmatprep.mubr.bf16.mxu0 0
  %6570 = vmatmul.mubr.bf16.gmra.mrb[0].mxu0 %v6495
  %v6571 = vpop.f32.mrb[0].mxu0
  %v6572 = vadd.f32 %v5650, %v6571
  %v6573 = vpop.f32.mrb[0].mxu0
  %v6574 = vpop.f32.mrb[0].mxu0
  %v6575 = vpop.f32.mrb[0].mxu0
  %6576 = vdwg.mxu0
  %v6577 = vadd.f32 %v6492, %v6531
  %v6578 = vmul.f32 %v6577, 0.5
  %v6579 = vtanh.pop %v6578
  %v6580 = vmul.f32 %v6579, 0.5
  %v6581 = vadd.f32 %v6580, 0.5
  %v6582 = vadd.f32 %v6493, %v6533
  %v6583 = vmul.f32 %v6582, 0.5
  %v6584 = vtanh.pop %v6583
  %v6585 = vmul.f32 %v6584, 0.5
  %v6586 = vadd.f32 %v6585, 0.5
  %v6587 = vmul.f32 %v6581, %v6572
  %v6588 = vadd.f32 %v6494, %v6587
  %v6589 = vtanh.pop %v6588
  %v6590 = vsub.f32 1.0, %v6586
  %v6591 = vmul.f32 %v6590, %v6589
  %v6592 = vmul.f32 %v6586, %v6491
  %v6593 = vadd.f32 %v6591, %v6592
  %v6594 = vpack.c.bf16 %v6593, %v6593
  %v6595 = vld [vmem:[%s13] sm:$0xf]
  %v6596 = vld [vmem:[%s13 + $0x4] sm:$0xf]
  %v6597 = vld [vmem:[%s13 + $0x8] sm:$0xf]
  %v6598 = vld [vmem:[%s13 + $0xc] sm:$0xf]
  %v6599 = vld [vmem:[%s13 + $0x10] sm:$0xf]
  %v6600 = vld [vmem:[%s13 + $0x14] sm:$0xf]
  %v6601 = vld [vmem:[%s13 + $0x18] sm:$0xf]
  %v6602 = vld [vmem:[%s13 + $0x1c] sm:$0xf]
  %v6603 = vld [vmem:[%s13 + $0x20] sm:$0xf]
  %v6604 = vld [vmem:[%s13 + $0x24] sm:$0xf]
  %v6605 = vld [vmem:[%s13 + $0x28] sm:$0xf]
  %v6606 = vld [vmem:[%s13 + $0x2c] sm:$0xf]
  %v6607 = vld [vmem:[%s13 + $0x30] sm:$0xf]
  %v6608 = vld [vmem:[%s13 + $0x34] sm:$0xf]
  %v6609 = vld [vmem:[%s13 + $0x38] sm:$0xf]
  %v6610 = vld [vmem:[%s13 + $0x3c] sm:$0xf]
  %v6611 = vld [vmem:[%s14] sm:$0x1]
  %v6613 = vlaneseq
  %v6614 = vshrl.u32 %v6613, 7
  %v6615 = vsub.s32 0, %v6614
  %v6616 = vrot.slane %v6611, %v6615
  %v6634 = vunpack.c.l.b16 %v6595
  %v6635 = vunpack.c.l.b16 %v6596
  %v6636 = vunpack.c.l.b16 %v6597
  %v6637 = vunpack.c.l.b16 %v6598
  %v6638 = vunpack.c.l.b16 %v6599
  %v6639 = vunpack.c.l.b16 %v6600
  %v6640 = vunpack.c.l.b16 %v6601
  %v6641 = vunpack.c.l.b16 %v6602
  %v6642 = vunpack.c.l.b16 %v6603
  %v6643 = vunpack.c.l.b16 %v6604
  %v6644 = vunpack.c.l.b16 %v6605
  %v6645 = vunpack.c.l.b16 %v6606
  %v6646 = vunpack.c.l.b16 %v6607
  %v6647 = vunpack.c.l.b16 %v6608
  %v6648 = vunpack.c.l.b16 %v6609
  %v6649 = vunpack.c.l.b16 %v6610
  %v6650 = vpack.c.b16 %v6635, %v6634
  %v6651 = vpack.c.b16 %v6637, %v6636
  %v6652 = vpack.c.b16 %v6639, %v6638
  %v6653 = vpack.c.b16 %v6641, %v6640
  %v6654 = vpack.c.b16 %v6643, %v6642
  %v6655 = vpack.c.b16 %v6645, %v6644
  %v6656 = vpack.c.b16 %v6647, %v6646
  %v6657 = vpack.c.b16 %v6649, %v6648
  %6666 = vmatprep.subr.bf16.mxu0 0
  %6667 = vmatpush1.bf16.msra.mxu0 %v6650
  %6668 = vmatprep.subr.bf16.mxu0 0
  %6669 = vmatpush1.bf16.msra.mxu0 %v6651
  %6670 = vmatprep.subr.bf16.mxu0 0
  %6671 = vmatpush1.bf16.msra.mxu0 %v6652
  %6672 = vmatprep.subr.bf16.mxu0 0
  %6673 = vmatpush1.bf16.msra.mxu0 %v6653
  %6674 = vmatprep.subr.bf16.mxu0 0
  %6675 = vmatpush1.bf16.msra.mxu0 %v6654
  %6676 = vmatprep.subr.bf16.mxu0 0
  %6677 = vmatpush1.bf16.msra.mxu0 %v6655
  %6678 = vmatprep.subr.bf16.mxu0 0
  %6679 = vmatpush1.bf16.msra.mxu0 %v6656
  %6680 = vmatprep.subr.bf16.mxu0 0
  %6681 = vmatpush1.bf16.msra.mxu0 %v6657
  %6682 = vmatprep.subr.bf16.mxu0 0
  %6683 = vmatpush1.bf16.msra.mxu0 0
  %6684 = vmatprep.subr.bf16.mxu0 0
  %6685 = vmatpush1.bf16.msra.mxu0 0
  %6686 = vmatprep.subr.bf16.mxu0 0
  %6687 = vmatpush1.bf16.msra.mxu0 0
  %6688 = vmatprep.subr.bf16.mxu0 0
  %6689 = vmatpush1.bf16.msra.mxu0 0
  %6690 = vmatprep.subr.bf16.mxu0 0
  %6691 = vmatpush1.bf16.msra.mxu0 0
  %6692 = vmatprep.subr.bf16.mxu0 0
  %6693 = vmatpush1.bf16.msra.mxu0 0
  %6694 = vmatprep.subr.bf16.mxu0 0
  %6695 = vmatpush1.bf16.msra.mxu0 0
  %6696 = vmatprep.subr.bf16.mxu0 0
  %6697 = vmatpush1.bf16.msra.mxu0 0
  %6698 = vmatprep.mubr.bf16.mxu0 0
  %6699 = vmatmul.mubr.bf16.gmra.mrb[0].mxu0 %v6594
  %v6700 = vpop.f32.mrb[0].mxu0
  %v6701 = vadd.f32 %v6616, %v6700
  %v6702 = vpop.f32.mrb[0].mxu0
  %v6703 = vpop.f32.mrb[0].mxu0
  %v6704 = vpop.f32.mrb[0].mxu0
  %6705 = vdwg.mxu0
  %v6706 = vmax.f32 %v6701, 0.0
  %6707 = vst [vmem:[%s15] sm:$0xff] %v6706
  // Predicated region
  $region62: #{gru_model_forward.1} parent=0 // pred_check
    _
  $region63: #{gru_model_forward.1} parent=0 // pred_check_branch
    %6709 = sbr.rel (0) target = $region65
  $region64: #{gru_model_forward.1} parent=0 // pred_region
    _
  $region65: #{gru_model_forward.1} parent=0 // pred_fallthru
    _
  // Predicated region
  $region66: #{gru_model_forward.1} parent=0 // pred_check
    _
  $region67: #{gru_model_forward.1} parent=0 // pred_check_branch
    %6711 = sbr.rel (0) target = $region69
  $region68: #{gru_model_forward.1} parent=0 // pred_region
    _
  $region69: #{gru_model_forward.1} parent=0 // pred_fallthru
    _

</llo_original>
